<compile_context>
chip_gen: v5e
topology: v5e:2x2
jax: 0.10.0
libtpu: 0.0.40
codegen_flags: <defaults>
</compile_context>

<pallas_src>
import functools

import jax
import jax.numpy as jnp
from jax.experimental import pallas as pl
from jax.experimental.pallas import tpu as pltpu

EPS = 1e-5
_TILE_M = 512                      # row tile (output pixels per grid step)
_VMEM_LIMIT = 32 * 1024 * 1024     # explicit scoped-VMEM budget (safe on v5e/v6e/v7x)

# Sub-pixel decomposition tables for ConvTranspose2d(kernel=4, stride=2, pad=1):
#   out[2*m + py] = x_pad[m + _SHIFT[py][dy]] * W[..., _KIDX[py][dy]]  summed over dy
# (same along the x axis with px/dx), where x_pad is the input zero-padded by 1.
_SHIFT = ((0, 1), (1, 2))
_KIDX = ((3, 1), (2, 0))


def _round_up(x, m):
    return (x + m - 1) // m * m


# --------------------------------------------------------------------------------------
# Layer 1: ConvTranspose2d(dim_z, 8*ngf, 4, 1, 0) + BN + ReLU  (a single small matmul)
# --------------------------------------------------------------------------------------
def _head_kernel(z_ref, w_ref, g_ref, b_ref, o_ref, *, n_rows, n_spatial, n_chan, eps):
    z = z_ref[...]                                                   # (N, dim_z) bf16
    y = jnp.dot(z, w_ref[...], preferred_element_type=jnp.float32)   # (N, S*C) f32
    # one-sweep BatchNorm2d stats per channel, pooled over batch and the S=16 positions
    s_sum = jnp.zeros((1, n_chan), jnp.float32)
    s_sq = jnp.zeros((1, n_chan), jnp.float32)
    for s in range(n_spatial):
        ys = y[:, s * n_chan:(s + 1) * n_chan]
        s_sum = s_sum + jnp.sum(ys, axis=0, keepdims=True)
        s_sq = s_sq + jnp.sum(ys * ys, axis=0, keepdims=True)
    inv_cnt = 1.0 / float(n_rows * n_spatial)
    mean = s_sum * inv_cnt
    var = s_sq * inv_cnt - mean * mean
    rstd = jax.lax.rsqrt(var + eps)
    g = g_ref[...]
    b = b_ref[...]
    for s in range(n_spatial):
        ys = y[:, s * n_chan:(s + 1) * n_chan]
        yn = (ys - mean) * rstd * g + b
        o_ref[:, s * n_chan:(s + 1) * n_chan] = jnp.maximum(yn, 0.0).astype(o_ref.dtype)


def _head_call(z, w1m, g1, b1):
    n = z.shape[0]
    c1 = g1.shape[-1]
    s_sp = w1m.shape[-1] // c1   # 16 spatial positions (4x4)
    kern = functools.partial(_head_kernel, n_rows=n, n_spatial=s_sp, n_chan=c1, eps=EPS)
    vmem = pl.BlockSpec(memory_space=pltpu.MemorySpace.VMEM)
    return pl.pallas_call(
        kern,
        out_shape=jax.ShapeDtypeStruct((n, s_sp * c1), jnp.bfloat16),
        in_specs=[vmem, vmem, vmem, vmem],
        out_specs=vmem,
        compiler_params=pltpu.CompilerParams(vmem_limit_bytes=_VMEM_LIMIT),
    )(z, w1m, g1, b1)


# --------------------------------------------------------------------------------------
# im2col for ConvTranspose2d(k=4, s=2, p=1): 4 phases, each a 2x2-window matmul
# --------------------------------------------------------------------------------------
def _im2col_phases(a, w):
    """a: (N,H,W,Cin) bf16, w: (Cin,Cout,4,4) bf16.

    Returns X (4, N*H*W, 4*Cin) and Wm (4, 4*Cin, Cout); phase index = 2*py + px.
    """
    n, h, wd, cin = a.shape
    ap = jnp.pad(a, ((0, 0), (1, 1), (1, 1), (0, 0)))
    xs, ws = [], []
    for py in range(2):
        for px in range(2):
            cols, rows = [], []
            for dy in range(2):
                sy, ky = _SHIFT[py][dy], _KIDX[py][dy]
                for dx in range(2):
                    sx, kx = _SHIFT[px][dx], _KIDX[px][dx]
                    cols.append(ap[:, sy:sy + h, sx:sx + wd, :])
                    rows.append(w[:, :, ky, kx])
            xs.append(jnp.concatenate(cols, axis=-1).reshape(n * h * wd, 4 * cin))
            ws.append(jnp.concatenate(rows, axis=0))
    return jnp.stack(xs, axis=0), jnp.stack(ws, axis=0)


def _pixel_shuffle(out4, n, h, wd, cout):
    """(4, N*H*W, C) phase outputs -> (N, 2H, 2W, C)."""
    y6 = out4.reshape(2, 2, n, h, wd, cout)
    return jnp.transpose(y6, (2, 3, 0, 4, 1, 5)).reshape(n, 2 * h, 2 * wd, cout)


# --------------------------------------------------------------------------------------
# Layers 2-4: ConvTranspose2d(4,2,1) + BN2d (batch stats) + ReLU, fused, tiled over rows
# --------------------------------------------------------------------------------------
def _convt_bn_relu_kernel(x_ref, w_ref, g_ref, b_ref, o_ref, sum_ref, sq_ref,
                          *, inv_count, eps):
    p = pl.program_id(0)    # 0: accumulate global stats, 1: normalize + write
    ph = pl.program_id(1)   # sub-pixel phase
    t = pl.program_id(2)    # row tile

    # bf16 x bf16 -> f32 MXU matmul (recomputed on both passes; cheaper than an extra
    # HBM round-trip of the raw activations for these mem-bound shapes).
    y = jnp.dot(x_ref[0], w_ref[0], preferred_element_type=jnp.float32)   # (TM, Cout)

    @pl.when(p == 0)
    def _():
        @pl.when((ph == 0) & (t == 0))
        def _():
            sum_ref[...] = jnp.zeros_like(sum_ref)
            sq_ref[...] = jnp.zeros_like(sq_ref)
        sum_ref[...] = sum_ref[...] + jnp.sum(y, axis=0, keepdims=True)
        sq_ref[...] = sq_ref[...] + jnp.sum(y * y, axis=0, keepdims=True)

    @pl.when(p == 1)
    def _():
        mean = sum_ref[...] * inv_count
        var = sq_ref[...] * inv_count - mean * mean
        rstd = jax.lax.rsqrt(var + eps)
        yn = (y - mean) * rstd * g_ref[...] + b_ref[...]
        o_ref[0] = jnp.maximum(yn, 0.0).astype(o_ref.dtype)


def _convt_bn_relu_call(a, w, g, b):
    n, h, wd, cin = a.shape
    cout = w.shape[1]
    x_all, w_all = _im2col_phases(a, w)          # (4, M, 4Cin) bf16, (4, 4Cin, Cout) bf16
    m = n * h * wd
    k = 4 * cin
    tm = min(_TILE_M, _round_up(m, 16))
    m_pad = _round_up(m, tm)
    if m_pad != m:
        # zero rows contribute nothing to sum/sumsq; count uses the true M below.
        x_all = jnp.pad(x_all, ((0, 0), (0, m_pad - m), (0, 0)))
    n_tiles = m_pad // tm

    kern = functools.partial(_convt_bn_relu_kernel,
                             inv_count=1.0 / float(4 * m), eps=EPS)
    out = pl.pallas_call(
        kern,
        out_shape=jax.ShapeDtypeStruct((4, m_pad, cout), jnp.bfloat16),
        grid=(2, 4, n_tiles),
        in_specs=[
            pl.BlockSpec((1, tm, k), lambda p, ph, t: (ph, t, 0)),      # streamed x tiles
            pl.BlockSpec((1, k, cout), lambda p, ph, t: (ph, 0, 0)),    # per-phase weight
            pl.BlockSpec((1, cout), lambda p, ph, t: (0, 0)),           # gamma (resident)
            pl.BlockSpec((1, cout), lambda p, ph, t: (0, 0)),           # beta  (resident)
        ],
        out_specs=pl.BlockSpec((1, tm, cout), lambda p, ph, t: (ph, t, 0)),
        scratch_shapes=[pltpu.VMEM((1, cout), jnp.float32),
                        pltpu.VMEM((1, cout), jnp.float32)],
        compiler_params=pltpu.CompilerParams(
            # stats scratch is shared across every grid step -> all axes "arbitrary"
            dimension_semantics=("arbitrary", "arbitrary", "arbitrary"),
            vmem_limit_bytes=_VMEM_LIMIT),
    )(x_all, w_all, g, b)

    return _pixel_shuffle(out[:, :m, :], n, h, wd, cout)


# --------------------------------------------------------------------------------------
# Layer 5: ConvTranspose2d(ngf, n_channels, 4, 2, 1) + Tanh (no BN -> single pass)
# --------------------------------------------------------------------------------------
def _convt_tanh_kernel(x_ref, w_ref, o_ref):
    y = jnp.dot(x_ref[0], w_ref[0], preferred_element_type=jnp.float32)
    o_ref[0] = jnp.tanh(y)


def _convt_tanh_call(a, w):
    n, h, wd, cin = a.shape
    cout = w.shape[1]
    x_all, w_all = _im2col_phases(a, w)
    m = n * h * wd
    k = 4 * cin
    tm = min(_TILE_M, _round_up(m, 16))
    m_pad = _round_up(m, tm)
    if m_pad != m:
        x_all = jnp.pad(x_all, ((0, 0), (0, m_pad - m), (0, 0)))
    n_tiles = m_pad // tm

    out = pl.pallas_call(
        _convt_tanh_kernel,
        out_shape=jax.ShapeDtypeStruct((4, m_pad, cout), jnp.float32),
        grid=(4, n_tiles),
        in_specs=[
            pl.BlockSpec((1, tm, k), lambda ph, t: (ph, t, 0)),
            pl.BlockSpec((1, k, cout), lambda ph, t: (ph, 0, 0)),
        ],
        out_specs=pl.BlockSpec((1, tm, cout), lambda ph, t: (ph, t, 0)),
        compiler_params=pltpu.CompilerParams(
            dimension_semantics=("parallel", "parallel"),   # independent -> 2 TCs on v7x
            vmem_limit_bytes=_VMEM_LIMIT),
    )(x_all, w_all)

    return _pixel_shuffle(out[:, :m, :], n, h, wd, cout)


# --------------------------------------------------------------------------------------
# Full forward
# --------------------------------------------------------------------------------------
def frame_generator_forward(z, params):
    """FrameGenerator.forward with training-mode BatchNorm (batch statistics)."""
    z = z.reshape(z.shape[0], -1)            # PyTorch: z.view(N, dim_z, 1, 1)
    n = z.shape[0]
    c1 = params["g1"].shape[-1]

    a = _head_call(z.astype(jnp.bfloat16), params["w1m"], params["g1"], params["b1"])
    a = a.reshape(n, 4, 4, c1)                                            # NHWC 4x4

    a = _convt_bn_relu_call(a, params["w2"], params["g2"], params["b2"])  # 8x8
    a = _convt_bn_relu_call(a, params["w3"], params["g3"], params["b3"])  # 16x16
    a = _convt_bn_relu_call(a, params["w4"], params["g4"], params["b4"])  # 32x32
    x = _convt_tanh_call(a, params["w5"])                                 # 64x64, f32

    return jnp.transpose(x, (0, 3, 1, 2))    # NCHW, same layout as the PyTorch module


# --------------------------------------------------------------------------------------
# Parameters + reference
# --------------------------------------------------------------------------------------
def init_params(key, dim_z, ngf, n_channels):
    """Deterministic synthetic f32 master parameters (PyTorch layouts)."""
    chans = [dim_z, 8 * ngf, 4 * ngf, 2 * ngf, ngf, n_channels]
    ks = jax.random.split(key, 16)
    p = {}
    ki = 0
    for i in range(5):
        cin, cout = chans[i], chans[i + 1]
        std = 1.0 / (cin * 16) ** 0.5
        p[f"w{i + 1}"] = std * jax.random.normal(ks[ki], (cin, cout, 4, 4), jnp.float32)
        ki += 1
        if i < 4:
            p[f"g{i + 1}"] = 1.0 + 0.1 * jax.random.normal(ks[ki], (cout,), jnp.float32)
            ki += 1
            p[f"b{i + 1}"] = 0.1 * jax.random.normal(ks[ki], (cout,), jnp.float32)
            ki += 1
    return p


def prepare_params(master):
    """Kernel-side layouts: bf16 weights, (1, C) f32 BN affine, flattened layer-1 weight."""
    dim_z, c1 = master["w1"].shape[0], master["w1"].shape[1]
    w1m = jnp.transpose(master["w1"], (0, 2, 3, 1)).reshape(dim_z, 16 * c1)
    p = {"w1m": w1m.astype(jnp.bfloat16)}
    for i in (2, 3, 4, 5):
        p[f"w{i}"] = master[f"w{i}"].astype(jnp.bfloat16)
    for i in (1, 2, 3, 4):
        p[f"g{i}"] = master[f"g{i}"].reshape(1, -1)
        p[f"b{i}"] = master[f"b{i}"].reshape(1, -1)
    return p


def _reference_forward(z, master):
    """Pure-XLA reference (lhs-dilated convs == ConvTranspose2d), with the same bf16
    casts on matmul inputs / inter-layer activations as the kernel path."""
    x = z.reshape(z.shape[0], -1, 1, 1).astype(jnp.bfloat16)

    def convt(x, w, stride, pad):
        wt = jnp.transpose(jnp.flip(w, axis=(2, 3)), (1, 0, 2, 3)).astype(jnp.bfloat16)
        return jax.lax.conv_general_dilated(
            x.astype(jnp.bfloat16), wt, window_strides=(1, 1),
            padding=[(3 - pad, 3 - pad)] * 2, lhs_dilation=(stride, stride),
            dimension_numbers=("NCHW", "OIHW", "NCHW"),
            preferred_element_type=jnp.float32)

    def bn_relu(y, g, b):
        mu = jnp.mean(y, axis=(0, 2, 3), keepdims=True)
        var = jnp.mean((y - mu) ** 2, axis=(0, 2, 3), keepdims=True)
        yn = ((y - mu) * jax.lax.rsqrt(var + EPS) * g.reshape(1, -1, 1, 1)
              + b.reshape(1, -1, 1, 1))
        return jnp.maximum(yn, 0.0).astype(jnp.bfloat16)

    h = bn_relu(convt(x, master["w1"], 1, 0), master["g1"], master["b1"])
    h = bn_relu(convt(h, master["w2"], 2, 1), master["g2"], master["b2"])
    h = bn_relu(convt(h, master["w3"], 2, 1), master["g3"], master["b3"])
    h = bn_relu(convt(h, master["w4"], 2, 1), master["g4"], master["b4"])
    return jnp.tanh(convt(h, master["w5"], 2, 1))


if __name__ == "__main__":
    key = jax.random.PRNGKey(0)
    kz, kp = jax.random.split(key)

    n_channels, dim_z_content, dim_z_motion, ngf = 3, 24, 8, 32
    dim_z = dim_z_content + dim_z_motion
    batch = 2

    z = jax.random.normal(kz, (batch, dim_z), jnp.float32)
    master = init_params(kp, dim_z, ngf, n_channels)
    params = prepare_params(master)

    fwd = jax.jit(frame_generator_forward)
    out = jax.block_until_ready(fwd(z, params))

    assert out.shape == (batch, n_channels, 64, 64), out.shape
    ref = _reference_forward(z, master)
    err = float(jnp.max(jnp.abs(out - ref)))
    assert err < 5e-2, f"max abs err {err}"
    print("KERNEL_OK")
</pallas_src>

<mosaic_0001>
module attributes {stable_mosaic.version = 11 : i64} {
  func.func @_head_kernel(%arg0: memref<2x32xbf16, #tpu.memory_space<vmem>>, %arg1: memref<32x4096xbf16, #tpu.memory_space<vmem>>, %arg2: memref<1x256xf32, #tpu.memory_space<vmem>>, %arg3: memref<1x256xf32, #tpu.memory_space<vmem>>, %arg4: memref<2x4096xbf16, #tpu.memory_space<vmem>>) attributes {dimension_semantics = [], scalar_prefetch = 0 : i64, scratch_operands = 0 : i64, tpu.core_type = #tpu.core_type<tc>} {
    %c0 = arith.constant 0 : index
    %c0_0 = arith.constant 0 : index
    %0 = vector.load %arg0[%c0, %c0_0] : memref<2x32xbf16, #tpu.memory_space<vmem>>, vector<2x32xbf16>
    %c0_1 = arith.constant 0 : index
    %c0_2 = arith.constant 0 : index
    %1 = vector.load %arg1[%c0_1, %c0_2] : memref<32x4096xbf16, #tpu.memory_space<vmem>>, vector<32x4096xbf16>
    %cst = arith.constant dense<0.000000e+00> : vector<2x4096xf32>
    %2 = tpu.matmul %0, %1, %cst {dimension_numbers = #tpu.dot_dimension_numbers<[1], [0], [0], [1], [0, 0, 1, 1], [], []>} : vector<2x32xbf16>, vector<32x4096xbf16>, vector<2x4096xf32> -> vector<2x4096xf32>
    %cst_3 = arith.constant 0.000000e+00 : f32
    %3 = vector.broadcast %cst_3 : f32 to vector<1x256xf32>
    %cst_4 = arith.constant 0.000000e+00 : f32
    %4 = vector.broadcast %cst_4 : f32 to vector<1x256xf32>
    %5 = vector.extract_strided_slice %2 {offsets = [0, 0], sizes = [2, 256], strides = [1, 1]} : vector<2x4096xf32> to vector<2x256xf32>
    %cst_5 = arith.constant dense<0.000000e+00> : vector<256xf32>
    %6 = vector.multi_reduction <add>, %5, %cst_5 [0] : vector<2x256xf32> to vector<256xf32>
    %7 = vector.shape_cast %6 : vector<256xf32> to vector<1x256xf32>
    %8 = arith.addf %3, %7 : vector<1x256xf32>
    %9 = arith.mulf %5, %5 : vector<2x256xf32>
    %cst_6 = arith.constant dense<0.000000e+00> : vector<256xf32>
    %10 = vector.multi_reduction <add>, %9, %cst_6 [0] : vector<2x256xf32> to vector<256xf32>
    %11 = vector.shape_cast %10 : vector<256xf32> to vector<1x256xf32>
    %12 = arith.addf %4, %11 : vector<1x256xf32>
    %13 = vector.extract_strided_slice %2 {offsets = [0, 256], sizes = [2, 256], strides = [1, 1]} : vector<2x4096xf32> to vector<2x256xf32>
    %cst_7 = arith.constant dense<0.000000e+00> : vector<256xf32>
    %14 = vector.multi_reduction <add>, %13, %cst_7 [0] : vector<2x256xf32> to vector<256xf32>
    %15 = vector.shape_cast %14 : vector<256xf32> to vector<1x256xf32>
    %16 = arith.addf %8, %15 : vector<1x256xf32>
    %17 = arith.mulf %13, %13 : vector<2x256xf32>
    %cst_8 = arith.constant dense<0.000000e+00> : vector<256xf32>
    %18 = vector.multi_reduction <add>, %17, %cst_8 [0] : vector<2x256xf32> to vector<256xf32>
    %19 = vector.shape_cast %18 : vector<256xf32> to vector<1x256xf32>
    %20 = arith.addf %12, %19 : vector<1x256xf32>
    %21 = vector.extract_strided_slice %2 {offsets = [0, 512], sizes = [2, 256], strides = [1, 1]} : vector<2x4096xf32> to vector<2x256xf32>
    %cst_9 = arith.constant dense<0.000000e+00> : vector<256xf32>
    %22 = vector.multi_reduction <add>, %21, %cst_9 [0] : vector<2x256xf32> to vector<256xf32>
    %23 = vector.shape_cast %22 : vector<256xf32> to vector<1x256xf32>
    %24 = arith.addf %16, %23 : vector<1x256xf32>
    %25 = arith.mulf %21, %21 : vector<2x256xf32>
    %cst_10 = arith.constant dense<0.000000e+00> : vector<256xf32>
    %26 = vector.multi_reduction <add>, %25, %cst_10 [0] : vector<2x256xf32> to vector<256xf32>
    %27 = vector.shape_cast %26 : vector<256xf32> to vector<1x256xf32>
    %28 = arith.addf %20, %27 : vector<1x256xf32>
    %29 = vector.extract_strided_slice %2 {offsets = [0, 768], sizes = [2, 256], strides = [1, 1]} : vector<2x4096xf32> to vector<2x256xf32>
    %cst_11 = arith.constant dense<0.000000e+00> : vector<256xf32>
    %30 = vector.multi_reduction <add>, %29, %cst_11 [0] : vector<2x256xf32> to vector<256xf32>
    %31 = vector.shape_cast %30 : vector<256xf32> to vector<1x256xf32>
    %32 = arith.addf %24, %31 : vector<1x256xf32>
    %33 = arith.mulf %29, %29 : vector<2x256xf32>
    %cst_12 = arith.constant dense<0.000000e+00> : vector<256xf32>
    %34 = vector.multi_reduction <add>, %33, %cst_12 [0] : vector<2x256xf32> to vector<256xf32>
    %35 = vector.shape_cast %34 : vector<256xf32> to vector<1x256xf32>
    %36 = arith.addf %28, %35 : vector<1x256xf32>
    %37 = vector.extract_strided_slice %2 {offsets = [0, 1024], sizes = [2, 256], strides = [1, 1]} : vector<2x4096xf32> to vector<2x256xf32>
    %cst_13 = arith.constant dense<0.000000e+00> : vector<256xf32>
    %38 = vector.multi_reduction <add>, %37, %cst_13 [0] : vector<2x256xf32> to vector<256xf32>
    %39 = vector.shape_cast %38 : vector<256xf32> to vector<1x256xf32>
    %40 = arith.addf %32, %39 : vector<1x256xf32>
    %41 = arith.mulf %37, %37 : vector<2x256xf32>
    %cst_14 = arith.constant dense<0.000000e+00> : vector<256xf32>
    %42 = vector.multi_reduction <add>, %41, %cst_14 [0] : vector<2x256xf32> to vector<256xf32>
    %43 = vector.shape_cast %42 : vector<256xf32> to vector<1x256xf32>
    %44 = arith.addf %36, %43 : vector<1x256xf32>
    %45 = vector.extract_strided_slice %2 {offsets = [0, 1280], sizes = [2, 256], strides = [1, 1]} : vector<2x4096xf32> to vector<2x256xf32>
    %cst_15 = arith.constant dense<0.000000e+00> : vector<256xf32>
    %46 = vector.multi_reduction <add>, %45, %cst_15 [0] : vector<2x256xf32> to vector<256xf32>
    %47 = vector.shape_cast %46 : vector<256xf32> to vector<1x256xf32>
    %48 = arith.addf %40, %47 : vector<1x256xf32>
    %49 = arith.mulf %45, %45 : vector<2x256xf32>
    %cst_16 = arith.constant dense<0.000000e+00> : vector<256xf32>
    %50 = vector.multi_reduction <add>, %49, %cst_16 [0] : vector<2x256xf32> to vector<256xf32>
    %51 = vector.shape_cast %50 : vector<256xf32> to vector<1x256xf32>
    %52 = arith.addf %44, %51 : vector<1x256xf32>
    %53 = vector.extract_strided_slice %2 {offsets = [0, 1536], sizes = [2, 256], strides = [1, 1]} : vector<2x4096xf32> to vector<2x256xf32>
    %cst_17 = arith.constant dense<0.000000e+00> : vector<256xf32>
    %54 = vector.multi_reduction <add>, %53, %cst_17 [0] : vector<2x256xf32> to vector<256xf32>
    %55 = vector.shape_cast %54 : vector<256xf32> to vector<1x256xf32>
    %56 = arith.addf %48, %55 : vector<1x256xf32>
    %57 = arith.mulf %53, %53 : vector<2x256xf32>
    %cst_18 = arith.constant dense<0.000000e+00> : vector<256xf32>
    %58 = vector.multi_reduction <add>, %57, %cst_18 [0] : vector<2x256xf32> to vector<256xf32>
    %59 = vector.shape_cast %58 : vector<256xf32> to vector<1x256xf32>
    %60 = arith.addf %52, %59 : vector<1x256xf32>
    %61 = vector.extract_strided_slice %2 {offsets = [0, 1792], sizes = [2, 256], strides = [1, 1]} : vector<2x4096xf32> to vector<2x256xf32>
    %cst_19 = arith.constant dense<0.000000e+00> : vector<256xf32>
    %62 = vector.multi_reduction <add>, %61, %cst_19 [0] : vector<2x256xf32> to vector<256xf32>
    %63 = vector.shape_cast %62 : vector<256xf32> to vector<1x256xf32>
    %64 = arith.addf %56, %63 : vector<1x256xf32>
    %65 = arith.mulf %61, %61 : vector<2x256xf32>
    %cst_20 = arith.constant dense<0.000000e+00> : vector<256xf32>
    %66 = vector.multi_reduction <add>, %65, %cst_20 [0] : vector<2x256xf32> to vector<256xf32>
    %67 = vector.shape_cast %66 : vector<256xf32> to vector<1x256xf32>
    %68 = arith.addf %60, %67 : vector<1x256xf32>
    %69 = vector.extract_strided_slice %2 {offsets = [0, 2048], sizes = [2, 256], strides = [1, 1]} : vector<2x4096xf32> to vector<2x256xf32>
    %cst_21 = arith.constant dense<0.000000e+00> : vector<256xf32>
    %70 = vector.multi_reduction <add>, %69, %cst_21 [0] : vector<2x256xf32> to vector<256xf32>
    %71 = vector.shape_cast %70 : vector<256xf32> to vector<1x256xf32>
    %72 = arith.addf %64, %71 : vector<1x256xf32>
    %73 = arith.mulf %69, %69 : vector<2x256xf32>
    %cst_22 = arith.constant dense<0.000000e+00> : vector<256xf32>
    %74 = vector.multi_reduction <add>, %73, %cst_22 [0] : vector<2x256xf32> to vector<256xf32>
    %75 = vector.shape_cast %74 : vector<256xf32> to vector<1x256xf32>
    %76 = arith.addf %68, %75 : vector<1x256xf32>
    %77 = vector.extract_strided_slice %2 {offsets = [0, 2304], sizes = [2, 256], strides = [1, 1]} : vector<2x4096xf32> to vector<2x256xf32>
    %cst_23 = arith.constant dense<0.000000e+00> : vector<256xf32>
    %78 = vector.multi_reduction <add>, %77, %cst_23 [0] : vector<2x256xf32> to vector<256xf32>
    %79 = vector.shape_cast %78 : vector<256xf32> to vector<1x256xf32>
    %80 = arith.addf %72, %79 : vector<1x256xf32>
    %81 = arith.mulf %77, %77 : vector<2x256xf32>
    %cst_24 = arith.constant dense<0.000000e+00> : vector<256xf32>
    %82 = vector.multi_reduction <add>, %81, %cst_24 [0] : vector<2x256xf32> to vector<256xf32>
    %83 = vector.shape_cast %82 : vector<256xf32> to vector<1x256xf32>
    %84 = arith.addf %76, %83 : vector<1x256xf32>
    %85 = vector.extract_strided_slice %2 {offsets = [0, 2560], sizes = [2, 256], strides = [1, 1]} : vector<2x4096xf32> to vector<2x256xf32>
    %cst_25 = arith.constant dense<0.000000e+00> : vector<256xf32>
    %86 = vector.multi_reduction <add>, %85, %cst_25 [0] : vector<2x256xf32> to vector<256xf32>
    %87 = vector.shape_cast %86 : vector<256xf32> to vector<1x256xf32>
    %88 = arith.addf %80, %87 : vector<1x256xf32>
    %89 = arith.mulf %85, %85 : vector<2x256xf32>
    %cst_26 = arith.constant dense<0.000000e+00> : vector<256xf32>
    %90 = vector.multi_reduction <add>, %89, %cst_26 [0] : vector<2x256xf32> to vector<256xf32>
    %91 = vector.shape_cast %90 : vector<256xf32> to vector<1x256xf32>
    %92 = arith.addf %84, %91 : vector<1x256xf32>
    %93 = vector.extract_strided_slice %2 {offsets = [0, 2816], sizes = [2, 256], strides = [1, 1]} : vector<2x4096xf32> to vector<2x256xf32>
    %cst_27 = arith.constant dense<0.000000e+00> : vector<256xf32>
    %94 = vector.multi_reduction <add>, %93, %cst_27 [0] : vector<2x256xf32> to vector<256xf32>
    %95 = vector.shape_cast %94 : vector<256xf32> to vector<1x256xf32>
    %96 = arith.addf %88, %95 : vector<1x256xf32>
    %97 = arith.mulf %93, %93 : vector<2x256xf32>
    %cst_28 = arith.constant dense<0.000000e+00> : vector<256xf32>
    %98 = vector.multi_reduction <add>, %97, %cst_28 [0] : vector<2x256xf32> to vector<256xf32>
    %99 = vector.shape_cast %98 : vector<256xf32> to vector<1x256xf32>
    %100 = arith.addf %92, %99 : vector<1x256xf32>
    %101 = vector.extract_strided_slice %2 {offsets = [0, 3072], sizes = [2, 256], strides = [1, 1]} : vector<2x4096xf32> to vector<2x256xf32>
    %cst_29 = arith.constant dense<0.000000e+00> : vector<256xf32>
    %102 = vector.multi_reduction <add>, %101, %cst_29 [0] : vector<2x256xf32> to vector<256xf32>
    %103 = vector.shape_cast %102 : vector<256xf32> to vector<1x256xf32>
    %104 = arith.addf %96, %103 : vector<1x256xf32>
    %105 = arith.mulf %101, %101 : vector<2x256xf32>
    %cst_30 = arith.constant dense<0.000000e+00> : vector<256xf32>
    %106 = vector.multi_reduction <add>, %105, %cst_30 [0] : vector<2x256xf32> to vector<256xf32>
    %107 = vector.shape_cast %106 : vector<256xf32> to vector<1x256xf32>
    %108 = arith.addf %100, %107 : vector<1x256xf32>
    %109 = vector.extract_strided_slice %2 {offsets = [0, 3328], sizes = [2, 256], strides = [1, 1]} : vector<2x4096xf32> to vector<2x256xf32>
    %cst_31 = arith.constant dense<0.000000e+00> : vector<256xf32>
    %110 = vector.multi_reduction <add>, %109, %cst_31 [0] : vector<2x256xf32> to vector<256xf32>
    %111 = vector.shape_cast %110 : vector<256xf32> to vector<1x256xf32>
    %112 = arith.addf %104, %111 : vector<1x256xf32>
    %113 = arith.mulf %109, %109 : vector<2x256xf32>
    %cst_32 = arith.constant dense<0.000000e+00> : vector<256xf32>
    %114 = vector.multi_reduction <add>, %113, %cst_32 [0] : vector<2x256xf32> to vector<256xf32>
    %115 = vector.shape_cast %114 : vector<256xf32> to vector<1x256xf32>
    %116 = arith.addf %108, %115 : vector<1x256xf32>
    %117 = vector.extract_strided_slice %2 {offsets = [0, 3584], sizes = [2, 256], strides = [1, 1]} : vector<2x4096xf32> to vector<2x256xf32>
    %cst_33 = arith.constant dense<0.000000e+00> : vector<256xf32>
    %118 = vector.multi_reduction <add>, %117, %cst_33 [0] : vector<2x256xf32> to vector<256xf32>
    %119 = vector.shape_cast %118 : vector<256xf32> to vector<1x256xf32>
    %120 = arith.addf %112, %119 : vector<1x256xf32>
    %121 = arith.mulf %117, %117 : vector<2x256xf32>
    %cst_34 = arith.constant dense<0.000000e+00> : vector<256xf32>
    %122 = vector.multi_reduction <add>, %121, %cst_34 [0] : vector<2x256xf32> to vector<256xf32>
    %123 = vector.shape_cast %122 : vector<256xf32> to vector<1x256xf32>
    %124 = arith.addf %116, %123 : vector<1x256xf32>
    %125 = vector.extract_strided_slice %2 {offsets = [0, 3840], sizes = [2, 256], strides = [1, 1]} : vector<2x4096xf32> to vector<2x256xf32>
    %cst_35 = arith.constant dense<0.000000e+00> : vector<256xf32>
    %126 = vector.multi_reduction <add>, %125, %cst_35 [0] : vector<2x256xf32> to vector<256xf32>
    %127 = vector.shape_cast %126 : vector<256xf32> to vector<1x256xf32>
    %128 = arith.addf %120, %127 : vector<1x256xf32>
    %129 = arith.mulf %125, %125 : vector<2x256xf32>
    %cst_36 = arith.constant dense<0.000000e+00> : vector<256xf32>
    %130 = vector.multi_reduction <add>, %129, %cst_36 [0] : vector<2x256xf32> to vector<256xf32>
    %131 = vector.shape_cast %130 : vector<256xf32> to vector<1x256xf32>
    %132 = arith.addf %124, %131 : vector<1x256xf32>
    %cst_37 = arith.constant 3.125000e-02 : f32
    %133 = vector.broadcast %cst_37 : f32 to vector<1x256xf32>
    %134 = arith.mulf %128, %133 : vector<1x256xf32>
    %cst_38 = arith.constant 3.125000e-02 : f32
    %135 = vector.broadcast %cst_38 : f32 to vector<1x256xf32>
    %136 = arith.mulf %132, %135 : vector<1x256xf32>
    %137 = arith.mulf %134, %134 : vector<1x256xf32>
    %138 = arith.subf %136, %137 : vector<1x256xf32>
    %cst_39 = arith.constant 9.99999974E-6 : f32
    %139 = vector.broadcast %cst_39 : f32 to vector<1x256xf32>
    %140 = arith.addf %138, %139 : vector<1x256xf32>
    %141 = math.rsqrt %140 : vector<1x256xf32>
    %c0_40 = arith.constant 0 : index
    %c0_41 = arith.constant 0 : index
    %142 = vector.load %arg2[%c0_40, %c0_41] : memref<1x256xf32, #tpu.memory_space<vmem>>, vector<1x256xf32>
    %c0_42 = arith.constant 0 : index
    %c0_43 = arith.constant 0 : index
    %143 = vector.load %arg3[%c0_42, %c0_43] : memref<1x256xf32, #tpu.memory_space<vmem>>, vector<1x256xf32>
    %144 = vector.extract_strided_slice %2 {offsets = [0, 0], sizes = [2, 256], strides = [1, 1]} : vector<2x4096xf32> to vector<2x256xf32>
    %145 = vector.broadcast %134 : vector<1x256xf32> to vector<2x256xf32>
    %146 = arith.subf %144, %145 : vector<2x256xf32>
    %147 = vector.broadcast %141 : vector<1x256xf32> to vector<2x256xf32>
    %148 = arith.mulf %146, %147 : vector<2x256xf32>
    %149 = vector.broadcast %142 : vector<1x256xf32> to vector<2x256xf32>
    %150 = arith.mulf %148, %149 : vector<2x256xf32>
    %151 = vector.broadcast %143 : vector<1x256xf32> to vector<2x256xf32>
    %152 = arith.addf %150, %151 : vector<2x256xf32>
    %cst_44 = arith.constant 0.000000e+00 : f32
    %153 = vector.broadcast %cst_44 : f32 to vector<2x256xf32>
    %154 = arith.maximumf %152, %153 : vector<2x256xf32>
    %155 = arith.truncf %154 : vector<2x256xf32> to vector<2x256xbf16>
    %c0_45 = arith.constant 0 : index
    %c0_46 = arith.constant 0 : index
    %156 = vector.load %arg4[%c0_45, %c0_46] : memref<2x4096xbf16, #tpu.memory_space<vmem>>, vector<2x256xbf16>
    tpu.vector_store %arg4[%c0_45, %c0_46], %155 {strides = array<i32>} : memref<2x4096xbf16, #tpu.memory_space<vmem>>, vector<2x256xbf16>,
    %157 = vector.extract_strided_slice %2 {offsets = [0, 256], sizes = [2, 256], strides = [1, 1]} : vector<2x4096xf32> to vector<2x256xf32>
    %158 = vector.broadcast %134 : vector<1x256xf32> to vector<2x256xf32>
    %159 = arith.subf %157, %158 : vector<2x256xf32>
    %160 = vector.broadcast %141 : vector<1x256xf32> to vector<2x256xf32>
    %161 = arith.mulf %159, %160 : vector<2x256xf32>
    %162 = vector.broadcast %142 : vector<1x256xf32> to vector<2x256xf32>
    %163 = arith.mulf %161, %162 : vector<2x256xf32>
    %164 = vector.broadcast %143 : vector<1x256xf32> to vector<2x256xf32>
    %165 = arith.addf %163, %164 : vector<2x256xf32>
    %cst_47 = arith.constant 0.000000e+00 : f32
    %166 = vector.broadcast %cst_47 : f32 to vector<2x256xf32>
    %167 = arith.maximumf %165, %166 : vector<2x256xf32>
    %168 = arith.truncf %167 : vector<2x256xf32> to vector<2x256xbf16>
    %c0_48 = arith.constant 0 : index
    %c256 = arith.constant 256 : index
    %169 = vector.load %arg4[%c0_48, %c256] : memref<2x4096xbf16, #tpu.memory_space<vmem>>, vector<2x256xbf16>
    tpu.vector_store %arg4[%c0_48, %c256], %168 {strides = array<i32>} : memref<2x4096xbf16, #tpu.memory_space<vmem>>, vector<2x256xbf16>,
    %170 = vector.extract_strided_slice %2 {offsets = [0, 512], sizes = [2, 256], strides = [1, 1]} : vector<2x4096xf32> to vector<2x256xf32>
    %171 = vector.broadcast %134 : vector<1x256xf32> to vector<2x256xf32>
    %172 = arith.subf %170, %171 : vector<2x256xf32>
    %173 = vector.broadcast %141 : vector<1x256xf32> to vector<2x256xf32>
    %174 = arith.mulf %172, %173 : vector<2x256xf32>
    %175 = vector.broadcast %142 : vector<1x256xf32> to vector<2x256xf32>
    %176 = arith.mulf %174, %175 : vector<2x256xf32>
    %177 = vector.broadcast %143 : vector<1x256xf32> to vector<2x256xf32>
    %178 = arith.addf %176, %177 : vector<2x256xf32>
    %cst_49 = arith.constant 0.000000e+00 : f32
    %179 = vector.broadcast %cst_49 : f32 to vector<2x256xf32>
    %180 = arith.maximumf %178, %179 : vector<2x256xf32>
    %181 = arith.truncf %180 : vector<2x256xf32> to vector<2x256xbf16>
    %c0_50 = arith.constant 0 : index
    %c512 = arith.constant 512 : index
    %182 = vector.load %arg4[%c0_50, %c512] : memref<2x4096xbf16, #tpu.memory_space<vmem>>, vector<2x256xbf16>
    tpu.vector_store %arg4[%c0_50, %c512], %181 {strides = array<i32>} : memref<2x4096xbf16, #tpu.memory_space<vmem>>, vector<2x256xbf16>,
    %183 = vector.extract_strided_slice %2 {offsets = [0, 768], sizes = [2, 256], strides = [1, 1]} : vector<2x4096xf32> to vector<2x256xf32>
    %184 = vector.broadcast %134 : vector<1x256xf32> to vector<2x256xf32>
    %185 = arith.subf %183, %184 : vector<2x256xf32>
    %186 = vector.broadcast %141 : vector<1x256xf32> to vector<2x256xf32>
    %187 = arith.mulf %185, %186 : vector<2x256xf32>
    %188 = vector.broadcast %142 : vector<1x256xf32> to vector<2x256xf32>
    %189 = arith.mulf %187, %188 : vector<2x256xf32>
    %190 = vector.broadcast %143 : vector<1x256xf32> to vector<2x256xf32>
    %191 = arith.addf %189, %190 : vector<2x256xf32>
    %cst_51 = arith.constant 0.000000e+00 : f32
    %192 = vector.broadcast %cst_51 : f32 to vector<2x256xf32>
    %193 = arith.maximumf %191, %192 : vector<2x256xf32>
    %194 = arith.truncf %193 : vector<2x256xf32> to vector<2x256xbf16>
    %c0_52 = arith.constant 0 : index
    %c768 = arith.constant 768 : index
    %195 = vector.load %arg4[%c0_52, %c768] : memref<2x4096xbf16, #tpu.memory_space<vmem>>, vector<2x256xbf16>
    tpu.vector_store %arg4[%c0_52, %c768], %194 {strides = array<i32>} : memref<2x4096xbf16, #tpu.memory_space<vmem>>, vector<2x256xbf16>,
    %196 = vector.extract_strided_slice %2 {offsets = [0, 1024], sizes = [2, 256], strides = [1, 1]} : vector<2x4096xf32> to vector<2x256xf32>
    %197 = vector.broadcast %134 : vector<1x256xf32> to vector<2x256xf32>
    %198 = arith.subf %196, %197 : vector<2x256xf32>
    %199 = vector.broadcast %141 : vector<1x256xf32> to vector<2x256xf32>
    %200 = arith.mulf %198, %199 : vector<2x256xf32>
    %201 = vector.broadcast %142 : vector<1x256xf32> to vector<2x256xf32>
    %202 = arith.mulf %200, %201 : vector<2x256xf32>
    %203 = vector.broadcast %143 : vector<1x256xf32> to vector<2x256xf32>
    %204 = arith.addf %202, %203 : vector<2x256xf32>
    %cst_53 = arith.constant 0.000000e+00 : f32
    %205 = vector.broadcast %cst_53 : f32 to vector<2x256xf32>
    %206 = arith.maximumf %204, %205 : vector<2x256xf32>
    %207 = arith.truncf %206 : vector<2x256xf32> to vector<2x256xbf16>
    %c0_54 = arith.constant 0 : index
    %c1024 = arith.constant 1024 : index
    %208 = vector.load %arg4[%c0_54, %c1024] : memref<2x4096xbf16, #tpu.memory_space<vmem>>, vector<2x256xbf16>
    tpu.vector_store %arg4[%c0_54, %c1024], %207 {strides = array<i32>} : memref<2x4096xbf16, #tpu.memory_space<vmem>>, vector<2x256xbf16>,
    %209 = vector.extract_strided_slice %2 {offsets = [0, 1280], sizes = [2, 256], strides = [1, 1]} : vector<2x4096xf32> to vector<2x256xf32>
    %210 = vector.broadcast %134 : vector<1x256xf32> to vector<2x256xf32>
    %211 = arith.subf %209, %210 : vector<2x256xf32>
    %212 = vector.broadcast %141 : vector<1x256xf32> to vector<2x256xf32>
    %213 = arith.mulf %211, %212 : vector<2x256xf32>
    %214 = vector.broadcast %142 : vector<1x256xf32> to vector<2x256xf32>
    %215 = arith.mulf %213, %214 : vector<2x256xf32>
    %216 = vector.broadcast %143 : vector<1x256xf32> to vector<2x256xf32>
    %217 = arith.addf %215, %216 : vector<2x256xf32>
    %cst_55 = arith.constant 0.000000e+00 : f32
    %218 = vector.broadcast %cst_55 : f32 to vector<2x256xf32>
    %219 = arith.maximumf %217, %218 : vector<2x256xf32>
    %220 = arith.truncf %219 : vector<2x256xf32> to vector<2x256xbf16>
    %c0_56 = arith.constant 0 : index
    %c1280 = arith.constant 1280 : index
    %221 = vector.load %arg4[%c0_56, %c1280] : memref<2x4096xbf16, #tpu.memory_space<vmem>>, vector<2x256xbf16>
    tpu.vector_store %arg4[%c0_56, %c1280], %220 {strides = array<i32>} : memref<2x4096xbf16, #tpu.memory_space<vmem>>, vector<2x256xbf16>,
    %222 = vector.extract_strided_slice %2 {offsets = [0, 1536], sizes = [2, 256], strides = [1, 1]} : vector<2x4096xf32> to vector<2x256xf32>
    %223 = vector.broadcast %134 : vector<1x256xf32> to vector<2x256xf32>
    %224 = arith.subf %222, %223 : vector<2x256xf32>
    %225 = vector.broadcast %141 : vector<1x256xf32> to vector<2x256xf32>
    %226 = arith.mulf %224, %225 : vector<2x256xf32>
    %227 = vector.broadcast %142 : vector<1x256xf32> to vector<2x256xf32>
    %228 = arith.mulf %226, %227 : vector<2x256xf32>
    %229 = vector.broadcast %143 : vector<1x256xf32> to vector<2x256xf32>
    %230 = arith.addf %228, %229 : vector<2x256xf32>
    %cst_57 = arith.constant 0.000000e+00 : f32
    %231 = vector.broadcast %cst_57 : f32 to vector<2x256xf32>
    %232 = arith.maximumf %230, %231 : vector<2x256xf32>
    %233 = arith.truncf %232 : vector<2x256xf32> to vector<2x256xbf16>
    %c0_58 = arith.constant 0 : index
    %c1536 = arith.constant 1536 : index
    %234 = vector.load %arg4[%c0_58, %c1536] : memref<2x4096xbf16, #tpu.memory_space<vmem>>, vector<2x256xbf16>
    tpu.vector_store %arg4[%c0_58, %c1536], %233 {strides = array<i32>} : memref<2x4096xbf16, #tpu.memory_space<vmem>>, vector<2x256xbf16>,
    %235 = vector.extract_strided_slice %2 {offsets = [0, 1792], sizes = [2, 256], strides = [1, 1]} : vector<2x4096xf32> to vector<2x256xf32>
    %236 = vector.broadcast %134 : vector<1x256xf32> to vector<2x256xf32>
    %237 = arith.subf %235, %236 : vector<2x256xf32>
    %238 = vector.broadcast %141 : vector<1x256xf32> to vector<2x256xf32>
    %239 = arith.mulf %237, %238 : vector<2x256xf32>
    %240 = vector.broadcast %142 : vector<1x256xf32> to vector<2x256xf32>
    %241 = arith.mulf %239, %240 : vector<2x256xf32>
    %242 = vector.broadcast %143 : vector<1x256xf32> to vector<2x256xf32>
    %243 = arith.addf %241, %242 : vector<2x256xf32>
    %cst_59 = arith.constant 0.000000e+00 : f32
    %244 = vector.broadcast %cst_59 : f32 to vector<2x256xf32>
    %245 = arith.maximumf %243, %244 : vector<2x256xf32>
    %246 = arith.truncf %245 : vector<2x256xf32> to vector<2x256xbf16>
    %c0_60 = arith.constant 0 : index
    %c1792 = arith.constant 1792 : index
    %247 = vector.load %arg4[%c0_60, %c1792] : memref<2x4096xbf16, #tpu.memory_space<vmem>>, vector<2x256xbf16>
    tpu.vector_store %arg4[%c0_60, %c1792], %246 {strides = array<i32>} : memref<2x4096xbf16, #tpu.memory_space<vmem>>, vector<2x256xbf16>,
    %248 = vector.extract_strided_slice %2 {offsets = [0, 2048], sizes = [2, 256], strides = [1, 1]} : vector<2x4096xf32> to vector<2x256xf32>
    %249 = vector.broadcast %134 : vector<1x256xf32> to vector<2x256xf32>
    %250 = arith.subf %248, %249 : vector<2x256xf32>
    %251 = vector.broadcast %141 : vector<1x256xf32> to vector<2x256xf32>
    %252 = arith.mulf %250, %251 : vector<2x256xf32>
    %253 = vector.broadcast %142 : vector<1x256xf32> to vector<2x256xf32>
    %254 = arith.mulf %252, %253 : vector<2x256xf32>
    %255 = vector.broadcast %143 : vector<1x256xf32> to vector<2x256xf32>
    %256 = arith.addf %254, %255 : vector<2x256xf32>
    %cst_61 = arith.constant 0.000000e+00 : f32
    %257 = vector.broadcast %cst_61 : f32 to vector<2x256xf32>
    %258 = arith.maximumf %256, %257 : vector<2x256xf32>
    %259 = arith.truncf %258 : vector<2x256xf32> to vector<2x256xbf16>
    %c0_62 = arith.constant 0 : index
    %c2048 = arith.constant 2048 : index
    %260 = vector.load %arg4[%c0_62, %c2048] : memref<2x4096xbf16, #tpu.memory_space<vmem>>, vector<2x256xbf16>
    tpu.vector_store %arg4[%c0_62, %c2048], %259 {strides = array<i32>} : memref<2x4096xbf16, #tpu.memory_space<vmem>>, vector<2x256xbf16>,
    %261 = vector.extract_strided_slice %2 {offsets = [0, 2304], sizes = [2, 256], strides = [1, 1]} : vector<2x4096xf32> to vector<2x256xf32>
    %262 = vector.broadcast %134 : vector<1x256xf32> to vector<2x256xf32>
    %263 = arith.subf %261, %262 : vector<2x256xf32>
    %264 = vector.broadcast %141 : vector<1x256xf32> to vector<2x256xf32>
    %265 = arith.mulf %263, %264 : vector<2x256xf32>
    %266 = vector.broadcast %142 : vector<1x256xf32> to vector<2x256xf32>
    %267 = arith.mulf %265, %266 : vector<2x256xf32>
    %268 = vector.broadcast %143 : vector<1x256xf32> to vector<2x256xf32>
    %269 = arith.addf %267, %268 : vector<2x256xf32>
    %cst_63 = arith.constant 0.000000e+00 : f32
    %270 = vector.broadcast %cst_63 : f32 to vector<2x256xf32>
    %271 = arith.maximumf %269, %270 : vector<2x256xf32>
    %272 = arith.truncf %271 : vector<2x256xf32> to vector<2x256xbf16>
    %c0_64 = arith.constant 0 : index
    %c2304 = arith.constant 2304 : index
    %273 = vector.load %arg4[%c0_64, %c2304] : memref<2x4096xbf16, #tpu.memory_space<vmem>>, vector<2x256xbf16>
    tpu.vector_store %arg4[%c0_64, %c2304], %272 {strides = array<i32>} : memref<2x4096xbf16, #tpu.memory_space<vmem>>, vector<2x256xbf16>,
    %274 = vector.extract_strided_slice %2 {offsets = [0, 2560], sizes = [2, 256], strides = [1, 1]} : vector<2x4096xf32> to vector<2x256xf32>
    %275 = vector.broadcast %134 : vector<1x256xf32> to vector<2x256xf32>
    %276 = arith.subf %274, %275 : vector<2x256xf32>
    %277 = vector.broadcast %141 : vector<1x256xf32> to vector<2x256xf32>
    %278 = arith.mulf %276, %277 : vector<2x256xf32>
    %279 = vector.broadcast %142 : vector<1x256xf32> to vector<2x256xf32>
    %280 = arith.mulf %278, %279 : vector<2x256xf32>
    %281 = vector.broadcast %143 : vector<1x256xf32> to vector<2x256xf32>
    %282 = arith.addf %280, %281 : vector<2x256xf32>
    %cst_65 = arith.constant 0.000000e+00 : f32
    %283 = vector.broadcast %cst_65 : f32 to vector<2x256xf32>
    %284 = arith.maximumf %282, %283 : vector<2x256xf32>
    %285 = arith.truncf %284 : vector<2x256xf32> to vector<2x256xbf16>
    %c0_66 = arith.constant 0 : index
    %c2560 = arith.constant 2560 : index
    %286 = vector.load %arg4[%c0_66, %c2560] : memref<2x4096xbf16, #tpu.memory_space<vmem>>, vector<2x256xbf16>
    tpu.vector_store %arg4[%c0_66, %c2560], %285 {strides = array<i32>} : memref<2x4096xbf16, #tpu.memory_space<vmem>>, vector<2x256xbf16>,
    %287 = vector.extract_strided_slice %2 {offsets = [0, 2816], sizes = [2, 256], strides = [1, 1]} : vector<2x4096xf32> to vector<2x256xf32>
    %288 = vector.broadcast %134 : vector<1x256xf32> to vector<2x256xf32>
    %289 = arith.subf %287, %288 : vector<2x256xf32>
    %290 = vector.broadcast %141 : vector<1x256xf32> to vector<2x256xf32>
    %291 = arith.mulf %289, %290 : vector<2x256xf32>
    %292 = vector.broadcast %142 : vector<1x256xf32> to vector<2x256xf32>
    %293 = arith.mulf %291, %292 : vector<2x256xf32>
    %294 = vector.broadcast %143 : vector<1x256xf32> to vector<2x256xf32>
    %295 = arith.addf %293, %294 : vector<2x256xf32>
    %cst_67 = arith.constant 0.000000e+00 : f32
    %296 = vector.broadcast %cst_67 : f32 to vector<2x256xf32>
    %297 = arith.maximumf %295, %296 : vector<2x256xf32>
    %298 = arith.truncf %297 : vector<2x256xf32> to vector<2x256xbf16>
    %c0_68 = arith.constant 0 : index
    %c2816 = arith.constant 2816 : index
    %299 = vector.load %arg4[%c0_68, %c2816] : memref<2x4096xbf16, #tpu.memory_space<vmem>>, vector<2x256xbf16>
    tpu.vector_store %arg4[%c0_68, %c2816], %298 {strides = array<i32>} : memref<2x4096xbf16, #tpu.memory_space<vmem>>, vector<2x256xbf16>,
    %300 = vector.extract_strided_slice %2 {offsets = [0, 3072], sizes = [2, 256], strides = [1, 1]} : vector<2x4096xf32> to vector<2x256xf32>
    %301 = vector.broadcast %134 : vector<1x256xf32> to vector<2x256xf32>
    %302 = arith.subf %300, %301 : vector<2x256xf32>
    %303 = vector.broadcast %141 : vector<1x256xf32> to vector<2x256xf32>
    %304 = arith.mulf %302, %303 : vector<2x256xf32>
    %305 = vector.broadcast %142 : vector<1x256xf32> to vector<2x256xf32>
    %306 = arith.mulf %304, %305 : vector<2x256xf32>
    %307 = vector.broadcast %143 : vector<1x256xf32> to vector<2x256xf32>
    %308 = arith.addf %306, %307 : vector<2x256xf32>
    %cst_69 = arith.constant 0.000000e+00 : f32
    %309 = vector.broadcast %cst_69 : f32 to vector<2x256xf32>
    %310 = arith.maximumf %308, %309 : vector<2x256xf32>
    %311 = arith.truncf %310 : vector<2x256xf32> to vector<2x256xbf16>
    %c0_70 = arith.constant 0 : index
    %c3072 = arith.constant 3072 : index
    %312 = vector.load %arg4[%c0_70, %c3072] : memref<2x4096xbf16, #tpu.memory_space<vmem>>, vector<2x256xbf16>
    tpu.vector_store %arg4[%c0_70, %c3072], %311 {strides = array<i32>} : memref<2x4096xbf16, #tpu.memory_space<vmem>>, vector<2x256xbf16>,
    %313 = vector.extract_strided_slice %2 {offsets = [0, 3328], sizes = [2, 256], strides = [1, 1]} : vector<2x4096xf32> to vector<2x256xf32>
    %314 = vector.broadcast %134 : vector<1x256xf32> to vector<2x256xf32>
    %315 = arith.subf %313, %314 : vector<2x256xf32>
    %316 = vector.broadcast %141 : vector<1x256xf32> to vector<2x256xf32>
    %317 = arith.mulf %315, %316 : vector<2x256xf32>
    %318 = vector.broadcast %142 : vector<1x256xf32> to vector<2x256xf32>
    %319 = arith.mulf %317, %318 : vector<2x256xf32>
    %320 = vector.broadcast %143 : vector<1x256xf32> to vector<2x256xf32>
    %321 = arith.addf %319, %320 : vector<2x256xf32>
    %cst_71 = arith.constant 0.000000e+00 : f32
    %322 = vector.broadcast %cst_71 : f32 to vector<2x256xf32>
    %323 = arith.maximumf %321, %322 : vector<2x256xf32>
    %324 = arith.truncf %323 : vector<2x256xf32> to vector<2x256xbf16>
    %c0_72 = arith.constant 0 : index
    %c3328 = arith.constant 3328 : index
    %325 = vector.load %arg4[%c0_72, %c3328] : memref<2x4096xbf16, #tpu.memory_space<vmem>>, vector<2x256xbf16>
    tpu.vector_store %arg4[%c0_72, %c3328], %324 {strides = array<i32>} : memref<2x4096xbf16, #tpu.memory_space<vmem>>, vector<2x256xbf16>,
    %326 = vector.extract_strided_slice %2 {offsets = [0, 3584], sizes = [2, 256], strides = [1, 1]} : vector<2x4096xf32> to vector<2x256xf32>
    %327 = vector.broadcast %134 : vector<1x256xf32> to vector<2x256xf32>
    %328 = arith.subf %326, %327 : vector<2x256xf32>
    %329 = vector.broadcast %141 : vector<1x256xf32> to vector<2x256xf32>
    %330 = arith.mulf %328, %329 : vector<2x256xf32>
    %331 = vector.broadcast %142 : vector<1x256xf32> to vector<2x256xf32>
    %332 = arith.mulf %330, %331 : vector<2x256xf32>
    %333 = vector.broadcast %143 : vector<1x256xf32> to vector<2x256xf32>
    %334 = arith.addf %332, %333 : vector<2x256xf32>
    %cst_73 = arith.constant 0.000000e+00 : f32
    %335 = vector.broadcast %cst_73 : f32 to vector<2x256xf32>
    %336 = arith.maximumf %334, %335 : vector<2x256xf32>
    %337 = arith.truncf %336 : vector<2x256xf32> to vector<2x256xbf16>
    %c0_74 = arith.constant 0 : index
    %c3584 = arith.constant 3584 : index
    %338 = vector.load %arg4[%c0_74, %c3584] : memref<2x4096xbf16, #tpu.memory_space<vmem>>, vector<2x256xbf16>
    tpu.vector_store %arg4[%c0_74, %c3584], %337 {strides = array<i32>} : memref<2x4096xbf16, #tpu.memory_space<vmem>>, vector<2x256xbf16>,
    %339 = vector.extract_strided_slice %2 {offsets = [0, 3840], sizes = [2, 256], strides = [1, 1]} : vector<2x4096xf32> to vector<2x256xf32>
    %340 = vector.broadcast %134 : vector<1x256xf32> to vector<2x256xf32>
    %341 = arith.subf %339, %340 : vector<2x256xf32>
    %342 = vector.broadcast %141 : vector<1x256xf32> to vector<2x256xf32>
    %343 = arith.mulf %341, %342 : vector<2x256xf32>
    %344 = vector.broadcast %142 : vector<1x256xf32> to vector<2x256xf32>
    %345 = arith.mulf %343, %344 : vector<2x256xf32>
    %346 = vector.broadcast %143 : vector<1x256xf32> to vector<2x256xf32>
    %347 = arith.addf %345, %346 : vector<2x256xf32>
    %cst_75 = arith.constant 0.000000e+00 : f32
    %348 = vector.broadcast %cst_75 : f32 to vector<2x256xf32>
    %349 = arith.maximumf %347, %348 : vector<2x256xf32>
    %350 = arith.truncf %349 : vector<2x256xf32> to vector<2x256xbf16>
    %c0_76 = arith.constant 0 : index
    %c3840 = arith.constant 3840 : index
    %351 = vector.load %arg4[%c0_76, %c3840] : memref<2x4096xbf16, #tpu.memory_space<vmem>>, vector<2x256xbf16>
    tpu.vector_store %arg4[%c0_76, %c3840], %350 {strides = array<i32>} : memref<2x4096xbf16, #tpu.memory_space<vmem>>, vector<2x256xbf16>,
    return
  }
}

module attributes {stable_mosaic.version = 11 : i64} {
  func.func @_convt_bn_relu_kernel(%arg0: i32, %arg1: i32, %arg2: i32, %arg3: memref<1x32x1024xbf16, #tpu.memory_space<vmem>>, %arg4: memref<1x1024x128xbf16, #tpu.memory_space<vmem>>, %arg5: memref<1x128xf32, #tpu.memory_space<vmem>>, %arg6: memref<1x128xf32, #tpu.memory_space<vmem>>, %arg7: memref<1x32x128xbf16, #tpu.memory_space<vmem>>, %arg8: memref<1x128xf32, #tpu.memory_space<vmem>>, %arg9: memref<1x128xf32, #tpu.memory_space<vmem>>) attributes {dimension_semantics = [#tpu.dimension_semantics<arbitrary>, #tpu.dimension_semantics<arbitrary>, #tpu.dimension_semantics<arbitrary>], iteration_bounds = array<i64: 2, 4, 1>, scalar_prefetch = 0 : i64, scratch_operands = 2 : i64, tpu.core_type = #tpu.core_type<tc>, window_params = [{transform_indices = @transform_0, window_bounds = array<i64: 1, 32, 1024>}, {transform_indices = @transform_1, window_bounds = array<i64: 1, 1024, 128>}, {pipeline_mode = #tpu.pipeline_mode<synchronous>, transform_indices = @transform_2, window_bounds = array<i64: 1, 128>}, {pipeline_mode = #tpu.pipeline_mode<synchronous>, transform_indices = @transform_3, window_bounds = array<i64: 1, 128>}, {transform_indices = @transform_4, window_bounds = array<i64: 1, 32, 128>}]} {
    %c0 = arith.constant 0 : index
    %c0_0 = arith.constant 0 : index
    %c0_1 = arith.constant 0 : index
    %0 = vector.load %arg3[%c0, %c0_0, %c0_1] : memref<1x32x1024xbf16, #tpu.memory_space<vmem>>, vector<1x32x1024xbf16>
    %1 = vector.shape_cast %0 : vector<1x32x1024xbf16> to vector<32x1024xbf16>
    %c0_2 = arith.constant 0 : index
    %c0_3 = arith.constant 0 : index
    %c0_4 = arith.constant 0 : index
    %2 = vector.load %arg4[%c0_2, %c0_3, %c0_4] : memref<1x1024x128xbf16, #tpu.memory_space<vmem>>, vector<1x1024x128xbf16>
    %3 = vector.shape_cast %2 : vector<1x1024x128xbf16> to vector<1024x128xbf16>
    %cst = arith.constant dense<0.000000e+00> : vector<32x128xf32>
    %4 = tpu.matmul %1, %3, %cst {dimension_numbers = #tpu.dot_dimension_numbers<[1], [0], [0], [1], [0, 0, 1, 1], [], []>} : vector<32x1024xbf16>, vector<1024x128xbf16>, vector<32x128xf32> -> vector<32x128xf32>
    %c0_i32 = arith.constant 0 : i32
    %5 = arith.cmpi eq, %arg0, %c0_i32 : i32
    %6 = arith.extui %5 : i1 to i32
    %c0_i32_5 = arith.constant 0 : i32
    %7 = arith.cmpi ne, %6, %c0_i32_5 : i32
    scf.if %7 {
      %c0_i32_7 = arith.constant 0 : i32
      %11 = arith.cmpi eq, %arg1, %c0_i32_7 : i32
      %c0_i32_8 = arith.constant 0 : i32
      %12 = arith.cmpi eq, %arg2, %c0_i32_8 : i32
      %13 = arith.andi %11, %12 : i1
      %14 = arith.extui %13 : i1 to i32
      %c0_i32_9 = arith.constant 0 : i32
      %15 = arith.cmpi ne, %14, %c0_i32_9 : i32
      scf.if %15 {
        %cst_20 = arith.constant 0.000000e+00 : f32
        %27 = vector.broadcast %cst_20 : f32 to vector<1x128xf32>
        %c0_21 = arith.constant 0 : index
        %c0_22 = arith.constant 0 : index
        %28 = vector.load %arg8[%c0_21, %c0_22] : memref<1x128xf32, #tpu.memory_space<vmem>>, vector<1x128xf32>
        tpu.vector_store %arg8[%c0_21, %c0_22], %27 {strides = array<i32>} : memref<1x128xf32, #tpu.memory_space<vmem>>, vector<1x128xf32>,
        %cst_23 = arith.constant 0.000000e+00 : f32
        %29 = vector.broadcast %cst_23 : f32 to vector<1x128xf32>
        %c0_24 = arith.constant 0 : index
        %c0_25 = arith.constant 0 : index
        %30 = vector.load %arg9[%c0_24, %c0_25] : memref<1x128xf32, #tpu.memory_space<vmem>>, vector<1x128xf32>
        tpu.vector_store %arg9[%c0_24, %c0_25], %29 {strides = array<i32>} : memref<1x128xf32, #tpu.memory_space<vmem>>, vector<1x128xf32>,
      } else {
      }
      %c0_10 = arith.constant 0 : index
      %c0_11 = arith.constant 0 : index
      %16 = vector.load %arg8[%c0_10, %c0_11] : memref<1x128xf32, #tpu.memory_space<vmem>>, vector<1x128xf32>
      %cst_12 = arith.constant dense<0.000000e+00> : vector<128xf32>
      %17 = vector.multi_reduction <add>, %4, %cst_12 [0] : vector<32x128xf32> to vector<128xf32>
      %18 = vector.shape_cast %17 : vector<128xf32> to vector<1x128xf32>
      %19 = arith.addf %16, %18 : vector<1x128xf32>
      %c0_13 = arith.constant 0 : index
      %c0_14 = arith.constant 0 : index
      %20 = vector.load %arg8[%c0_13, %c0_14] : memref<1x128xf32, #tpu.memory_space<vmem>>, vector<1x128xf32>
      tpu.vector_store %arg8[%c0_13, %c0_14], %19 {strides = array<i32>} : memref<1x128xf32, #tpu.memory_space<vmem>>, vector<1x128xf32>,
      %c0_15 = arith.constant 0 : index
      %c0_16 = arith.constant 0 : index
      %21 = vector.load %arg9[%c0_15, %c0_16] : memref<1x128xf32, #tpu.memory_space<vmem>>, vector<1x128xf32>
      %22 = arith.mulf %4, %4 : vector<32x128xf32>
      %cst_17 = arith.constant dense<0.000000e+00> : vector<128xf32>
      %23 = vector.multi_reduction <add>, %22, %cst_17 [0] : vector<32x128xf32> to vector<128xf32>
      %24 = vector.shape_cast %23 : vector<128xf32> to vector<1x128xf32>
      %25 = arith.addf %21, %24 : vector<1x128xf32>
      %c0_18 = arith.constant 0 : index
      %c0_19 = arith.constant 0 : index
      %26 = vector.load %arg9[%c0_18, %c0_19] : memref<1x128xf32, #tpu.memory_space<vmem>>, vector<1x128xf32>
      tpu.vector_store %arg9[%c0_18, %c0_19], %25 {strides = array<i32>} : memref<1x128xf32, #tpu.memory_space<vmem>>, vector<1x128xf32>,
    } else {
    }
    %c1_i32 = arith.constant 1 : i32
    %8 = arith.cmpi eq, %arg0, %c1_i32 : i32
    %9 = arith.extui %8 : i1 to i32
    %c0_i32_6 = arith.constant 0 : i32
    %10 = arith.cmpi ne, %9, %c0_i32_6 : i32
    scf.if %10 {
      %c0_7 = arith.constant 0 : index
      %c0_8 = arith.constant 0 : index
      %11 = vector.load %arg8[%c0_7, %c0_8] : memref<1x128xf32, #tpu.memory_space<vmem>>, vector<1x128xf32>
      %cst_9 = arith.constant 7.812500e-03 : f32
      %12 = vector.broadcast %cst_9 : f32 to vector<1x128xf32>
      %13 = arith.mulf %11, %12 : vector<1x128xf32>
      %c0_10 = arith.constant 0 : index
      %c0_11 = arith.constant 0 : index
      %14 = vector.load %arg9[%c0_10, %c0_11] : memref<1x128xf32, #tpu.memory_space<vmem>>, vector<1x128xf32>
      %cst_12 = arith.constant 7.812500e-03 : f32
      %15 = vector.broadcast %cst_12 : f32 to vector<1x128xf32>
      %16 = arith.mulf %14, %15 : vector<1x128xf32>
      %17 = arith.mulf %13, %13 : vector<1x128xf32>
      %18 = arith.subf %16, %17 : vector<1x128xf32>
      %cst_13 = arith.constant 9.99999974E-6 : f32
      %19 = vector.broadcast %cst_13 : f32 to vector<1x128xf32>
      %20 = arith.addf %18, %19 : vector<1x128xf32>
      %21 = math.rsqrt %20 : vector<1x128xf32>
      %22 = vector.broadcast %13 : vector<1x128xf32> to vector<32x128xf32>
      %23 = arith.subf %4, %22 : vector<32x128xf32>
      %24 = vector.broadcast %21 : vector<1x128xf32> to vector<32x128xf32>
      %25 = arith.mulf %23, %24 : vector<32x128xf32>
      %c0_14 = arith.constant 0 : index
      %c0_15 = arith.constant 0 : index
      %26 = vector.load %arg5[%c0_14, %c0_15] : memref<1x128xf32, #tpu.memory_space<vmem>>, vector<1x128xf32>
      %27 = vector.broadcast %26 : vector<1x128xf32> to vector<32x128xf32>
      %28 = arith.mulf %25, %27 : vector<32x128xf32>
      %c0_16 = arith.constant 0 : index
      %c0_17 = arith.constant 0 : index
      %29 = vector.load %arg6[%c0_16, %c0_17] : memref<1x128xf32, #tpu.memory_space<vmem>>, vector<1x128xf32>
      %30 = vector.broadcast %29 : vector<1x128xf32> to vector<32x128xf32>
      %31 = arith.addf %28, %30 : vector<32x128xf32>
      %cst_18 = arith.constant 0.000000e+00 : f32
      %32 = vector.broadcast %cst_18 : f32 to vector<32x128xf32>
      %33 = arith.maximumf %31, %32 : vector<32x128xf32>
      %34 = arith.truncf %33 : vector<32x128xf32> to vector<32x128xbf16>
      %c0_19 = arith.constant 0 : index
      %c0_20 = arith.constant 0 : index
      %c0_21 = arith.constant 0 : index
      %35 = vector.load %arg7[%c0_19, %c0_20, %c0_21] : memref<1x32x128xbf16, #tpu.memory_space<vmem>>, vector<1x32x128xbf16>
      %36 = vector.shape_cast %35 : vector<1x32x128xbf16> to vector<32x128xbf16>
      %37 = vector.shape_cast %34 : vector<32x128xbf16> to vector<1x32x128xbf16>
      tpu.vector_store %arg7[%c0_19, %c0_20, %c0_21], %37 {strides = array<i32>} : memref<1x32x128xbf16, #tpu.memory_space<vmem>>, vector<1x32x128xbf16>,
    } else {
    }
    return
  }
  func.func @transform_0(%arg0: i32, %arg1: i32, %arg2: i32) -> (i32, i32, i32) {
    %c0_i32 = arith.constant 0 : i32
    %c0_i32_0 = arith.constant 0 : i32
    return %arg1, %arg2, %c0_i32 : i32, i32, i32
  }
  func.func @transform_1(%arg0: i32, %arg1: i32, %arg2: i32) -> (i32, i32, i32) {
    %c0_i32 = arith.constant 0 : i32
    %c0_i32_0 = arith.constant 0 : i32
    %c0_i32_1 = arith.constant 0 : i32
    return %arg1, %c0_i32, %c0_i32_0 : i32, i32, i32
  }
  func.func @transform_2(%arg0: i32, %arg1: i32, %arg2: i32) -> (i32, i32) {
    %c0_i32 = arith.constant 0 : i32
    %c0_i32_0 = arith.constant 0 : i32
    %c0_i32_1 = arith.constant 0 : i32
    return %c0_i32, %c0_i32_0 : i32, i32
  }
  func.func @transform_3(%arg0: i32, %arg1: i32, %arg2: i32) -> (i32, i32) {
    %c0_i32 = arith.constant 0 : i32
    %c0_i32_0 = arith.constant 0 : i32
    %c0_i32_1 = arith.constant 0 : i32
    return %c0_i32, %c0_i32_0 : i32, i32
  }
  func.func @transform_4(%arg0: i32, %arg1: i32, %arg2: i32) -> (i32, i32, i32) {
    %c0_i32 = arith.constant 0 : i32
    %c0_i32_0 = arith.constant 0 : i32
    return %arg1, %arg2, %c0_i32 : i32, i32, i32
  }
}

module attributes {stable_mosaic.version = 11 : i64} {
  func.func @_convt_bn_relu_kernel(%arg0: i32, %arg1: i32, %arg2: i32, %arg3: memref<1x128x512xbf16, #tpu.memory_space<vmem>>, %arg4: memref<1x512x64xbf16, #tpu.memory_space<vmem>>, %arg5: memref<1x64xf32, #tpu.memory_space<vmem>>, %arg6: memref<1x64xf32, #tpu.memory_space<vmem>>, %arg7: memref<1x128x64xbf16, #tpu.memory_space<vmem>>, %arg8: memref<1x64xf32, #tpu.memory_space<vmem>>, %arg9: memref<1x64xf32, #tpu.memory_space<vmem>>) attributes {dimension_semantics = [#tpu.dimension_semantics<arbitrary>, #tpu.dimension_semantics<arbitrary>, #tpu.dimension_semantics<arbitrary>], iteration_bounds = array<i64: 2, 4, 1>, scalar_prefetch = 0 : i64, scratch_operands = 2 : i64, tpu.core_type = #tpu.core_type<tc>, window_params = [{transform_indices = @transform_0, window_bounds = array<i64: 1, 128, 512>}, {transform_indices = @transform_1, window_bounds = array<i64: 1, 512, 64>}, {pipeline_mode = #tpu.pipeline_mode<synchronous>, transform_indices = @transform_2, window_bounds = array<i64: 1, 64>}, {pipeline_mode = #tpu.pipeline_mode<synchronous>, transform_indices = @transform_3, window_bounds = array<i64: 1, 64>}, {transform_indices = @transform_4, window_bounds = array<i64: 1, 128, 64>}]} {
    %c0 = arith.constant 0 : index
    %c0_0 = arith.constant 0 : index
    %c0_1 = arith.constant 0 : index
    %0 = vector.load %arg3[%c0, %c0_0, %c0_1] : memref<1x128x512xbf16, #tpu.memory_space<vmem>>, vector<1x128x512xbf16>
    %1 = vector.shape_cast %0 : vector<1x128x512xbf16> to vector<128x512xbf16>
    %c0_2 = arith.constant 0 : index
    %c0_3 = arith.constant 0 : index
    %c0_4 = arith.constant 0 : index
    %2 = vector.load %arg4[%c0_2, %c0_3, %c0_4] : memref<1x512x64xbf16, #tpu.memory_space<vmem>>, vector<1x512x64xbf16>
    %3 = vector.shape_cast %2 : vector<1x512x64xbf16> to vector<512x64xbf16>
    %cst = arith.constant dense<0.000000e+00> : vector<128x64xf32>
    %4 = tpu.matmul %1, %3, %cst {dimension_numbers = #tpu.dot_dimension_numbers<[1], [0], [0], [1], [0, 0, 1, 1], [], []>} : vector<128x512xbf16>, vector<512x64xbf16>, vector<128x64xf32> -> vector<128x64xf32>
    %c0_i32 = arith.constant 0 : i32
    %5 = arith.cmpi eq, %arg0, %c0_i32 : i32
    %6 = arith.extui %5 : i1 to i32
    %c0_i32_5 = arith.constant 0 : i32
    %7 = arith.cmpi ne, %6, %c0_i32_5 : i32
    scf.if %7 {
      %c0_i32_7 = arith.constant 0 : i32
      %11 = arith.cmpi eq, %arg1, %c0_i32_7 : i32
      %c0_i32_8 = arith.constant 0 : i32
      %12 = arith.cmpi eq, %arg2, %c0_i32_8 : i32
      %13 = arith.andi %11, %12 : i1
      %14 = arith.extui %13 : i1 to i32
      %c0_i32_9 = arith.constant 0 : i32
      %15 = arith.cmpi ne, %14, %c0_i32_9 : i32
      scf.if %15 {
        %cst_20 = arith.constant 0.000000e+00 : f32
        %27 = vector.broadcast %cst_20 : f32 to vector<1x64xf32>
        %c0_21 = arith.constant 0 : index
        %c0_22 = arith.constant 0 : index
        %28 = vector.load %arg8[%c0_21, %c0_22] : memref<1x64xf32, #tpu.memory_space<vmem>>, vector<1x64xf32>
        tpu.vector_store %arg8[%c0_21, %c0_22], %27 {strides = array<i32>} : memref<1x64xf32, #tpu.memory_space<vmem>>, vector<1x64xf32>,
        %cst_23 = arith.constant 0.000000e+00 : f32
        %29 = vector.broadcast %cst_23 : f32 to vector<1x64xf32>
        %c0_24 = arith.constant 0 : index
        %c0_25 = arith.constant 0 : index
        %30 = vector.load %arg9[%c0_24, %c0_25] : memref<1x64xf32, #tpu.memory_space<vmem>>, vector<1x64xf32>
        tpu.vector_store %arg9[%c0_24, %c0_25], %29 {strides = array<i32>} : memref<1x64xf32, #tpu.memory_space<vmem>>, vector<1x64xf32>,
      } else {
      }
      %c0_10 = arith.constant 0 : index
      %c0_11 = arith.constant 0 : index
      %16 = vector.load %arg8[%c0_10, %c0_11] : memref<1x64xf32, #tpu.memory_space<vmem>>, vector<1x64xf32>
      %cst_12 = arith.constant dense<0.000000e+00> : vector<64xf32>
      %17 = vector.multi_reduction <add>, %4, %cst_12 [0] : vector<128x64xf32> to vector<64xf32>
      %18 = vector.shape_cast %17 : vector<64xf32> to vector<1x64xf32>
      %19 = arith.addf %16, %18 : vector<1x64xf32>
      %c0_13 = arith.constant 0 : index
      %c0_14 = arith.constant 0 : index
      %20 = vector.load %arg8[%c0_13, %c0_14] : memref<1x64xf32, #tpu.memory_space<vmem>>, vector<1x64xf32>
      tpu.vector_store %arg8[%c0_13, %c0_14], %19 {strides = array<i32>} : memref<1x64xf32, #tpu.memory_space<vmem>>, vector<1x64xf32>,
      %c0_15 = arith.constant 0 : index
      %c0_16 = arith.constant 0 : index
      %21 = vector.load %arg9[%c0_15, %c0_16] : memref<1x64xf32, #tpu.memory_space<vmem>>, vector<1x64xf32>
      %22 = arith.mulf %4, %4 : vector<128x64xf32>
      %cst_17 = arith.constant dense<0.000000e+00> : vector<64xf32>
      %23 = vector.multi_reduction <add>, %22, %cst_17 [0] : vector<128x64xf32> to vector<64xf32>
      %24 = vector.shape_cast %23 : vector<64xf32> to vector<1x64xf32>
      %25 = arith.addf %21, %24 : vector<1x64xf32>
      %c0_18 = arith.constant 0 : index
      %c0_19 = arith.constant 0 : index
      %26 = vector.load %arg9[%c0_18, %c0_19] : memref<1x64xf32, #tpu.memory_space<vmem>>, vector<1x64xf32>
      tpu.vector_store %arg9[%c0_18, %c0_19], %25 {strides = array<i32>} : memref<1x64xf32, #tpu.memory_space<vmem>>, vector<1x64xf32>,
    } else {
    }
    %c1_i32 = arith.constant 1 : i32
    %8 = arith.cmpi eq, %arg0, %c1_i32 : i32
    %9 = arith.extui %8 : i1 to i32
    %c0_i32_6 = arith.constant 0 : i32
    %10 = arith.cmpi ne, %9, %c0_i32_6 : i32
    scf.if %10 {
      %c0_7 = arith.constant 0 : index
      %c0_8 = arith.constant 0 : index
      %11 = vector.load %arg8[%c0_7, %c0_8] : memref<1x64xf32, #tpu.memory_space<vmem>>, vector<1x64xf32>
      %cst_9 = arith.constant 0.001953125 : f32
      %12 = vector.broadcast %cst_9 : f32 to vector<1x64xf32>
      %13 = arith.mulf %11, %12 : vector<1x64xf32>
      %c0_10 = arith.constant 0 : index
      %c0_11 = arith.constant 0 : index
      %14 = vector.load %arg9[%c0_10, %c0_11] : memref<1x64xf32, #tpu.memory_space<vmem>>, vector<1x64xf32>
      %cst_12 = arith.constant 0.001953125 : f32
      %15 = vector.broadcast %cst_12 : f32 to vector<1x64xf32>
      %16 = arith.mulf %14, %15 : vector<1x64xf32>
      %17 = arith.mulf %13, %13 : vector<1x64xf32>
      %18 = arith.subf %16, %17 : vector<1x64xf32>
      %cst_13 = arith.constant 9.99999974E-6 : f32
      %19 = vector.broadcast %cst_13 : f32 to vector<1x64xf32>
      %20 = arith.addf %18, %19 : vector<1x64xf32>
      %21 = math.rsqrt %20 : vector<1x64xf32>
      %22 = vector.broadcast %13 : vector<1x64xf32> to vector<128x64xf32>
      %23 = arith.subf %4, %22 : vector<128x64xf32>
      %24 = vector.broadcast %21 : vector<1x64xf32> to vector<128x64xf32>
      %25 = arith.mulf %23, %24 : vector<128x64xf32>
      %c0_14 = arith.constant 0 : index
      %c0_15 = arith.constant 0 : index
      %26 = vector.load %arg5[%c0_14, %c0_15] : memref<1x64xf32, #tpu.memory_space<vmem>>, vector<1x64xf32>
      %27 = vector.broadcast %26 : vector<1x64xf32> to vector<128x64xf32>
      %28 = arith.mulf %25, %27 : vector<128x64xf32>
      %c0_16 = arith.constant 0 : index
      %c0_17 = arith.constant 0 : index
      %29 = vector.load %arg6[%c0_16, %c0_17] : memref<1x64xf32, #tpu.memory_space<vmem>>, vector<1x64xf32>
      %30 = vector.broadcast %29 : vector<1x64xf32> to vector<128x64xf32>
      %31 = arith.addf %28, %30 : vector<128x64xf32>
      %cst_18 = arith.constant 0.000000e+00 : f32
      %32 = vector.broadcast %cst_18 : f32 to vector<128x64xf32>
      %33 = arith.maximumf %31, %32 : vector<128x64xf32>
      %34 = arith.truncf %33 : vector<128x64xf32> to vector<128x64xbf16>
      %c0_19 = arith.constant 0 : index
      %c0_20 = arith.constant 0 : index
      %c0_21 = arith.constant 0 : index
      %35 = vector.load %arg7[%c0_19, %c0_20, %c0_21] : memref<1x128x64xbf16, #tpu.memory_space<vmem>>, vector<1x128x64xbf16>
      %36 = vector.shape_cast %35 : vector<1x128x64xbf16> to vector<128x64xbf16>
      %37 = vector.shape_cast %34 : vector<128x64xbf16> to vector<1x128x64xbf16>
      tpu.vector_store %arg7[%c0_19, %c0_20, %c0_21], %37 {strides = array<i32>} : memref<1x128x64xbf16, #tpu.memory_space<vmem>>, vector<1x128x64xbf16>,
    } else {
    }
    return
  }
  func.func @transform_0(%arg0: i32, %arg1: i32, %arg2: i32) -> (i32, i32, i32) {
    %c0_i32 = arith.constant 0 : i32
    %c0_i32_0 = arith.constant 0 : i32
    return %arg1, %arg2, %c0_i32 : i32, i32, i32
  }
  func.func @transform_1(%arg0: i32, %arg1: i32, %arg2: i32) -> (i32, i32, i32) {
    %c0_i32 = arith.constant 0 : i32
    %c0_i32_0 = arith.constant 0 : i32
    %c0_i32_1 = arith.constant 0 : i32
    return %arg1, %c0_i32, %c0_i32_0 : i32, i32, i32
  }
  func.func @transform_2(%arg0: i32, %arg1: i32, %arg2: i32) -> (i32, i32) {
    %c0_i32 = arith.constant 0 : i32
    %c0_i32_0 = arith.constant 0 : i32
    %c0_i32_1 = arith.constant 0 : i32
    return %c0_i32, %c0_i32_0 : i32, i32
  }
  func.func @transform_3(%arg0: i32, %arg1: i32, %arg2: i32) -> (i32, i32) {
    %c0_i32 = arith.constant 0 : i32
    %c0_i32_0 = arith.constant 0 : i32
    %c0_i32_1 = arith.constant 0 : i32
    return %c0_i32, %c0_i32_0 : i32, i32
  }
  func.func @transform_4(%arg0: i32, %arg1: i32, %arg2: i32) -> (i32, i32, i32) {
    %c0_i32 = arith.constant 0 : i32
    %c0_i32_0 = arith.constant 0 : i32
    return %arg1, %arg2, %c0_i32 : i32, i32, i32
  }
}

module attributes {stable_mosaic.version = 11 : i64} {
  func.func @_convt_bn_relu_kernel(%arg0: i32, %arg1: i32, %arg2: i32, %arg3: memref<1x512x256xbf16, #tpu.memory_space<vmem>>, %arg4: memref<1x256x32xbf16, #tpu.memory_space<vmem>>, %arg5: memref<1x32xf32, #tpu.memory_space<vmem>>, %arg6: memref<1x32xf32, #tpu.memory_space<vmem>>, %arg7: memref<1x512x32xbf16, #tpu.memory_space<vmem>>, %arg8: memref<1x32xf32, #tpu.memory_space<vmem>>, %arg9: memref<1x32xf32, #tpu.memory_space<vmem>>) attributes {dimension_semantics = [#tpu.dimension_semantics<arbitrary>, #tpu.dimension_semantics<arbitrary>, #tpu.dimension_semantics<arbitrary>], iteration_bounds = array<i64: 2, 4, 1>, scalar_prefetch = 0 : i64, scratch_operands = 2 : i64, tpu.core_type = #tpu.core_type<tc>, window_params = [{transform_indices = @transform_0, window_bounds = array<i64: 1, 512, 256>}, {transform_indices = @transform_1, window_bounds = array<i64: 1, 256, 32>}, {pipeline_mode = #tpu.pipeline_mode<synchronous>, transform_indices = @transform_2, window_bounds = array<i64: 1, 32>}, {pipeline_mode = #tpu.pipeline_mode<synchronous>, transform_indices = @transform_3, window_bounds = array<i64: 1, 32>}, {transform_indices = @transform_4, window_bounds = array<i64: 1, 512, 32>}]} {
    %c0 = arith.constant 0 : index
    %c0_0 = arith.constant 0 : index
    %c0_1 = arith.constant 0 : index
    %0 = vector.load %arg3[%c0, %c0_0, %c0_1] : memref<1x512x256xbf16, #tpu.memory_space<vmem>>, vector<1x512x256xbf16>
    %1 = vector.shape_cast %0 : vector<1x512x256xbf16> to vector<512x256xbf16>
    %c0_2 = arith.constant 0 : index
    %c0_3 = arith.constant 0 : index
    %c0_4 = arith.constant 0 : index
    %2 = vector.load %arg4[%c0_2, %c0_3, %c0_4] : memref<1x256x32xbf16, #tpu.memory_space<vmem>>, vector<1x256x32xbf16>
    %3 = vector.shape_cast %2 : vector<1x256x32xbf16> to vector<256x32xbf16>
    %cst = arith.constant dense<0.000000e+00> : vector<512x32xf32>
    %4 = tpu.matmul %1, %3, %cst {dimension_numbers = #tpu.dot_dimension_numbers<[1], [0], [0], [1], [0, 0, 1, 1], [], []>} : vector<512x256xbf16>, vector<256x32xbf16>, vector<512x32xf32> -> vector<512x32xf32>
    %c0_i32 = arith.constant 0 : i32
    %5 = arith.cmpi eq, %arg0, %c0_i32 : i32
    %6 = arith.extui %5 : i1 to i32
    %c0_i32_5 = arith.constant 0 : i32
    %7 = arith.cmpi ne, %6, %c0_i32_5 : i32
    scf.if %7 {
      %c0_i32_7 = arith.constant 0 : i32
      %11 = arith.cmpi eq, %arg1, %c0_i32_7 : i32
      %c0_i32_8 = arith.constant 0 : i32
      %12 = arith.cmpi eq, %arg2, %c0_i32_8 : i32
      %13 = arith.andi %11, %12 : i1
      %14 = arith.extui %13 : i1 to i32
      %c0_i32_9 = arith.constant 0 : i32
      %15 = arith.cmpi ne, %14, %c0_i32_9 : i32
      scf.if %15 {
        %cst_20 = arith.constant 0.000000e+00 : f32
        %27 = vector.broadcast %cst_20 : f32 to vector<1x32xf32>
        %c0_21 = arith.constant 0 : index
        %c0_22 = arith.constant 0 : index
        %28 = vector.load %arg8[%c0_21, %c0_22] : memref<1x32xf32, #tpu.memory_space<vmem>>, vector<1x32xf32>
        tpu.vector_store %arg8[%c0_21, %c0_22], %27 {strides = array<i32>} : memref<1x32xf32, #tpu.memory_space<vmem>>, vector<1x32xf32>,
        %cst_23 = arith.constant 0.000000e+00 : f32
        %29 = vector.broadcast %cst_23 : f32 to vector<1x32xf32>
        %c0_24 = arith.constant 0 : index
        %c0_25 = arith.constant 0 : index
        %30 = vector.load %arg9[%c0_24, %c0_25] : memref<1x32xf32, #tpu.memory_space<vmem>>, vector<1x32xf32>
        tpu.vector_store %arg9[%c0_24, %c0_25], %29 {strides = array<i32>} : memref<1x32xf32, #tpu.memory_space<vmem>>, vector<1x32xf32>,
      } else {
      }
      %c0_10 = arith.constant 0 : index
      %c0_11 = arith.constant 0 : index
      %16 = vector.load %arg8[%c0_10, %c0_11] : memref<1x32xf32, #tpu.memory_space<vmem>>, vector<1x32xf32>
      %cst_12 = arith.constant dense<0.000000e+00> : vector<32xf32>
      %17 = vector.multi_reduction <add>, %4, %cst_12 [0] : vector<512x32xf32> to vector<32xf32>
      %18 = vector.shape_cast %17 : vector<32xf32> to vector<1x32xf32>
      %19 = arith.addf %16, %18 : vector<1x32xf32>
      %c0_13 = arith.constant 0 : index
      %c0_14 = arith.constant 0 : index
      %20 = vector.load %arg8[%c0_13, %c0_14] : memref<1x32xf32, #tpu.memory_space<vmem>>, vector<1x32xf32>
      tpu.vector_store %arg8[%c0_13, %c0_14], %19 {strides = array<i32>} : memref<1x32xf32, #tpu.memory_space<vmem>>, vector<1x32xf32>,
      %c0_15 = arith.constant 0 : index
      %c0_16 = arith.constant 0 : index
      %21 = vector.load %arg9[%c0_15, %c0_16] : memref<1x32xf32, #tpu.memory_space<vmem>>, vector<1x32xf32>
      %22 = arith.mulf %4, %4 : vector<512x32xf32>
      %cst_17 = arith.constant dense<0.000000e+00> : vector<32xf32>
      %23 = vector.multi_reduction <add>, %22, %cst_17 [0] : vector<512x32xf32> to vector<32xf32>
      %24 = vector.shape_cast %23 : vector<32xf32> to vector<1x32xf32>
      %25 = arith.addf %21, %24 : vector<1x32xf32>
      %c0_18 = arith.constant 0 : index
      %c0_19 = arith.constant 0 : index
      %26 = vector.load %arg9[%c0_18, %c0_19] : memref<1x32xf32, #tpu.memory_space<vmem>>, vector<1x32xf32>
      tpu.vector_store %arg9[%c0_18, %c0_19], %25 {strides = array<i32>} : memref<1x32xf32, #tpu.memory_space<vmem>>, vector<1x32xf32>,
    } else {
    }
    %c1_i32 = arith.constant 1 : i32
    %8 = arith.cmpi eq, %arg0, %c1_i32 : i32
    %9 = arith.extui %8 : i1 to i32
    %c0_i32_6 = arith.constant 0 : i32
    %10 = arith.cmpi ne, %9, %c0_i32_6 : i32
    scf.if %10 {
      %c0_7 = arith.constant 0 : index
      %c0_8 = arith.constant 0 : index
      %11 = vector.load %arg8[%c0_7, %c0_8] : memref<1x32xf32, #tpu.memory_space<vmem>>, vector<1x32xf32>
      %cst_9 = arith.constant 4.8828125E-4 : f32
      %12 = vector.broadcast %cst_9 : f32 to vector<1x32xf32>
      %13 = arith.mulf %11, %12 : vector<1x32xf32>
      %c0_10 = arith.constant 0 : index
      %c0_11 = arith.constant 0 : index
      %14 = vector.load %arg9[%c0_10, %c0_11] : memref<1x32xf32, #tpu.memory_space<vmem>>, vector<1x32xf32>
      %cst_12 = arith.constant 4.8828125E-4 : f32
      %15 = vector.broadcast %cst_12 : f32 to vector<1x32xf32>
      %16 = arith.mulf %14, %15 : vector<1x32xf32>
      %17 = arith.mulf %13, %13 : vector<1x32xf32>
      %18 = arith.subf %16, %17 : vector<1x32xf32>
      %cst_13 = arith.constant 9.99999974E-6 : f32
      %19 = vector.broadcast %cst_13 : f32 to vector<1x32xf32>
      %20 = arith.addf %18, %19 : vector<1x32xf32>
      %21 = math.rsqrt %20 : vector<1x32xf32>
      %22 = vector.broadcast %13 : vector<1x32xf32> to vector<512x32xf32>
      %23 = arith.subf %4, %22 : vector<512x32xf32>
      %24 = vector.broadcast %21 : vector<1x32xf32> to vector<512x32xf32>
      %25 = arith.mulf %23, %24 : vector<512x32xf32>
      %c0_14 = arith.constant 0 : index
      %c0_15 = arith.constant 0 : index
      %26 = vector.load %arg5[%c0_14, %c0_15] : memref<1x32xf32, #tpu.memory_space<vmem>>, vector<1x32xf32>
      %27 = vector.broadcast %26 : vector<1x32xf32> to vector<512x32xf32>
      %28 = arith.mulf %25, %27 : vector<512x32xf32>
      %c0_16 = arith.constant 0 : index
      %c0_17 = arith.constant 0 : index
      %29 = vector.load %arg6[%c0_16, %c0_17] : memref<1x32xf32, #tpu.memory_space<vmem>>, vector<1x32xf32>
      %30 = vector.broadcast %29 : vector<1x32xf32> to vector<512x32xf32>
      %31 = arith.addf %28, %30 : vector<512x32xf32>
      %cst_18 = arith.constant 0.000000e+00 : f32
      %32 = vector.broadcast %cst_18 : f32 to vector<512x32xf32>
      %33 = arith.maximumf %31, %32 : vector<512x32xf32>
      %34 = arith.truncf %33 : vector<512x32xf32> to vector<512x32xbf16>
      %c0_19 = arith.constant 0 : index
      %c0_20 = arith.constant 0 : index
      %c0_21 = arith.constant 0 : index
      %35 = vector.load %arg7[%c0_19, %c0_20, %c0_21] : memref<1x512x32xbf16, #tpu.memory_space<vmem>>, vector<1x512x32xbf16>
      %36 = vector.shape_cast %35 : vector<1x512x32xbf16> to vector<512x32xbf16>
      %37 = vector.shape_cast %34 : vector<512x32xbf16> to vector<1x512x32xbf16>
      tpu.vector_store %arg7[%c0_19, %c0_20, %c0_21], %37 {strides = array<i32>} : memref<1x512x32xbf16, #tpu.memory_space<vmem>>, vector<1x512x32xbf16>,
    } else {
    }
    return
  }
  func.func @transform_0(%arg0: i32, %arg1: i32, %arg2: i32) -> (i32, i32, i32) {
    %c0_i32 = arith.constant 0 : i32
    %c0_i32_0 = arith.constant 0 : i32
    return %arg1, %arg2, %c0_i32 : i32, i32, i32
  }
  func.func @transform_1(%arg0: i32, %arg1: i32, %arg2: i32) -> (i32, i32, i32) {
    %c0_i32 = arith.constant 0 : i32
    %c0_i32_0 = arith.constant 0 : i32
    %c0_i32_1 = arith.constant 0 : i32
    return %arg1, %c0_i32, %c0_i32_0 : i32, i32, i32
  }
  func.func @transform_2(%arg0: i32, %arg1: i32, %arg2: i32) -> (i32, i32) {
    %c0_i32 = arith.constant 0 : i32
    %c0_i32_0 = arith.constant 0 : i32
    %c0_i32_1 = arith.constant 0 : i32
    return %c0_i32, %c0_i32_0 : i32, i32
  }
  func.func @transform_3(%arg0: i32, %arg1: i32, %arg2: i32) -> (i32, i32) {
    %c0_i32 = arith.constant 0 : i32
    %c0_i32_0 = arith.constant 0 : i32
    %c0_i32_1 = arith.constant 0 : i32
    return %c0_i32, %c0_i32_0 : i32, i32
  }
  func.func @transform_4(%arg0: i32, %arg1: i32, %arg2: i32) -> (i32, i32, i32) {
    %c0_i32 = arith.constant 0 : i32
    %c0_i32_0 = arith.constant 0 : i32
    return %arg1, %arg2, %c0_i32 : i32, i32, i32
  }
}

module attributes {stable_mosaic.version = 11 : i64} {
  func.func @_convt_tanh_kernel(%arg0: i32, %arg1: i32, %arg2: memref<1x512x128xbf16, #tpu.memory_space<vmem>>, %arg3: memref<1x128x3xbf16, #tpu.memory_space<vmem>>, %arg4: memref<1x512x3xf32, #tpu.memory_space<vmem>>) attributes {dimension_semantics = [#tpu.dimension_semantics<parallel>, #tpu.dimension_semantics<parallel>], iteration_bounds = array<i64: 4, 4>, scalar_prefetch = 0 : i64, scratch_operands = 0 : i64, tpu.core_type = #tpu.core_type<tc>, window_params = [{transform_indices = @transform_0, window_bounds = array<i64: 1, 512, 128>}, {transform_indices = @transform_1, window_bounds = array<i64: 1, 128, 3>}, {transform_indices = @transform_2, window_bounds = array<i64: 1, 512, 3>}]} {
    %c0 = arith.constant 0 : index
    %c0_0 = arith.constant 0 : index
    %c0_1 = arith.constant 0 : index
    %0 = vector.load %arg2[%c0, %c0_0, %c0_1] : memref<1x512x128xbf16, #tpu.memory_space<vmem>>, vector<1x512x128xbf16>
    %1 = vector.shape_cast %0 : vector<1x512x128xbf16> to vector<512x128xbf16>
    %c0_2 = arith.constant 0 : index
    %c0_3 = arith.constant 0 : index
    %c0_4 = arith.constant 0 : index
    %2 = vector.load %arg3[%c0_2, %c0_3, %c0_4] : memref<1x128x3xbf16, #tpu.memory_space<vmem>>, vector<1x128x3xbf16>
    %3 = vector.shape_cast %2 : vector<1x128x3xbf16> to vector<128x3xbf16>
    %cst = arith.constant dense<0.000000e+00> : vector<512x3xf32>
    %4 = tpu.matmul %1, %3, %cst {dimension_numbers = #tpu.dot_dimension_numbers<[1], [0], [0], [1], [0, 0, 1, 1], [], []>} : vector<512x128xbf16>, vector<128x3xbf16>, vector<512x3xf32> -> vector<512x3xf32>
    %5 = math.tanh %4 : vector<512x3xf32>
    %c0_5 = arith.constant 0 : index
    %c0_6 = arith.constant 0 : index
    %c0_7 = arith.constant 0 : index
    %6 = vector.load %arg4[%c0_5, %c0_6, %c0_7] : memref<1x512x3xf32, #tpu.memory_space<vmem>>, vector<1x512x3xf32>
    %7 = vector.shape_cast %6 : vector<1x512x3xf32> to vector<512x3xf32>
    %8 = vector.shape_cast %5 : vector<512x3xf32> to vector<1x512x3xf32>
    tpu.vector_store %arg4[%c0_5, %c0_6, %c0_7], %8 {strides = array<i32>} : memref<1x512x3xf32, #tpu.memory_space<vmem>>, vector<1x512x3xf32>,
    return
  }
  func.func @transform_0(%arg0: i32, %arg1: i32) -> (i32, i32, i32) {
    %c0_i32 = arith.constant 0 : i32
    %c0_i32_0 = arith.constant 0 : i32
    return %arg0, %arg1, %c0_i32 : i32, i32, i32
  }
  func.func @transform_1(%arg0: i32, %arg1: i32) -> (i32, i32, i32) {
    %c0_i32 = arith.constant 0 : i32
    %c0_i32_0 = arith.constant 0 : i32
    %c0_i32_1 = arith.constant 0 : i32
    return %arg0, %c0_i32, %c0_i32_0 : i32, i32, i32
  }
  func.func @transform_2(%arg0: i32, %arg1: i32) -> (i32, i32, i32) {
    %c0_i32 = arith.constant 0 : i32
    %c0_i32_0 = arith.constant 0 : i32
    return %arg0, %arg1, %c0_i32 : i32, i32, i32
  }
}

</mosaic_0001>

<llo_original>
// kernel: frame_generator_forward.5
$region0: #{frame_generator_forward.5}
  #allocation0 [shape = 'u32[]', space=smem, size = 0x4, offset = 0x4, fixed_abs, tag = 'smem constant byte address 0x4 - core index']
  #allocation1 [shape = 'u32[72,128]{1,0:T(1,128)}', space=vmem, size = 0x9000, scoped, tag = 'internal scratch']
  %s0 = inlined_call_operand.vmem [shape: bf16[2,32], index: 0, kind: input, shape index: {}]
  %s1 = inlined_call_operand.hbm [shape: bf16[32,4096], index: 1, kind: input, shape index: {}]
  %s2 = inlined_call_operand.hbm [shape: f32[1,256], index: 2, kind: input, shape index: {}]
  %s3 = inlined_call_operand.hbm [shape: f32[1,256], index: 3, kind: input, shape index: {}]
  %s4 = inlined_call_operand.vmem [shape: bf16[2,4096], index: 4, kind: output, shape index: {}]
  %s5 = sld [smem:[#allocation0]]
  $region38: #{frame_generator_forward.5} parent=0
    _
  %s7 = ssub.s32 1, %s5
  %s8 = scalar_select 0, %s7, %s5
  $region1: #{frame_generator_forward.5} parent=0
    #allocation2 [shape = 'u8[262144]{0}', space=vmem, size = 0x40000, scoped, tag = 'input window, operand 1, single buffered']
    #allocation3 [shape = 's32[1]{0}', space=sflag, size = 0x4, scoped, tag = 'scoped memory for frame_generator_forward.5']
    #allocation4 [shape = 'u8[1024]{0}', space=vmem, size = 0x400, scoped, tag = 'input window, operand 2, single buffered']
    #allocation5 [shape = 's32[1]{0}', space=sflag, size = 0x4, scoped, tag = 'scoped memory for frame_generator_forward.5']
    #allocation6 [shape = 'u8[1024]{0}', space=vmem, size = 0x400, scoped, tag = 'input window, operand 3, single buffered']
    %9 = vsyncpa [#allocation3], 0
    %10 = vsyncpa [#allocation5], 0
    // Predicated region
    $region2: #{frame_generator_forward.5} parent=1 // pred_check
      _
    $region3: #{frame_generator_forward.5} parent=1 // pred_check_branch
      %12 = sbr.rel (0) target = $region5
    $region4: #{frame_generator_forward.5} parent=1 // pred_region
      _
    $region5: #{frame_generator_forward.5} parent=1 // pred_fallthru
      _
    // Predicated region
    $region6: #{frame_generator_forward.5} parent=1 // pred_check
      _
    $region7: #{frame_generator_forward.5} parent=1 // pred_check_branch
      %14 = sbr.rel (0) target = $region9
    $region8: #{frame_generator_forward.5} parent=1 // pred_region
      %16 = vsyncadd [#allocation3], 0
      %s17 = sshll.u32 %s1, 4
      %s18 = int_to_ptr.hbm [resolvable:$true] %s17
      %s19 = sshll.u32 [#allocation2], 4
      %s20 = int_to_ptr.vmem [resolvable:$true] %s19
      %25 = dma.hbm_to_vmem [thread:$0]  %s18, 8192, %s20, [#allocation3], 2048, 2048, 128
    $region9: #{frame_generator_forward.5} parent=1 // pred_fallthru
      _
    // Predicated region
    $region10: #{frame_generator_forward.5} parent=1 // pred_check
      _
    $region11: #{frame_generator_forward.5} parent=1 // pred_check_branch
      %27 = sbr.rel (0) target = $region13
    $region12: #{frame_generator_forward.5} parent=1 // pred_region
      %29 = vsyncadd [#allocation5], 0
      %s31 = sshll.u32 %s2, 4
      %s32 = int_to_ptr.hbm [resolvable:$true] %s31
      %s33 = sshll.u32 [#allocation4], 4
      %s34 = int_to_ptr.vmem [resolvable:$true] %s33
      %36 = dma.hbm_to_vmem [thread:$0]  %s32, 32, %s34, [#allocation5]
    $region13: #{frame_generator_forward.5} parent=1 // pred_fallthru
      _
    // Predicated region
    $region14: #{frame_generator_forward.5} parent=1 // pred_check
      _
    $region15: #{frame_generator_forward.5} parent=1 // pred_check_branch
      %38 = sbr.rel (0) target = $region17
    $region16: #{frame_generator_forward.5} parent=1 // pred_region
      %40 = vsyncadd [#allocation5], 0
      %s42 = sshll.u32 %s3, 4
      %s43 = int_to_ptr.hbm [resolvable:$true] %s42
      %s44 = sshll.u32 [#allocation6], 4
      %s45 = int_to_ptr.vmem [resolvable:$true] %s44
      %47 = dma.hbm_to_vmem [thread:$0]  %s43, 32, %s45, [#allocation5]
    $region17: #{frame_generator_forward.5} parent=1 // pred_fallthru
      _
    // Predicated region
    $region18: #{frame_generator_forward.5} parent=1 // pred_check
      _
    $region19: #{frame_generator_forward.5} parent=1 // pred_check_branch
      %49 = sbr.rel (0) target = $region21
    $region20: #{frame_generator_forward.5} parent=1 // pred_region
      %51 = dma.done [#allocation3], 8192
    $region21: #{frame_generator_forward.5} parent=1 // pred_fallthru
      _
    // Predicated region
    $region22: #{frame_generator_forward.5} parent=1 // pred_check
      _
    $region23: #{frame_generator_forward.5} parent=1 // pred_check_branch
      %53 = sbr.rel (0) target = $region25
    $region24: #{frame_generator_forward.5} parent=1 // pred_region
      %55 = dma.done [#allocation5], 32
    $region25: #{frame_generator_forward.5} parent=1 // pred_fallthru
      _
    // Predicated region
    $region26: #{frame_generator_forward.5} parent=1 // pred_check
      _
    $region27: #{frame_generator_forward.5} parent=1 // pred_check_branch
      %57 = sbr.rel (0) target = $region29
    $region28: #{frame_generator_forward.5} parent=1 // pred_region
      %59 = dma.done [#allocation5], 32
    $region29: #{frame_generator_forward.5} parent=1 // pred_fallthru
      _
    %v61 = vld [vmem:[%s0] sm:$0x1]
    %v62 = vld [vmem:[#allocation2] sm:$0xff]
    %v63 = vld [vmem:[#allocation2 + $0x8] sm:$0xff]
    %v64 = vld [vmem:[#allocation2 + $0x10] sm:$0xff]
    %v65 = vld [vmem:[#allocation2 + $0x18] sm:$0xff]
    %v66 = vld [vmem:[#allocation2 + $0x20] sm:$0xff]
    %v67 = vld [vmem:[#allocation2 + $0x28] sm:$0xff]
    %v68 = vld [vmem:[#allocation2 + $0x30] sm:$0xff]
    %v69 = vld [vmem:[#allocation2 + $0x38] sm:$0xff]
    %v70 = vld [vmem:[#allocation2 + $0x40] sm:$0xff]
    %v71 = vld [vmem:[#allocation2 + $0x48] sm:$0xff]
    %v72 = vld [vmem:[#allocation2 + $0x50] sm:$0xff]
    %v73 = vld [vmem:[#allocation2 + $0x58] sm:$0xff]
    %v74 = vld [vmem:[#allocation2 + $0x60] sm:$0xff]
    %v75 = vld [vmem:[#allocation2 + $0x68] sm:$0xff]
    %v76 = vld [vmem:[#allocation2 + $0x70] sm:$0xff]
    %v77 = vld [vmem:[#allocation2 + $0x78] sm:$0xff]
    %v78 = vld [vmem:[#allocation2 + $0x80] sm:$0xff]
    %v79 = vld [vmem:[#allocation2 + $0x88] sm:$0xff]
    %v80 = vld [vmem:[#allocation2 + $0x90] sm:$0xff]
    %v81 = vld [vmem:[#allocation2 + $0x98] sm:$0xff]
    %v82 = vld [vmem:[#allocation2 + $0xa0] sm:$0xff]
    %v83 = vld [vmem:[#allocation2 + $0xa8] sm:$0xff]
    %v84 = vld [vmem:[#allocation2 + $0xb0] sm:$0xff]
    %v85 = vld [vmem:[#allocation2 + $0xb8] sm:$0xff]
    %v86 = vld [vmem:[#allocation2 + $0xc0] sm:$0xff]
    %v87 = vld [vmem:[#allocation2 + $0xc8] sm:$0xff]
    %v88 = vld [vmem:[#allocation2 + $0xd0] sm:$0xff]
    %v89 = vld [vmem:[#allocation2 + $0xd8] sm:$0xff]
    %v90 = vld [vmem:[#allocation2 + $0xe0] sm:$0xff]
    %v91 = vld [vmem:[#allocation2 + $0xe8] sm:$0xff]
    %v92 = vld [vmem:[#allocation2 + $0xf0] sm:$0xff]
    %v93 = vld [vmem:[#allocation2 + $0xf8] sm:$0xff]
    %v94 = vld [vmem:[#allocation2 + $0x100] sm:$0xff]
    %v95 = vld [vmem:[#allocation2 + $0x108] sm:$0xff]
    %v96 = vld [vmem:[#allocation2 + $0x110] sm:$0xff]
    %v97 = vld [vmem:[#allocation2 + $0x118] sm:$0xff]
    %v98 = vld [vmem:[#allocation2 + $0x120] sm:$0xff]
    %v99 = vld [vmem:[#allocation2 + $0x128] sm:$0xff]
    %v100 = vld [vmem:[#allocation2 + $0x130] sm:$0xff]
    %v101 = vld [vmem:[#allocation2 + $0x138] sm:$0xff]
    %v102 = vld [vmem:[#allocation2 + $0x140] sm:$0xff]
    %v103 = vld [vmem:[#allocation2 + $0x148] sm:$0xff]
    %v104 = vld [vmem:[#allocation2 + $0x150] sm:$0xff]
    %v105 = vld [vmem:[#allocation2 + $0x158] sm:$0xff]
    %v106 = vld [vmem:[#allocation2 + $0x160] sm:$0xff]
    %v107 = vld [vmem:[#allocation2 + $0x168] sm:$0xff]
    %v108 = vld [vmem:[#allocation2 + $0x170] sm:$0xff]
    %v109 = vld [vmem:[#allocation2 + $0x178] sm:$0xff]
    %v110 = vld [vmem:[#allocation2 + $0x180] sm:$0xff]
    %v111 = vld [vmem:[#allocation2 + $0x188] sm:$0xff]
    %v112 = vld [vmem:[#allocation2 + $0x190] sm:$0xff]
    %v113 = vld [vmem:[#allocation2 + $0x198] sm:$0xff]
    %v114 = vld [vmem:[#allocation2 + $0x1a0] sm:$0xff]
    %v115 = vld [vmem:[#allocation2 + $0x1a8] sm:$0xff]
    %v116 = vld [vmem:[#allocation2 + $0x1b0] sm:$0xff]
    %v117 = vld [vmem:[#allocation2 + $0x1b8] sm:$0xff]
    %v118 = vld [vmem:[#allocation2 + $0x1c0] sm:$0xff]
    %v119 = vld [vmem:[#allocation2 + $0x1c8] sm:$0xff]
    %v120 = vld [vmem:[#allocation2 + $0x1d0] sm:$0xff]
    %v121 = vld [vmem:[#allocation2 + $0x1d8] sm:$0xff]
    %v122 = vld [vmem:[#allocation2 + $0x1e0] sm:$0xff]
    %v123 = vld [vmem:[#allocation2 + $0x1e8] sm:$0xff]
    %v124 = vld [vmem:[#allocation2 + $0x1f0] sm:$0xff]
    %v125 = vld [vmem:[#allocation2 + $0x1f8] sm:$0xff]
    %v190 = vunpack.c.l.b16 %v62
    %v191 = vunpack.c.h.b16 %v62
    %v192 = vunpack.c.l.b16 %v63
    %v193 = vunpack.c.h.b16 %v63
    %v194 = vunpack.c.l.b16 %v64
    %v195 = vunpack.c.h.b16 %v64
    %v196 = vunpack.c.l.b16 %v65
    %v197 = vunpack.c.h.b16 %v65
    %v198 = vunpack.c.l.b16 %v66
    %v199 = vunpack.c.h.b16 %v66
    %v200 = vunpack.c.l.b16 %v67
    %v201 = vunpack.c.h.b16 %v67
    %v202 = vunpack.c.l.b16 %v68
    %v203 = vunpack.c.h.b16 %v68
    %v204 = vunpack.c.l.b16 %v69
    %v205 = vunpack.c.h.b16 %v69
    %v206 = vunpack.c.l.b16 %v70
    %v207 = vunpack.c.h.b16 %v70
    %v208 = vunpack.c.l.b16 %v71
    %v209 = vunpack.c.h.b16 %v71
    %v210 = vunpack.c.l.b16 %v72
    %v211 = vunpack.c.h.b16 %v72
    %v212 = vunpack.c.l.b16 %v73
    %v213 = vunpack.c.h.b16 %v73
    %v214 = vunpack.c.l.b16 %v74
    %v215 = vunpack.c.h.b16 %v74
    %v216 = vunpack.c.l.b16 %v75
    %v217 = vunpack.c.h.b16 %v75
    %v218 = vunpack.c.l.b16 %v76
    %v219 = vunpack.c.h.b16 %v76
    %v220 = vunpack.c.l.b16 %v77
    %v221 = vunpack.c.h.b16 %v77
    %v222 = vunpack.c.l.b16 %v78
    %v223 = vunpack.c.h.b16 %v78
    %v224 = vunpack.c.l.b16 %v79
    %v225 = vunpack.c.h.b16 %v79
    %v226 = vunpack.c.l.b16 %v80
    %v227 = vunpack.c.h.b16 %v80
    %v228 = vunpack.c.l.b16 %v81
    %v229 = vunpack.c.h.b16 %v81
    %v230 = vunpack.c.l.b16 %v82
    %v231 = vunpack.c.h.b16 %v82
    %v232 = vunpack.c.l.b16 %v83
    %v233 = vunpack.c.h.b16 %v83
    %v234 = vunpack.c.l.b16 %v84
    %v235 = vunpack.c.h.b16 %v84
    %v236 = vunpack.c.l.b16 %v85
    %v237 = vunpack.c.h.b16 %v85
    %v238 = vunpack.c.l.b16 %v86
    %v239 = vunpack.c.h.b16 %v86
    %v240 = vunpack.c.l.b16 %v87
    %v241 = vunpack.c.h.b16 %v87
    %v242 = vunpack.c.l.b16 %v88
    %v243 = vunpack.c.h.b16 %v88
    %v244 = vunpack.c.l.b16 %v89
    %v245 = vunpack.c.h.b16 %v89
    %v246 = vunpack.c.l.b16 %v90
    %v247 = vunpack.c.h.b16 %v90
    %v248 = vunpack.c.l.b16 %v91
    %v249 = vunpack.c.h.b16 %v91
    %v250 = vunpack.c.l.b16 %v92
    %v251 = vunpack.c.h.b16 %v92
    %v252 = vunpack.c.l.b16 %v93
    %v253 = vunpack.c.h.b16 %v93
    %v254 = vunpack.c.l.b16 %v94
    %v255 = vunpack.c.h.b16 %v94
    %v256 = vunpack.c.l.b16 %v95
    %v257 = vunpack.c.h.b16 %v95
    %v258 = vunpack.c.l.b16 %v96
    %v259 = vunpack.c.h.b16 %v96
    %v260 = vunpack.c.l.b16 %v97
    %v261 = vunpack.c.h.b16 %v97
    %v262 = vunpack.c.l.b16 %v98
    %v263 = vunpack.c.h.b16 %v98
    %v264 = vunpack.c.l.b16 %v99
    %v265 = vunpack.c.h.b16 %v99
    %v266 = vunpack.c.l.b16 %v100
    %v267 = vunpack.c.h.b16 %v100
    %v268 = vunpack.c.l.b16 %v101
    %v269 = vunpack.c.h.b16 %v101
    %v270 = vunpack.c.l.b16 %v102
    %v271 = vunpack.c.h.b16 %v102
    %v272 = vunpack.c.l.b16 %v103
    %v273 = vunpack.c.h.b16 %v103
    %v274 = vunpack.c.l.b16 %v104
    %v275 = vunpack.c.h.b16 %v104
    %v276 = vunpack.c.l.b16 %v105
    %v277 = vunpack.c.h.b16 %v105
    %v278 = vunpack.c.l.b16 %v106
    %v279 = vunpack.c.h.b16 %v106
    %v280 = vunpack.c.l.b16 %v107
    %v281 = vunpack.c.h.b16 %v107
    %v282 = vunpack.c.l.b16 %v108
    %v283 = vunpack.c.h.b16 %v108
    %v284 = vunpack.c.l.b16 %v109
    %v285 = vunpack.c.h.b16 %v109
    %v286 = vunpack.c.l.b16 %v110
    %v287 = vunpack.c.h.b16 %v110
    %v288 = vunpack.c.l.b16 %v111
    %v289 = vunpack.c.h.b16 %v111
    %v290 = vunpack.c.l.b16 %v112
    %v291 = vunpack.c.h.b16 %v112
    %v292 = vunpack.c.l.b16 %v113
    %v293 = vunpack.c.h.b16 %v113
    %v294 = vunpack.c.l.b16 %v114
    %v295 = vunpack.c.h.b16 %v114
    %v296 = vunpack.c.l.b16 %v115
    %v297 = vunpack.c.h.b16 %v115
    %v298 = vunpack.c.l.b16 %v116
    %v299 = vunpack.c.h.b16 %v116
    %v300 = vunpack.c.l.b16 %v117
    %v301 = vunpack.c.h.b16 %v117
    %v302 = vunpack.c.l.b16 %v118
    %v303 = vunpack.c.h.b16 %v118
    %v304 = vunpack.c.l.b16 %v119
    %v305 = vunpack.c.h.b16 %v119
    %v306 = vunpack.c.l.b16 %v120
    %v307 = vunpack.c.h.b16 %v120
    %v308 = vunpack.c.l.b16 %v121
    %v309 = vunpack.c.h.b16 %v121
    %v310 = vunpack.c.l.b16 %v122
    %v311 = vunpack.c.h.b16 %v122
    %v312 = vunpack.c.l.b16 %v123
    %v313 = vunpack.c.h.b16 %v123
    %v314 = vunpack.c.l.b16 %v124
    %v315 = vunpack.c.h.b16 %v124
    %v316 = vunpack.c.l.b16 %v125
    %v317 = vunpack.c.h.b16 %v125
    %v318 = vpack.c.b16 %v222, %v190
    %v319 = vpack.c.b16 %v223, %v191
    %v320 = vpack.c.b16 %v224, %v192
    %v321 = vpack.c.b16 %v225, %v193
    %v322 = vpack.c.b16 %v226, %v194
    %v323 = vpack.c.b16 %v227, %v195
    %v324 = vpack.c.b16 %v228, %v196
    %v325 = vpack.c.b16 %v229, %v197
    %v326 = vpack.c.b16 %v230, %v198
    %v327 = vpack.c.b16 %v231, %v199
    %v328 = vpack.c.b16 %v232, %v200
    %v329 = vpack.c.b16 %v233, %v201
    %v330 = vpack.c.b16 %v234, %v202
    %v331 = vpack.c.b16 %v235, %v203
    %v332 = vpack.c.b16 %v236, %v204
    %v333 = vpack.c.b16 %v237, %v205
    %v334 = vpack.c.b16 %v238, %v206
    %v335 = vpack.c.b16 %v239, %v207
    %v336 = vpack.c.b16 %v240, %v208
    %v337 = vpack.c.b16 %v241, %v209
    %v338 = vpack.c.b16 %v242, %v210
    %v339 = vpack.c.b16 %v243, %v211
    %v340 = vpack.c.b16 %v244, %v212
    %v341 = vpack.c.b16 %v245, %v213
    %v342 = vpack.c.b16 %v246, %v214
    %v343 = vpack.c.b16 %v247, %v215
    %v344 = vpack.c.b16 %v248, %v216
    %v345 = vpack.c.b16 %v249, %v217
    %v346 = vpack.c.b16 %v250, %v218
    %v347 = vpack.c.b16 %v251, %v219
    %v348 = vpack.c.b16 %v252, %v220
    %v349 = vpack.c.b16 %v253, %v221
    %v350 = vpack.c.b16 %v286, %v254
    %v351 = vpack.c.b16 %v287, %v255
    %v352 = vpack.c.b16 %v288, %v256
    %v353 = vpack.c.b16 %v289, %v257
    %v354 = vpack.c.b16 %v290, %v258
    %v355 = vpack.c.b16 %v291, %v259
    %v356 = vpack.c.b16 %v292, %v260
    %v357 = vpack.c.b16 %v293, %v261
    %v358 = vpack.c.b16 %v294, %v262
    %v359 = vpack.c.b16 %v295, %v263
    %v360 = vpack.c.b16 %v296, %v264
    %v361 = vpack.c.b16 %v297, %v265
    %v362 = vpack.c.b16 %v298, %v266
    %v363 = vpack.c.b16 %v299, %v267
    %v364 = vpack.c.b16 %v300, %v268
    %v365 = vpack.c.b16 %v301, %v269
    %v366 = vpack.c.b16 %v302, %v270
    %v367 = vpack.c.b16 %v303, %v271
    %v368 = vpack.c.b16 %v304, %v272
    %v369 = vpack.c.b16 %v305, %v273
    %v370 = vpack.c.b16 %v306, %v274
    %v371 = vpack.c.b16 %v307, %v275
    %v372 = vpack.c.b16 %v308, %v276
    %v373 = vpack.c.b16 %v309, %v277
    %v374 = vpack.c.b16 %v310, %v278
    %v375 = vpack.c.b16 %v311, %v279
    %v376 = vpack.c.b16 %v312, %v280
    %v377 = vpack.c.b16 %v313, %v281
    %v378 = vpack.c.b16 %v314, %v282
    %v379 = vpack.c.b16 %v315, %v283
    %v380 = vpack.c.b16 %v316, %v284
    %v381 = vpack.c.b16 %v317, %v285
    %vm446 = vcmask 261120
    %v448 = vsel %vm446, %v61, 0
    %450 = vmatpush.bf16.msra.mxu0 0
    %451 = vmatpush.bf16.msra.mxu0 0
    %452 = vmatpush.bf16.msra.mxu0 0
    %453 = vmatpush.bf16.msra.mxu0 0
    %454 = vmatpush.bf16.msra.mxu0 0
    %455 = vmatpush.bf16.msra.mxu0 0
    %456 = vmatpush.bf16.msra.mxu0 %v350
    %457 = vmatpush.bf16.msra.mxu0 %v318
    %458 = vmatmul.bf16.gmra.mxu0 %v448
    %v459 = vpop.f32.mrf.mxu0
    %v460 = vadd.f32 0.0, %v459
    %v461 = vpop.f32.mrf.mxu0
    %462 = vdwg.mxu0
    %463 = vmatpush.bf16.msra.mxu0 0
    %464 = vmatpush.bf16.msra.mxu0 0
    %465 = vmatpush.bf16.msra.mxu0 0
    %466 = vmatpush.bf16.msra.mxu0 0
    %467 = vmatpush.bf16.msra.mxu0 0
    %468 = vmatpush.bf16.msra.mxu0 0
    %469 = vmatpush.bf16.msra.mxu0 %v351
    %470 = vmatpush.bf16.msra.mxu0 %v319
    %471 = vmatmul.bf16.gmra.mxu0 %v448
    %v472 = vpop.f32.mrf.mxu0
    %v473 = vadd.f32 0.0, %v472
    %v474 = vpop.f32.mrf.mxu0
    %475 = vdwg.mxu0
    %476 = vmatpush.bf16.msra.mxu0 0
    %477 = vmatpush.bf16.msra.mxu0 0
    %478 = vmatpush.bf16.msra.mxu0 0
    %479 = vmatpush.bf16.msra.mxu0 0
    %480 = vmatpush.bf16.msra.mxu0 0
    %481 = vmatpush.bf16.msra.mxu0 0
    %482 = vmatpush.bf16.msra.mxu0 %v352
    %483 = vmatpush.bf16.msra.mxu0 %v320
    %484 = vmatmul.bf16.gmra.mxu0 %v448
    %v485 = vpop.f32.mrf.mxu0
    %v486 = vadd.f32 0.0, %v485
    %v487 = vpop.f32.mrf.mxu0
    %488 = vdwg.mxu0
    %489 = vmatpush.bf16.msra.mxu0 0
    %490 = vmatpush.bf16.msra.mxu0 0
    %491 = vmatpush.bf16.msra.mxu0 0
    %492 = vmatpush.bf16.msra.mxu0 0
    %493 = vmatpush.bf16.msra.mxu0 0
    %494 = vmatpush.bf16.msra.mxu0 0
    %495 = vmatpush.bf16.msra.mxu0 %v353
    %496 = vmatpush.bf16.msra.mxu0 %v321
    %497 = vmatmul.bf16.gmra.mxu0 %v448
    %v498 = vpop.f32.mrf.mxu0
    %v499 = vadd.f32 0.0, %v498
    %v500 = vpop.f32.mrf.mxu0
    %501 = vdwg.mxu0
    %502 = vmatpush.bf16.msra.mxu0 0
    %503 = vmatpush.bf16.msra.mxu0 0
    %504 = vmatpush.bf16.msra.mxu0 0
    %505 = vmatpush.bf16.msra.mxu0 0
    %506 = vmatpush.bf16.msra.mxu0 0
    %507 = vmatpush.bf16.msra.mxu0 0
    %508 = vmatpush.bf16.msra.mxu0 %v354
    %509 = vmatpush.bf16.msra.mxu0 %v322
    %510 = vmatmul.bf16.gmra.mxu0 %v448
    %v511 = vpop.f32.mrf.mxu0
    %v512 = vadd.f32 0.0, %v511
    %v513 = vpop.f32.mrf.mxu0
    %514 = vdwg.mxu0
    %515 = vmatpush.bf16.msra.mxu0 0
    %516 = vmatpush.bf16.msra.mxu0 0
    %517 = vmatpush.bf16.msra.mxu0 0
    %518 = vmatpush.bf16.msra.mxu0 0
    %519 = vmatpush.bf16.msra.mxu0 0
    %520 = vmatpush.bf16.msra.mxu0 0
    %521 = vmatpush.bf16.msra.mxu0 %v355
    %522 = vmatpush.bf16.msra.mxu0 %v323
    %523 = vmatmul.bf16.gmra.mxu0 %v448
    %v524 = vpop.f32.mrf.mxu0
    %v525 = vadd.f32 0.0, %v524
    %v526 = vpop.f32.mrf.mxu0
    %527 = vdwg.mxu0
    %528 = vmatpush.bf16.msra.mxu0 0
    %529 = vmatpush.bf16.msra.mxu0 0
    %530 = vmatpush.bf16.msra.mxu0 0
    %531 = vmatpush.bf16.msra.mxu0 0
    %532 = vmatpush.bf16.msra.mxu0 0
    %533 = vmatpush.bf16.msra.mxu0 0
    %534 = vmatpush.bf16.msra.mxu0 %v356
    %535 = vmatpush.bf16.msra.mxu0 %v324
    %536 = vmatmul.bf16.gmra.mxu0 %v448
    %v537 = vpop.f32.mrf.mxu0
    %v538 = vadd.f32 0.0, %v537
    %v539 = vpop.f32.mrf.mxu0
    %540 = vdwg.mxu0
    %541 = vmatpush.bf16.msra.mxu0 0
    %542 = vmatpush.bf16.msra.mxu0 0
    %543 = vmatpush.bf16.msra.mxu0 0
    %544 = vmatpush.bf16.msra.mxu0 0
    %545 = vmatpush.bf16.msra.mxu0 0
    %546 = vmatpush.bf16.msra.mxu0 0
    %547 = vmatpush.bf16.msra.mxu0 %v357
    %548 = vmatpush.bf16.msra.mxu0 %v325
    %549 = vmatmul.bf16.gmra.mxu0 %v448
    %v550 = vpop.f32.mrf.mxu0
    %v551 = vadd.f32 0.0, %v550
    %v552 = vpop.f32.mrf.mxu0
    %553 = vdwg.mxu0
    %554 = vmatpush.bf16.msra.mxu0 0
    %555 = vmatpush.bf16.msra.mxu0 0
    %556 = vmatpush.bf16.msra.mxu0 0
    %557 = vmatpush.bf16.msra.mxu0 0
    %558 = vmatpush.bf16.msra.mxu0 0
    %559 = vmatpush.bf16.msra.mxu0 0
    %560 = vmatpush.bf16.msra.mxu0 %v358
    %561 = vmatpush.bf16.msra.mxu0 %v326
    %562 = vmatmul.bf16.gmra.mxu0 %v448
    %v563 = vpop.f32.mrf.mxu0
    %v564 = vadd.f32 0.0, %v563
    %v565 = vpop.f32.mrf.mxu0
    %566 = vdwg.mxu0
    %567 = vmatpush.bf16.msra.mxu0 0
    %568 = vmatpush.bf16.msra.mxu0 0
    %569 = vmatpush.bf16.msra.mxu0 0
    %570 = vmatpush.bf16.msra.mxu0 0
    %571 = vmatpush.bf16.msra.mxu0 0
    %572 = vmatpush.bf16.msra.mxu0 0
    %573 = vmatpush.bf16.msra.mxu0 %v359
    %574 = vmatpush.bf16.msra.mxu0 %v327
    %575 = vmatmul.bf16.gmra.mxu0 %v448
    %v576 = vpop.f32.mrf.mxu0
    %v577 = vadd.f32 0.0, %v576
    %v578 = vpop.f32.mrf.mxu0
    %579 = vdwg.mxu0
    %580 = vmatpush.bf16.msra.mxu0 0
    %581 = vmatpush.bf16.msra.mxu0 0
    %582 = vmatpush.bf16.msra.mxu0 0
    %583 = vmatpush.bf16.msra.mxu0 0
    %584 = vmatpush.bf16.msra.mxu0 0
    %585 = vmatpush.bf16.msra.mxu0 0
    %586 = vmatpush.bf16.msra.mxu0 %v360
    %587 = vmatpush.bf16.msra.mxu0 %v328
    %588 = vmatmul.bf16.gmra.mxu0 %v448
    %v589 = vpop.f32.mrf.mxu0
    %v590 = vadd.f32 0.0, %v589
    %v591 = vpop.f32.mrf.mxu0
    %592 = vdwg.mxu0
    %593 = vmatpush.bf16.msra.mxu0 0
    %594 = vmatpush.bf16.msra.mxu0 0
    %595 = vmatpush.bf16.msra.mxu0 0
    %596 = vmatpush.bf16.msra.mxu0 0
    %597 = vmatpush.bf16.msra.mxu0 0
    %598 = vmatpush.bf16.msra.mxu0 0
    %599 = vmatpush.bf16.msra.mxu0 %v361
    %600 = vmatpush.bf16.msra.mxu0 %v329
    %601 = vmatmul.bf16.gmra.mxu0 %v448
    %v602 = vpop.f32.mrf.mxu0
    %v603 = vadd.f32 0.0, %v602
    %v604 = vpop.f32.mrf.mxu0
    %605 = vdwg.mxu0
    %606 = vmatpush.bf16.msra.mxu0 0
    %607 = vmatpush.bf16.msra.mxu0 0
    %608 = vmatpush.bf16.msra.mxu0 0
    %609 = vmatpush.bf16.msra.mxu0 0
    %610 = vmatpush.bf16.msra.mxu0 0
    %611 = vmatpush.bf16.msra.mxu0 0
    %612 = vmatpush.bf16.msra.mxu0 %v362
    %613 = vmatpush.bf16.msra.mxu0 %v330
    %614 = vmatmul.bf16.gmra.mxu0 %v448
    %v615 = vpop.f32.mrf.mxu0
    %v616 = vadd.f32 0.0, %v615
    %v617 = vpop.f32.mrf.mxu0
    %618 = vdwg.mxu0
    %619 = vmatpush.bf16.msra.mxu0 0
    %620 = vmatpush.bf16.msra.mxu0 0
    %621 = vmatpush.bf16.msra.mxu0 0
    %622 = vmatpush.bf16.msra.mxu0 0
    %623 = vmatpush.bf16.msra.mxu0 0
    %624 = vmatpush.bf16.msra.mxu0 0
    %625 = vmatpush.bf16.msra.mxu0 %v363
    %626 = vmatpush.bf16.msra.mxu0 %v331
    %627 = vmatmul.bf16.gmra.mxu0 %v448
    %v628 = vpop.f32.mrf.mxu0
    %v629 = vadd.f32 0.0, %v628
    %v630 = vpop.f32.mrf.mxu0
    %631 = vdwg.mxu0
    %632 = vmatpush.bf16.msra.mxu0 0
    %633 = vmatpush.bf16.msra.mxu0 0
    %634 = vmatpush.bf16.msra.mxu0 0
    %635 = vmatpush.bf16.msra.mxu0 0
    %636 = vmatpush.bf16.msra.mxu0 0
    %637 = vmatpush.bf16.msra.mxu0 0
    %638 = vmatpush.bf16.msra.mxu0 %v364
    %639 = vmatpush.bf16.msra.mxu0 %v332
    %640 = vmatmul.bf16.gmra.mxu0 %v448
    %v641 = vpop.f32.mrf.mxu0
    %v642 = vadd.f32 0.0, %v641
    %v643 = vpop.f32.mrf.mxu0
    %644 = vdwg.mxu0
    %645 = vmatpush.bf16.msra.mxu0 0
    %646 = vmatpush.bf16.msra.mxu0 0
    %647 = vmatpush.bf16.msra.mxu0 0
    %648 = vmatpush.bf16.msra.mxu0 0
    %649 = vmatpush.bf16.msra.mxu0 0
    %650 = vmatpush.bf16.msra.mxu0 0
    %651 = vmatpush.bf16.msra.mxu0 %v365
    %652 = vmatpush.bf16.msra.mxu0 %v333
    %653 = vmatmul.bf16.gmra.mxu0 %v448
    %v654 = vpop.f32.mrf.mxu0
    %v655 = vadd.f32 0.0, %v654
    %v656 = vpop.f32.mrf.mxu0
    %657 = vdwg.mxu0
    %658 = vmatpush.bf16.msra.mxu0 0
    %659 = vmatpush.bf16.msra.mxu0 0
    %660 = vmatpush.bf16.msra.mxu0 0
    %661 = vmatpush.bf16.msra.mxu0 0
    %662 = vmatpush.bf16.msra.mxu0 0
    %663 = vmatpush.bf16.msra.mxu0 0
    %664 = vmatpush.bf16.msra.mxu0 %v366
    %665 = vmatpush.bf16.msra.mxu0 %v334
    %666 = vmatmul.bf16.gmra.mxu0 %v448
    %v667 = vpop.f32.mrf.mxu0
    %v668 = vadd.f32 0.0, %v667
    %v669 = vpop.f32.mrf.mxu0
    %670 = vdwg.mxu0
    %671 = vmatpush.bf16.msra.mxu0 0
    %672 = vmatpush.bf16.msra.mxu0 0
    %673 = vmatpush.bf16.msra.mxu0 0
    %674 = vmatpush.bf16.msra.mxu0 0
    %675 = vmatpush.bf16.msra.mxu0 0
    %676 = vmatpush.bf16.msra.mxu0 0
    %677 = vmatpush.bf16.msra.mxu0 %v367
    %678 = vmatpush.bf16.msra.mxu0 %v335
    %679 = vmatmul.bf16.gmra.mxu0 %v448
    %v680 = vpop.f32.mrf.mxu0
    %v681 = vadd.f32 0.0, %v680
    %v682 = vpop.f32.mrf.mxu0
    %683 = vdwg.mxu0
    %684 = vmatpush.bf16.msra.mxu0 0
    %685 = vmatpush.bf16.msra.mxu0 0
    %686 = vmatpush.bf16.msra.mxu0 0
    %687 = vmatpush.bf16.msra.mxu0 0
    %688 = vmatpush.bf16.msra.mxu0 0
    %689 = vmatpush.bf16.msra.mxu0 0
    %690 = vmatpush.bf16.msra.mxu0 %v368
    %691 = vmatpush.bf16.msra.mxu0 %v336
    %692 = vmatmul.bf16.gmra.mxu0 %v448
    %v693 = vpop.f32.mrf.mxu0
    %v694 = vadd.f32 0.0, %v693
    %v695 = vpop.f32.mrf.mxu0
    %696 = vdwg.mxu0
    %697 = vmatpush.bf16.msra.mxu0 0
    %698 = vmatpush.bf16.msra.mxu0 0
    %699 = vmatpush.bf16.msra.mxu0 0
    %700 = vmatpush.bf16.msra.mxu0 0
    %701 = vmatpush.bf16.msra.mxu0 0
    %702 = vmatpush.bf16.msra.mxu0 0
    %703 = vmatpush.bf16.msra.mxu0 %v369
    %704 = vmatpush.bf16.msra.mxu0 %v337
    %705 = vmatmul.bf16.gmra.mxu0 %v448
    %v706 = vpop.f32.mrf.mxu0
    %v707 = vadd.f32 0.0, %v706
    %v708 = vpop.f32.mrf.mxu0
    %709 = vdwg.mxu0
    %710 = vmatpush.bf16.msra.mxu0 0
    %711 = vmatpush.bf16.msra.mxu0 0
    %712 = vmatpush.bf16.msra.mxu0 0
    %713 = vmatpush.bf16.msra.mxu0 0
    %714 = vmatpush.bf16.msra.mxu0 0
    %715 = vmatpush.bf16.msra.mxu0 0
    %716 = vmatpush.bf16.msra.mxu0 %v370
    %717 = vmatpush.bf16.msra.mxu0 %v338
    %718 = vmatmul.bf16.gmra.mxu0 %v448
    %v719 = vpop.f32.mrf.mxu0
    %v720 = vadd.f32 0.0, %v719
    %v721 = vpop.f32.mrf.mxu0
    %722 = vdwg.mxu0
    %723 = vmatpush.bf16.msra.mxu0 0
    %724 = vmatpush.bf16.msra.mxu0 0
    %725 = vmatpush.bf16.msra.mxu0 0
    %726 = vmatpush.bf16.msra.mxu0 0
    %727 = vmatpush.bf16.msra.mxu0 0
    %728 = vmatpush.bf16.msra.mxu0 0
    %729 = vmatpush.bf16.msra.mxu0 %v371
    %730 = vmatpush.bf16.msra.mxu0 %v339
    %731 = vmatmul.bf16.gmra.mxu0 %v448
    %v732 = vpop.f32.mrf.mxu0
    %v733 = vadd.f32 0.0, %v732
    %v734 = vpop.f32.mrf.mxu0
    %735 = vdwg.mxu0
    %736 = vmatpush.bf16.msra.mxu0 0
    %737 = vmatpush.bf16.msra.mxu0 0
    %738 = vmatpush.bf16.msra.mxu0 0
    %739 = vmatpush.bf16.msra.mxu0 0
    %740 = vmatpush.bf16.msra.mxu0 0
    %741 = vmatpush.bf16.msra.mxu0 0
    %742 = vmatpush.bf16.msra.mxu0 %v372
    %743 = vmatpush.bf16.msra.mxu0 %v340
    %744 = vmatmul.bf16.gmra.mxu0 %v448
    %v745 = vpop.f32.mrf.mxu0
    %v746 = vadd.f32 0.0, %v745
    %v747 = vpop.f32.mrf.mxu0
    %748 = vdwg.mxu0
    %749 = vmatpush.bf16.msra.mxu0 0
    %750 = vmatpush.bf16.msra.mxu0 0
    %751 = vmatpush.bf16.msra.mxu0 0
    %752 = vmatpush.bf16.msra.mxu0 0
    %753 = vmatpush.bf16.msra.mxu0 0
    %754 = vmatpush.bf16.msra.mxu0 0
    %755 = vmatpush.bf16.msra.mxu0 %v373
    %756 = vmatpush.bf16.msra.mxu0 %v341
    %757 = vmatmul.bf16.gmra.mxu0 %v448
    %v758 = vpop.f32.mrf.mxu0
    %v759 = vadd.f32 0.0, %v758
    %v760 = vpop.f32.mrf.mxu0
    %761 = vdwg.mxu0
    %762 = vmatpush.bf16.msra.mxu0 0
    %763 = vmatpush.bf16.msra.mxu0 0
    %764 = vmatpush.bf16.msra.mxu0 0
    %765 = vmatpush.bf16.msra.mxu0 0
    %766 = vmatpush.bf16.msra.mxu0 0
    %767 = vmatpush.bf16.msra.mxu0 0
    %768 = vmatpush.bf16.msra.mxu0 %v374
    %769 = vmatpush.bf16.msra.mxu0 %v342
    %770 = vmatmul.bf16.gmra.mxu0 %v448
    %v771 = vpop.f32.mrf.mxu0
    %v772 = vadd.f32 0.0, %v771
    %v773 = vpop.f32.mrf.mxu0
    %774 = vdwg.mxu0
    %775 = vmatpush.bf16.msra.mxu0 0
    %776 = vmatpush.bf16.msra.mxu0 0
    %777 = vmatpush.bf16.msra.mxu0 0
    %778 = vmatpush.bf16.msra.mxu0 0
    %779 = vmatpush.bf16.msra.mxu0 0
    %780 = vmatpush.bf16.msra.mxu0 0
    %781 = vmatpush.bf16.msra.mxu0 %v375
    %782 = vmatpush.bf16.msra.mxu0 %v343
    %783 = vmatmul.bf16.gmra.mxu0 %v448
    %v784 = vpop.f32.mrf.mxu0
    %v785 = vadd.f32 0.0, %v784
    %v786 = vpop.f32.mrf.mxu0
    %787 = vdwg.mxu0
    %788 = vmatpush.bf16.msra.mxu0 0
    %789 = vmatpush.bf16.msra.mxu0 0
    %790 = vmatpush.bf16.msra.mxu0 0
    %791 = vmatpush.bf16.msra.mxu0 0
    %792 = vmatpush.bf16.msra.mxu0 0
    %793 = vmatpush.bf16.msra.mxu0 0
    %794 = vmatpush.bf16.msra.mxu0 %v376
    %795 = vmatpush.bf16.msra.mxu0 %v344
    %796 = vmatmul.bf16.gmra.mxu0 %v448
    %v797 = vpop.f32.mrf.mxu0
    %v798 = vadd.f32 0.0, %v797
    %v799 = vpop.f32.mrf.mxu0
    %800 = vdwg.mxu0
    %801 = vmatpush.bf16.msra.mxu0 0
    %802 = vmatpush.bf16.msra.mxu0 0
    %803 = vmatpush.bf16.msra.mxu0 0
    %804 = vmatpush.bf16.msra.mxu0 0
    %805 = vmatpush.bf16.msra.mxu0 0
    %806 = vmatpush.bf16.msra.mxu0 0
    %807 = vmatpush.bf16.msra.mxu0 %v377
    %808 = vmatpush.bf16.msra.mxu0 %v345
    %809 = vmatmul.bf16.gmra.mxu0 %v448
    %v810 = vpop.f32.mrf.mxu0
    %v811 = vadd.f32 0.0, %v810
    %v812 = vpop.f32.mrf.mxu0
    %813 = vdwg.mxu0
    %814 = vmatpush.bf16.msra.mxu0 0
    %815 = vmatpush.bf16.msra.mxu0 0
    %816 = vmatpush.bf16.msra.mxu0 0
    %817 = vmatpush.bf16.msra.mxu0 0
    %818 = vmatpush.bf16.msra.mxu0 0
    %819 = vmatpush.bf16.msra.mxu0 0
    %820 = vmatpush.bf16.msra.mxu0 %v378
    %821 = vmatpush.bf16.msra.mxu0 %v346
    %822 = vmatmul.bf16.gmra.mxu0 %v448
    %v823 = vpop.f32.mrf.mxu0
    %v824 = vadd.f32 0.0, %v823
    %v825 = vpop.f32.mrf.mxu0
    %826 = vdwg.mxu0
    %827 = vmatpush.bf16.msra.mxu0 0
    %828 = vmatpush.bf16.msra.mxu0 0
    %829 = vmatpush.bf16.msra.mxu0 0
    %830 = vmatpush.bf16.msra.mxu0 0
    %831 = vmatpush.bf16.msra.mxu0 0
    %832 = vmatpush.bf16.msra.mxu0 0
    %833 = vmatpush.bf16.msra.mxu0 %v379
    %834 = vmatpush.bf16.msra.mxu0 %v347
    %835 = vmatmul.bf16.gmra.mxu0 %v448
    %v836 = vpop.f32.mrf.mxu0
    %v837 = vadd.f32 0.0, %v836
    %v838 = vpop.f32.mrf.mxu0
    %839 = vdwg.mxu0
    %840 = vmatpush.bf16.msra.mxu0 0
    %841 = vmatpush.bf16.msra.mxu0 0
    %842 = vmatpush.bf16.msra.mxu0 0
    %843 = vmatpush.bf16.msra.mxu0 0
    %844 = vmatpush.bf16.msra.mxu0 0
    %845 = vmatpush.bf16.msra.mxu0 0
    %846 = vmatpush.bf16.msra.mxu0 %v380
    %847 = vmatpush.bf16.msra.mxu0 %v348
    %848 = vmatmul.bf16.gmra.mxu0 %v448
    %v849 = vpop.f32.mrf.mxu0
    %v850 = vadd.f32 0.0, %v849
    %v851 = vpop.f32.mrf.mxu0
    %852 = vdwg.mxu0
    %853 = vmatpush.bf16.msra.mxu0 0
    %854 = vmatpush.bf16.msra.mxu0 0
    %855 = vmatpush.bf16.msra.mxu0 0
    %856 = vmatpush.bf16.msra.mxu0 0
    %857 = vmatpush.bf16.msra.mxu0 0
    %858 = vmatpush.bf16.msra.mxu0 0
    %859 = vmatpush.bf16.msra.mxu0 %v381
    %860 = vmatpush.bf16.msra.mxu0 %v349
    %861 = vmatmul.bf16.gmra.mxu0 %v448
    %v862 = vpop.f32.mrf.mxu0
    %v863 = vadd.f32 0.0, %v862
    %v864 = vpop.f32.mrf.mxu0
    %865 = vdwg.mxu0
    %vm866 = vcmask 1041408
    %v867 = vsel %vm866, %v460, 0.0
    %v868 = vrot.slane %v867, 4
    %v869 = vadd.f32 %v867, %v868
    %v870 = vrot.slane %v869, 2
    %v871 = vadd.f32 %v869, %v870
    %v872 = vrot.slane %v871, 1
    %v873 = vadd.f32 %v871, %v872
    %v874 = vsel %vm866, %v473, 0.0
    %v875 = vrot.slane %v874, 4
    %v876 = vadd.f32 %v874, %v875
    %v877 = vrot.slane %v876, 2
    %v878 = vadd.f32 %v876, %v877
    %v879 = vrot.slane %v878, 1
    %v880 = vadd.f32 %v878, %v879
    %v881 = vadd.f32 %v873, 0.0
    %v882 = vadd.f32 %v880, 0.0
    %v883 = vmul.f32 %v460, %v460
    %v884 = vmul.f32 %v473, %v473
    %v885 = vsel %vm866, %v883, 0.0
    %v886 = vrot.slane %v885, 4
    %v887 = vadd.f32 %v885, %v886
    %v888 = vrot.slane %v887, 2
    %v889 = vadd.f32 %v887, %v888
    %v890 = vrot.slane %v889, 1
    %v891 = vadd.f32 %v889, %v890
    %v892 = vsel %vm866, %v884, 0.0
    %v893 = vrot.slane %v892, 4
    %v894 = vadd.f32 %v892, %v893
    %v895 = vrot.slane %v894, 2
    %v896 = vadd.f32 %v894, %v895
    %v897 = vrot.slane %v896, 1
    %v898 = vadd.f32 %v896, %v897
    %v899 = vadd.f32 %v891, 0.0
    %v900 = vadd.f32 %v898, 0.0
    %v901 = vsel %vm866, %v486, 0.0
    %v902 = vrot.slane %v901, 4
    %v903 = vadd.f32 %v901, %v902
    %v904 = vrot.slane %v903, 2
    %v905 = vadd.f32 %v903, %v904
    %v906 = vrot.slane %v905, 1
    %v907 = vadd.f32 %v905, %v906
    %v908 = vsel %vm866, %v499, 0.0
    %v909 = vrot.slane %v908, 4
    %v910 = vadd.f32 %v908, %v909
    %v911 = vrot.slane %v910, 2
    %v912 = vadd.f32 %v910, %v911
    %v913 = vrot.slane %v912, 1
    %v914 = vadd.f32 %v912, %v913
    %v915 = vadd.f32 %v881, %v907
    %v916 = vadd.f32 %v882, %v914
    %v917 = vmul.f32 %v486, %v486
    %v918 = vmul.f32 %v499, %v499
    %v919 = vsel %vm866, %v917, 0.0
    %v920 = vrot.slane %v919, 4
    %v921 = vadd.f32 %v919, %v920
    %v922 = vrot.slane %v921, 2
    %v923 = vadd.f32 %v921, %v922
    %v924 = vrot.slane %v923, 1
    %v925 = vadd.f32 %v923, %v924
    %v926 = vsel %vm866, %v918, 0.0
    %v927 = vrot.slane %v926, 4
    %v928 = vadd.f32 %v926, %v927
    %v929 = vrot.slane %v928, 2
    %v930 = vadd.f32 %v928, %v929
    %v931 = vrot.slane %v930, 1
    %v932 = vadd.f32 %v930, %v931
    %v933 = vadd.f32 %v899, %v925
    %v934 = vadd.f32 %v900, %v932
    %v935 = vsel %vm866, %v512, 0.0
    %v936 = vrot.slane %v935, 4
    %v937 = vadd.f32 %v935, %v936
    %v938 = vrot.slane %v937, 2
    %v939 = vadd.f32 %v937, %v938
    %v940 = vrot.slane %v939, 1
    %v941 = vadd.f32 %v939, %v940
    %v942 = vsel %vm866, %v525, 0.0
    %v943 = vrot.slane %v942, 4
    %v944 = vadd.f32 %v942, %v943
    %v945 = vrot.slane %v944, 2
    %v946 = vadd.f32 %v944, %v945
    %v947 = vrot.slane %v946, 1
    %v948 = vadd.f32 %v946, %v947
    %v949 = vadd.f32 %v915, %v941
    %v950 = vadd.f32 %v916, %v948
    %v951 = vmul.f32 %v512, %v512
    %v952 = vmul.f32 %v525, %v525
    %v953 = vsel %vm866, %v951, 0.0
    %v954 = vrot.slane %v953, 4
    %v955 = vadd.f32 %v953, %v954
    %v956 = vrot.slane %v955, 2
    %v957 = vadd.f32 %v955, %v956
    %v958 = vrot.slane %v957, 1
    %v959 = vadd.f32 %v957, %v958
    %v960 = vsel %vm866, %v952, 0.0
    %v961 = vrot.slane %v960, 4
    %v962 = vadd.f32 %v960, %v961
    %v963 = vrot.slane %v962, 2
    %v964 = vadd.f32 %v962, %v963
    %v965 = vrot.slane %v964, 1
    %v966 = vadd.f32 %v964, %v965
    %v967 = vadd.f32 %v933, %v959
    %v968 = vadd.f32 %v934, %v966
    %v969 = vsel %vm866, %v538, 0.0
    %v970 = vrot.slane %v969, 4
    %v971 = vadd.f32 %v969, %v970
    %v972 = vrot.slane %v971, 2
    %v973 = vadd.f32 %v971, %v972
    %v974 = vrot.slane %v973, 1
    %v975 = vadd.f32 %v973, %v974
    %v976 = vsel %vm866, %v551, 0.0
    %v977 = vrot.slane %v976, 4
    %v978 = vadd.f32 %v976, %v977
    %v979 = vrot.slane %v978, 2
    %v980 = vadd.f32 %v978, %v979
    %v981 = vrot.slane %v980, 1
    %v982 = vadd.f32 %v980, %v981
    %v983 = vadd.f32 %v949, %v975
    %v984 = vadd.f32 %v950, %v982
    %v985 = vmul.f32 %v538, %v538
    %v986 = vmul.f32 %v551, %v551
    %v987 = vsel %vm866, %v985, 0.0
    %v988 = vrot.slane %v987, 4
    %v989 = vadd.f32 %v987, %v988
    %v990 = vrot.slane %v989, 2
    %v991 = vadd.f32 %v989, %v990
    %v992 = vrot.slane %v991, 1
    %v993 = vadd.f32 %v991, %v992
    %v994 = vsel %vm866, %v986, 0.0
    %v995 = vrot.slane %v994, 4
    %v996 = vadd.f32 %v994, %v995
    %v997 = vrot.slane %v996, 2
    %v998 = vadd.f32 %v996, %v997
    %v999 = vrot.slane %v998, 1
    %v1000 = vadd.f32 %v998, %v999
    %v1001 = vadd.f32 %v967, %v993
    %v1002 = vadd.f32 %v968, %v1000
    %v1003 = vsel %vm866, %v564, 0.0
    %v1004 = vrot.slane %v1003, 4
    %v1005 = vadd.f32 %v1003, %v1004
    %v1006 = vrot.slane %v1005, 2
    %v1007 = vadd.f32 %v1005, %v1006
    %v1008 = vrot.slane %v1007, 1
    %v1009 = vadd.f32 %v1007, %v1008
    %v1010 = vsel %vm866, %v577, 0.0
    %v1011 = vrot.slane %v1010, 4
    %v1012 = vadd.f32 %v1010, %v1011
    %v1013 = vrot.slane %v1012, 2
    %v1014 = vadd.f32 %v1012, %v1013
    %v1015 = vrot.slane %v1014, 1
    %v1016 = vadd.f32 %v1014, %v1015
    %v1017 = vadd.f32 %v983, %v1009
    %v1018 = vadd.f32 %v984, %v1016
    %v1019 = vmul.f32 %v564, %v564
    %v1020 = vmul.f32 %v577, %v577
    %v1021 = vsel %vm866, %v1019, 0.0
    %v1022 = vrot.slane %v1021, 4
    %v1023 = vadd.f32 %v1021, %v1022
    %v1024 = vrot.slane %v1023, 2
    %v1025 = vadd.f32 %v1023, %v1024
    %v1026 = vrot.slane %v1025, 1
    %v1027 = vadd.f32 %v1025, %v1026
    %v1028 = vsel %vm866, %v1020, 0.0
    %v1029 = vrot.slane %v1028, 4
    %v1030 = vadd.f32 %v1028, %v1029
    %v1031 = vrot.slane %v1030, 2
    %v1032 = vadd.f32 %v1030, %v1031
    %v1033 = vrot.slane %v1032, 1
    %v1034 = vadd.f32 %v1032, %v1033
    %v1035 = vadd.f32 %v1001, %v1027
    %v1036 = vadd.f32 %v1002, %v1034
    %v1037 = vsel %vm866, %v590, 0.0
    %v1038 = vrot.slane %v1037, 4
    %v1039 = vadd.f32 %v1037, %v1038
    %v1040 = vrot.slane %v1039, 2
    %v1041 = vadd.f32 %v1039, %v1040
    %v1042 = vrot.slane %v1041, 1
    %v1043 = vadd.f32 %v1041, %v1042
    %v1044 = vsel %vm866, %v603, 0.0
    %v1045 = vrot.slane %v1044, 4
    %v1046 = vadd.f32 %v1044, %v1045
    %v1047 = vrot.slane %v1046, 2
    %v1048 = vadd.f32 %v1046, %v1047
    %v1049 = vrot.slane %v1048, 1
    %v1050 = vadd.f32 %v1048, %v1049
    %v1051 = vadd.f32 %v1017, %v1043
    %v1052 = vadd.f32 %v1018, %v1050
    %v1053 = vmul.f32 %v590, %v590
    %v1054 = vmul.f32 %v603, %v603
    %v1055 = vsel %vm866, %v1053, 0.0
    %v1056 = vrot.slane %v1055, 4
    %v1057 = vadd.f32 %v1055, %v1056
    %v1058 = vrot.slane %v1057, 2
    %v1059 = vadd.f32 %v1057, %v1058
    %v1060 = vrot.slane %v1059, 1
    %v1061 = vadd.f32 %v1059, %v1060
    %v1062 = vsel %vm866, %v1054, 0.0
    %v1063 = vrot.slane %v1062, 4
    %v1064 = vadd.f32 %v1062, %v1063
    %v1065 = vrot.slane %v1064, 2
    %v1066 = vadd.f32 %v1064, %v1065
    %v1067 = vrot.slane %v1066, 1
    %v1068 = vadd.f32 %v1066, %v1067
    %v1069 = vadd.f32 %v1035, %v1061
    %v1070 = vadd.f32 %v1036, %v1068
    %v1071 = vsel %vm866, %v616, 0.0
    %v1072 = vrot.slane %v1071, 4
    %v1073 = vadd.f32 %v1071, %v1072
    %v1074 = vrot.slane %v1073, 2
    %v1075 = vadd.f32 %v1073, %v1074
    %v1076 = vrot.slane %v1075, 1
    %v1077 = vadd.f32 %v1075, %v1076
    %v1078 = vsel %vm866, %v629, 0.0
    %v1079 = vrot.slane %v1078, 4
    %v1080 = vadd.f32 %v1078, %v1079
    %v1081 = vrot.slane %v1080, 2
    %v1082 = vadd.f32 %v1080, %v1081
    %v1083 = vrot.slane %v1082, 1
    %v1084 = vadd.f32 %v1082, %v1083
    %v1085 = vadd.f32 %v1051, %v1077
    %v1086 = vadd.f32 %v1052, %v1084
    %v1087 = vmul.f32 %v616, %v616
    %v1088 = vmul.f32 %v629, %v629
    %v1089 = vsel %vm866, %v1087, 0.0
    %v1090 = vrot.slane %v1089, 4
    %v1091 = vadd.f32 %v1089, %v1090
    %v1092 = vrot.slane %v1091, 2
    %v1093 = vadd.f32 %v1091, %v1092
    %v1094 = vrot.slane %v1093, 1
    %v1095 = vadd.f32 %v1093, %v1094
    %v1096 = vsel %vm866, %v1088, 0.0
    %v1097 = vrot.slane %v1096, 4
    %v1098 = vadd.f32 %v1096, %v1097
    %v1099 = vrot.slane %v1098, 2
    %v1100 = vadd.f32 %v1098, %v1099
    %v1101 = vrot.slane %v1100, 1
    %v1102 = vadd.f32 %v1100, %v1101
    %v1103 = vadd.f32 %v1069, %v1095
    %v1104 = vadd.f32 %v1070, %v1102
    %v1105 = vsel %vm866, %v642, 0.0
    %v1106 = vrot.slane %v1105, 4
    %v1107 = vadd.f32 %v1105, %v1106
    %v1108 = vrot.slane %v1107, 2
    %v1109 = vadd.f32 %v1107, %v1108
    %v1110 = vrot.slane %v1109, 1
    %v1111 = vadd.f32 %v1109, %v1110
    %v1112 = vsel %vm866, %v655, 0.0
    %v1113 = vrot.slane %v1112, 4
    %v1114 = vadd.f32 %v1112, %v1113
    %v1115 = vrot.slane %v1114, 2
    %v1116 = vadd.f32 %v1114, %v1115
    %v1117 = vrot.slane %v1116, 1
    %v1118 = vadd.f32 %v1116, %v1117
    %v1119 = vadd.f32 %v1085, %v1111
    %v1120 = vadd.f32 %v1086, %v1118
    %v1121 = vmul.f32 %v642, %v642
    %v1122 = vmul.f32 %v655, %v655
    %v1123 = vsel %vm866, %v1121, 0.0
    %v1124 = vrot.slane %v1123, 4
    %v1125 = vadd.f32 %v1123, %v1124
    %v1126 = vrot.slane %v1125, 2
    %v1127 = vadd.f32 %v1125, %v1126
    %v1128 = vrot.slane %v1127, 1
    %v1129 = vadd.f32 %v1127, %v1128
    %v1130 = vsel %vm866, %v1122, 0.0
    %v1131 = vrot.slane %v1130, 4
    %v1132 = vadd.f32 %v1130, %v1131
    %v1133 = vrot.slane %v1132, 2
    %v1134 = vadd.f32 %v1132, %v1133
    %v1135 = vrot.slane %v1134, 1
    %v1136 = vadd.f32 %v1134, %v1135
    %v1137 = vadd.f32 %v1103, %v1129
    %v1138 = vadd.f32 %v1104, %v1136
    %v1139 = vsel %vm866, %v668, 0.0
    %v1140 = vrot.slane %v1139, 4
    %v1141 = vadd.f32 %v1139, %v1140
    %v1142 = vrot.slane %v1141, 2
    %v1143 = vadd.f32 %v1141, %v1142
    %v1144 = vrot.slane %v1143, 1
    %v1145 = vadd.f32 %v1143, %v1144
    %v1146 = vsel %vm866, %v681, 0.0
    %v1147 = vrot.slane %v1146, 4
    %v1148 = vadd.f32 %v1146, %v1147
    %v1149 = vrot.slane %v1148, 2
    %v1150 = vadd.f32 %v1148, %v1149
    %v1151 = vrot.slane %v1150, 1
    %v1152 = vadd.f32 %v1150, %v1151
    %v1153 = vadd.f32 %v1119, %v1145
    %v1154 = vadd.f32 %v1120, %v1152
    %v1155 = vmul.f32 %v668, %v668
    %v1156 = vmul.f32 %v681, %v681
    %v1157 = vsel %vm866, %v1155, 0.0
    %v1158 = vrot.slane %v1157, 4
    %v1159 = vadd.f32 %v1157, %v1158
    %v1160 = vrot.slane %v1159, 2
    %v1161 = vadd.f32 %v1159, %v1160
    %v1162 = vrot.slane %v1161, 1
    %v1163 = vadd.f32 %v1161, %v1162
    %v1164 = vsel %vm866, %v1156, 0.0
    %v1165 = vrot.slane %v1164, 4
    %v1166 = vadd.f32 %v1164, %v1165
    %v1167 = vrot.slane %v1166, 2
    %v1168 = vadd.f32 %v1166, %v1167
    %v1169 = vrot.slane %v1168, 1
    %v1170 = vadd.f32 %v1168, %v1169
    %v1171 = vadd.f32 %v1137, %v1163
    %v1172 = vadd.f32 %v1138, %v1170
    %v1173 = vsel %vm866, %v694, 0.0
    %v1174 = vrot.slane %v1173, 4
    %v1175 = vadd.f32 %v1173, %v1174
    %v1176 = vrot.slane %v1175, 2
    %v1177 = vadd.f32 %v1175, %v1176
    %v1178 = vrot.slane %v1177, 1
    %v1179 = vadd.f32 %v1177, %v1178
    %v1180 = vsel %vm866, %v707, 0.0
    %v1181 = vrot.slane %v1180, 4
    %v1182 = vadd.f32 %v1180, %v1181
    %v1183 = vrot.slane %v1182, 2
    %v1184 = vadd.f32 %v1182, %v1183
    %v1185 = vrot.slane %v1184, 1
    %v1186 = vadd.f32 %v1184, %v1185
    %v1187 = vadd.f32 %v1153, %v1179
    %v1188 = vadd.f32 %v1154, %v1186
    %v1189 = vmul.f32 %v694, %v694
    %v1190 = vmul.f32 %v707, %v707
    %v1191 = vsel %vm866, %v1189, 0.0
    %v1192 = vrot.slane %v1191, 4
    %v1193 = vadd.f32 %v1191, %v1192
    %v1194 = vrot.slane %v1193, 2
    %v1195 = vadd.f32 %v1193, %v1194
    %v1196 = vrot.slane %v1195, 1
    %v1197 = vadd.f32 %v1195, %v1196
    %v1198 = vsel %vm866, %v1190, 0.0
    %v1199 = vrot.slane %v1198, 4
    %v1200 = vadd.f32 %v1198, %v1199
    %v1201 = vrot.slane %v1200, 2
    %v1202 = vadd.f32 %v1200, %v1201
    %v1203 = vrot.slane %v1202, 1
    %v1204 = vadd.f32 %v1202, %v1203
    %v1205 = vadd.f32 %v1171, %v1197
    %v1206 = vadd.f32 %v1172, %v1204
    %v1207 = vsel %vm866, %v720, 0.0
    %v1208 = vrot.slane %v1207, 4
    %v1209 = vadd.f32 %v1207, %v1208
    %v1210 = vrot.slane %v1209, 2
    %v1211 = vadd.f32 %v1209, %v1210
    %v1212 = vrot.slane %v1211, 1
    %v1213 = vadd.f32 %v1211, %v1212
    %v1214 = vsel %vm866, %v733, 0.0
    %v1215 = vrot.slane %v1214, 4
    %v1216 = vadd.f32 %v1214, %v1215
    %v1217 = vrot.slane %v1216, 2
    %v1218 = vadd.f32 %v1216, %v1217
    %v1219 = vrot.slane %v1218, 1
    %v1220 = vadd.f32 %v1218, %v1219
    %v1221 = vadd.f32 %v1187, %v1213
    %v1222 = vadd.f32 %v1188, %v1220
    %v1223 = vmul.f32 %v720, %v720
    %v1224 = vmul.f32 %v733, %v733
    %v1225 = vsel %vm866, %v1223, 0.0
    %v1226 = vrot.slane %v1225, 4
    %v1227 = vadd.f32 %v1225, %v1226
    %v1228 = vrot.slane %v1227, 2
    %v1229 = vadd.f32 %v1227, %v1228
    %v1230 = vrot.slane %v1229, 1
    %v1231 = vadd.f32 %v1229, %v1230
    %v1232 = vsel %vm866, %v1224, 0.0
    %v1233 = vrot.slane %v1232, 4
    %v1234 = vadd.f32 %v1232, %v1233
    %v1235 = vrot.slane %v1234, 2
    %v1236 = vadd.f32 %v1234, %v1235
    %v1237 = vrot.slane %v1236, 1
    %v1238 = vadd.f32 %v1236, %v1237
    %v1239 = vadd.f32 %v1205, %v1231
    %v1240 = vadd.f32 %v1206, %v1238
    %v1241 = vsel %vm866, %v746, 0.0
    %v1242 = vrot.slane %v1241, 4
    %v1243 = vadd.f32 %v1241, %v1242
    %v1244 = vrot.slane %v1243, 2
    %v1245 = vadd.f32 %v1243, %v1244
    %v1246 = vrot.slane %v1245, 1
    %v1247 = vadd.f32 %v1245, %v1246
    %v1248 = vsel %vm866, %v759, 0.0
    %v1249 = vrot.slane %v1248, 4
    %v1250 = vadd.f32 %v1248, %v1249
    %v1251 = vrot.slane %v1250, 2
    %v1252 = vadd.f32 %v1250, %v1251
    %v1253 = vrot.slane %v1252, 1
    %v1254 = vadd.f32 %v1252, %v1253
    %v1255 = vadd.f32 %v1221, %v1247
    %v1256 = vadd.f32 %v1222, %v1254
    %v1257 = vmul.f32 %v746, %v746
    %v1258 = vmul.f32 %v759, %v759
    %v1259 = vsel %vm866, %v1257, 0.0
    %v1260 = vrot.slane %v1259, 4
    %v1261 = vadd.f32 %v1259, %v1260
    %v1262 = vrot.slane %v1261, 2
    %v1263 = vadd.f32 %v1261, %v1262
    %v1264 = vrot.slane %v1263, 1
    %v1265 = vadd.f32 %v1263, %v1264
    %v1266 = vsel %vm866, %v1258, 0.0
    %v1267 = vrot.slane %v1266, 4
    %v1268 = vadd.f32 %v1266, %v1267
    %v1269 = vrot.slane %v1268, 2
    %v1270 = vadd.f32 %v1268, %v1269
    %v1271 = vrot.slane %v1270, 1
    %v1272 = vadd.f32 %v1270, %v1271
    %v1273 = vadd.f32 %v1239, %v1265
    %v1274 = vadd.f32 %v1240, %v1272
    %v1275 = vsel %vm866, %v772, 0.0
    %v1276 = vrot.slane %v1275, 4
    %v1277 = vadd.f32 %v1275, %v1276
    %v1278 = vrot.slane %v1277, 2
    %v1279 = vadd.f32 %v1277, %v1278
    %v1280 = vrot.slane %v1279, 1
    %v1281 = vadd.f32 %v1279, %v1280
    %v1282 = vsel %vm866, %v785, 0.0
    %v1283 = vrot.slane %v1282, 4
    %v1284 = vadd.f32 %v1282, %v1283
    %v1285 = vrot.slane %v1284, 2
    %v1286 = vadd.f32 %v1284, %v1285
    %v1287 = vrot.slane %v1286, 1
    %v1288 = vadd.f32 %v1286, %v1287
    %v1289 = vadd.f32 %v1255, %v1281
    %v1290 = vadd.f32 %v1256, %v1288
    %v1291 = vmul.f32 %v772, %v772
    %v1292 = vmul.f32 %v785, %v785
    %v1293 = vsel %vm866, %v1291, 0.0
    %v1294 = vrot.slane %v1293, 4
    %v1295 = vadd.f32 %v1293, %v1294
    %v1296 = vrot.slane %v1295, 2
    %v1297 = vadd.f32 %v1295, %v1296
    %v1298 = vrot.slane %v1297, 1
    %v1299 = vadd.f32 %v1297, %v1298
    %v1300 = vsel %vm866, %v1292, 0.0
    %v1301 = vrot.slane %v1300, 4
    %v1302 = vadd.f32 %v1300, %v1301
    %v1303 = vrot.slane %v1302, 2
    %v1304 = vadd.f32 %v1302, %v1303
    %v1305 = vrot.slane %v1304, 1
    %v1306 = vadd.f32 %v1304, %v1305
    %v1307 = vadd.f32 %v1273, %v1299
    %v1308 = vadd.f32 %v1274, %v1306
    %v1309 = vsel %vm866, %v798, 0.0
    %v1310 = vrot.slane %v1309, 4
    %v1311 = vadd.f32 %v1309, %v1310
    %v1312 = vrot.slane %v1311, 2
    %v1313 = vadd.f32 %v1311, %v1312
    %v1314 = vrot.slane %v1313, 1
    %v1315 = vadd.f32 %v1313, %v1314
    %v1316 = vsel %vm866, %v811, 0.0
    %v1317 = vrot.slane %v1316, 4
    %v1318 = vadd.f32 %v1316, %v1317
    %v1319 = vrot.slane %v1318, 2
    %v1320 = vadd.f32 %v1318, %v1319
    %v1321 = vrot.slane %v1320, 1
    %v1322 = vadd.f32 %v1320, %v1321
    %v1323 = vadd.f32 %v1289, %v1315
    %v1324 = vadd.f32 %v1290, %v1322
    %v1325 = vmul.f32 %v798, %v798
    %v1326 = vmul.f32 %v811, %v811
    %v1327 = vsel %vm866, %v1325, 0.0
    %v1328 = vrot.slane %v1327, 4
    %v1329 = vadd.f32 %v1327, %v1328
    %v1330 = vrot.slane %v1329, 2
    %v1331 = vadd.f32 %v1329, %v1330
    %v1332 = vrot.slane %v1331, 1
    %v1333 = vadd.f32 %v1331, %v1332
    %v1334 = vsel %vm866, %v1326, 0.0
    %v1335 = vrot.slane %v1334, 4
    %v1336 = vadd.f32 %v1334, %v1335
    %v1337 = vrot.slane %v1336, 2
    %v1338 = vadd.f32 %v1336, %v1337
    %v1339 = vrot.slane %v1338, 1
    %v1340 = vadd.f32 %v1338, %v1339
    %v1341 = vadd.f32 %v1307, %v1333
    %v1342 = vadd.f32 %v1308, %v1340
    %v1343 = vsel %vm866, %v824, 0.0
    %v1344 = vrot.slane %v1343, 4
    %v1345 = vadd.f32 %v1343, %v1344
    %v1346 = vrot.slane %v1345, 2
    %v1347 = vadd.f32 %v1345, %v1346
    %v1348 = vrot.slane %v1347, 1
    %v1349 = vadd.f32 %v1347, %v1348
    %v1350 = vsel %vm866, %v837, 0.0
    %v1351 = vrot.slane %v1350, 4
    %v1352 = vadd.f32 %v1350, %v1351
    %v1353 = vrot.slane %v1352, 2
    %v1354 = vadd.f32 %v1352, %v1353
    %v1355 = vrot.slane %v1354, 1
    %v1356 = vadd.f32 %v1354, %v1355
    %v1357 = vadd.f32 %v1323, %v1349
    %v1358 = vadd.f32 %v1324, %v1356
    %v1359 = vmul.f32 %v824, %v824
    %v1360 = vmul.f32 %v837, %v837
    %v1361 = vsel %vm866, %v1359, 0.0
    %v1362 = vrot.slane %v1361, 4
    %v1363 = vadd.f32 %v1361, %v1362
    %v1364 = vrot.slane %v1363, 2
    %v1365 = vadd.f32 %v1363, %v1364
    %v1366 = vrot.slane %v1365, 1
    %v1367 = vadd.f32 %v1365, %v1366
    %v1368 = vsel %vm866, %v1360, 0.0
    %v1369 = vrot.slane %v1368, 4
    %v1370 = vadd.f32 %v1368, %v1369
    %v1371 = vrot.slane %v1370, 2
    %v1372 = vadd.f32 %v1370, %v1371
    %v1373 = vrot.slane %v1372, 1
    %v1374 = vadd.f32 %v1372, %v1373
    %v1375 = vadd.f32 %v1341, %v1367
    %v1376 = vadd.f32 %v1342, %v1374
    %v1377 = vsel %vm866, %v850, 0.0
    %v1378 = vrot.slane %v1377, 4
    %v1379 = vadd.f32 %v1377, %v1378
    %v1380 = vrot.slane %v1379, 2
    %v1381 = vadd.f32 %v1379, %v1380
    %v1382 = vrot.slane %v1381, 1
    %v1383 = vadd.f32 %v1381, %v1382
    %v1384 = vsel %vm866, %v863, 0.0
    %v1385 = vrot.slane %v1384, 4
    %v1386 = vadd.f32 %v1384, %v1385
    %v1387 = vrot.slane %v1386, 2
    %v1388 = vadd.f32 %v1386, %v1387
    %v1389 = vrot.slane %v1388, 1
    %v1390 = vadd.f32 %v1388, %v1389
    %v1391 = vadd.f32 %v1357, %v1383
    %v1392 = vadd.f32 %v1358, %v1390
    %v1393 = vmul.f32 %v850, %v850
    %v1394 = vmul.f32 %v863, %v863
    %v1395 = vsel %vm866, %v1393, 0.0
    %v1396 = vrot.slane %v1395, 4
    %v1397 = vadd.f32 %v1395, %v1396
    %v1398 = vrot.slane %v1397, 2
    %v1399 = vadd.f32 %v1397, %v1398
    %v1400 = vrot.slane %v1399, 1
    %v1401 = vadd.f32 %v1399, %v1400
    %v1402 = vsel %vm866, %v1394, 0.0
    %v1403 = vrot.slane %v1402, 4
    %v1404 = vadd.f32 %v1402, %v1403
    %v1405 = vrot.slane %v1404, 2
    %v1406 = vadd.f32 %v1404, %v1405
    %v1407 = vrot.slane %v1406, 1
    %v1408 = vadd.f32 %v1406, %v1407
    %v1409 = vadd.f32 %v1375, %v1401
    %v1410 = vadd.f32 %v1376, %v1408
    %v1411 = vmul.f32 %v1391, 0.03125
    %v1412 = vmul.f32 %v1392, 0.03125
    %v1413 = vmul.f32 %v1409, 0.03125
    %v1414 = vmul.f32 %v1410, 0.03125
    %v1415 = vmul.f32 %v1411, %v1411
    %v1416 = vmul.f32 %v1412, %v1412
    %v1417 = vsub.f32 %v1413, %v1415
    %v1418 = vsub.f32 %v1414, %v1416
    %v1419 = vadd.f32 %v1417, 1e-05
    %v1420 = vadd.f32 %v1418, 1e-05
    %v1421 = vrsqrt.pop %v1419
    %v1422 = vmul.f32 %v1421, %v1419
    %v1423 = vmul.f32 %v1422, %v1421
    %v1424 = vmul.f32 0.5, %v1423
    %v1425 = vsub.f32 1.5, %v1424
    %v1426 = vmul.f32 %v1421, %v1425
    %vm1427 = vweird.f32 %v1419
    %vm1428 = vweird.f32 %v1421
    %vm1429 = vmor %vm1427, %vm1428
    %v1430 = vsel %vm1429, %v1421, %v1426
    %v1431 = vrsqrt.pop %v1420
    %v1432 = vmul.f32 %v1431, %v1420
    %v1433 = vmul.f32 %v1432, %v1431
    %v1434 = vmul.f32 0.5, %v1433
    %v1435 = vsub.f32 1.5, %v1434
    %v1436 = vmul.f32 %v1431, %v1435
    %vm1437 = vweird.f32 %v1420
    %vm1438 = vweird.f32 %v1431
    %vm1439 = vmor %vm1437, %vm1438
    %v1440 = vsel %vm1439, %v1431, %v1436
    %v1441 = vld [vmem:[#allocation4] sm:$0x3]
    %v1442 = vld [vmem:[#allocation6] sm:$0x3]
    %v1443 = vsub.f32 %v460, %v1411
    %v1444 = vsub.f32 %v473, %v1412
    %v1445 = vmul.f32 %v1443, %v1430
    %v1446 = vmul.f32 %v1444, %v1440
    %v1448 = vperm.slane %v1441, 0
    %v1449 = vperm.slane %v1441, 1
    %v1452 = vmul.f32 %v1445, %v1448
    %v1453 = vmul.f32 %v1446, %v1449
    %v1455 = vperm.slane %v1442, 0
    %v1456 = vperm.slane %v1442, 1
    %v1459 = vadd.f32 %v1452, %v1455
    %v1460 = vadd.f32 %v1453, %v1456
    %v1461 = vmax.f32 %v1459, 0.0
    %v1462 = vmax.f32 %v1460, 0.0
    %v1463 = vpack.c.bf16 %v1462, %v1461
    %v1465 = vrot.slane %v1463, 3
    %vm1466 = vcmask 1040384
    %v1469 = vsel %vm1466, %v1463, %v1465
    %1471 = vst [vmem:[%s4] sm:$0x3] %v1469
    %v1472 = vsub.f32 %v486, %v1411
    %v1473 = vsub.f32 %v499, %v1412
    %v1474 = vmul.f32 %v1472, %v1430
    %v1475 = vmul.f32 %v1473, %v1440
    %v1476 = vmul.f32 %v1474, %v1448
    %v1477 = vmul.f32 %v1475, %v1449
    %v1478 = vadd.f32 %v1476, %v1455
    %v1479 = vadd.f32 %v1477, %v1456
    %v1480 = vmax.f32 %v1478, 0.0
    %v1481 = vmax.f32 %v1479, 0.0
    %v1482 = vpack.c.bf16 %v1481, %v1480
    %v1484 = vrot.slane %v1482, 3
    %v1487 = vsel %vm1466, %v1482, %v1484
    %1489 = vst [vmem:[%s4 + $0x2] sm:$0x3] %v1487
    %v1490 = vsub.f32 %v512, %v1411
    %v1491 = vsub.f32 %v525, %v1412
    %v1492 = vmul.f32 %v1490, %v1430
    %v1493 = vmul.f32 %v1491, %v1440
    %v1494 = vmul.f32 %v1492, %v1448
    %v1495 = vmul.f32 %v1493, %v1449
    %v1496 = vadd.f32 %v1494, %v1455
    %v1497 = vadd.f32 %v1495, %v1456
    %v1498 = vmax.f32 %v1496, 0.0
    %v1499 = vmax.f32 %v1497, 0.0
    %v1500 = vpack.c.bf16 %v1499, %v1498
    %v1502 = vrot.slane %v1500, 3
    %v1505 = vsel %vm1466, %v1500, %v1502
    %1507 = vst [vmem:[%s4 + $0x4] sm:$0x3] %v1505
    %v1508 = vsub.f32 %v538, %v1411
    %v1509 = vsub.f32 %v551, %v1412
    %v1510 = vmul.f32 %v1508, %v1430
    %v1511 = vmul.f32 %v1509, %v1440
    %v1512 = vmul.f32 %v1510, %v1448
    %v1513 = vmul.f32 %v1511, %v1449
    %v1514 = vadd.f32 %v1512, %v1455
    %v1515 = vadd.f32 %v1513, %v1456
    %v1516 = vmax.f32 %v1514, 0.0
    %v1517 = vmax.f32 %v1515, 0.0
    %v1518 = vpack.c.bf16 %v1517, %v1516
    %v1520 = vrot.slane %v1518, 3
    %v1523 = vsel %vm1466, %v1518, %v1520
    %1525 = vst [vmem:[%s4 + $0x6] sm:$0x3] %v1523
    %v1526 = vsub.f32 %v564, %v1411
    %v1527 = vsub.f32 %v577, %v1412
    %v1528 = vmul.f32 %v1526, %v1430
    %v1529 = vmul.f32 %v1527, %v1440
    %v1530 = vmul.f32 %v1528, %v1448
    %v1531 = vmul.f32 %v1529, %v1449
    %v1532 = vadd.f32 %v1530, %v1455
    %v1533 = vadd.f32 %v1531, %v1456
    %v1534 = vmax.f32 %v1532, 0.0
    %v1535 = vmax.f32 %v1533, 0.0
    %v1536 = vpack.c.bf16 %v1535, %v1534
    %v1538 = vrot.slane %v1536, 3
    %v1541 = vsel %vm1466, %v1536, %v1538
    %1543 = vst [vmem:[%s4 + $0x8] sm:$0x3] %v1541
    %v1544 = vsub.f32 %v590, %v1411
    %v1545 = vsub.f32 %v603, %v1412
    %v1546 = vmul.f32 %v1544, %v1430
    %v1547 = vmul.f32 %v1545, %v1440
    %v1548 = vmul.f32 %v1546, %v1448
    %v1549 = vmul.f32 %v1547, %v1449
    %v1550 = vadd.f32 %v1548, %v1455
    %v1551 = vadd.f32 %v1549, %v1456
    %v1552 = vmax.f32 %v1550, 0.0
    %v1553 = vmax.f32 %v1551, 0.0
    %v1554 = vpack.c.bf16 %v1553, %v1552
    %v1556 = vrot.slane %v1554, 3
    %v1559 = vsel %vm1466, %v1554, %v1556
    %1561 = vst [vmem:[%s4 + $0xa] sm:$0x3] %v1559
    %v1562 = vsub.f32 %v616, %v1411
    %v1563 = vsub.f32 %v629, %v1412
    %v1564 = vmul.f32 %v1562, %v1430
    %v1565 = vmul.f32 %v1563, %v1440
    %v1566 = vmul.f32 %v1564, %v1448
    %v1567 = vmul.f32 %v1565, %v1449
    %v1568 = vadd.f32 %v1566, %v1455
    %v1569 = vadd.f32 %v1567, %v1456
    %v1570 = vmax.f32 %v1568, 0.0
    %v1571 = vmax.f32 %v1569, 0.0
    %v1572 = vpack.c.bf16 %v1571, %v1570
    %v1574 = vrot.slane %v1572, 3
    %v1577 = vsel %vm1466, %v1572, %v1574
    %1579 = vst [vmem:[%s4 + $0xc] sm:$0x3] %v1577
    %v1580 = vsub.f32 %v642, %v1411
    %v1581 = vsub.f32 %v655, %v1412
    %v1582 = vmul.f32 %v1580, %v1430
    %v1583 = vmul.f32 %v1581, %v1440
    %v1584 = vmul.f32 %v1582, %v1448
    %v1585 = vmul.f32 %v1583, %v1449
    %v1586 = vadd.f32 %v1584, %v1455
    %v1587 = vadd.f32 %v1585, %v1456
    %v1588 = vmax.f32 %v1586, 0.0
    %v1589 = vmax.f32 %v1587, 0.0
    %v1590 = vpack.c.bf16 %v1589, %v1588
    %v1592 = vrot.slane %v1590, 3
    %v1595 = vsel %vm1466, %v1590, %v1592
    %1597 = vst [vmem:[%s4 + $0xe] sm:$0x3] %v1595
    %v1598 = vsub.f32 %v668, %v1411
    %v1599 = vsub.f32 %v681, %v1412
    %v1600 = vmul.f32 %v1598, %v1430
    %v1601 = vmul.f32 %v1599, %v1440
    %v1602 = vmul.f32 %v1600, %v1448
    %v1603 = vmul.f32 %v1601, %v1449
    %v1604 = vadd.f32 %v1602, %v1455
    %v1605 = vadd.f32 %v1603, %v1456
    %v1606 = vmax.f32 %v1604, 0.0
    %v1607 = vmax.f32 %v1605, 0.0
    %v1608 = vpack.c.bf16 %v1607, %v1606
    %v1610 = vrot.slane %v1608, 3
    %v1613 = vsel %vm1466, %v1608, %v1610
    %1615 = vst [vmem:[%s4 + $0x10] sm:$0x3] %v1613
    %v1616 = vsub.f32 %v694, %v1411
    %v1617 = vsub.f32 %v707, %v1412
    %v1618 = vmul.f32 %v1616, %v1430
    %v1619 = vmul.f32 %v1617, %v1440
    %v1620 = vmul.f32 %v1618, %v1448
    %v1621 = vmul.f32 %v1619, %v1449
    %v1622 = vadd.f32 %v1620, %v1455
    %v1623 = vadd.f32 %v1621, %v1456
    %v1624 = vmax.f32 %v1622, 0.0
    %v1625 = vmax.f32 %v1623, 0.0
    %v1626 = vpack.c.bf16 %v1625, %v1624
    %v1628 = vrot.slane %v1626, 3
    %v1631 = vsel %vm1466, %v1626, %v1628
    %1633 = vst [vmem:[%s4 + $0x12] sm:$0x3] %v1631
    %v1634 = vsub.f32 %v720, %v1411
    %v1635 = vsub.f32 %v733, %v1412
    %v1636 = vmul.f32 %v1634, %v1430
    %v1637 = vmul.f32 %v1635, %v1440
    %v1638 = vmul.f32 %v1636, %v1448
    %v1639 = vmul.f32 %v1637, %v1449
    %v1640 = vadd.f32 %v1638, %v1455
    %v1641 = vadd.f32 %v1639, %v1456
    %v1642 = vmax.f32 %v1640, 0.0
    %v1643 = vmax.f32 %v1641, 0.0
    %v1644 = vpack.c.bf16 %v1643, %v1642
    %v1646 = vrot.slane %v1644, 3
    %v1649 = vsel %vm1466, %v1644, %v1646
    %1651 = vst [vmem:[%s4 + $0x14] sm:$0x3] %v1649
    %v1652 = vsub.f32 %v746, %v1411
    %v1653 = vsub.f32 %v759, %v1412
    %v1654 = vmul.f32 %v1652, %v1430
    %v1655 = vmul.f32 %v1653, %v1440
    %v1656 = vmul.f32 %v1654, %v1448
    %v1657 = vmul.f32 %v1655, %v1449
    %v1658 = vadd.f32 %v1656, %v1455
    %v1659 = vadd.f32 %v1657, %v1456
    %v1660 = vmax.f32 %v1658, 0.0
    %v1661 = vmax.f32 %v1659, 0.0
    %v1662 = vpack.c.bf16 %v1661, %v1660
    %v1664 = vrot.slane %v1662, 3
    %v1667 = vsel %vm1466, %v1662, %v1664
    %1669 = vst [vmem:[%s4 + $0x16] sm:$0x3] %v1667
    %v1670 = vsub.f32 %v772, %v1411
    %v1671 = vsub.f32 %v785, %v1412
    %v1672 = vmul.f32 %v1670, %v1430
    %v1673 = vmul.f32 %v1671, %v1440
    %v1674 = vmul.f32 %v1672, %v1448
    %v1675 = vmul.f32 %v1673, %v1449
    %v1676 = vadd.f32 %v1674, %v1455
    %v1677 = vadd.f32 %v1675, %v1456
    %v1678 = vmax.f32 %v1676, 0.0
    %v1679 = vmax.f32 %v1677, 0.0
    %v1680 = vpack.c.bf16 %v1679, %v1678
    %v1682 = vrot.slane %v1680, 3
    %v1685 = vsel %vm1466, %v1680, %v1682
    %1687 = vst [vmem:[%s4 + $0x18] sm:$0x3] %v1685
    %v1688 = vsub.f32 %v798, %v1411
    %v1689 = vsub.f32 %v811, %v1412
    %v1690 = vmul.f32 %v1688, %v1430
    %v1691 = vmul.f32 %v1689, %v1440
    %v1692 = vmul.f32 %v1690, %v1448
    %v1693 = vmul.f32 %v1691, %v1449
    %v1694 = vadd.f32 %v1692, %v1455
    %v1695 = vadd.f32 %v1693, %v1456
    %v1696 = vmax.f32 %v1694, 0.0
    %v1697 = vmax.f32 %v1695, 0.0
    %v1698 = vpack.c.bf16 %v1697, %v1696
    %v1700 = vrot.slane %v1698, 3
    %v1703 = vsel %vm1466, %v1698, %v1700
    %1705 = vst [vmem:[%s4 + $0x1a] sm:$0x3] %v1703
    %v1706 = vsub.f32 %v824, %v1411
    %v1707 = vsub.f32 %v837, %v1412
    %v1708 = vmul.f32 %v1706, %v1430
    %v1709 = vmul.f32 %v1707, %v1440
    %v1710 = vmul.f32 %v1708, %v1448
    %v1711 = vmul.f32 %v1709, %v1449
    %v1712 = vadd.f32 %v1710, %v1455
    %v1713 = vadd.f32 %v1711, %v1456
    %v1714 = vmax.f32 %v1712, 0.0
    %v1715 = vmax.f32 %v1713, 0.0
    %v1716 = vpack.c.bf16 %v1715, %v1714
    %v1718 = vrot.slane %v1716, 3
    %v1721 = vsel %vm1466, %v1716, %v1718
    %1723 = vst [vmem:[%s4 + $0x1c] sm:$0x3] %v1721
    %v1724 = vsub.f32 %v850, %v1411
    %v1725 = vsub.f32 %v863, %v1412
    %v1726 = vmul.f32 %v1724, %v1430
    %v1727 = vmul.f32 %v1725, %v1440
    %v1728 = vmul.f32 %v1726, %v1448
    %v1729 = vmul.f32 %v1727, %v1449
    %v1730 = vadd.f32 %v1728, %v1455
    %v1731 = vadd.f32 %v1729, %v1456
    %v1732 = vmax.f32 %v1730, 0.0
    %v1733 = vmax.f32 %v1731, 0.0
    %v1734 = vpack.c.bf16 %v1733, %v1732
    %v1736 = vrot.slane %v1734, 3
    %v1739 = vsel %vm1466, %v1734, %v1736
    %1741 = vst [vmem:[%s4 + $0x1e] sm:$0x3] %v1739
    // Predicated region
    $region30: #{frame_generator_forward.5} parent=1 // pred_check
      _
    $region31: #{frame_generator_forward.5} parent=1 // pred_check_branch
      %1743 = sbr.rel (0) target = $region33
    $region32: #{frame_generator_forward.5} parent=1 // pred_region
      _
    $region33: #{frame_generator_forward.5} parent=1 // pred_fallthru
      _
    // Predicated region
    $region34: #{frame_generator_forward.5} parent=1 // pred_check
      _
    $region35: #{frame_generator_forward.5} parent=1 // pred_check_branch
      %1745 = sbr.rel (0) target = $region37
    $region36: #{frame_generator_forward.5} parent=1 // pred_region
      _
    $region37: #{frame_generator_forward.5} parent=1 // pred_fallthru
      _
    %1746 = vsyncpa [#allocation3], 1
    %1747 = vsyncpa [#allocation5], 1

// kernel: frame_generator_forward.6
$region0: #{frame_generator_forward.6}
  #allocation0 [shape = 'u32[]', space=smem, size = 0x4, offset = 0x4, fixed_abs, tag = 'smem constant byte address 0x4 - core index']
  #allocation1 [shape = 'u32[72,128]{1,0:T(1,128)}', space=vmem, size = 0x9000, scoped, tag = 'internal scratch']
  #allocation2 [shape = 'f32[1,128]{1,0:T(1,128)}', space=vmem, size = 0x200, scoped, tag = 'scratch operand']
  #allocation3 [shape = 'f32[1,128]{1,0:T(1,128)}', space=vmem, size = 0x200, scoped, tag = 'scratch operand']
  %s0 = inlined_call_operand.vmem [shape: bf16[4,32,1024], index: 0, kind: input, shape index: {}]
  %s1 = inlined_call_operand.vmem [shape: bf16[4,1024,128], index: 1, kind: input, shape index: {}]
  %s2 = inlined_call_operand.vmem [shape: f32[1,128], index: 2, kind: input, shape index: {}]
  %s3 = inlined_call_operand.vmem [shape: f32[1,128], index: 3, kind: input, shape index: {}]
  %s4 = inlined_call_operand.vmem [shape: bf16[4,32,128], index: 4, kind: output, shape index: {}]
  %s5 = sld [smem:[#allocation0]]
  $region61: #{frame_generator_forward.6} parent=0
    _
  %s7 = ssub.s32 1, %s5
  %s8 = scalar_select 0, %s7, %s5
  loop: start=0, step=1, limit=10
  $region2: #{frame_generator_forward.6} parent=0 // loop_pre_header
    _
  $region3: #{frame_generator_forward.6} parent=0 // loop_header
    %s10 = sphi 0, %s14
    %p11 = scmp.ge.s32.totalorder %s10, 10
    %s17 = sphi 0, %s36
    %s18 = sphi 0, %s32
    %s19 = sphi 0, %s28
    %s20 = sphi 0, %s17
    %s21 = sphi 0, %s18
    %s22 = sphi 0, %s19
    %s23 = sphi 0, %s20
    %s24 = sphi 0, %s21
    %s25 = sphi 0, %s22
    %s41 = sphi 0, %s43
    %s44 = sphi 0, %s41
    %s45 = sphi 0, %s44
    %s61 = sphi 0, %s45
    %s67 = sphi 0, %s69
    %s70 = sphi 0, %s67
    %s71 = sphi 0, %s70
    %s87 = sphi 0, %s71
    %s91 = sphi 0, %s91
    %s93 = sphi 0, %s91
    %s94 = sphi 0, %s93
    %s108 = sphi 0, %s94
    %s112 = sphi 0, %s112
    %s114 = sphi 0, %s112
    %s115 = sphi 0, %s114
    %s129 = sphi 0, %s115
    %s137 = sphi 0, %s139
    %s140 = sphi 0, %s137
    %s141 = sphi 0, %s140
    %s157 = sphi 0, %s141
  $region4: #{frame_generator_forward.6} parent=0 // loop_header_branch
    %13 = sbr.rel (%p11) target = $region8
  $region5: #{frame_generator_forward.6} parent=0 // loop_body
    %s15 = ssub.s32 %s10, 1
    %s16 = ssub.s32 %s10, 2
    %s26 = sadd.s32 1, %s19
    %p27 = scmp.ge.s32.totalorder %s26, 1
    %s28 = scalar_select %p27, 0, %s26
    %s29 = sadd.s32 1, %s18
    %s30 = scalar_select %p27, %s29, %s18
    %p31 = scmp.ge.s32.totalorder %s30, 4
    %s32 = scalar_select %p31, 0, %s30
    %s33 = sadd.s32 1, %s17
    %s34 = scalar_select %p31, %s33, %s17
    %p35 = scmp.ge.s32.totalorder %s34, 2
    %s36 = scalar_select %p35, 0, %s34
    %s37 = ssub.s32 %s18, %s32
    %s38 = ssub.s32 %s19, %s28
    %s39 = sor.u32 %s37, %s38
    %p40 = scmp.eq.s32.totalorder %s39, 0
    %s42 = sadd.s32 %s41, 1
    %s43 = scalar_select %p40, %s41, %s42
    %p46 = pneg %p40
    %p47 = scmp.eq.s32.totalorder %s10, 7
    %p48 = por %p46, %p47
    %p49 = scmp.ne.s32.totalorder %s41, %s44
    %p50 = scmp.eq.s32.totalorder %s10, 0
    %p51 = por %p49, %p50
    %p52 = scmp.ne.s32.totalorder %s41, %s44
    %p53 = scmp.eq.s32.totalorder %s15, 7
    %p54 = por %p52, %p53
    %p55 = scmp.ne.s32.totalorder %s44, %s45
    %p56 = scmp.eq.s32.totalorder %s15, 0
    %p57 = por %p55, %p56
    %p58 = scmp.ne.s32.totalorder %s44, %s45
    %p59 = scmp.eq.s32.totalorder %s16, 7
    %p60 = por %p58, %p59
    %p62 = scmp.ne.s32.totalorder %s45, %s61
    %p63 = scmp.eq.s32.totalorder %s16, 0
    %p64 = por %p62, %p63
    %s65 = ssub.s32 %s18, %s32
    %p66 = scmp.eq.s32.totalorder %s65, 0
    %s68 = sadd.s32 %s67, 1
    %s69 = scalar_select %p66, %s67, %s68
    %p72 = pneg %p66
    %p73 = scmp.eq.s32.totalorder %s10, 7
    %p74 = por %p72, %p73
    %p75 = scmp.ne.s32.totalorder %s67, %s70
    %p76 = scmp.eq.s32.totalorder %s10, 0
    %p77 = por %p75, %p76
    %p78 = scmp.ne.s32.totalorder %s67, %s70
    %p79 = scmp.eq.s32.totalorder %s15, 7
    %p80 = por %p78, %p79
    %p81 = scmp.ne.s32.totalorder %s70, %s71
    %p82 = scmp.eq.s32.totalorder %s15, 0
    %p83 = por %p81, %p82
    %p84 = scmp.ne.s32.totalorder %s70, %s71
    %p85 = scmp.eq.s32.totalorder %s16, 7
    %p86 = por %p84, %p85
    %p88 = scmp.ne.s32.totalorder %s71, %s87
    %p89 = scmp.eq.s32.totalorder %s16, 0
    %p90 = por %p88, %p89
    %s92 = sadd.s32 %s91, 1
    %p95 = scmp.eq.s32.totalorder %s10, 7
    %p96 = scmp.ne.s32.totalorder %s91, %s93
    %p97 = scmp.eq.s32.totalorder %s10, 0
    %p98 = por %p96, %p97
    %p99 = scmp.ne.s32.totalorder %s91, %s93
    %p100 = scmp.eq.s32.totalorder %s15, 7
    %p101 = por %p99, %p100
    %p102 = scmp.ne.s32.totalorder %s93, %s94
    %p103 = scmp.eq.s32.totalorder %s15, 0
    %p104 = por %p102, %p103
    %p105 = scmp.ne.s32.totalorder %s93, %s94
    %p106 = scmp.eq.s32.totalorder %s16, 7
    %p107 = por %p105, %p106
    %p109 = scmp.ne.s32.totalorder %s94, %s108
    %p110 = scmp.eq.s32.totalorder %s16, 0
    %p111 = por %p109, %p110
    %s113 = sadd.s32 %s112, 1
    %p116 = scmp.eq.s32.totalorder %s10, 7
    %p117 = scmp.ne.s32.totalorder %s112, %s114
    %p118 = scmp.eq.s32.totalorder %s10, 0
    %p119 = por %p117, %p118
    %p120 = scmp.ne.s32.totalorder %s112, %s114
    %p121 = scmp.eq.s32.totalorder %s15, 7
    %p122 = por %p120, %p121
    %p123 = scmp.ne.s32.totalorder %s114, %s115
    %p124 = scmp.eq.s32.totalorder %s15, 0
    %p125 = por %p123, %p124
    %p126 = scmp.ne.s32.totalorder %s114, %s115
    %p127 = scmp.eq.s32.totalorder %s16, 7
    %p128 = por %p126, %p127
    %p130 = scmp.ne.s32.totalorder %s115, %s129
    %p131 = scmp.eq.s32.totalorder %s16, 0
    %p132 = por %p130, %p131
    %s133 = ssub.s32 %s18, %s32
    %s134 = ssub.s32 %s19, %s28
    %s135 = sor.u32 %s133, %s134
    %p136 = scmp.eq.s32.totalorder %s135, 0
    %s138 = sadd.s32 %s137, 1
    %s139 = scalar_select %p136, %s137, %s138
    %p142 = pneg %p136
    %p143 = scmp.eq.s32.totalorder %s10, 7
    %p144 = por %p142, %p143
    %p145 = scmp.ne.s32.totalorder %s137, %s140
    %p146 = scmp.eq.s32.totalorder %s10, 0
    %p147 = por %p145, %p146
    %p148 = scmp.ne.s32.totalorder %s137, %s140
    %p149 = scmp.eq.s32.totalorder %s15, 7
    %p150 = por %p148, %p149
    %p151 = scmp.ne.s32.totalorder %s140, %s141
    %p152 = scmp.eq.s32.totalorder %s15, 0
    %p153 = por %p151, %p152
    %p154 = scmp.ne.s32.totalorder %s140, %s141
    %p155 = scmp.eq.s32.totalorder %s16, 7
    %p156 = por %p154, %p155
    %p158 = scmp.ne.s32.totalorder %s141, %s157
    %p159 = scmp.eq.s32.totalorder %s16, 0
    %p160 = por %p158, %p159
    %p161 = scmp.le.s32.totalorder 1, %s10
    %p162 = scmp.lt.s32.totalorder %s10, 9
    %p163 = pnand %p161, %p162
    %p164 = pneg %p163
    // Predicated region
    $region9: #{frame_generator_forward.6} parent=5 // pred_check
      _
    $region10: #{frame_generator_forward.6} parent=5 // pred_check_branch
      %166 = sbr.rel (%p163) target = $region12
    $region11: #{frame_generator_forward.6} parent=5 // pred_region
      %s167 = ssub.s32 %s10, 1
      // Predicated region
      $region13: #{frame_generator_forward.6} parent=11 // pred_check
        %p168 = pneg %p104
      $region14: #{frame_generator_forward.6} parent=11 // pred_check_branch
        %170 = sbr.rel (%p168) target = $region16
      $region15: #{frame_generator_forward.6} parent=11 // pred_region
        _
      $region16: #{frame_generator_forward.6} parent=11 // pred_fallthru
        _
      // Predicated region
      $region17: #{frame_generator_forward.6} parent=11 // pred_check
        %p171 = pneg %p125
      $region18: #{frame_generator_forward.6} parent=11 // pred_check_branch
        %173 = sbr.rel (%p171) target = $region20
      $region19: #{frame_generator_forward.6} parent=11 // pred_region
        _
      $region20: #{frame_generator_forward.6} parent=11 // pred_fallthru
        _
    $region12: #{frame_generator_forward.6} parent=5 // pred_fallthru
      _
    %p174 = scmp.lt.s32.totalorder %s10, 8
    // Predicated region
    $region21: #{frame_generator_forward.6} parent=5 // pred_check
      %p175 = pneg %p174
    $region22: #{frame_generator_forward.6} parent=5 // pred_check_branch
      %177 = sbr.rel (%p175) target = $region24
    $region23: #{frame_generator_forward.6} parent=5 // pred_region
      // Predicated region
      $region25: #{frame_generator_forward.6} parent=23 // pred_check
        %p178 = pneg %p51
      $region26: #{frame_generator_forward.6} parent=23 // pred_check_branch
        %180 = sbr.rel (%p178) target = $region28
      $region27: #{frame_generator_forward.6} parent=23 // pred_region
        %s181 = smul.u32 4, %s19
        %p182 = scmp.lt.s32.totalorder %s18, 3
        %s183 = scalar_select %p182, %s18, 3
        %p184 = scmp.lt.s32.totalorder %s181, 3
        %s185 = scalar_select %p184, %s181, 3
        %s186 = smul.addr %s185, 8
        %s187 = smul.addr %s183, 32
        %s188 = sadd.s32 %s186, %s187
        %s189 = smul.addr %s188, 4
        %s190 = scalar_lea.vmem %s0, %s189
        %s191 = smul.u32 4, %s19
      $region28: #{frame_generator_forward.6} parent=23 // pred_fallthru
        _
      // Predicated region
      $region29: #{frame_generator_forward.6} parent=23 // pred_check
        %p192 = pneg %p77
      $region30: #{frame_generator_forward.6} parent=23 // pred_check_branch
        %194 = sbr.rel (%p192) target = $region32
      $region31: #{frame_generator_forward.6} parent=23 // pred_region
        %p195 = scmp.lt.s32.totalorder %s18, 3
        %s196 = scalar_select %p195, %s18, 3
        %s197 = smul.addr %s196, 128
        %s198 = smul.addr %s197, 4
        %s199 = scalar_lea.vmem %s1, %s198
      $region32: #{frame_generator_forward.6} parent=23 // pred_fallthru
        _
    $region24: #{frame_generator_forward.6} parent=5 // pred_fallthru
      _
    %p200 = scmp.le.s32.totalorder 1, %s10
    %p201 = scmp.lt.s32.totalorder %s10, 9
    %p202 = pnand %p200, %p201
    %p203 = pneg %p202
    // Predicated region
    $region33: #{frame_generator_forward.6} parent=5 // pred_check
      _
    $region34: #{frame_generator_forward.6} parent=5 // pred_check_branch
      %205 = sbr.rel (%p202) target = $region36
    $region35: #{frame_generator_forward.6} parent=5 // pred_region
      %s206 = ssub.s32 %s10, 1
      %s207 = smul.u32 4, %s22
      %p208 = scmp.lt.s32.totalorder %s21, 3
      %s209 = scalar_select %p208, %s21, 3
      %p210 = scmp.lt.s32.totalorder %s207, 3
      %s211 = scalar_select %p210, %s207, 3
      %s212 = smul.addr %s211, 8
      %s213 = smul.addr %s209, 32
      %s214 = sadd.s32 %s212, %s213
      %s215 = smul.addr %s214, 4
      %s216 = scalar_lea.vmem %s0, %s215
      %p217 = pneg %p57
      %p218 = pneg %p54
      %p219 = scmp.lt.s32.totalorder %s21, 3
      %s220 = scalar_select %p219, %s21, 3
      %s221 = smul.addr %s220, 128
      %s222 = smul.addr %s221, 4
      %s223 = scalar_lea.vmem %s1, %s222
      %p224 = pneg %p83
      %p225 = pneg %p80
      %p226 = pneg %p104
      %p227 = pneg %p101
      %p228 = pneg %p125
      %p229 = pneg %p122
      %p230 = pneg %p153
      %p231 = pneg %p150
      %s232 = smul.u32 4, %s22
      %p233 = scmp.lt.s32.totalorder %s21, 3
      %s234 = scalar_select %p233, %s21, 3
      %p235 = scmp.lt.s32.totalorder %s232, 3
      %s236 = scalar_select %p235, %s232, 3
      %s237 = smul.addr %s234, 4
      %s238 = sadd.s32 %s236, %s237
      %s239 = smul.addr %s238, 4
      %s240 = scalar_lea.vmem %s4, %s239
      %s241 = smul.u32 4, %s22
      %p242 = scmp.lt.s32.totalorder %s21, 3
      %s243 = scalar_select %p242, %s21, 3
      %p244 = scmp.lt.s32.totalorder %s241, 3
      %s245 = scalar_select %p244, %s241, 3
      %s246 = smul.addr %s245, 8
      %s247 = smul.addr %s243, 32
      %s248 = sadd.s32 %s246, %s247
      %s249 = smul.addr %s248, 4
      %s250 = scalar_lea.vmem %s0, %s249
      %s251 = smul.u32 4, %s22
      %p252 = scmp.lt.s32.totalorder %s21, 3
      %s253 = scalar_select %p252, %s21, 3
      %s254 = smul.addr %s253, 128
      %s255 = smul.addr %s254, 4
      %s256 = scalar_lea.vmem %s1, %s255
      %s257 = smul.u32 4, %s22
      %p258 = scmp.lt.s32.totalorder %s21, 3
      %s259 = scalar_select %p258, %s21, 3
      %p260 = scmp.lt.s32.totalorder %s257, 3
      %s261 = scalar_select %p260, %s257, 3
      %s262 = smul.addr %s259, 4
      %s263 = sadd.s32 %s261, %s262
      %s264 = smul.addr %s263, 4
      %s265 = scalar_lea.vmem %s4, %s264
      %s266 = smul.u32 4, %s22
      %v267 = vld [vmem:[%s250] sm:$0xff]
      %v268 = vld [vmem:[%s250 + $0x8] sm:$0xff]
      %v269 = vld [vmem:[%s250 + $0x10] sm:$0xff]
      %v270 = vld [vmem:[%s250 + $0x18] sm:$0xff]
      %v271 = vld [vmem:[%s250 + $0x20] sm:$0xff]
      %v272 = vld [vmem:[%s250 + $0x28] sm:$0xff]
      %v273 = vld [vmem:[%s250 + $0x30] sm:$0xff]
      %v274 = vld [vmem:[%s250 + $0x38] sm:$0xff]
      %v275 = vld [vmem:[%s250 + $0x40] sm:$0xff]
      %v276 = vld [vmem:[%s250 + $0x48] sm:$0xff]
      %v277 = vld [vmem:[%s250 + $0x50] sm:$0xff]
      %v278 = vld [vmem:[%s250 + $0x58] sm:$0xff]
      %v279 = vld [vmem:[%s250 + $0x60] sm:$0xff]
      %v280 = vld [vmem:[%s250 + $0x68] sm:$0xff]
      %v281 = vld [vmem:[%s250 + $0x70] sm:$0xff]
      %v282 = vld [vmem:[%s250 + $0x78] sm:$0xff]
      %v283 = vld [vmem:[%s256] sm:$0xf]
      %v284 = vld [vmem:[%s256 + $0x4] sm:$0xf]
      %v285 = vld [vmem:[%s256 + $0x8] sm:$0xf]
      %v286 = vld [vmem:[%s256 + $0xc] sm:$0xf]
      %v287 = vld [vmem:[%s256 + $0x10] sm:$0xf]
      %v288 = vld [vmem:[%s256 + $0x14] sm:$0xf]
      %v289 = vld [vmem:[%s256 + $0x18] sm:$0xf]
      %v290 = vld [vmem:[%s256 + $0x1c] sm:$0xf]
      %v291 = vld [vmem:[%s256 + $0x20] sm:$0xf]
      %v292 = vld [vmem:[%s256 + $0x24] sm:$0xf]
      %v293 = vld [vmem:[%s256 + $0x28] sm:$0xf]
      %v294 = vld [vmem:[%s256 + $0x2c] sm:$0xf]
      %v295 = vld [vmem:[%s256 + $0x30] sm:$0xf]
      %v296 = vld [vmem:[%s256 + $0x34] sm:$0xf]
      %v297 = vld [vmem:[%s256 + $0x38] sm:$0xf]
      %v298 = vld [vmem:[%s256 + $0x3c] sm:$0xf]
      %v299 = vld [vmem:[%s256 + $0x40] sm:$0xf]
      %v300 = vld [vmem:[%s256 + $0x44] sm:$0xf]
      %v301 = vld [vmem:[%s256 + $0x48] sm:$0xf]
      %v302 = vld [vmem:[%s256 + $0x4c] sm:$0xf]
      %v303 = vld [vmem:[%s256 + $0x50] sm:$0xf]
      %v304 = vld [vmem:[%s256 + $0x54] sm:$0xf]
      %v305 = vld [vmem:[%s256 + $0x58] sm:$0xf]
      %v306 = vld [vmem:[%s256 + $0x5c] sm:$0xf]
      %v307 = vld [vmem:[%s256 + $0x60] sm:$0xf]
      %v308 = vld [vmem:[%s256 + $0x64] sm:$0xf]
      %v309 = vld [vmem:[%s256 + $0x68] sm:$0xf]
      %v310 = vld [vmem:[%s256 + $0x6c] sm:$0xf]
      %v311 = vld [vmem:[%s256 + $0x70] sm:$0xf]
      %v312 = vld [vmem:[%s256 + $0x74] sm:$0xf]
      %v313 = vld [vmem:[%s256 + $0x78] sm:$0xf]
      %v314 = vld [vmem:[%s256 + $0x7c] sm:$0xf]
      %v315 = vld [vmem:[%s256 + $0x80] sm:$0xf]
      %v316 = vld [vmem:[%s256 + $0x84] sm:$0xf]
      %v317 = vld [vmem:[%s256 + $0x88] sm:$0xf]
      %v318 = vld [vmem:[%s256 + $0x8c] sm:$0xf]
      %v319 = vld [vmem:[%s256 + $0x90] sm:$0xf]
      %v320 = vld [vmem:[%s256 + $0x94] sm:$0xf]
      %v321 = vld [vmem:[%s256 + $0x98] sm:$0xf]
      %v322 = vld [vmem:[%s256 + $0x9c] sm:$0xf]
      %v323 = vld [vmem:[%s256 + $0xa0] sm:$0xf]
      %v324 = vld [vmem:[%s256 + $0xa4] sm:$0xf]
      %v325 = vld [vmem:[%s256 + $0xa8] sm:$0xf]
      %v326 = vld [vmem:[%s256 + $0xac] sm:$0xf]
      %v327 = vld [vmem:[%s256 + $0xb0] sm:$0xf]
      %v328 = vld [vmem:[%s256 + $0xb4] sm:$0xf]
      %v329 = vld [vmem:[%s256 + $0xb8] sm:$0xf]
      %v330 = vld [vmem:[%s256 + $0xbc] sm:$0xf]
      %v331 = vld [vmem:[%s256 + $0xc0] sm:$0xf]
      %v332 = vld [vmem:[%s256 + $0xc4] sm:$0xf]
      %v333 = vld [vmem:[%s256 + $0xc8] sm:$0xf]
      %v334 = vld [vmem:[%s256 + $0xcc] sm:$0xf]
      %v335 = vld [vmem:[%s256 + $0xd0] sm:$0xf]
      %v336 = vld [vmem:[%s256 + $0xd4] sm:$0xf]
      %v337 = vld [vmem:[%s256 + $0xd8] sm:$0xf]
      %v338 = vld [vmem:[%s256 + $0xdc] sm:$0xf]
      %v339 = vld [vmem:[%s256 + $0xe0] sm:$0xf]
      %v340 = vld [vmem:[%s256 + $0xe4] sm:$0xf]
      %v341 = vld [vmem:[%s256 + $0xe8] sm:$0xf]
      %v342 = vld [vmem:[%s256 + $0xec] sm:$0xf]
      %v343 = vld [vmem:[%s256 + $0xf0] sm:$0xf]
      %v344 = vld [vmem:[%s256 + $0xf4] sm:$0xf]
      %v345 = vld [vmem:[%s256 + $0xf8] sm:$0xf]
      %v346 = vld [vmem:[%s256 + $0xfc] sm:$0xf]
      %v347 = vld [vmem:[%s256 + $0x100] sm:$0xf]
      %v348 = vld [vmem:[%s256 + $0x104] sm:$0xf]
      %v349 = vld [vmem:[%s256 + $0x108] sm:$0xf]
      %v350 = vld [vmem:[%s256 + $0x10c] sm:$0xf]
      %v351 = vld [vmem:[%s256 + $0x110] sm:$0xf]
      %v352 = vld [vmem:[%s256 + $0x114] sm:$0xf]
      %v353 = vld [vmem:[%s256 + $0x118] sm:$0xf]
      %v354 = vld [vmem:[%s256 + $0x11c] sm:$0xf]
      %v355 = vld [vmem:[%s256 + $0x120] sm:$0xf]
      %v356 = vld [vmem:[%s256 + $0x124] sm:$0xf]
      %v357 = vld [vmem:[%s256 + $0x128] sm:$0xf]
      %v358 = vld [vmem:[%s256 + $0x12c] sm:$0xf]
      %v359 = vld [vmem:[%s256 + $0x130] sm:$0xf]
      %v360 = vld [vmem:[%s256 + $0x134] sm:$0xf]
      %v361 = vld [vmem:[%s256 + $0x138] sm:$0xf]
      %v362 = vld [vmem:[%s256 + $0x13c] sm:$0xf]
      %v363 = vld [vmem:[%s256 + $0x140] sm:$0xf]
      %v364 = vld [vmem:[%s256 + $0x144] sm:$0xf]
      %v365 = vld [vmem:[%s256 + $0x148] sm:$0xf]
      %v366 = vld [vmem:[%s256 + $0x14c] sm:$0xf]
      %v367 = vld [vmem:[%s256 + $0x150] sm:$0xf]
      %v368 = vld [vmem:[%s256 + $0x154] sm:$0xf]
      %v369 = vld [vmem:[%s256 + $0x158] sm:$0xf]
      %v370 = vld [vmem:[%s256 + $0x15c] sm:$0xf]
      %v371 = vld [vmem:[%s256 + $0x160] sm:$0xf]
      %v372 = vld [vmem:[%s256 + $0x164] sm:$0xf]
      %v373 = vld [vmem:[%s256 + $0x168] sm:$0xf]
      %v374 = vld [vmem:[%s256 + $0x16c] sm:$0xf]
      %v375 = vld [vmem:[%s256 + $0x170] sm:$0xf]
      %v376 = vld [vmem:[%s256 + $0x174] sm:$0xf]
      %v377 = vld [vmem:[%s256 + $0x178] sm:$0xf]
      %v378 = vld [vmem:[%s256 + $0x17c] sm:$0xf]
      %v379 = vld [vmem:[%s256 + $0x180] sm:$0xf]
      %v380 = vld [vmem:[%s256 + $0x184] sm:$0xf]
      %v381 = vld [vmem:[%s256 + $0x188] sm:$0xf]
      %v382 = vld [vmem:[%s256 + $0x18c] sm:$0xf]
      %v383 = vld [vmem:[%s256 + $0x190] sm:$0xf]
      %v384 = vld [vmem:[%s256 + $0x194] sm:$0xf]
      %v385 = vld [vmem:[%s256 + $0x198] sm:$0xf]
      %v386 = vld [vmem:[%s256 + $0x19c] sm:$0xf]
      %v387 = vld [vmem:[%s256 + $0x1a0] sm:$0xf]
      %v388 = vld [vmem:[%s256 + $0x1a4] sm:$0xf]
      %v389 = vld [vmem:[%s256 + $0x1a8] sm:$0xf]
      %v390 = vld [vmem:[%s256 + $0x1ac] sm:$0xf]
      %v391 = vld [vmem:[%s256 + $0x1b0] sm:$0xf]
      %v392 = vld [vmem:[%s256 + $0x1b4] sm:$0xf]
      %v393 = vld [vmem:[%s256 + $0x1b8] sm:$0xf]
      %v394 = vld [vmem:[%s256 + $0x1bc] sm:$0xf]
      %v395 = vld [vmem:[%s256 + $0x1c0] sm:$0xf]
      %v396 = vld [vmem:[%s256 + $0x1c4] sm:$0xf]
      %v397 = vld [vmem:[%s256 + $0x1c8] sm:$0xf]
      %v398 = vld [vmem:[%s256 + $0x1cc] sm:$0xf]
      %v399 = vld [vmem:[%s256 + $0x1d0] sm:$0xf]
      %v400 = vld [vmem:[%s256 + $0x1d4] sm:$0xf]
      %v401 = vld [vmem:[%s256 + $0x1d8] sm:$0xf]
      %v402 = vld [vmem:[%s256 + $0x1dc] sm:$0xf]
      %v403 = vld [vmem:[%s256 + $0x1e0] sm:$0xf]
      %v404 = vld [vmem:[%s256 + $0x1e4] sm:$0xf]
      %v405 = vld [vmem:[%s256 + $0x1e8] sm:$0xf]
      %v406 = vld [vmem:[%s256 + $0x1ec] sm:$0xf]
      %v407 = vld [vmem:[%s256 + $0x1f0] sm:$0xf]
      %v408 = vld [vmem:[%s256 + $0x1f4] sm:$0xf]
      %v409 = vld [vmem:[%s256 + $0x1f8] sm:$0xf]
      %v410 = vld [vmem:[%s256 + $0x1fc] sm:$0xf]
      %v427 = vunpack.c.l.b16 %v267
      %v428 = vunpack.c.h.b16 %v267
      %v429 = vunpack.c.l.b16 %v268
      %v430 = vunpack.c.h.b16 %v268
      %v431 = vunpack.c.l.b16 %v269
      %v432 = vunpack.c.h.b16 %v269
      %v433 = vunpack.c.l.b16 %v270
      %v434 = vunpack.c.h.b16 %v270
      %v435 = vunpack.c.l.b16 %v271
      %v436 = vunpack.c.h.b16 %v271
      %v437 = vunpack.c.l.b16 %v272
      %v438 = vunpack.c.h.b16 %v272
      %v439 = vunpack.c.l.b16 %v273
      %v440 = vunpack.c.h.b16 %v273
      %v441 = vunpack.c.l.b16 %v274
      %v442 = vunpack.c.h.b16 %v274
      %v443 = vunpack.c.l.b16 %v275
      %v444 = vunpack.c.h.b16 %v275
      %v445 = vunpack.c.l.b16 %v276
      %v446 = vunpack.c.h.b16 %v276
      %v447 = vunpack.c.l.b16 %v277
      %v448 = vunpack.c.h.b16 %v277
      %v449 = vunpack.c.l.b16 %v278
      %v450 = vunpack.c.h.b16 %v278
      %v451 = vunpack.c.l.b16 %v279
      %v452 = vunpack.c.h.b16 %v279
      %v453 = vunpack.c.l.b16 %v280
      %v454 = vunpack.c.h.b16 %v280
      %v455 = vunpack.c.l.b16 %v281
      %v456 = vunpack.c.h.b16 %v281
      %v457 = vunpack.c.l.b16 %v282
      %v458 = vunpack.c.h.b16 %v282
      %v459 = vpack.c.b16 %v435, %v427
      %v460 = vpack.c.b16 %v436, %v428
      %v461 = vpack.c.b16 %v437, %v429
      %v462 = vpack.c.b16 %v438, %v430
      %v463 = vpack.c.b16 %v439, %v431
      %v464 = vpack.c.b16 %v440, %v432
      %v465 = vpack.c.b16 %v441, %v433
      %v466 = vpack.c.b16 %v442, %v434
      %v467 = vpack.c.b16 %v451, %v443
      %v468 = vpack.c.b16 %v452, %v444
      %v469 = vpack.c.b16 %v453, %v445
      %v470 = vpack.c.b16 %v454, %v446
      %v471 = vpack.c.b16 %v455, %v447
      %v472 = vpack.c.b16 %v456, %v448
      %v473 = vpack.c.b16 %v457, %v449
      %v474 = vpack.c.b16 %v458, %v450
      %v619 = vunpack.c.l.b16 %v283
      %v620 = vunpack.c.l.b16 %v284
      %v621 = vunpack.c.l.b16 %v285
      %v622 = vunpack.c.l.b16 %v286
      %v623 = vunpack.c.l.b16 %v287
      %v624 = vunpack.c.l.b16 %v288
      %v625 = vunpack.c.l.b16 %v289
      %v626 = vunpack.c.l.b16 %v290
      %v627 = vunpack.c.l.b16 %v291
      %v628 = vunpack.c.l.b16 %v292
      %v629 = vunpack.c.l.b16 %v293
      %v630 = vunpack.c.l.b16 %v294
      %v631 = vunpack.c.l.b16 %v295
      %v632 = vunpack.c.l.b16 %v296
      %v633 = vunpack.c.l.b16 %v297
      %v634 = vunpack.c.l.b16 %v298
      %v635 = vunpack.c.l.b16 %v299
      %v636 = vunpack.c.l.b16 %v300
      %v637 = vunpack.c.l.b16 %v301
      %v638 = vunpack.c.l.b16 %v302
      %v639 = vunpack.c.l.b16 %v303
      %v640 = vunpack.c.l.b16 %v304
      %v641 = vunpack.c.l.b16 %v305
      %v642 = vunpack.c.l.b16 %v306
      %v643 = vunpack.c.l.b16 %v307
      %v644 = vunpack.c.l.b16 %v308
      %v645 = vunpack.c.l.b16 %v309
      %v646 = vunpack.c.l.b16 %v310
      %v647 = vunpack.c.l.b16 %v311
      %v648 = vunpack.c.l.b16 %v312
      %v649 = vunpack.c.l.b16 %v313
      %v650 = vunpack.c.l.b16 %v314
      %v651 = vunpack.c.l.b16 %v315
      %v652 = vunpack.c.l.b16 %v316
      %v653 = vunpack.c.l.b16 %v317
      %v654 = vunpack.c.l.b16 %v318
      %v655 = vunpack.c.l.b16 %v319
      %v656 = vunpack.c.l.b16 %v320
      %v657 = vunpack.c.l.b16 %v321
      %v658 = vunpack.c.l.b16 %v322
      %v659 = vunpack.c.l.b16 %v323
      %v660 = vunpack.c.l.b16 %v324
      %v661 = vunpack.c.l.b16 %v325
      %v662 = vunpack.c.l.b16 %v326
      %v663 = vunpack.c.l.b16 %v327
      %v664 = vunpack.c.l.b16 %v328
      %v665 = vunpack.c.l.b16 %v329
      %v666 = vunpack.c.l.b16 %v330
      %v667 = vunpack.c.l.b16 %v331
      %v668 = vunpack.c.l.b16 %v332
      %v669 = vunpack.c.l.b16 %v333
      %v670 = vunpack.c.l.b16 %v334
      %v671 = vunpack.c.l.b16 %v335
      %v672 = vunpack.c.l.b16 %v336
      %v673 = vunpack.c.l.b16 %v337
      %v674 = vunpack.c.l.b16 %v338
      %v675 = vunpack.c.l.b16 %v339
      %v676 = vunpack.c.l.b16 %v340
      %v677 = vunpack.c.l.b16 %v341
      %v678 = vunpack.c.l.b16 %v342
      %v679 = vunpack.c.l.b16 %v343
      %v680 = vunpack.c.l.b16 %v344
      %v681 = vunpack.c.l.b16 %v345
      %v682 = vunpack.c.l.b16 %v346
      %v683 = vunpack.c.l.b16 %v347
      %v684 = vunpack.c.l.b16 %v348
      %v685 = vunpack.c.l.b16 %v349
      %v686 = vunpack.c.l.b16 %v350
      %v687 = vunpack.c.l.b16 %v351
      %v688 = vunpack.c.l.b16 %v352
      %v689 = vunpack.c.l.b16 %v353
      %v690 = vunpack.c.l.b16 %v354
      %v691 = vunpack.c.l.b16 %v355
      %v692 = vunpack.c.l.b16 %v356
      %v693 = vunpack.c.l.b16 %v357
      %v694 = vunpack.c.l.b16 %v358
      %v695 = vunpack.c.l.b16 %v359
      %v696 = vunpack.c.l.b16 %v360
      %v697 = vunpack.c.l.b16 %v361
      %v698 = vunpack.c.l.b16 %v362
      %v699 = vunpack.c.l.b16 %v363
      %v700 = vunpack.c.l.b16 %v364
      %v701 = vunpack.c.l.b16 %v365
      %v702 = vunpack.c.l.b16 %v366
      %v703 = vunpack.c.l.b16 %v367
      %v704 = vunpack.c.l.b16 %v368
      %v705 = vunpack.c.l.b16 %v369
      %v706 = vunpack.c.l.b16 %v370
      %v707 = vunpack.c.l.b16 %v371
      %v708 = vunpack.c.l.b16 %v372
      %v709 = vunpack.c.l.b16 %v373
      %v710 = vunpack.c.l.b16 %v374
      %v711 = vunpack.c.l.b16 %v375
      %v712 = vunpack.c.l.b16 %v376
      %v713 = vunpack.c.l.b16 %v377
      %v714 = vunpack.c.l.b16 %v378
      %v715 = vunpack.c.l.b16 %v379
      %v716 = vunpack.c.l.b16 %v380
      %v717 = vunpack.c.l.b16 %v381
      %v718 = vunpack.c.l.b16 %v382
      %v719 = vunpack.c.l.b16 %v383
      %v720 = vunpack.c.l.b16 %v384
      %v721 = vunpack.c.l.b16 %v385
      %v722 = vunpack.c.l.b16 %v386
      %v723 = vunpack.c.l.b16 %v387
      %v724 = vunpack.c.l.b16 %v388
      %v725 = vunpack.c.l.b16 %v389
      %v726 = vunpack.c.l.b16 %v390
      %v727 = vunpack.c.l.b16 %v391
      %v728 = vunpack.c.l.b16 %v392
      %v729 = vunpack.c.l.b16 %v393
      %v730 = vunpack.c.l.b16 %v394
      %v731 = vunpack.c.l.b16 %v395
      %v732 = vunpack.c.l.b16 %v396
      %v733 = vunpack.c.l.b16 %v397
      %v734 = vunpack.c.l.b16 %v398
      %v735 = vunpack.c.l.b16 %v399
      %v736 = vunpack.c.l.b16 %v400
      %v737 = vunpack.c.l.b16 %v401
      %v738 = vunpack.c.l.b16 %v402
      %v739 = vunpack.c.l.b16 %v403
      %v740 = vunpack.c.l.b16 %v404
      %v741 = vunpack.c.l.b16 %v405
      %v742 = vunpack.c.l.b16 %v406
      %v743 = vunpack.c.l.b16 %v407
      %v744 = vunpack.c.l.b16 %v408
      %v745 = vunpack.c.l.b16 %v409
      %v746 = vunpack.c.l.b16 %v410
      %v747 = vpack.c.b16 %v620, %v619
      %v748 = vpack.c.b16 %v622, %v621
      %v749 = vpack.c.b16 %v624, %v623
      %v750 = vpack.c.b16 %v626, %v625
      %v751 = vpack.c.b16 %v628, %v627
      %v752 = vpack.c.b16 %v630, %v629
      %v753 = vpack.c.b16 %v632, %v631
      %v754 = vpack.c.b16 %v634, %v633
      %v755 = vpack.c.b16 %v636, %v635
      %v756 = vpack.c.b16 %v638, %v637
      %v757 = vpack.c.b16 %v640, %v639
      %v758 = vpack.c.b16 %v642, %v641
      %v759 = vpack.c.b16 %v644, %v643
      %v760 = vpack.c.b16 %v646, %v645
      %v761 = vpack.c.b16 %v648, %v647
      %v762 = vpack.c.b16 %v650, %v649
      %v763 = vpack.c.b16 %v652, %v651
      %v764 = vpack.c.b16 %v654, %v653
      %v765 = vpack.c.b16 %v656, %v655
      %v766 = vpack.c.b16 %v658, %v657
      %v767 = vpack.c.b16 %v660, %v659
      %v768 = vpack.c.b16 %v662, %v661
      %v769 = vpack.c.b16 %v664, %v663
      %v770 = vpack.c.b16 %v666, %v665
      %v771 = vpack.c.b16 %v668, %v667
      %v772 = vpack.c.b16 %v670, %v669
      %v773 = vpack.c.b16 %v672, %v671
      %v774 = vpack.c.b16 %v674, %v673
      %v775 = vpack.c.b16 %v676, %v675
      %v776 = vpack.c.b16 %v678, %v677
      %v777 = vpack.c.b16 %v680, %v679
      %v778 = vpack.c.b16 %v682, %v681
      %v779 = vpack.c.b16 %v684, %v683
      %v780 = vpack.c.b16 %v686, %v685
      %v781 = vpack.c.b16 %v688, %v687
      %v782 = vpack.c.b16 %v690, %v689
      %v783 = vpack.c.b16 %v692, %v691
      %v784 = vpack.c.b16 %v694, %v693
      %v785 = vpack.c.b16 %v696, %v695
      %v786 = vpack.c.b16 %v698, %v697
      %v787 = vpack.c.b16 %v700, %v699
      %v788 = vpack.c.b16 %v702, %v701
      %v789 = vpack.c.b16 %v704, %v703
      %v790 = vpack.c.b16 %v706, %v705
      %v791 = vpack.c.b16 %v708, %v707
      %v792 = vpack.c.b16 %v710, %v709
      %v793 = vpack.c.b16 %v712, %v711
      %v794 = vpack.c.b16 %v714, %v713
      %v795 = vpack.c.b16 %v716, %v715
      %v796 = vpack.c.b16 %v718, %v717
      %v797 = vpack.c.b16 %v720, %v719
      %v798 = vpack.c.b16 %v722, %v721
      %v799 = vpack.c.b16 %v724, %v723
      %v800 = vpack.c.b16 %v726, %v725
      %v801 = vpack.c.b16 %v728, %v727
      %v802 = vpack.c.b16 %v730, %v729
      %v803 = vpack.c.b16 %v732, %v731
      %v804 = vpack.c.b16 %v734, %v733
      %v805 = vpack.c.b16 %v736, %v735
      %v806 = vpack.c.b16 %v738, %v737
      %v807 = vpack.c.b16 %v740, %v739
      %v808 = vpack.c.b16 %v742, %v741
      %v809 = vpack.c.b16 %v744, %v743
      %v810 = vpack.c.b16 %v746, %v745
      %875 = vmatpush.bf16.msra.mxu0 %v754
      %876 = vmatpush.bf16.msra.mxu0 %v753
      %877 = vmatpush.bf16.msra.mxu0 %v752
      %878 = vmatpush.bf16.msra.mxu0 %v751
      %879 = vmatpush.bf16.msra.mxu0 %v750
      %880 = vmatpush.bf16.msra.mxu0 %v749
      %881 = vmatpush.bf16.msra.mxu0 %v748
      %882 = vmatpush.bf16.msra.mxu0 %v747
      %883 = vmatmul.bf16.gmra.mxu0 %v459
      %v884 = vpop.f32.mrf.mxu0
      %v885 = vadd.f32 0.0, %v884
      %v886 = vpop.f32.mrf.mxu0
      %v887 = vadd.f32 0.0, %v886
      %888 = vmatmul.bf16.gmra.mxu0 %v467
      %v889 = vpop.f32.mrf.mxu0
      %v890 = vadd.f32 0.0, %v889
      %v891 = vpop.f32.mrf.mxu0
      %v892 = vadd.f32 0.0, %v891
      %893 = vdwg.mxu0
      %894 = vmatpush.bf16.msra.mxu0 %v762
      %895 = vmatpush.bf16.msra.mxu0 %v761
      %896 = vmatpush.bf16.msra.mxu0 %v760
      %897 = vmatpush.bf16.msra.mxu0 %v759
      %898 = vmatpush.bf16.msra.mxu0 %v758
      %899 = vmatpush.bf16.msra.mxu0 %v757
      %900 = vmatpush.bf16.msra.mxu0 %v756
      %901 = vmatpush.bf16.msra.mxu0 %v755
      %902 = vmatmul.bf16.gmra.mxu0 %v460
      %v903 = vpop.f32.mrf.mxu0
      %v904 = vadd.f32 %v885, %v903
      %v905 = vpop.f32.mrf.mxu0
      %v906 = vadd.f32 %v887, %v905
      %907 = vmatmul.bf16.gmra.mxu0 %v468
      %v908 = vpop.f32.mrf.mxu0
      %v909 = vadd.f32 %v890, %v908
      %v910 = vpop.f32.mrf.mxu0
      %v911 = vadd.f32 %v892, %v910
      %912 = vdwg.mxu0
      %913 = vmatpush.bf16.msra.mxu0 %v770
      %914 = vmatpush.bf16.msra.mxu0 %v769
      %915 = vmatpush.bf16.msra.mxu0 %v768
      %916 = vmatpush.bf16.msra.mxu0 %v767
      %917 = vmatpush.bf16.msra.mxu0 %v766
      %918 = vmatpush.bf16.msra.mxu0 %v765
      %919 = vmatpush.bf16.msra.mxu0 %v764
      %920 = vmatpush.bf16.msra.mxu0 %v763
      %921 = vmatmul.bf16.gmra.mxu0 %v461
      %v922 = vpop.f32.mrf.mxu0
      %v923 = vadd.f32 %v904, %v922
      %v924 = vpop.f32.mrf.mxu0
      %v925 = vadd.f32 %v906, %v924
      %926 = vmatmul.bf16.gmra.mxu0 %v469
      %v927 = vpop.f32.mrf.mxu0
      %v928 = vadd.f32 %v909, %v927
      %v929 = vpop.f32.mrf.mxu0
      %v930 = vadd.f32 %v911, %v929
      %931 = vdwg.mxu0
      %932 = vmatpush.bf16.msra.mxu0 %v778
      %933 = vmatpush.bf16.msra.mxu0 %v777
      %934 = vmatpush.bf16.msra.mxu0 %v776
      %935 = vmatpush.bf16.msra.mxu0 %v775
      %936 = vmatpush.bf16.msra.mxu0 %v774
      %937 = vmatpush.bf16.msra.mxu0 %v773
      %938 = vmatpush.bf16.msra.mxu0 %v772
      %939 = vmatpush.bf16.msra.mxu0 %v771
      %940 = vmatmul.bf16.gmra.mxu0 %v462
      %v941 = vpop.f32.mrf.mxu0
      %v942 = vadd.f32 %v923, %v941
      %v943 = vpop.f32.mrf.mxu0
      %v944 = vadd.f32 %v925, %v943
      %945 = vmatmul.bf16.gmra.mxu0 %v470
      %v946 = vpop.f32.mrf.mxu0
      %v947 = vadd.f32 %v928, %v946
      %v948 = vpop.f32.mrf.mxu0
      %v949 = vadd.f32 %v930, %v948
      %950 = vdwg.mxu0
      %951 = vmatpush.bf16.msra.mxu0 %v786
      %952 = vmatpush.bf16.msra.mxu0 %v785
      %953 = vmatpush.bf16.msra.mxu0 %v784
      %954 = vmatpush.bf16.msra.mxu0 %v783
      %955 = vmatpush.bf16.msra.mxu0 %v782
      %956 = vmatpush.bf16.msra.mxu0 %v781
      %957 = vmatpush.bf16.msra.mxu0 %v780
      %958 = vmatpush.bf16.msra.mxu0 %v779
      %959 = vmatmul.bf16.gmra.mxu0 %v463
      %v960 = vpop.f32.mrf.mxu0
      %v961 = vadd.f32 %v942, %v960
      %v962 = vpop.f32.mrf.mxu0
      %v963 = vadd.f32 %v944, %v962
      %964 = vmatmul.bf16.gmra.mxu0 %v471
      %v965 = vpop.f32.mrf.mxu0
      %v966 = vadd.f32 %v947, %v965
      %v967 = vpop.f32.mrf.mxu0
      %v968 = vadd.f32 %v949, %v967
      %969 = vdwg.mxu0
      %970 = vmatpush.bf16.msra.mxu0 %v794
      %971 = vmatpush.bf16.msra.mxu0 %v793
      %972 = vmatpush.bf16.msra.mxu0 %v792
      %973 = vmatpush.bf16.msra.mxu0 %v791
      %974 = vmatpush.bf16.msra.mxu0 %v790
      %975 = vmatpush.bf16.msra.mxu0 %v789
      %976 = vmatpush.bf16.msra.mxu0 %v788
      %977 = vmatpush.bf16.msra.mxu0 %v787
      %978 = vmatmul.bf16.gmra.mxu0 %v464
      %v979 = vpop.f32.mrf.mxu0
      %v980 = vadd.f32 %v961, %v979
      %v981 = vpop.f32.mrf.mxu0
      %v982 = vadd.f32 %v963, %v981
      %983 = vmatmul.bf16.gmra.mxu0 %v472
      %v984 = vpop.f32.mrf.mxu0
      %v985 = vadd.f32 %v966, %v984
      %v986 = vpop.f32.mrf.mxu0
      %v987 = vadd.f32 %v968, %v986
      %988 = vdwg.mxu0
      %989 = vmatpush.bf16.msra.mxu0 %v802
      %990 = vmatpush.bf16.msra.mxu0 %v801
      %991 = vmatpush.bf16.msra.mxu0 %v800
      %992 = vmatpush.bf16.msra.mxu0 %v799
      %993 = vmatpush.bf16.msra.mxu0 %v798
      %994 = vmatpush.bf16.msra.mxu0 %v797
      %995 = vmatpush.bf16.msra.mxu0 %v796
      %996 = vmatpush.bf16.msra.mxu0 %v795
      %997 = vmatmul.bf16.gmra.mxu0 %v465
      %v998 = vpop.f32.mrf.mxu0
      %v999 = vadd.f32 %v980, %v998
      %v1000 = vpop.f32.mrf.mxu0
      %v1001 = vadd.f32 %v982, %v1000
      %1002 = vmatmul.bf16.gmra.mxu0 %v473
      %v1003 = vpop.f32.mrf.mxu0
      %v1004 = vadd.f32 %v985, %v1003
      %v1005 = vpop.f32.mrf.mxu0
      %v1006 = vadd.f32 %v987, %v1005
      %1007 = vdwg.mxu0
      %1008 = vmatpush.bf16.msra.mxu0 %v810
      %1009 = vmatpush.bf16.msra.mxu0 %v809
      %1010 = vmatpush.bf16.msra.mxu0 %v808
      %1011 = vmatpush.bf16.msra.mxu0 %v807
      %1012 = vmatpush.bf16.msra.mxu0 %v806
      %1013 = vmatpush.bf16.msra.mxu0 %v805
      %1014 = vmatpush.bf16.msra.mxu0 %v804
      %1015 = vmatpush.bf16.msra.mxu0 %v803
      %1016 = vmatmul.bf16.gmra.mxu0 %v466
      %v1017 = vpop.f32.mrf.mxu0
      %v1018 = vadd.f32 %v999, %v1017
      %v1019 = vpop.f32.mrf.mxu0
      %v1020 = vadd.f32 %v1001, %v1019
      %1021 = vmatmul.bf16.gmra.mxu0 %v474
      %v1022 = vpop.f32.mrf.mxu0
      %v1023 = vadd.f32 %v1004, %v1022
      %v1024 = vpop.f32.mrf.mxu0
      %v1025 = vadd.f32 %v1006, %v1024
      %1026 = vdwg.mxu0
      %p1027 = scmp.eq.s32.totalorder %s20, 0
      // Predicated region
      $region37: #{frame_generator_forward.6} parent=35 // pred_check
        %p1028 = pneg %p1027
      $region38: #{frame_generator_forward.6} parent=35 // pred_check_branch
        %1030 = sbr.rel (%p1028) target = $region40
      $region39: #{frame_generator_forward.6} parent=35 // pred_region
        %p1031 = scmp.eq.s32.totalorder %s21, 0
        %p1032 = scmp.eq.s32.totalorder %s22, 0
        %p1033 = pnand %p1031, %p1032
        %p1034 = pneg %p1033
        // Predicated region
        $region41: #{frame_generator_forward.6} parent=39 // pred_check
          _
        $region42: #{frame_generator_forward.6} parent=39 // pred_check_branch
          %1036 = sbr.rel (%p1033) target = $region44
        $region43: #{frame_generator_forward.6} parent=39 // pred_region
          %1037 = vst [vmem:[#allocation2] sm:$0x1] 0.0
          %1038 = vst [vmem:[#allocation3] sm:$0x1] 0.0
        $region44: #{frame_generator_forward.6} parent=39 // pred_fallthru
          _
        %v1039 = vld [vmem:[#allocation2] sm:$0x1]
        %v1040 = vadd.f32 %v1018, %v1020
        %v1041 = vadd.f32 %v1040, %v1023
        %v1042 = vadd.f32 %v1041, %v1025
        %v1043 = vrot.slane %v1042, 4
        %v1044 = vadd.f32 %v1042, %v1043
        %v1045 = vrot.slane %v1044, 2
        %v1046 = vadd.f32 %v1044, %v1045
        %v1047 = vrot.slane %v1046, 1
        %v1048 = vadd.f32 %v1046, %v1047
        %v1049 = vadd.f32 %v1039, %v1048
        %1050 = vst [vmem:[#allocation2] sm:$0x1] %v1049
        %v1051 = vld [vmem:[#allocation3] sm:$0x1]
        %v1052 = vmul.f32 %v1018, %v1018
        %v1053 = vmul.f32 %v1020, %v1020
        %v1054 = vmul.f32 %v1023, %v1023
        %v1055 = vmul.f32 %v1025, %v1025
        %v1056 = vadd.f32 %v1052, %v1053
        %v1057 = vadd.f32 %v1056, %v1054
        %v1058 = vadd.f32 %v1057, %v1055
        %v1059 = vrot.slane %v1058, 4
        %v1060 = vadd.f32 %v1058, %v1059
        %v1061 = vrot.slane %v1060, 2
        %v1062 = vadd.f32 %v1060, %v1061
        %v1063 = vrot.slane %v1062, 1
        %v1064 = vadd.f32 %v1062, %v1063
        %v1065 = vadd.f32 %v1051, %v1064
        %1066 = vst [vmem:[#allocation3] sm:$0x1] %v1065
      $region40: #{frame_generator_forward.6} parent=35 // pred_fallthru
        _
      %p1067 = scmp.eq.s32.totalorder %s20, 1
      // Predicated region
      $region45: #{frame_generator_forward.6} parent=35 // pred_check
        %p1068 = pneg %p1067
      $region46: #{frame_generator_forward.6} parent=35 // pred_check_branch
        %1070 = sbr.rel (%p1068) target = $region48
      $region47: #{frame_generator_forward.6} parent=35 // pred_region
        %v1071 = vld [vmem:[#allocation2] sm:$0x1]
        %v1072 = vmul.f32 %v1071, 0.0078125
        %v1073 = vld [vmem:[#allocation3] sm:$0x1]
        %v1074 = vmul.f32 %v1073, 0.0078125
        %v1075 = vmul.f32 %v1072, %v1072
        %v1076 = vsub.f32 %v1074, %v1075
        %v1077 = vadd.f32 %v1076, 1e-05
        %v1078 = vrsqrt.pop %v1077
        %v1079 = vmul.f32 %v1078, %v1077
        %v1080 = vmul.f32 %v1079, %v1078
        %v1081 = vmul.f32 0.5, %v1080
        %v1082 = vsub.f32 1.5, %v1081
        %v1083 = vmul.f32 %v1078, %v1082
        %vm1084 = vweird.f32 %v1077
        %vm1085 = vweird.f32 %v1078
        %vm1086 = vmor %vm1084, %vm1085
        %v1087 = vsel %vm1086, %v1078, %v1083
        %v1089 = vperm.slane %v1072, 0
        %v1091 = vsub.f32 %v1018, %v1089
        %v1092 = vsub.f32 %v1020, %v1089
        %v1093 = vsub.f32 %v1023, %v1089
        %v1094 = vsub.f32 %v1025, %v1089
        %v1096 = vperm.slane %v1087, 0
        %v1098 = vmul.f32 %v1091, %v1096
        %v1099 = vmul.f32 %v1092, %v1096
        %v1100 = vmul.f32 %v1093, %v1096
        %v1101 = vmul.f32 %v1094, %v1096
        %v1102 = vld [vmem:[%s2] sm:$0x1]
        %v1104 = vperm.slane %v1102, 0
        %v1106 = vmul.f32 %v1098, %v1104
        %v1107 = vmul.f32 %v1099, %v1104
        %v1108 = vmul.f32 %v1100, %v1104
        %v1109 = vmul.f32 %v1101, %v1104
        %v1110 = vld [vmem:[%s3] sm:$0x1]
        %v1112 = vperm.slane %v1110, 0
        %v1114 = vadd.f32 %v1106, %v1112
        %v1115 = vadd.f32 %v1107, %v1112
        %v1116 = vadd.f32 %v1108, %v1112
        %v1117 = vadd.f32 %v1109, %v1112
        %v1118 = vmax.f32 %v1114, 0.0
        %v1119 = vmax.f32 %v1115, 0.0
        %v1120 = vmax.f32 %v1116, 0.0
        %v1121 = vmax.f32 %v1117, 0.0
        %v1122 = vpack.c.bf16 %v1118, %v1118
        %v1123 = vpack.c.bf16 %v1119, %v1119
        %v1124 = vpack.c.bf16 %v1120, %v1120
        %v1125 = vpack.c.bf16 %v1121, %v1121
        %1126 = vst [vmem:[%s265] sm:$0xf] %v1122
        %1127 = vst [vmem:[%s265 + $0x4] sm:$0xf] %v1123
        %1128 = vst [vmem:[%s265 + $0x8] sm:$0xf] %v1124
        %1129 = vst [vmem:[%s265 + $0xc] sm:$0xf] %v1125
      $region48: #{frame_generator_forward.6} parent=35 // pred_fallthru
        _
      %s1130 = smul.u32 4, %s22
      %p1131 = scmp.lt.s32.totalorder %s21, 3
      %s1132 = scalar_select %p1131, %s21, 3
      %p1133 = scmp.lt.s32.totalorder %s1130, 3
      %s1134 = scalar_select %p1133, %s1130, 3
      %s1135 = smul.addr %s1132, 4
      %s1136 = sadd.s32 %s1134, %s1135
      %s1137 = smul.addr %s1136, 4
      %s1138 = scalar_lea.vmem %s4, %s1137
      // Predicated region
      $region49: #{frame_generator_forward.6} parent=35 // pred_check
        %p1139 = pneg %p150
      $region50: #{frame_generator_forward.6} parent=35 // pred_check_branch
        %1141 = sbr.rel (%p1139) target = $region52
      $region51: #{frame_generator_forward.6} parent=35 // pred_region
        %s1142 = smul.u32 4, %s22
      $region52: #{frame_generator_forward.6} parent=35 // pred_fallthru
        _
    $region36: #{frame_generator_forward.6} parent=5 // pred_fallthru
      _
    %p1143 = scmp.le.s32.totalorder 2, %s10
    // Predicated region
    $region53: #{frame_generator_forward.6} parent=5 // pred_check
      %p1144 = pneg %p1143
    $region54: #{frame_generator_forward.6} parent=5 // pred_check_branch
      %1146 = sbr.rel (%p1144) target = $region56
    $region55: #{frame_generator_forward.6} parent=5 // pred_region
      %s1147 = ssub.s32 %s10, 2
      // Predicated region
      $region57: #{frame_generator_forward.6} parent=55 // pred_check
        %p1148 = pneg %p156
      $region58: #{frame_generator_forward.6} parent=55 // pred_check_branch
        %1150 = sbr.rel (%p1148) target = $region60
      $region59: #{frame_generator_forward.6} parent=55 // pred_region
        %s1151 = smul.u32 4, %s25
        %p1152 = scmp.lt.s32.totalorder %s24, 3
        %s1153 = scalar_select %p1152, %s24, 3
        %p1154 = scmp.lt.s32.totalorder %s1151, 3
        %s1155 = scalar_select %p1154, %s1151, 3
        %s1156 = smul.addr %s1153, 4
        %s1157 = sadd.s32 %s1155, %s1156
        %s1158 = smul.addr %s1157, 4
        %s1159 = scalar_lea.vmem %s4, %s1158
      $region60: #{frame_generator_forward.6} parent=55 // pred_fallthru
        _
    $region56: #{frame_generator_forward.6} parent=5 // pred_fallthru
      _
  $region6: #{frame_generator_forward.6} parent=0 // loop_footer
    %s14 = sadd.s32 1, %s10
  $region7: #{frame_generator_forward.6} parent=0 // loop_footer_branch
    %9 = sbr.rel target = $region3
  $region8: #{frame_generator_forward.6} parent=0 // loop_exit
    _

// kernel: frame_generator_forward.7
$region0: #{frame_generator_forward.7}
  #allocation0 [shape = 'u32[]', space=smem, size = 0x4, offset = 0x4, fixed_abs, tag = 'smem constant byte address 0x4 - core index']
  #allocation1 [shape = 'u32[72,128]{1,0:T(1,128)}', space=vmem, size = 0x9000, scoped, tag = 'internal scratch']
  #allocation2 [shape = 'f32[1,64]{1,0:T(1,128)}', space=vmem, size = 0x200, scoped, tag = 'scratch operand']
  #allocation3 [shape = 'f32[1,64]{1,0:T(1,128)}', space=vmem, size = 0x200, scoped, tag = 'scratch operand']
  %s0 = inlined_call_operand.vmem [shape: bf16[4,128,512], index: 0, kind: input, shape index: {}]
  %s1 = inlined_call_operand.vmem [shape: bf16[4,512,64], index: 1, kind: input, shape index: {}]
  %s2 = inlined_call_operand.vmem [shape: f32[1,64], index: 2, kind: input, shape index: {}]
  %s3 = inlined_call_operand.vmem [shape: f32[1,64], index: 3, kind: input, shape index: {}]
  %s4 = inlined_call_operand.vmem [shape: bf16[4,128,64], index: 4, kind: output, shape index: {}]
  %s5 = sld [smem:[#allocation0]]
  $region61: #{frame_generator_forward.7} parent=0
    _
  %s7 = ssub.s32 1, %s5
  %s8 = scalar_select 0, %s7, %s5
  loop: start=0, step=1, limit=10
  $region2: #{frame_generator_forward.7} parent=0 // loop_pre_header
    _
  $region3: #{frame_generator_forward.7} parent=0 // loop_header
    %s10 = sphi 0, %s14
    %p11 = scmp.ge.s32.totalorder %s10, 10
    %s17 = sphi 0, %s36
    %s18 = sphi 0, %s32
    %s19 = sphi 0, %s28
    %s20 = sphi 0, %s17
    %s21 = sphi 0, %s18
    %s22 = sphi 0, %s19
    %s23 = sphi 0, %s20
    %s24 = sphi 0, %s21
    %s25 = sphi 0, %s22
    %s41 = sphi 0, %s43
    %s44 = sphi 0, %s41
    %s45 = sphi 0, %s44
    %s61 = sphi 0, %s45
    %s67 = sphi 0, %s69
    %s70 = sphi 0, %s67
    %s71 = sphi 0, %s70
    %s87 = sphi 0, %s71
    %s91 = sphi 0, %s91
    %s93 = sphi 0, %s91
    %s94 = sphi 0, %s93
    %s108 = sphi 0, %s94
    %s112 = sphi 0, %s112
    %s114 = sphi 0, %s112
    %s115 = sphi 0, %s114
    %s129 = sphi 0, %s115
    %s137 = sphi 0, %s139
    %s140 = sphi 0, %s137
    %s141 = sphi 0, %s140
    %s157 = sphi 0, %s141
  $region4: #{frame_generator_forward.7} parent=0 // loop_header_branch
    %13 = sbr.rel (%p11) target = $region8
  $region5: #{frame_generator_forward.7} parent=0 // loop_body
    %s15 = ssub.s32 %s10, 1
    %s16 = ssub.s32 %s10, 2
    %s26 = sadd.s32 1, %s19
    %p27 = scmp.ge.s32.totalorder %s26, 1
    %s28 = scalar_select %p27, 0, %s26
    %s29 = sadd.s32 1, %s18
    %s30 = scalar_select %p27, %s29, %s18
    %p31 = scmp.ge.s32.totalorder %s30, 4
    %s32 = scalar_select %p31, 0, %s30
    %s33 = sadd.s32 1, %s17
    %s34 = scalar_select %p31, %s33, %s17
    %p35 = scmp.ge.s32.totalorder %s34, 2
    %s36 = scalar_select %p35, 0, %s34
    %s37 = ssub.s32 %s18, %s32
    %s38 = ssub.s32 %s19, %s28
    %s39 = sor.u32 %s37, %s38
    %p40 = scmp.eq.s32.totalorder %s39, 0
    %s42 = sadd.s32 %s41, 1
    %s43 = scalar_select %p40, %s41, %s42
    %p46 = pneg %p40
    %p47 = scmp.eq.s32.totalorder %s10, 7
    %p48 = por %p46, %p47
    %p49 = scmp.ne.s32.totalorder %s41, %s44
    %p50 = scmp.eq.s32.totalorder %s10, 0
    %p51 = por %p49, %p50
    %p52 = scmp.ne.s32.totalorder %s41, %s44
    %p53 = scmp.eq.s32.totalorder %s15, 7
    %p54 = por %p52, %p53
    %p55 = scmp.ne.s32.totalorder %s44, %s45
    %p56 = scmp.eq.s32.totalorder %s15, 0
    %p57 = por %p55, %p56
    %p58 = scmp.ne.s32.totalorder %s44, %s45
    %p59 = scmp.eq.s32.totalorder %s16, 7
    %p60 = por %p58, %p59
    %p62 = scmp.ne.s32.totalorder %s45, %s61
    %p63 = scmp.eq.s32.totalorder %s16, 0
    %p64 = por %p62, %p63
    %s65 = ssub.s32 %s18, %s32
    %p66 = scmp.eq.s32.totalorder %s65, 0
    %s68 = sadd.s32 %s67, 1
    %s69 = scalar_select %p66, %s67, %s68
    %p72 = pneg %p66
    %p73 = scmp.eq.s32.totalorder %s10, 7
    %p74 = por %p72, %p73
    %p75 = scmp.ne.s32.totalorder %s67, %s70
    %p76 = scmp.eq.s32.totalorder %s10, 0
    %p77 = por %p75, %p76
    %p78 = scmp.ne.s32.totalorder %s67, %s70
    %p79 = scmp.eq.s32.totalorder %s15, 7
    %p80 = por %p78, %p79
    %p81 = scmp.ne.s32.totalorder %s70, %s71
    %p82 = scmp.eq.s32.totalorder %s15, 0
    %p83 = por %p81, %p82
    %p84 = scmp.ne.s32.totalorder %s70, %s71
    %p85 = scmp.eq.s32.totalorder %s16, 7
    %p86 = por %p84, %p85
    %p88 = scmp.ne.s32.totalorder %s71, %s87
    %p89 = scmp.eq.s32.totalorder %s16, 0
    %p90 = por %p88, %p89
    %s92 = sadd.s32 %s91, 1
    %p95 = scmp.eq.s32.totalorder %s10, 7
    %p96 = scmp.ne.s32.totalorder %s91, %s93
    %p97 = scmp.eq.s32.totalorder %s10, 0
    %p98 = por %p96, %p97
    %p99 = scmp.ne.s32.totalorder %s91, %s93
    %p100 = scmp.eq.s32.totalorder %s15, 7
    %p101 = por %p99, %p100
    %p102 = scmp.ne.s32.totalorder %s93, %s94
    %p103 = scmp.eq.s32.totalorder %s15, 0
    %p104 = por %p102, %p103
    %p105 = scmp.ne.s32.totalorder %s93, %s94
    %p106 = scmp.eq.s32.totalorder %s16, 7
    %p107 = por %p105, %p106
    %p109 = scmp.ne.s32.totalorder %s94, %s108
    %p110 = scmp.eq.s32.totalorder %s16, 0
    %p111 = por %p109, %p110
    %s113 = sadd.s32 %s112, 1
    %p116 = scmp.eq.s32.totalorder %s10, 7
    %p117 = scmp.ne.s32.totalorder %s112, %s114
    %p118 = scmp.eq.s32.totalorder %s10, 0
    %p119 = por %p117, %p118
    %p120 = scmp.ne.s32.totalorder %s112, %s114
    %p121 = scmp.eq.s32.totalorder %s15, 7
    %p122 = por %p120, %p121
    %p123 = scmp.ne.s32.totalorder %s114, %s115
    %p124 = scmp.eq.s32.totalorder %s15, 0
    %p125 = por %p123, %p124
    %p126 = scmp.ne.s32.totalorder %s114, %s115
    %p127 = scmp.eq.s32.totalorder %s16, 7
    %p128 = por %p126, %p127
    %p130 = scmp.ne.s32.totalorder %s115, %s129
    %p131 = scmp.eq.s32.totalorder %s16, 0
    %p132 = por %p130, %p131
    %s133 = ssub.s32 %s18, %s32
    %s134 = ssub.s32 %s19, %s28
    %s135 = sor.u32 %s133, %s134
    %p136 = scmp.eq.s32.totalorder %s135, 0
    %s138 = sadd.s32 %s137, 1
    %s139 = scalar_select %p136, %s137, %s138
    %p142 = pneg %p136
    %p143 = scmp.eq.s32.totalorder %s10, 7
    %p144 = por %p142, %p143
    %p145 = scmp.ne.s32.totalorder %s137, %s140
    %p146 = scmp.eq.s32.totalorder %s10, 0
    %p147 = por %p145, %p146
    %p148 = scmp.ne.s32.totalorder %s137, %s140
    %p149 = scmp.eq.s32.totalorder %s15, 7
    %p150 = por %p148, %p149
    %p151 = scmp.ne.s32.totalorder %s140, %s141
    %p152 = scmp.eq.s32.totalorder %s15, 0
    %p153 = por %p151, %p152
    %p154 = scmp.ne.s32.totalorder %s140, %s141
    %p155 = scmp.eq.s32.totalorder %s16, 7
    %p156 = por %p154, %p155
    %p158 = scmp.ne.s32.totalorder %s141, %s157
    %p159 = scmp.eq.s32.totalorder %s16, 0
    %p160 = por %p158, %p159
    %p161 = scmp.le.s32.totalorder 1, %s10
    %p162 = scmp.lt.s32.totalorder %s10, 9
    %p163 = pnand %p161, %p162
    %p164 = pneg %p163
    // Predicated region
    $region9: #{frame_generator_forward.7} parent=5 // pred_check
      _
    $region10: #{frame_generator_forward.7} parent=5 // pred_check_branch
      %166 = sbr.rel (%p163) target = $region12
    $region11: #{frame_generator_forward.7} parent=5 // pred_region
      %s167 = ssub.s32 %s10, 1
      // Predicated region
      $region13: #{frame_generator_forward.7} parent=11 // pred_check
        %p168 = pneg %p104
      $region14: #{frame_generator_forward.7} parent=11 // pred_check_branch
        %170 = sbr.rel (%p168) target = $region16
      $region15: #{frame_generator_forward.7} parent=11 // pred_region
        _
      $region16: #{frame_generator_forward.7} parent=11 // pred_fallthru
        _
      // Predicated region
      $region17: #{frame_generator_forward.7} parent=11 // pred_check
        %p171 = pneg %p125
      $region18: #{frame_generator_forward.7} parent=11 // pred_check_branch
        %173 = sbr.rel (%p171) target = $region20
      $region19: #{frame_generator_forward.7} parent=11 // pred_region
        _
      $region20: #{frame_generator_forward.7} parent=11 // pred_fallthru
        _
    $region12: #{frame_generator_forward.7} parent=5 // pred_fallthru
      _
    %p174 = scmp.lt.s32.totalorder %s10, 8
    // Predicated region
    $region21: #{frame_generator_forward.7} parent=5 // pred_check
      %p175 = pneg %p174
    $region22: #{frame_generator_forward.7} parent=5 // pred_check_branch
      %177 = sbr.rel (%p175) target = $region24
    $region23: #{frame_generator_forward.7} parent=5 // pred_region
      // Predicated region
      $region25: #{frame_generator_forward.7} parent=23 // pred_check
        %p178 = pneg %p51
      $region26: #{frame_generator_forward.7} parent=23 // pred_check_branch
        %180 = sbr.rel (%p178) target = $region28
      $region27: #{frame_generator_forward.7} parent=23 // pred_region
        %s181 = smul.u32 16, %s19
        %p182 = scmp.lt.s32.totalorder %s18, 3
        %s183 = scalar_select %p182, %s18, 3
        %p184 = scmp.lt.s32.totalorder %s181, 15
        %s185 = scalar_select %p184, %s181, 15
        %s186 = smul.addr %s185, 4
        %s187 = smul.addr %s183, 64
        %s188 = sadd.s32 %s186, %s187
        %s189 = smul.addr %s188, 4
        %s190 = scalar_lea.vmem %s0, %s189
        %s191 = smul.u32 16, %s19
      $region28: #{frame_generator_forward.7} parent=23 // pred_fallthru
        _
      // Predicated region
      $region29: #{frame_generator_forward.7} parent=23 // pred_check
        %p192 = pneg %p77
      $region30: #{frame_generator_forward.7} parent=23 // pred_check_branch
        %194 = sbr.rel (%p192) target = $region32
      $region31: #{frame_generator_forward.7} parent=23 // pred_region
        %p195 = scmp.lt.s32.totalorder %s18, 3
        %s196 = scalar_select %p195, %s18, 3
        %s197 = smul.addr %s196, 64
        %s198 = smul.addr %s197, 4
        %s199 = scalar_lea.vmem %s1, %s198
      $region32: #{frame_generator_forward.7} parent=23 // pred_fallthru
        _
    $region24: #{frame_generator_forward.7} parent=5 // pred_fallthru
      _
    %p200 = scmp.le.s32.totalorder 1, %s10
    %p201 = scmp.lt.s32.totalorder %s10, 9
    %p202 = pnand %p200, %p201
    %p203 = pneg %p202
    // Predicated region
    $region33: #{frame_generator_forward.7} parent=5 // pred_check
      _
    $region34: #{frame_generator_forward.7} parent=5 // pred_check_branch
      %205 = sbr.rel (%p202) target = $region36
    $region35: #{frame_generator_forward.7} parent=5 // pred_region
      %s206 = ssub.s32 %s10, 1
      %s207 = smul.u32 16, %s22
      %p208 = scmp.lt.s32.totalorder %s21, 3
      %s209 = scalar_select %p208, %s21, 3
      %p210 = scmp.lt.s32.totalorder %s207, 15
      %s211 = scalar_select %p210, %s207, 15
      %s212 = smul.addr %s211, 4
      %s213 = smul.addr %s209, 64
      %s214 = sadd.s32 %s212, %s213
      %s215 = smul.addr %s214, 4
      %s216 = scalar_lea.vmem %s0, %s215
      %p217 = pneg %p57
      %p218 = pneg %p54
      %p219 = scmp.lt.s32.totalorder %s21, 3
      %s220 = scalar_select %p219, %s21, 3
      %s221 = smul.addr %s220, 64
      %s222 = smul.addr %s221, 4
      %s223 = scalar_lea.vmem %s1, %s222
      %p224 = pneg %p83
      %p225 = pneg %p80
      %p226 = pneg %p104
      %p227 = pneg %p101
      %p228 = pneg %p125
      %p229 = pneg %p122
      %p230 = pneg %p153
      %p231 = pneg %p150
      %s232 = smul.u32 16, %s22
      %p233 = scmp.lt.s32.totalorder %s21, 3
      %s234 = scalar_select %p233, %s21, 3
      %p235 = scmp.lt.s32.totalorder %s232, 15
      %s236 = scalar_select %p235, %s232, 15
      %s237 = smul.addr %s234, 16
      %s238 = sadd.s32 %s236, %s237
      %s239 = smul.addr %s238, 4
      %s240 = scalar_lea.vmem %s4, %s239
      %s241 = smul.u32 16, %s22
      %p242 = scmp.lt.s32.totalorder %s21, 3
      %s243 = scalar_select %p242, %s21, 3
      %p244 = scmp.lt.s32.totalorder %s241, 15
      %s245 = scalar_select %p244, %s241, 15
      %s246 = smul.addr %s245, 4
      %s247 = smul.addr %s243, 64
      %s248 = sadd.s32 %s246, %s247
      %s249 = smul.addr %s248, 4
      %s250 = scalar_lea.vmem %s0, %s249
      %s251 = smul.u32 16, %s22
      %p252 = scmp.lt.s32.totalorder %s21, 3
      %s253 = scalar_select %p252, %s21, 3
      %s254 = smul.addr %s253, 64
      %s255 = smul.addr %s254, 4
      %s256 = scalar_lea.vmem %s1, %s255
      %s257 = smul.u32 16, %s22
      %p258 = scmp.lt.s32.totalorder %s21, 3
      %s259 = scalar_select %p258, %s21, 3
      %p260 = scmp.lt.s32.totalorder %s257, 15
      %s261 = scalar_select %p260, %s257, 15
      %s262 = smul.addr %s259, 16
      %s263 = sadd.s32 %s261, %s262
      %s264 = smul.addr %s263, 4
      %s265 = scalar_lea.vmem %s4, %s264
      %s266 = smul.u32 16, %s22
      %v267 = vld [vmem:[%s250] sm:$0xff]
      %v268 = vld [vmem:[%s250 + $0x8] sm:$0xff]
      %v269 = vld [vmem:[%s250 + $0x10] sm:$0xff]
      %v270 = vld [vmem:[%s250 + $0x18] sm:$0xff]
      %v271 = vld [vmem:[%s250 + $0x20] sm:$0xff]
      %v272 = vld [vmem:[%s250 + $0x28] sm:$0xff]
      %v273 = vld [vmem:[%s250 + $0x30] sm:$0xff]
      %v274 = vld [vmem:[%s250 + $0x38] sm:$0xff]
      %v275 = vld [vmem:[%s250 + $0x40] sm:$0xff]
      %v276 = vld [vmem:[%s250 + $0x48] sm:$0xff]
      %v277 = vld [vmem:[%s250 + $0x50] sm:$0xff]
      %v278 = vld [vmem:[%s250 + $0x58] sm:$0xff]
      %v279 = vld [vmem:[%s250 + $0x60] sm:$0xff]
      %v280 = vld [vmem:[%s250 + $0x68] sm:$0xff]
      %v281 = vld [vmem:[%s250 + $0x70] sm:$0xff]
      %v282 = vld [vmem:[%s250 + $0x78] sm:$0xff]
      %v283 = vld [vmem:[%s250 + $0x80] sm:$0xff]
      %v284 = vld [vmem:[%s250 + $0x88] sm:$0xff]
      %v285 = vld [vmem:[%s250 + $0x90] sm:$0xff]
      %v286 = vld [vmem:[%s250 + $0x98] sm:$0xff]
      %v287 = vld [vmem:[%s250 + $0xa0] sm:$0xff]
      %v288 = vld [vmem:[%s250 + $0xa8] sm:$0xff]
      %v289 = vld [vmem:[%s250 + $0xb0] sm:$0xff]
      %v290 = vld [vmem:[%s250 + $0xb8] sm:$0xff]
      %v291 = vld [vmem:[%s250 + $0xc0] sm:$0xff]
      %v292 = vld [vmem:[%s250 + $0xc8] sm:$0xff]
      %v293 = vld [vmem:[%s250 + $0xd0] sm:$0xff]
      %v294 = vld [vmem:[%s250 + $0xd8] sm:$0xff]
      %v295 = vld [vmem:[%s250 + $0xe0] sm:$0xff]
      %v296 = vld [vmem:[%s250 + $0xe8] sm:$0xff]
      %v297 = vld [vmem:[%s250 + $0xf0] sm:$0xff]
      %v298 = vld [vmem:[%s250 + $0xf8] sm:$0xff]
      %v299 = vld [vmem:[%s256] sm:$0xf]
      %v300 = vld [vmem:[%s256 + $0x4] sm:$0xf]
      %v301 = vld [vmem:[%s256 + $0x8] sm:$0xf]
      %v302 = vld [vmem:[%s256 + $0xc] sm:$0xf]
      %v303 = vld [vmem:[%s256 + $0x10] sm:$0xf]
      %v304 = vld [vmem:[%s256 + $0x14] sm:$0xf]
      %v305 = vld [vmem:[%s256 + $0x18] sm:$0xf]
      %v306 = vld [vmem:[%s256 + $0x1c] sm:$0xf]
      %v307 = vld [vmem:[%s256 + $0x20] sm:$0xf]
      %v308 = vld [vmem:[%s256 + $0x24] sm:$0xf]
      %v309 = vld [vmem:[%s256 + $0x28] sm:$0xf]
      %v310 = vld [vmem:[%s256 + $0x2c] sm:$0xf]
      %v311 = vld [vmem:[%s256 + $0x30] sm:$0xf]
      %v312 = vld [vmem:[%s256 + $0x34] sm:$0xf]
      %v313 = vld [vmem:[%s256 + $0x38] sm:$0xf]
      %v314 = vld [vmem:[%s256 + $0x3c] sm:$0xf]
      %v315 = vld [vmem:[%s256 + $0x40] sm:$0xf]
      %v316 = vld [vmem:[%s256 + $0x44] sm:$0xf]
      %v317 = vld [vmem:[%s256 + $0x48] sm:$0xf]
      %v318 = vld [vmem:[%s256 + $0x4c] sm:$0xf]
      %v319 = vld [vmem:[%s256 + $0x50] sm:$0xf]
      %v320 = vld [vmem:[%s256 + $0x54] sm:$0xf]
      %v321 = vld [vmem:[%s256 + $0x58] sm:$0xf]
      %v322 = vld [vmem:[%s256 + $0x5c] sm:$0xf]
      %v323 = vld [vmem:[%s256 + $0x60] sm:$0xf]
      %v324 = vld [vmem:[%s256 + $0x64] sm:$0xf]
      %v325 = vld [vmem:[%s256 + $0x68] sm:$0xf]
      %v326 = vld [vmem:[%s256 + $0x6c] sm:$0xf]
      %v327 = vld [vmem:[%s256 + $0x70] sm:$0xf]
      %v328 = vld [vmem:[%s256 + $0x74] sm:$0xf]
      %v329 = vld [vmem:[%s256 + $0x78] sm:$0xf]
      %v330 = vld [vmem:[%s256 + $0x7c] sm:$0xf]
      %v331 = vld [vmem:[%s256 + $0x80] sm:$0xf]
      %v332 = vld [vmem:[%s256 + $0x84] sm:$0xf]
      %v333 = vld [vmem:[%s256 + $0x88] sm:$0xf]
      %v334 = vld [vmem:[%s256 + $0x8c] sm:$0xf]
      %v335 = vld [vmem:[%s256 + $0x90] sm:$0xf]
      %v336 = vld [vmem:[%s256 + $0x94] sm:$0xf]
      %v337 = vld [vmem:[%s256 + $0x98] sm:$0xf]
      %v338 = vld [vmem:[%s256 + $0x9c] sm:$0xf]
      %v339 = vld [vmem:[%s256 + $0xa0] sm:$0xf]
      %v340 = vld [vmem:[%s256 + $0xa4] sm:$0xf]
      %v341 = vld [vmem:[%s256 + $0xa8] sm:$0xf]
      %v342 = vld [vmem:[%s256 + $0xac] sm:$0xf]
      %v343 = vld [vmem:[%s256 + $0xb0] sm:$0xf]
      %v344 = vld [vmem:[%s256 + $0xb4] sm:$0xf]
      %v345 = vld [vmem:[%s256 + $0xb8] sm:$0xf]
      %v346 = vld [vmem:[%s256 + $0xbc] sm:$0xf]
      %v347 = vld [vmem:[%s256 + $0xc0] sm:$0xf]
      %v348 = vld [vmem:[%s256 + $0xc4] sm:$0xf]
      %v349 = vld [vmem:[%s256 + $0xc8] sm:$0xf]
      %v350 = vld [vmem:[%s256 + $0xcc] sm:$0xf]
      %v351 = vld [vmem:[%s256 + $0xd0] sm:$0xf]
      %v352 = vld [vmem:[%s256 + $0xd4] sm:$0xf]
      %v353 = vld [vmem:[%s256 + $0xd8] sm:$0xf]
      %v354 = vld [vmem:[%s256 + $0xdc] sm:$0xf]
      %v355 = vld [vmem:[%s256 + $0xe0] sm:$0xf]
      %v356 = vld [vmem:[%s256 + $0xe4] sm:$0xf]
      %v357 = vld [vmem:[%s256 + $0xe8] sm:$0xf]
      %v358 = vld [vmem:[%s256 + $0xec] sm:$0xf]
      %v359 = vld [vmem:[%s256 + $0xf0] sm:$0xf]
      %v360 = vld [vmem:[%s256 + $0xf4] sm:$0xf]
      %v361 = vld [vmem:[%s256 + $0xf8] sm:$0xf]
      %v362 = vld [vmem:[%s256 + $0xfc] sm:$0xf]
      %v395 = vunpack.c.l.b16 %v267
      %v396 = vunpack.c.h.b16 %v267
      %v397 = vunpack.c.l.b16 %v268
      %v398 = vunpack.c.h.b16 %v268
      %v399 = vunpack.c.l.b16 %v269
      %v400 = vunpack.c.h.b16 %v269
      %v401 = vunpack.c.l.b16 %v270
      %v402 = vunpack.c.h.b16 %v270
      %v403 = vunpack.c.l.b16 %v271
      %v404 = vunpack.c.h.b16 %v271
      %v405 = vunpack.c.l.b16 %v272
      %v406 = vunpack.c.h.b16 %v272
      %v407 = vunpack.c.l.b16 %v273
      %v408 = vunpack.c.h.b16 %v273
      %v409 = vunpack.c.l.b16 %v274
      %v410 = vunpack.c.h.b16 %v274
      %v411 = vunpack.c.l.b16 %v275
      %v412 = vunpack.c.h.b16 %v275
      %v413 = vunpack.c.l.b16 %v276
      %v414 = vunpack.c.h.b16 %v276
      %v415 = vunpack.c.l.b16 %v277
      %v416 = vunpack.c.h.b16 %v277
      %v417 = vunpack.c.l.b16 %v278
      %v418 = vunpack.c.h.b16 %v278
      %v419 = vunpack.c.l.b16 %v279
      %v420 = vunpack.c.h.b16 %v279
      %v421 = vunpack.c.l.b16 %v280
      %v422 = vunpack.c.h.b16 %v280
      %v423 = vunpack.c.l.b16 %v281
      %v424 = vunpack.c.h.b16 %v281
      %v425 = vunpack.c.l.b16 %v282
      %v426 = vunpack.c.h.b16 %v282
      %v427 = vunpack.c.l.b16 %v283
      %v428 = vunpack.c.h.b16 %v283
      %v429 = vunpack.c.l.b16 %v284
      %v430 = vunpack.c.h.b16 %v284
      %v431 = vunpack.c.l.b16 %v285
      %v432 = vunpack.c.h.b16 %v285
      %v433 = vunpack.c.l.b16 %v286
      %v434 = vunpack.c.h.b16 %v286
      %v435 = vunpack.c.l.b16 %v287
      %v436 = vunpack.c.h.b16 %v287
      %v437 = vunpack.c.l.b16 %v288
      %v438 = vunpack.c.h.b16 %v288
      %v439 = vunpack.c.l.b16 %v289
      %v440 = vunpack.c.h.b16 %v289
      %v441 = vunpack.c.l.b16 %v290
      %v442 = vunpack.c.h.b16 %v290
      %v443 = vunpack.c.l.b16 %v291
      %v444 = vunpack.c.h.b16 %v291
      %v445 = vunpack.c.l.b16 %v292
      %v446 = vunpack.c.h.b16 %v292
      %v447 = vunpack.c.l.b16 %v293
      %v448 = vunpack.c.h.b16 %v293
      %v449 = vunpack.c.l.b16 %v294
      %v450 = vunpack.c.h.b16 %v294
      %v451 = vunpack.c.l.b16 %v295
      %v452 = vunpack.c.h.b16 %v295
      %v453 = vunpack.c.l.b16 %v296
      %v454 = vunpack.c.h.b16 %v296
      %v455 = vunpack.c.l.b16 %v297
      %v456 = vunpack.c.h.b16 %v297
      %v457 = vunpack.c.l.b16 %v298
      %v458 = vunpack.c.h.b16 %v298
      %v459 = vpack.c.b16 %v399, %v395
      %v460 = vpack.c.b16 %v400, %v396
      %v461 = vpack.c.b16 %v401, %v397
      %v462 = vpack.c.b16 %v402, %v398
      %v463 = vpack.c.b16 %v407, %v403
      %v464 = vpack.c.b16 %v408, %v404
      %v465 = vpack.c.b16 %v409, %v405
      %v466 = vpack.c.b16 %v410, %v406
      %v467 = vpack.c.b16 %v415, %v411
      %v468 = vpack.c.b16 %v416, %v412
      %v469 = vpack.c.b16 %v417, %v413
      %v470 = vpack.c.b16 %v418, %v414
      %v471 = vpack.c.b16 %v423, %v419
      %v472 = vpack.c.b16 %v424, %v420
      %v473 = vpack.c.b16 %v425, %v421
      %v474 = vpack.c.b16 %v426, %v422
      %v475 = vpack.c.b16 %v431, %v427
      %v476 = vpack.c.b16 %v432, %v428
      %v477 = vpack.c.b16 %v433, %v429
      %v478 = vpack.c.b16 %v434, %v430
      %v479 = vpack.c.b16 %v439, %v435
      %v480 = vpack.c.b16 %v440, %v436
      %v481 = vpack.c.b16 %v441, %v437
      %v482 = vpack.c.b16 %v442, %v438
      %v483 = vpack.c.b16 %v447, %v443
      %v484 = vpack.c.b16 %v448, %v444
      %v485 = vpack.c.b16 %v449, %v445
      %v486 = vpack.c.b16 %v450, %v446
      %v487 = vpack.c.b16 %v455, %v451
      %v488 = vpack.c.b16 %v456, %v452
      %v489 = vpack.c.b16 %v457, %v453
      %v490 = vpack.c.b16 %v458, %v454
      %v587 = vunpack.c.l.b16 %v299
      %v588 = vunpack.c.l.b16 %v300
      %v589 = vunpack.c.l.b16 %v301
      %v590 = vunpack.c.l.b16 %v302
      %v591 = vunpack.c.l.b16 %v303
      %v592 = vunpack.c.l.b16 %v304
      %v593 = vunpack.c.l.b16 %v305
      %v594 = vunpack.c.l.b16 %v306
      %v595 = vunpack.c.l.b16 %v307
      %v596 = vunpack.c.l.b16 %v308
      %v597 = vunpack.c.l.b16 %v309
      %v598 = vunpack.c.l.b16 %v310
      %v599 = vunpack.c.l.b16 %v311
      %v600 = vunpack.c.l.b16 %v312
      %v601 = vunpack.c.l.b16 %v313
      %v602 = vunpack.c.l.b16 %v314
      %v603 = vunpack.c.l.b16 %v315
      %v604 = vunpack.c.l.b16 %v316
      %v605 = vunpack.c.l.b16 %v317
      %v606 = vunpack.c.l.b16 %v318
      %v607 = vunpack.c.l.b16 %v319
      %v608 = vunpack.c.l.b16 %v320
      %v609 = vunpack.c.l.b16 %v321
      %v610 = vunpack.c.l.b16 %v322
      %v611 = vunpack.c.l.b16 %v323
      %v612 = vunpack.c.l.b16 %v324
      %v613 = vunpack.c.l.b16 %v325
      %v614 = vunpack.c.l.b16 %v326
      %v615 = vunpack.c.l.b16 %v327
      %v616 = vunpack.c.l.b16 %v328
      %v617 = vunpack.c.l.b16 %v329
      %v618 = vunpack.c.l.b16 %v330
      %v619 = vunpack.c.l.b16 %v331
      %v620 = vunpack.c.l.b16 %v332
      %v621 = vunpack.c.l.b16 %v333
      %v622 = vunpack.c.l.b16 %v334
      %v623 = vunpack.c.l.b16 %v335
      %v624 = vunpack.c.l.b16 %v336
      %v625 = vunpack.c.l.b16 %v337
      %v626 = vunpack.c.l.b16 %v338
      %v627 = vunpack.c.l.b16 %v339
      %v628 = vunpack.c.l.b16 %v340
      %v629 = vunpack.c.l.b16 %v341
      %v630 = vunpack.c.l.b16 %v342
      %v631 = vunpack.c.l.b16 %v343
      %v632 = vunpack.c.l.b16 %v344
      %v633 = vunpack.c.l.b16 %v345
      %v634 = vunpack.c.l.b16 %v346
      %v635 = vunpack.c.l.b16 %v347
      %v636 = vunpack.c.l.b16 %v348
      %v637 = vunpack.c.l.b16 %v349
      %v638 = vunpack.c.l.b16 %v350
      %v639 = vunpack.c.l.b16 %v351
      %v640 = vunpack.c.l.b16 %v352
      %v641 = vunpack.c.l.b16 %v353
      %v642 = vunpack.c.l.b16 %v354
      %v643 = vunpack.c.l.b16 %v355
      %v644 = vunpack.c.l.b16 %v356
      %v645 = vunpack.c.l.b16 %v357
      %v646 = vunpack.c.l.b16 %v358
      %v647 = vunpack.c.l.b16 %v359
      %v648 = vunpack.c.l.b16 %v360
      %v649 = vunpack.c.l.b16 %v361
      %v650 = vunpack.c.l.b16 %v362
      %v651 = vpack.c.b16 %v588, %v587
      %v652 = vpack.c.b16 %v590, %v589
      %v653 = vpack.c.b16 %v592, %v591
      %v654 = vpack.c.b16 %v594, %v593
      %v655 = vpack.c.b16 %v596, %v595
      %v656 = vpack.c.b16 %v598, %v597
      %v657 = vpack.c.b16 %v600, %v599
      %v658 = vpack.c.b16 %v602, %v601
      %v659 = vpack.c.b16 %v604, %v603
      %v660 = vpack.c.b16 %v606, %v605
      %v661 = vpack.c.b16 %v608, %v607
      %v662 = vpack.c.b16 %v610, %v609
      %v663 = vpack.c.b16 %v612, %v611
      %v664 = vpack.c.b16 %v614, %v613
      %v665 = vpack.c.b16 %v616, %v615
      %v666 = vpack.c.b16 %v618, %v617
      %v667 = vpack.c.b16 %v620, %v619
      %v668 = vpack.c.b16 %v622, %v621
      %v669 = vpack.c.b16 %v624, %v623
      %v670 = vpack.c.b16 %v626, %v625
      %v671 = vpack.c.b16 %v628, %v627
      %v672 = vpack.c.b16 %v630, %v629
      %v673 = vpack.c.b16 %v632, %v631
      %v674 = vpack.c.b16 %v634, %v633
      %v675 = vpack.c.b16 %v636, %v635
      %v676 = vpack.c.b16 %v638, %v637
      %v677 = vpack.c.b16 %v640, %v639
      %v678 = vpack.c.b16 %v642, %v641
      %v679 = vpack.c.b16 %v644, %v643
      %v680 = vpack.c.b16 %v646, %v645
      %v681 = vpack.c.b16 %v648, %v647
      %v682 = vpack.c.b16 %v650, %v649
      %715 = vmatpush.bf16.msra.mxu0 %v658
      %716 = vmatpush.bf16.msra.mxu0 %v657
      %717 = vmatpush.bf16.msra.mxu0 %v656
      %718 = vmatpush.bf16.msra.mxu0 %v655
      %719 = vmatpush.bf16.msra.mxu0 %v654
      %720 = vmatpush.bf16.msra.mxu0 %v653
      %721 = vmatpush.bf16.msra.mxu0 %v652
      %722 = vmatpush.bf16.msra.mxu0 %v651
      %723 = vmatmul.bf16.gmra.mxu0 %v459
      %v724 = vpop.f32.mrf.mxu0
      %v725 = vadd.f32 0.0, %v724
      %v726 = vpop.f32.mrf.mxu0
      %v727 = vadd.f32 0.0, %v726
      %728 = vmatmul.bf16.gmra.mxu0 %v463
      %v729 = vpop.f32.mrf.mxu0
      %v730 = vadd.f32 0.0, %v729
      %v731 = vpop.f32.mrf.mxu0
      %v732 = vadd.f32 0.0, %v731
      %733 = vmatmul.bf16.gmra.mxu0 %v467
      %v734 = vpop.f32.mrf.mxu0
      %v735 = vadd.f32 0.0, %v734
      %v736 = vpop.f32.mrf.mxu0
      %v737 = vadd.f32 0.0, %v736
      %738 = vmatmul.bf16.gmra.mxu0 %v471
      %v739 = vpop.f32.mrf.mxu0
      %v740 = vadd.f32 0.0, %v739
      %v741 = vpop.f32.mrf.mxu0
      %v742 = vadd.f32 0.0, %v741
      %743 = vmatmul.bf16.gmra.mxu0 %v475
      %v744 = vpop.f32.mrf.mxu0
      %v745 = vadd.f32 0.0, %v744
      %v746 = vpop.f32.mrf.mxu0
      %v747 = vadd.f32 0.0, %v746
      %748 = vmatmul.bf16.gmra.mxu0 %v479
      %v749 = vpop.f32.mrf.mxu0
      %v750 = vadd.f32 0.0, %v749
      %v751 = vpop.f32.mrf.mxu0
      %v752 = vadd.f32 0.0, %v751
      %753 = vmatmul.bf16.gmra.mxu0 %v483
      %v754 = vpop.f32.mrf.mxu0
      %v755 = vadd.f32 0.0, %v754
      %v756 = vpop.f32.mrf.mxu0
      %v757 = vadd.f32 0.0, %v756
      %758 = vmatmul.bf16.gmra.mxu0 %v487
      %v759 = vpop.f32.mrf.mxu0
      %v760 = vadd.f32 0.0, %v759
      %v761 = vpop.f32.mrf.mxu0
      %v762 = vadd.f32 0.0, %v761
      %763 = vdwg.mxu0
      %764 = vmatpush.bf16.msra.mxu0 %v666
      %765 = vmatpush.bf16.msra.mxu0 %v665
      %766 = vmatpush.bf16.msra.mxu0 %v664
      %767 = vmatpush.bf16.msra.mxu0 %v663
      %768 = vmatpush.bf16.msra.mxu0 %v662
      %769 = vmatpush.bf16.msra.mxu0 %v661
      %770 = vmatpush.bf16.msra.mxu0 %v660
      %771 = vmatpush.bf16.msra.mxu0 %v659
      %772 = vmatmul.bf16.gmra.mxu0 %v460
      %v773 = vpop.f32.mrf.mxu0
      %v774 = vadd.f32 %v725, %v773
      %v775 = vpop.f32.mrf.mxu0
      %v776 = vadd.f32 %v727, %v775
      %777 = vmatmul.bf16.gmra.mxu0 %v464
      %v778 = vpop.f32.mrf.mxu0
      %v779 = vadd.f32 %v730, %v778
      %v780 = vpop.f32.mrf.mxu0
      %v781 = vadd.f32 %v732, %v780
      %782 = vmatmul.bf16.gmra.mxu0 %v468
      %v783 = vpop.f32.mrf.mxu0
      %v784 = vadd.f32 %v735, %v783
      %v785 = vpop.f32.mrf.mxu0
      %v786 = vadd.f32 %v737, %v785
      %787 = vmatmul.bf16.gmra.mxu0 %v472
      %v788 = vpop.f32.mrf.mxu0
      %v789 = vadd.f32 %v740, %v788
      %v790 = vpop.f32.mrf.mxu0
      %v791 = vadd.f32 %v742, %v790
      %792 = vmatmul.bf16.gmra.mxu0 %v476
      %v793 = vpop.f32.mrf.mxu0
      %v794 = vadd.f32 %v745, %v793
      %v795 = vpop.f32.mrf.mxu0
      %v796 = vadd.f32 %v747, %v795
      %797 = vmatmul.bf16.gmra.mxu0 %v480
      %v798 = vpop.f32.mrf.mxu0
      %v799 = vadd.f32 %v750, %v798
      %v800 = vpop.f32.mrf.mxu0
      %v801 = vadd.f32 %v752, %v800
      %802 = vmatmul.bf16.gmra.mxu0 %v484
      %v803 = vpop.f32.mrf.mxu0
      %v804 = vadd.f32 %v755, %v803
      %v805 = vpop.f32.mrf.mxu0
      %v806 = vadd.f32 %v757, %v805
      %807 = vmatmul.bf16.gmra.mxu0 %v488
      %v808 = vpop.f32.mrf.mxu0
      %v809 = vadd.f32 %v760, %v808
      %v810 = vpop.f32.mrf.mxu0
      %v811 = vadd.f32 %v762, %v810
      %812 = vdwg.mxu0
      %813 = vmatpush.bf16.msra.mxu0 %v674
      %814 = vmatpush.bf16.msra.mxu0 %v673
      %815 = vmatpush.bf16.msra.mxu0 %v672
      %816 = vmatpush.bf16.msra.mxu0 %v671
      %817 = vmatpush.bf16.msra.mxu0 %v670
      %818 = vmatpush.bf16.msra.mxu0 %v669
      %819 = vmatpush.bf16.msra.mxu0 %v668
      %820 = vmatpush.bf16.msra.mxu0 %v667
      %821 = vmatmul.bf16.gmra.mxu0 %v461
      %v822 = vpop.f32.mrf.mxu0
      %v823 = vadd.f32 %v774, %v822
      %v824 = vpop.f32.mrf.mxu0
      %v825 = vadd.f32 %v776, %v824
      %826 = vmatmul.bf16.gmra.mxu0 %v465
      %v827 = vpop.f32.mrf.mxu0
      %v828 = vadd.f32 %v779, %v827
      %v829 = vpop.f32.mrf.mxu0
      %v830 = vadd.f32 %v781, %v829
      %831 = vmatmul.bf16.gmra.mxu0 %v469
      %v832 = vpop.f32.mrf.mxu0
      %v833 = vadd.f32 %v784, %v832
      %v834 = vpop.f32.mrf.mxu0
      %v835 = vadd.f32 %v786, %v834
      %836 = vmatmul.bf16.gmra.mxu0 %v473
      %v837 = vpop.f32.mrf.mxu0
      %v838 = vadd.f32 %v789, %v837
      %v839 = vpop.f32.mrf.mxu0
      %v840 = vadd.f32 %v791, %v839
      %841 = vmatmul.bf16.gmra.mxu0 %v477
      %v842 = vpop.f32.mrf.mxu0
      %v843 = vadd.f32 %v794, %v842
      %v844 = vpop.f32.mrf.mxu0
      %v845 = vadd.f32 %v796, %v844
      %846 = vmatmul.bf16.gmra.mxu0 %v481
      %v847 = vpop.f32.mrf.mxu0
      %v848 = vadd.f32 %v799, %v847
      %v849 = vpop.f32.mrf.mxu0
      %v850 = vadd.f32 %v801, %v849
      %851 = vmatmul.bf16.gmra.mxu0 %v485
      %v852 = vpop.f32.mrf.mxu0
      %v853 = vadd.f32 %v804, %v852
      %v854 = vpop.f32.mrf.mxu0
      %v855 = vadd.f32 %v806, %v854
      %856 = vmatmul.bf16.gmra.mxu0 %v489
      %v857 = vpop.f32.mrf.mxu0
      %v858 = vadd.f32 %v809, %v857
      %v859 = vpop.f32.mrf.mxu0
      %v860 = vadd.f32 %v811, %v859
      %861 = vdwg.mxu0
      %862 = vmatpush.bf16.msra.mxu0 %v682
      %863 = vmatpush.bf16.msra.mxu0 %v681
      %864 = vmatpush.bf16.msra.mxu0 %v680
      %865 = vmatpush.bf16.msra.mxu0 %v679
      %866 = vmatpush.bf16.msra.mxu0 %v678
      %867 = vmatpush.bf16.msra.mxu0 %v677
      %868 = vmatpush.bf16.msra.mxu0 %v676
      %869 = vmatpush.bf16.msra.mxu0 %v675
      %870 = vmatmul.bf16.gmra.mxu0 %v462
      %v871 = vpop.f32.mrf.mxu0
      %v872 = vadd.f32 %v823, %v871
      %v873 = vpop.f32.mrf.mxu0
      %v874 = vadd.f32 %v825, %v873
      %875 = vmatmul.bf16.gmra.mxu0 %v466
      %v876 = vpop.f32.mrf.mxu0
      %v877 = vadd.f32 %v828, %v876
      %v878 = vpop.f32.mrf.mxu0
      %v879 = vadd.f32 %v830, %v878
      %880 = vmatmul.bf16.gmra.mxu0 %v470
      %v881 = vpop.f32.mrf.mxu0
      %v882 = vadd.f32 %v833, %v881
      %v883 = vpop.f32.mrf.mxu0
      %v884 = vadd.f32 %v835, %v883
      %885 = vmatmul.bf16.gmra.mxu0 %v474
      %v886 = vpop.f32.mrf.mxu0
      %v887 = vadd.f32 %v838, %v886
      %v888 = vpop.f32.mrf.mxu0
      %v889 = vadd.f32 %v840, %v888
      %890 = vmatmul.bf16.gmra.mxu0 %v478
      %v891 = vpop.f32.mrf.mxu0
      %v892 = vadd.f32 %v843, %v891
      %v893 = vpop.f32.mrf.mxu0
      %v894 = vadd.f32 %v845, %v893
      %895 = vmatmul.bf16.gmra.mxu0 %v482
      %v896 = vpop.f32.mrf.mxu0
      %v897 = vadd.f32 %v848, %v896
      %v898 = vpop.f32.mrf.mxu0
      %v899 = vadd.f32 %v850, %v898
      %900 = vmatmul.bf16.gmra.mxu0 %v486
      %v901 = vpop.f32.mrf.mxu0
      %v902 = vadd.f32 %v853, %v901
      %v903 = vpop.f32.mrf.mxu0
      %v904 = vadd.f32 %v855, %v903
      %905 = vmatmul.bf16.gmra.mxu0 %v490
      %v906 = vpop.f32.mrf.mxu0
      %v907 = vadd.f32 %v858, %v906
      %v908 = vpop.f32.mrf.mxu0
      %v909 = vadd.f32 %v860, %v908
      %910 = vdwg.mxu0
      %p911 = scmp.eq.s32.totalorder %s20, 0
      // Predicated region
      $region37: #{frame_generator_forward.7} parent=35 // pred_check
        %p912 = pneg %p911
      $region38: #{frame_generator_forward.7} parent=35 // pred_check_branch
        %914 = sbr.rel (%p912) target = $region40
      $region39: #{frame_generator_forward.7} parent=35 // pred_region
        %p915 = scmp.eq.s32.totalorder %s21, 0
        %p916 = scmp.eq.s32.totalorder %s22, 0
        %p917 = pnand %p915, %p916
        %p918 = pneg %p917
        // Predicated region
        $region41: #{frame_generator_forward.7} parent=39 // pred_check
          _
        $region42: #{frame_generator_forward.7} parent=39 // pred_check_branch
          %920 = sbr.rel (%p917) target = $region44
        $region43: #{frame_generator_forward.7} parent=39 // pred_region
          %vm921 = vcmask 516096
          %922 = vst.msk [vmem:[#allocation2] sm:$0x1] %vm921, 0.0
          %923 = vst.msk [vmem:[#allocation3] sm:$0x1] %vm921, 0.0
        $region44: #{frame_generator_forward.7} parent=39 // pred_fallthru
          _
        %v924 = vld [vmem:[#allocation2] sm:$0x1]
        %vm925 = vcmask 523264
        %v926 = vsel %vm925, %v872, 0.0
        %v927 = vsel %vm925, %v874, 0.0
        %v928 = vadd.f32 %v926, %v927
        %v929 = vsel %vm925, %v877, 0.0
        %v930 = vadd.f32 %v928, %v929
        %v931 = vsel %vm925, %v879, 0.0
        %v932 = vadd.f32 %v930, %v931
        %v933 = vsel %vm925, %v882, 0.0
        %v934 = vadd.f32 %v932, %v933
        %v935 = vsel %vm925, %v884, 0.0
        %v936 = vadd.f32 %v934, %v935
        %v937 = vsel %vm925, %v887, 0.0
        %v938 = vadd.f32 %v936, %v937
        %v939 = vsel %vm925, %v889, 0.0
        %v940 = vadd.f32 %v938, %v939
        %v941 = vsel %vm925, %v892, 0.0
        %v942 = vadd.f32 %v940, %v941
        %v943 = vsel %vm925, %v894, 0.0
        %v944 = vadd.f32 %v942, %v943
        %v945 = vsel %vm925, %v897, 0.0
        %v946 = vadd.f32 %v944, %v945
        %v947 = vsel %vm925, %v899, 0.0
        %v948 = vadd.f32 %v946, %v947
        %v949 = vsel %vm925, %v902, 0.0
        %v950 = vadd.f32 %v948, %v949
        %v951 = vsel %vm925, %v904, 0.0
        %v952 = vadd.f32 %v950, %v951
        %v953 = vsel %vm925, %v907, 0.0
        %v954 = vadd.f32 %v952, %v953
        %v955 = vsel %vm925, %v909, 0.0
        %v956 = vadd.f32 %v954, %v955
        %v957 = vrot.slane %v956, 4
        %v958 = vadd.f32 %v956, %v957
        %v959 = vrot.slane %v958, 2
        %v960 = vadd.f32 %v958, %v959
        %v961 = vrot.slane %v960, 1
        %v962 = vadd.f32 %v960, %v961
        %v963 = vadd.f32 %v924, %v962
        %vm964 = vcmask 516096
        %965 = vst.msk [vmem:[#allocation2] sm:$0x1] %vm964, %v963
        %v966 = vld [vmem:[#allocation3] sm:$0x1]
        %v967 = vmul.f32 %v872, %v872
        %v968 = vmul.f32 %v874, %v874
        %v969 = vmul.f32 %v877, %v877
        %v970 = vmul.f32 %v879, %v879
        %v971 = vmul.f32 %v882, %v882
        %v972 = vmul.f32 %v884, %v884
        %v973 = vmul.f32 %v887, %v887
        %v974 = vmul.f32 %v889, %v889
        %v975 = vmul.f32 %v892, %v892
        %v976 = vmul.f32 %v894, %v894
        %v977 = vmul.f32 %v897, %v897
        %v978 = vmul.f32 %v899, %v899
        %v979 = vmul.f32 %v902, %v902
        %v980 = vmul.f32 %v904, %v904
        %v981 = vmul.f32 %v907, %v907
        %v982 = vmul.f32 %v909, %v909
        %v983 = vsel %vm925, %v967, 0.0
        %v984 = vsel %vm925, %v968, 0.0
        %v985 = vadd.f32 %v983, %v984
        %v986 = vsel %vm925, %v969, 0.0
        %v987 = vadd.f32 %v985, %v986
        %v988 = vsel %vm925, %v970, 0.0
        %v989 = vadd.f32 %v987, %v988
        %v990 = vsel %vm925, %v971, 0.0
        %v991 = vadd.f32 %v989, %v990
        %v992 = vsel %vm925, %v972, 0.0
        %v993 = vadd.f32 %v991, %v992
        %v994 = vsel %vm925, %v973, 0.0
        %v995 = vadd.f32 %v993, %v994
        %v996 = vsel %vm925, %v974, 0.0
        %v997 = vadd.f32 %v995, %v996
        %v998 = vsel %vm925, %v975, 0.0
        %v999 = vadd.f32 %v997, %v998
        %v1000 = vsel %vm925, %v976, 0.0
        %v1001 = vadd.f32 %v999, %v1000
        %v1002 = vsel %vm925, %v977, 0.0
        %v1003 = vadd.f32 %v1001, %v1002
        %v1004 = vsel %vm925, %v978, 0.0
        %v1005 = vadd.f32 %v1003, %v1004
        %v1006 = vsel %vm925, %v979, 0.0
        %v1007 = vadd.f32 %v1005, %v1006
        %v1008 = vsel %vm925, %v980, 0.0
        %v1009 = vadd.f32 %v1007, %v1008
        %v1010 = vsel %vm925, %v981, 0.0
        %v1011 = vadd.f32 %v1009, %v1010
        %v1012 = vsel %vm925, %v982, 0.0
        %v1013 = vadd.f32 %v1011, %v1012
        %v1014 = vrot.slane %v1013, 4
        %v1015 = vadd.f32 %v1013, %v1014
        %v1016 = vrot.slane %v1015, 2
        %v1017 = vadd.f32 %v1015, %v1016
        %v1018 = vrot.slane %v1017, 1
        %v1019 = vadd.f32 %v1017, %v1018
        %v1020 = vadd.f32 %v966, %v1019
        %1021 = vst.msk [vmem:[#allocation3] sm:$0x1] %vm964, %v1020
      $region40: #{frame_generator_forward.7} parent=35 // pred_fallthru
        _
      %p1022 = scmp.eq.s32.totalorder %s20, 1
      // Predicated region
      $region45: #{frame_generator_forward.7} parent=35 // pred_check
        %p1023 = pneg %p1022
      $region46: #{frame_generator_forward.7} parent=35 // pred_check_branch
        %1025 = sbr.rel (%p1023) target = $region48
      $region47: #{frame_generator_forward.7} parent=35 // pred_region
        %v1026 = vld [vmem:[#allocation2] sm:$0x1]
        %v1027 = vmul.f32 %v1026, 0.001953125
        %v1028 = vld [vmem:[#allocation3] sm:$0x1]
        %v1029 = vmul.f32 %v1028, 0.001953125
        %v1030 = vmul.f32 %v1027, %v1027
        %v1031 = vsub.f32 %v1029, %v1030
        %v1032 = vadd.f32 %v1031, 1e-05
        %v1033 = vrsqrt.pop %v1032
        %v1034 = vmul.f32 %v1033, %v1032
        %v1035 = vmul.f32 %v1034, %v1033
        %v1036 = vmul.f32 0.5, %v1035
        %v1037 = vsub.f32 1.5, %v1036
        %v1038 = vmul.f32 %v1033, %v1037
        %vm1039 = vweird.f32 %v1032
        %vm1040 = vweird.f32 %v1033
        %vm1041 = vmor %vm1039, %vm1040
        %v1042 = vsel %vm1041, %v1033, %v1038
        %v1044 = vperm.slane %v1027, 0
        %v1046 = vsub.f32 %v872, %v1044
        %v1047 = vsub.f32 %v874, %v1044
        %v1048 = vsub.f32 %v877, %v1044
        %v1049 = vsub.f32 %v879, %v1044
        %v1050 = vsub.f32 %v882, %v1044
        %v1051 = vsub.f32 %v884, %v1044
        %v1052 = vsub.f32 %v887, %v1044
        %v1053 = vsub.f32 %v889, %v1044
        %v1054 = vsub.f32 %v892, %v1044
        %v1055 = vsub.f32 %v894, %v1044
        %v1056 = vsub.f32 %v897, %v1044
        %v1057 = vsub.f32 %v899, %v1044
        %v1058 = vsub.f32 %v902, %v1044
        %v1059 = vsub.f32 %v904, %v1044
        %v1060 = vsub.f32 %v907, %v1044
        %v1061 = vsub.f32 %v909, %v1044
        %v1063 = vperm.slane %v1042, 0
        %v1065 = vmul.f32 %v1046, %v1063
        %v1066 = vmul.f32 %v1047, %v1063
        %v1067 = vmul.f32 %v1048, %v1063
        %v1068 = vmul.f32 %v1049, %v1063
        %v1069 = vmul.f32 %v1050, %v1063
        %v1070 = vmul.f32 %v1051, %v1063
        %v1071 = vmul.f32 %v1052, %v1063
        %v1072 = vmul.f32 %v1053, %v1063
        %v1073 = vmul.f32 %v1054, %v1063
        %v1074 = vmul.f32 %v1055, %v1063
        %v1075 = vmul.f32 %v1056, %v1063
        %v1076 = vmul.f32 %v1057, %v1063
        %v1077 = vmul.f32 %v1058, %v1063
        %v1078 = vmul.f32 %v1059, %v1063
        %v1079 = vmul.f32 %v1060, %v1063
        %v1080 = vmul.f32 %v1061, %v1063
        %v1081 = vld [vmem:[%s2] sm:$0x1]
        %v1083 = vperm.slane %v1081, 0
        %v1085 = vmul.f32 %v1065, %v1083
        %v1086 = vmul.f32 %v1066, %v1083
        %v1087 = vmul.f32 %v1067, %v1083
        %v1088 = vmul.f32 %v1068, %v1083
        %v1089 = vmul.f32 %v1069, %v1083
        %v1090 = vmul.f32 %v1070, %v1083
        %v1091 = vmul.f32 %v1071, %v1083
        %v1092 = vmul.f32 %v1072, %v1083
        %v1093 = vmul.f32 %v1073, %v1083
        %v1094 = vmul.f32 %v1074, %v1083
        %v1095 = vmul.f32 %v1075, %v1083
        %v1096 = vmul.f32 %v1076, %v1083
        %v1097 = vmul.f32 %v1077, %v1083
        %v1098 = vmul.f32 %v1078, %v1083
        %v1099 = vmul.f32 %v1079, %v1083
        %v1100 = vmul.f32 %v1080, %v1083
        %v1101 = vld [vmem:[%s3] sm:$0x1]
        %v1103 = vperm.slane %v1101, 0
        %v1105 = vadd.f32 %v1085, %v1103
        %v1106 = vadd.f32 %v1086, %v1103
        %v1107 = vadd.f32 %v1087, %v1103
        %v1108 = vadd.f32 %v1088, %v1103
        %v1109 = vadd.f32 %v1089, %v1103
        %v1110 = vadd.f32 %v1090, %v1103
        %v1111 = vadd.f32 %v1091, %v1103
        %v1112 = vadd.f32 %v1092, %v1103
        %v1113 = vadd.f32 %v1093, %v1103
        %v1114 = vadd.f32 %v1094, %v1103
        %v1115 = vadd.f32 %v1095, %v1103
        %v1116 = vadd.f32 %v1096, %v1103
        %v1117 = vadd.f32 %v1097, %v1103
        %v1118 = vadd.f32 %v1098, %v1103
        %v1119 = vadd.f32 %v1099, %v1103
        %v1120 = vadd.f32 %v1100, %v1103
        %v1121 = vmax.f32 %v1105, 0.0
        %v1122 = vmax.f32 %v1106, 0.0
        %v1123 = vmax.f32 %v1107, 0.0
        %v1124 = vmax.f32 %v1108, 0.0
        %v1125 = vmax.f32 %v1109, 0.0
        %v1126 = vmax.f32 %v1110, 0.0
        %v1127 = vmax.f32 %v1111, 0.0
        %v1128 = vmax.f32 %v1112, 0.0
        %v1129 = vmax.f32 %v1113, 0.0
        %v1130 = vmax.f32 %v1114, 0.0
        %v1131 = vmax.f32 %v1115, 0.0
        %v1132 = vmax.f32 %v1116, 0.0
        %v1133 = vmax.f32 %v1117, 0.0
        %v1134 = vmax.f32 %v1118, 0.0
        %v1135 = vmax.f32 %v1119, 0.0
        %v1136 = vmax.f32 %v1120, 0.0
        %v1137 = vpack.c.bf16 %v1121, %v1121
        %v1138 = vpack.c.bf16 %v1122, %v1122
        %v1139 = vpack.c.bf16 %v1123, %v1123
        %v1140 = vpack.c.bf16 %v1124, %v1124
        %v1141 = vpack.c.bf16 %v1125, %v1125
        %v1142 = vpack.c.bf16 %v1126, %v1126
        %v1143 = vpack.c.bf16 %v1127, %v1127
        %v1144 = vpack.c.bf16 %v1128, %v1128
        %v1145 = vpack.c.bf16 %v1129, %v1129
        %v1146 = vpack.c.bf16 %v1130, %v1130
        %v1147 = vpack.c.bf16 %v1131, %v1131
        %v1148 = vpack.c.bf16 %v1132, %v1132
        %v1149 = vpack.c.bf16 %v1133, %v1133
        %v1150 = vpack.c.bf16 %v1134, %v1134
        %v1151 = vpack.c.bf16 %v1135, %v1135
        %v1152 = vpack.c.bf16 %v1136, %v1136
        %vm1153 = vcmask 519168
        %1154 = vst.msk [vmem:[%s265] sm:$0xf] %vm1153, %v1137
        %1155 = vst.msk [vmem:[%s265 + $0x4] sm:$0xf] %vm1153, %v1138
        %1156 = vst.msk [vmem:[%s265 + $0x8] sm:$0xf] %vm1153, %v1139
        %1157 = vst.msk [vmem:[%s265 + $0xc] sm:$0xf] %vm1153, %v1140
        %1158 = vst.msk [vmem:[%s265 + $0x10] sm:$0xf] %vm1153, %v1141
        %1159 = vst.msk [vmem:[%s265 + $0x14] sm:$0xf] %vm1153, %v1142
        %1160 = vst.msk [vmem:[%s265 + $0x18] sm:$0xf] %vm1153, %v1143
        %1161 = vst.msk [vmem:[%s265 + $0x1c] sm:$0xf] %vm1153, %v1144
        %1162 = vst.msk [vmem:[%s265 + $0x20] sm:$0xf] %vm1153, %v1145
        %1163 = vst.msk [vmem:[%s265 + $0x24] sm:$0xf] %vm1153, %v1146
        %1164 = vst.msk [vmem:[%s265 + $0x28] sm:$0xf] %vm1153, %v1147
        %1165 = vst.msk [vmem:[%s265 + $0x2c] sm:$0xf] %vm1153, %v1148
        %1166 = vst.msk [vmem:[%s265 + $0x30] sm:$0xf] %vm1153, %v1149
        %1167 = vst.msk [vmem:[%s265 + $0x34] sm:$0xf] %vm1153, %v1150
        %1168 = vst.msk [vmem:[%s265 + $0x38] sm:$0xf] %vm1153, %v1151
        %1169 = vst.msk [vmem:[%s265 + $0x3c] sm:$0xf] %vm1153, %v1152
      $region48: #{frame_generator_forward.7} parent=35 // pred_fallthru
        _
      %s1170 = smul.u32 16, %s22
      %p1171 = scmp.lt.s32.totalorder %s21, 3
      %s1172 = scalar_select %p1171, %s21, 3
      %p1173 = scmp.lt.s32.totalorder %s1170, 15
      %s1174 = scalar_select %p1173, %s1170, 15
      %s1175 = smul.addr %s1172, 16
      %s1176 = sadd.s32 %s1174, %s1175
      %s1177 = smul.addr %s1176, 4
      %s1178 = scalar_lea.vmem %s4, %s1177
      // Predicated region
      $region49: #{frame_generator_forward.7} parent=35 // pred_check
        %p1179 = pneg %p150
      $region50: #{frame_generator_forward.7} parent=35 // pred_check_branch
        %1181 = sbr.rel (%p1179) target = $region52
      $region51: #{frame_generator_forward.7} parent=35 // pred_region
        %s1182 = smul.u32 16, %s22
      $region52: #{frame_generator_forward.7} parent=35 // pred_fallthru
        _
    $region36: #{frame_generator_forward.7} parent=5 // pred_fallthru
      _
    %p1183 = scmp.le.s32.totalorder 2, %s10
    // Predicated region
    $region53: #{frame_generator_forward.7} parent=5 // pred_check
      %p1184 = pneg %p1183
    $region54: #{frame_generator_forward.7} parent=5 // pred_check_branch
      %1186 = sbr.rel (%p1184) target = $region56
    $region55: #{frame_generator_forward.7} parent=5 // pred_region
      %s1187 = ssub.s32 %s10, 2
      // Predicated region
      $region57: #{frame_generator_forward.7} parent=55 // pred_check
        %p1188 = pneg %p156
      $region58: #{frame_generator_forward.7} parent=55 // pred_check_branch
        %1190 = sbr.rel (%p1188) target = $region60
      $region59: #{frame_generator_forward.7} parent=55 // pred_region
        %s1191 = smul.u32 16, %s25
        %p1192 = scmp.lt.s32.totalorder %s24, 3
        %s1193 = scalar_select %p1192, %s24, 3
        %p1194 = scmp.lt.s32.totalorder %s1191, 15
        %s1195 = scalar_select %p1194, %s1191, 15
        %s1196 = smul.addr %s1193, 16
        %s1197 = sadd.s32 %s1195, %s1196
        %s1198 = smul.addr %s1197, 4
        %s1199 = scalar_lea.vmem %s4, %s1198
      $region60: #{frame_generator_forward.7} parent=55 // pred_fallthru
        _
    $region56: #{frame_generator_forward.7} parent=5 // pred_fallthru
      _
  $region6: #{frame_generator_forward.7} parent=0 // loop_footer
    %s14 = sadd.s32 1, %s10
  $region7: #{frame_generator_forward.7} parent=0 // loop_footer_branch
    %9 = sbr.rel target = $region3
  $region8: #{frame_generator_forward.7} parent=0 // loop_exit
    _

// kernel: frame_generator_forward.8
$region0: #{frame_generator_forward.8}
  #allocation0 [shape = 'u32[]', space=smem, size = 0x4, offset = 0x4, fixed_abs, tag = 'smem constant byte address 0x4 - core index']
  #allocation1 [shape = 'u32[72,128]{1,0:T(1,128)}', space=vmem, size = 0x9000, scoped, tag = 'internal scratch']
  #allocation2 [shape = 'f32[1,32]{1,0:T(1,128)}', space=vmem, size = 0x200, scoped, tag = 'scratch operand']
  #allocation3 [shape = 'f32[1,32]{1,0:T(1,128)}', space=vmem, size = 0x200, scoped, tag = 'scratch operand']
  %s0 = inlined_call_operand.vmem [shape: bf16[4,512,256], index: 0, kind: input, shape index: {}]
  %s1 = inlined_call_operand.vmem [shape: bf16[4,256,32], index: 1, kind: input, shape index: {}]
  %s2 = inlined_call_operand.vmem [shape: f32[1,32], index: 2, kind: input, shape index: {}]
  %s3 = inlined_call_operand.vmem [shape: f32[1,32], index: 3, kind: input, shape index: {}]
  %s4 = inlined_call_operand.vmem [shape: bf16[4,512,32], index: 4, kind: output, shape index: {}]
  %s5 = sld [smem:[#allocation0]]
  $region61: #{frame_generator_forward.8} parent=0
    _
  %s7 = ssub.s32 1, %s5
  %s8 = scalar_select 0, %s7, %s5
  loop: start=0, step=1, limit=10
  $region2: #{frame_generator_forward.8} parent=0 // loop_pre_header
    _
  $region3: #{frame_generator_forward.8} parent=0 // loop_header
    %s10 = sphi 0, %s14
    %p11 = scmp.ge.s32.totalorder %s10, 10
    %s17 = sphi 0, %s36
    %s18 = sphi 0, %s32
    %s19 = sphi 0, %s28
    %s20 = sphi 0, %s17
    %s21 = sphi 0, %s18
    %s22 = sphi 0, %s19
    %s23 = sphi 0, %s20
    %s24 = sphi 0, %s21
    %s25 = sphi 0, %s22
    %s41 = sphi 0, %s43
    %s44 = sphi 0, %s41
    %s45 = sphi 0, %s44
    %s61 = sphi 0, %s45
    %s67 = sphi 0, %s69
    %s70 = sphi 0, %s67
    %s71 = sphi 0, %s70
    %s87 = sphi 0, %s71
    %s91 = sphi 0, %s91
    %s93 = sphi 0, %s91
    %s94 = sphi 0, %s93
    %s108 = sphi 0, %s94
    %s112 = sphi 0, %s112
    %s114 = sphi 0, %s112
    %s115 = sphi 0, %s114
    %s129 = sphi 0, %s115
    %s137 = sphi 0, %s139
    %s140 = sphi 0, %s137
    %s141 = sphi 0, %s140
    %s157 = sphi 0, %s141
  $region4: #{frame_generator_forward.8} parent=0 // loop_header_branch
    %13 = sbr.rel (%p11) target = $region8
  $region5: #{frame_generator_forward.8} parent=0 // loop_body
    %s15 = ssub.s32 %s10, 1
    %s16 = ssub.s32 %s10, 2
    %s26 = sadd.s32 1, %s19
    %p27 = scmp.ge.s32.totalorder %s26, 1
    %s28 = scalar_select %p27, 0, %s26
    %s29 = sadd.s32 1, %s18
    %s30 = scalar_select %p27, %s29, %s18
    %p31 = scmp.ge.s32.totalorder %s30, 4
    %s32 = scalar_select %p31, 0, %s30
    %s33 = sadd.s32 1, %s17
    %s34 = scalar_select %p31, %s33, %s17
    %p35 = scmp.ge.s32.totalorder %s34, 2
    %s36 = scalar_select %p35, 0, %s34
    %s37 = ssub.s32 %s18, %s32
    %s38 = ssub.s32 %s19, %s28
    %s39 = sor.u32 %s37, %s38
    %p40 = scmp.eq.s32.totalorder %s39, 0
    %s42 = sadd.s32 %s41, 1
    %s43 = scalar_select %p40, %s41, %s42
    %p46 = pneg %p40
    %p47 = scmp.eq.s32.totalorder %s10, 7
    %p48 = por %p46, %p47
    %p49 = scmp.ne.s32.totalorder %s41, %s44
    %p50 = scmp.eq.s32.totalorder %s10, 0
    %p51 = por %p49, %p50
    %p52 = scmp.ne.s32.totalorder %s41, %s44
    %p53 = scmp.eq.s32.totalorder %s15, 7
    %p54 = por %p52, %p53
    %p55 = scmp.ne.s32.totalorder %s44, %s45
    %p56 = scmp.eq.s32.totalorder %s15, 0
    %p57 = por %p55, %p56
    %p58 = scmp.ne.s32.totalorder %s44, %s45
    %p59 = scmp.eq.s32.totalorder %s16, 7
    %p60 = por %p58, %p59
    %p62 = scmp.ne.s32.totalorder %s45, %s61
    %p63 = scmp.eq.s32.totalorder %s16, 0
    %p64 = por %p62, %p63
    %s65 = ssub.s32 %s18, %s32
    %p66 = scmp.eq.s32.totalorder %s65, 0
    %s68 = sadd.s32 %s67, 1
    %s69 = scalar_select %p66, %s67, %s68
    %p72 = pneg %p66
    %p73 = scmp.eq.s32.totalorder %s10, 7
    %p74 = por %p72, %p73
    %p75 = scmp.ne.s32.totalorder %s67, %s70
    %p76 = scmp.eq.s32.totalorder %s10, 0
    %p77 = por %p75, %p76
    %p78 = scmp.ne.s32.totalorder %s67, %s70
    %p79 = scmp.eq.s32.totalorder %s15, 7
    %p80 = por %p78, %p79
    %p81 = scmp.ne.s32.totalorder %s70, %s71
    %p82 = scmp.eq.s32.totalorder %s15, 0
    %p83 = por %p81, %p82
    %p84 = scmp.ne.s32.totalorder %s70, %s71
    %p85 = scmp.eq.s32.totalorder %s16, 7
    %p86 = por %p84, %p85
    %p88 = scmp.ne.s32.totalorder %s71, %s87
    %p89 = scmp.eq.s32.totalorder %s16, 0
    %p90 = por %p88, %p89
    %s92 = sadd.s32 %s91, 1
    %p95 = scmp.eq.s32.totalorder %s10, 7
    %p96 = scmp.ne.s32.totalorder %s91, %s93
    %p97 = scmp.eq.s32.totalorder %s10, 0
    %p98 = por %p96, %p97
    %p99 = scmp.ne.s32.totalorder %s91, %s93
    %p100 = scmp.eq.s32.totalorder %s15, 7
    %p101 = por %p99, %p100
    %p102 = scmp.ne.s32.totalorder %s93, %s94
    %p103 = scmp.eq.s32.totalorder %s15, 0
    %p104 = por %p102, %p103
    %p105 = scmp.ne.s32.totalorder %s93, %s94
    %p106 = scmp.eq.s32.totalorder %s16, 7
    %p107 = por %p105, %p106
    %p109 = scmp.ne.s32.totalorder %s94, %s108
    %p110 = scmp.eq.s32.totalorder %s16, 0
    %p111 = por %p109, %p110
    %s113 = sadd.s32 %s112, 1
    %p116 = scmp.eq.s32.totalorder %s10, 7
    %p117 = scmp.ne.s32.totalorder %s112, %s114
    %p118 = scmp.eq.s32.totalorder %s10, 0
    %p119 = por %p117, %p118
    %p120 = scmp.ne.s32.totalorder %s112, %s114
    %p121 = scmp.eq.s32.totalorder %s15, 7
    %p122 = por %p120, %p121
    %p123 = scmp.ne.s32.totalorder %s114, %s115
    %p124 = scmp.eq.s32.totalorder %s15, 0
    %p125 = por %p123, %p124
    %p126 = scmp.ne.s32.totalorder %s114, %s115
    %p127 = scmp.eq.s32.totalorder %s16, 7
    %p128 = por %p126, %p127
    %p130 = scmp.ne.s32.totalorder %s115, %s129
    %p131 = scmp.eq.s32.totalorder %s16, 0
    %p132 = por %p130, %p131
    %s133 = ssub.s32 %s18, %s32
    %s134 = ssub.s32 %s19, %s28
    %s135 = sor.u32 %s133, %s134
    %p136 = scmp.eq.s32.totalorder %s135, 0
    %s138 = sadd.s32 %s137, 1
    %s139 = scalar_select %p136, %s137, %s138
    %p142 = pneg %p136
    %p143 = scmp.eq.s32.totalorder %s10, 7
    %p144 = por %p142, %p143
    %p145 = scmp.ne.s32.totalorder %s137, %s140
    %p146 = scmp.eq.s32.totalorder %s10, 0
    %p147 = por %p145, %p146
    %p148 = scmp.ne.s32.totalorder %s137, %s140
    %p149 = scmp.eq.s32.totalorder %s15, 7
    %p150 = por %p148, %p149
    %p151 = scmp.ne.s32.totalorder %s140, %s141
    %p152 = scmp.eq.s32.totalorder %s15, 0
    %p153 = por %p151, %p152
    %p154 = scmp.ne.s32.totalorder %s140, %s141
    %p155 = scmp.eq.s32.totalorder %s16, 7
    %p156 = por %p154, %p155
    %p158 = scmp.ne.s32.totalorder %s141, %s157
    %p159 = scmp.eq.s32.totalorder %s16, 0
    %p160 = por %p158, %p159
    %p161 = scmp.le.s32.totalorder 1, %s10
    %p162 = scmp.lt.s32.totalorder %s10, 9
    %p163 = pnand %p161, %p162
    %p164 = pneg %p163
    // Predicated region
    $region9: #{frame_generator_forward.8} parent=5 // pred_check
      _
    $region10: #{frame_generator_forward.8} parent=5 // pred_check_branch
      %166 = sbr.rel (%p163) target = $region12
    $region11: #{frame_generator_forward.8} parent=5 // pred_region
      %s167 = ssub.s32 %s10, 1
      // Predicated region
      $region13: #{frame_generator_forward.8} parent=11 // pred_check
        %p168 = pneg %p104
      $region14: #{frame_generator_forward.8} parent=11 // pred_check_branch
        %170 = sbr.rel (%p168) target = $region16
      $region15: #{frame_generator_forward.8} parent=11 // pred_region
        _
      $region16: #{frame_generator_forward.8} parent=11 // pred_fallthru
        _
      // Predicated region
      $region17: #{frame_generator_forward.8} parent=11 // pred_check
        %p171 = pneg %p125
      $region18: #{frame_generator_forward.8} parent=11 // pred_check_branch
        %173 = sbr.rel (%p171) target = $region20
      $region19: #{frame_generator_forward.8} parent=11 // pred_region
        _
      $region20: #{frame_generator_forward.8} parent=11 // pred_fallthru
        _
    $region12: #{frame_generator_forward.8} parent=5 // pred_fallthru
      _
    %p174 = scmp.lt.s32.totalorder %s10, 8
    // Predicated region
    $region21: #{frame_generator_forward.8} parent=5 // pred_check
      %p175 = pneg %p174
    $region22: #{frame_generator_forward.8} parent=5 // pred_check_branch
      %177 = sbr.rel (%p175) target = $region24
    $region23: #{frame_generator_forward.8} parent=5 // pred_region
      // Predicated region
      $region25: #{frame_generator_forward.8} parent=23 // pred_check
        %p178 = pneg %p51
      $region26: #{frame_generator_forward.8} parent=23 // pred_check_branch
        %180 = sbr.rel (%p178) target = $region28
      $region27: #{frame_generator_forward.8} parent=23 // pred_region
        %s181 = smul.u32 64, %s19
        %p182 = scmp.lt.s32.totalorder %s18, 3
        %s183 = scalar_select %p182, %s18, 3
        %p184 = scmp.lt.s32.totalorder %s181, 63
        %s185 = scalar_select %p184, %s181, 63
        %s186 = smul.addr %s185, 2
        %s187 = smul.addr %s183, 128
        %s188 = sadd.s32 %s186, %s187
        %s189 = smul.addr %s188, 4
        %s190 = scalar_lea.vmem %s0, %s189
        %s191 = smul.u32 64, %s19
      $region28: #{frame_generator_forward.8} parent=23 // pred_fallthru
        _
      // Predicated region
      $region29: #{frame_generator_forward.8} parent=23 // pred_check
        %p192 = pneg %p77
      $region30: #{frame_generator_forward.8} parent=23 // pred_check_branch
        %194 = sbr.rel (%p192) target = $region32
      $region31: #{frame_generator_forward.8} parent=23 // pred_region
        %p195 = scmp.lt.s32.totalorder %s18, 3
        %s196 = scalar_select %p195, %s18, 3
        %s197 = smul.addr %s196, 32
        %s198 = smul.addr %s197, 4
        %s199 = scalar_lea.vmem %s1, %s198
      $region32: #{frame_generator_forward.8} parent=23 // pred_fallthru
        _
    $region24: #{frame_generator_forward.8} parent=5 // pred_fallthru
      _
    %p200 = scmp.le.s32.totalorder 1, %s10
    %p201 = scmp.lt.s32.totalorder %s10, 9
    %p202 = pnand %p200, %p201
    %p203 = pneg %p202
    // Predicated region
    $region33: #{frame_generator_forward.8} parent=5 // pred_check
      _
    $region34: #{frame_generator_forward.8} parent=5 // pred_check_branch
      %205 = sbr.rel (%p202) target = $region36
    $region35: #{frame_generator_forward.8} parent=5 // pred_region
      %s206 = ssub.s32 %s10, 1
      %s207 = smul.u32 64, %s22
      %p208 = scmp.lt.s32.totalorder %s21, 3
      %s209 = scalar_select %p208, %s21, 3
      %p210 = scmp.lt.s32.totalorder %s207, 63
      %s211 = scalar_select %p210, %s207, 63
      %s212 = smul.addr %s211, 2
      %s213 = smul.addr %s209, 128
      %s214 = sadd.s32 %s212, %s213
      %s215 = smul.addr %s214, 4
      %s216 = scalar_lea.vmem %s0, %s215
      %p217 = pneg %p57
      %p218 = pneg %p54
      %p219 = scmp.lt.s32.totalorder %s21, 3
      %s220 = scalar_select %p219, %s21, 3
      %s221 = smul.addr %s220, 32
      %s222 = smul.addr %s221, 4
      %s223 = scalar_lea.vmem %s1, %s222
      %p224 = pneg %p83
      %p225 = pneg %p80
      %p226 = pneg %p104
      %p227 = pneg %p101
      %p228 = pneg %p125
      %p229 = pneg %p122
      %p230 = pneg %p153
      %p231 = pneg %p150
      %s232 = smul.u32 64, %s22
      %p233 = scmp.lt.s32.totalorder %s21, 3
      %s234 = scalar_select %p233, %s21, 3
      %p235 = scmp.lt.s32.totalorder %s232, 63
      %s236 = scalar_select %p235, %s232, 63
      %s237 = smul.addr %s234, 64
      %s238 = sadd.s32 %s236, %s237
      %s239 = smul.addr %s238, 4
      %s240 = scalar_lea.vmem %s4, %s239
      %s241 = smul.u32 64, %s22
      %p242 = scmp.lt.s32.totalorder %s21, 3
      %s243 = scalar_select %p242, %s21, 3
      %p244 = scmp.lt.s32.totalorder %s241, 63
      %s245 = scalar_select %p244, %s241, 63
      %s246 = smul.addr %s245, 2
      %s247 = smul.addr %s243, 128
      %s248 = sadd.s32 %s246, %s247
      %s249 = smul.addr %s248, 4
      %s250 = scalar_lea.vmem %s0, %s249
      %s251 = smul.u32 64, %s22
      %p252 = scmp.lt.s32.totalorder %s21, 3
      %s253 = scalar_select %p252, %s21, 3
      %s254 = smul.addr %s253, 32
      %s255 = smul.addr %s254, 4
      %s256 = scalar_lea.vmem %s1, %s255
      %s257 = smul.u32 64, %s22
      %p258 = scmp.lt.s32.totalorder %s21, 3
      %s259 = scalar_select %p258, %s21, 3
      %p260 = scmp.lt.s32.totalorder %s257, 63
      %s261 = scalar_select %p260, %s257, 63
      %s262 = smul.addr %s259, 64
      %s263 = sadd.s32 %s261, %s262
      %s264 = smul.addr %s263, 4
      %s265 = scalar_lea.vmem %s4, %s264
      %s266 = smul.u32 64, %s22
      %v267 = vld [vmem:[%s250] sm:$0xff]
      %v268 = vld [vmem:[%s250 + $0x8] sm:$0xff]
      %v269 = vld [vmem:[%s250 + $0x10] sm:$0xff]
      %v270 = vld [vmem:[%s250 + $0x18] sm:$0xff]
      %v271 = vld [vmem:[%s250 + $0x20] sm:$0xff]
      %v272 = vld [vmem:[%s250 + $0x28] sm:$0xff]
      %v273 = vld [vmem:[%s250 + $0x30] sm:$0xff]
      %v274 = vld [vmem:[%s250 + $0x38] sm:$0xff]
      %v275 = vld [vmem:[%s250 + $0x40] sm:$0xff]
      %v276 = vld [vmem:[%s250 + $0x48] sm:$0xff]
      %v277 = vld [vmem:[%s250 + $0x50] sm:$0xff]
      %v278 = vld [vmem:[%s250 + $0x58] sm:$0xff]
      %v279 = vld [vmem:[%s250 + $0x60] sm:$0xff]
      %v280 = vld [vmem:[%s250 + $0x68] sm:$0xff]
      %v281 = vld [vmem:[%s250 + $0x70] sm:$0xff]
      %v282 = vld [vmem:[%s250 + $0x78] sm:$0xff]
      %v283 = vld [vmem:[%s250 + $0x80] sm:$0xff]
      %v284 = vld [vmem:[%s250 + $0x88] sm:$0xff]
      %v285 = vld [vmem:[%s250 + $0x90] sm:$0xff]
      %v286 = vld [vmem:[%s250 + $0x98] sm:$0xff]
      %v287 = vld [vmem:[%s250 + $0xa0] sm:$0xff]
      %v288 = vld [vmem:[%s250 + $0xa8] sm:$0xff]
      %v289 = vld [vmem:[%s250 + $0xb0] sm:$0xff]
      %v290 = vld [vmem:[%s250 + $0xb8] sm:$0xff]
      %v291 = vld [vmem:[%s250 + $0xc0] sm:$0xff]
      %v292 = vld [vmem:[%s250 + $0xc8] sm:$0xff]
      %v293 = vld [vmem:[%s250 + $0xd0] sm:$0xff]
      %v294 = vld [vmem:[%s250 + $0xd8] sm:$0xff]
      %v295 = vld [vmem:[%s250 + $0xe0] sm:$0xff]
      %v296 = vld [vmem:[%s250 + $0xe8] sm:$0xff]
      %v297 = vld [vmem:[%s250 + $0xf0] sm:$0xff]
      %v298 = vld [vmem:[%s250 + $0xf8] sm:$0xff]
      %v299 = vld [vmem:[%s250 + $0x100] sm:$0xff]
      %v300 = vld [vmem:[%s250 + $0x108] sm:$0xff]
      %v301 = vld [vmem:[%s250 + $0x110] sm:$0xff]
      %v302 = vld [vmem:[%s250 + $0x118] sm:$0xff]
      %v303 = vld [vmem:[%s250 + $0x120] sm:$0xff]
      %v304 = vld [vmem:[%s250 + $0x128] sm:$0xff]
      %v305 = vld [vmem:[%s250 + $0x130] sm:$0xff]
      %v306 = vld [vmem:[%s250 + $0x138] sm:$0xff]
      %v307 = vld [vmem:[%s250 + $0x140] sm:$0xff]
      %v308 = vld [vmem:[%s250 + $0x148] sm:$0xff]
      %v309 = vld [vmem:[%s250 + $0x150] sm:$0xff]
      %v310 = vld [vmem:[%s250 + $0x158] sm:$0xff]
      %v311 = vld [vmem:[%s250 + $0x160] sm:$0xff]
      %v312 = vld [vmem:[%s250 + $0x168] sm:$0xff]
      %v313 = vld [vmem:[%s250 + $0x170] sm:$0xff]
      %v314 = vld [vmem:[%s250 + $0x178] sm:$0xff]
      %v315 = vld [vmem:[%s250 + $0x180] sm:$0xff]
      %v316 = vld [vmem:[%s250 + $0x188] sm:$0xff]
      %v317 = vld [vmem:[%s250 + $0x190] sm:$0xff]
      %v318 = vld [vmem:[%s250 + $0x198] sm:$0xff]
      %v319 = vld [vmem:[%s250 + $0x1a0] sm:$0xff]
      %v320 = vld [vmem:[%s250 + $0x1a8] sm:$0xff]
      %v321 = vld [vmem:[%s250 + $0x1b0] sm:$0xff]
      %v322 = vld [vmem:[%s250 + $0x1b8] sm:$0xff]
      %v323 = vld [vmem:[%s250 + $0x1c0] sm:$0xff]
      %v324 = vld [vmem:[%s250 + $0x1c8] sm:$0xff]
      %v325 = vld [vmem:[%s250 + $0x1d0] sm:$0xff]
      %v326 = vld [vmem:[%s250 + $0x1d8] sm:$0xff]
      %v327 = vld [vmem:[%s250 + $0x1e0] sm:$0xff]
      %v328 = vld [vmem:[%s250 + $0x1e8] sm:$0xff]
      %v329 = vld [vmem:[%s250 + $0x1f0] sm:$0xff]
      %v330 = vld [vmem:[%s250 + $0x1f8] sm:$0xff]
      %v331 = vld [vmem:[%s256] sm:$0xf]
      %v332 = vld [vmem:[%s256 + $0x4] sm:$0xf]
      %v333 = vld [vmem:[%s256 + $0x8] sm:$0xf]
      %v334 = vld [vmem:[%s256 + $0xc] sm:$0xf]
      %v335 = vld [vmem:[%s256 + $0x10] sm:$0xf]
      %v336 = vld [vmem:[%s256 + $0x14] sm:$0xf]
      %v337 = vld [vmem:[%s256 + $0x18] sm:$0xf]
      %v338 = vld [vmem:[%s256 + $0x1c] sm:$0xf]
      %v339 = vld [vmem:[%s256 + $0x20] sm:$0xf]
      %v340 = vld [vmem:[%s256 + $0x24] sm:$0xf]
      %v341 = vld [vmem:[%s256 + $0x28] sm:$0xf]
      %v342 = vld [vmem:[%s256 + $0x2c] sm:$0xf]
      %v343 = vld [vmem:[%s256 + $0x30] sm:$0xf]
      %v344 = vld [vmem:[%s256 + $0x34] sm:$0xf]
      %v345 = vld [vmem:[%s256 + $0x38] sm:$0xf]
      %v346 = vld [vmem:[%s256 + $0x3c] sm:$0xf]
      %v347 = vld [vmem:[%s256 + $0x40] sm:$0xf]
      %v348 = vld [vmem:[%s256 + $0x44] sm:$0xf]
      %v349 = vld [vmem:[%s256 + $0x48] sm:$0xf]
      %v350 = vld [vmem:[%s256 + $0x4c] sm:$0xf]
      %v351 = vld [vmem:[%s256 + $0x50] sm:$0xf]
      %v352 = vld [vmem:[%s256 + $0x54] sm:$0xf]
      %v353 = vld [vmem:[%s256 + $0x58] sm:$0xf]
      %v354 = vld [vmem:[%s256 + $0x5c] sm:$0xf]
      %v355 = vld [vmem:[%s256 + $0x60] sm:$0xf]
      %v356 = vld [vmem:[%s256 + $0x64] sm:$0xf]
      %v357 = vld [vmem:[%s256 + $0x68] sm:$0xf]
      %v358 = vld [vmem:[%s256 + $0x6c] sm:$0xf]
      %v359 = vld [vmem:[%s256 + $0x70] sm:$0xf]
      %v360 = vld [vmem:[%s256 + $0x74] sm:$0xf]
      %v361 = vld [vmem:[%s256 + $0x78] sm:$0xf]
      %v362 = vld [vmem:[%s256 + $0x7c] sm:$0xf]
      %v427 = vunpack.c.l.b16 %v267
      %v428 = vunpack.c.h.b16 %v267
      %v429 = vunpack.c.l.b16 %v268
      %v430 = vunpack.c.h.b16 %v268
      %v431 = vunpack.c.l.b16 %v269
      %v432 = vunpack.c.h.b16 %v269
      %v433 = vunpack.c.l.b16 %v270
      %v434 = vunpack.c.h.b16 %v270
      %v435 = vunpack.c.l.b16 %v271
      %v436 = vunpack.c.h.b16 %v271
      %v437 = vunpack.c.l.b16 %v272
      %v438 = vunpack.c.h.b16 %v272
      %v439 = vunpack.c.l.b16 %v273
      %v440 = vunpack.c.h.b16 %v273
      %v441 = vunpack.c.l.b16 %v274
      %v442 = vunpack.c.h.b16 %v274
      %v443 = vunpack.c.l.b16 %v275
      %v444 = vunpack.c.h.b16 %v275
      %v445 = vunpack.c.l.b16 %v276
      %v446 = vunpack.c.h.b16 %v276
      %v447 = vunpack.c.l.b16 %v277
      %v448 = vunpack.c.h.b16 %v277
      %v449 = vunpack.c.l.b16 %v278
      %v450 = vunpack.c.h.b16 %v278
      %v451 = vunpack.c.l.b16 %v279
      %v452 = vunpack.c.h.b16 %v279
      %v453 = vunpack.c.l.b16 %v280
      %v454 = vunpack.c.h.b16 %v280
      %v455 = vunpack.c.l.b16 %v281
      %v456 = vunpack.c.h.b16 %v281
      %v457 = vunpack.c.l.b16 %v282
      %v458 = vunpack.c.h.b16 %v282
      %v459 = vunpack.c.l.b16 %v283
      %v460 = vunpack.c.h.b16 %v283
      %v461 = vunpack.c.l.b16 %v284
      %v462 = vunpack.c.h.b16 %v284
      %v463 = vunpack.c.l.b16 %v285
      %v464 = vunpack.c.h.b16 %v285
      %v465 = vunpack.c.l.b16 %v286
      %v466 = vunpack.c.h.b16 %v286
      %v467 = vunpack.c.l.b16 %v287
      %v468 = vunpack.c.h.b16 %v287
      %v469 = vunpack.c.l.b16 %v288
      %v470 = vunpack.c.h.b16 %v288
      %v471 = vunpack.c.l.b16 %v289
      %v472 = vunpack.c.h.b16 %v289
      %v473 = vunpack.c.l.b16 %v290
      %v474 = vunpack.c.h.b16 %v290
      %v475 = vunpack.c.l.b16 %v291
      %v476 = vunpack.c.h.b16 %v291
      %v477 = vunpack.c.l.b16 %v292
      %v478 = vunpack.c.h.b16 %v292
      %v479 = vunpack.c.l.b16 %v293
      %v480 = vunpack.c.h.b16 %v293
      %v481 = vunpack.c.l.b16 %v294
      %v482 = vunpack.c.h.b16 %v294
      %v483 = vunpack.c.l.b16 %v295
      %v484 = vunpack.c.h.b16 %v295
      %v485 = vunpack.c.l.b16 %v296
      %v486 = vunpack.c.h.b16 %v296
      %v487 = vunpack.c.l.b16 %v297
      %v488 = vunpack.c.h.b16 %v297
      %v489 = vunpack.c.l.b16 %v298
      %v490 = vunpack.c.h.b16 %v298
      %v491 = vunpack.c.l.b16 %v299
      %v492 = vunpack.c.h.b16 %v299
      %v493 = vunpack.c.l.b16 %v300
      %v494 = vunpack.c.h.b16 %v300
      %v495 = vunpack.c.l.b16 %v301
      %v496 = vunpack.c.h.b16 %v301
      %v497 = vunpack.c.l.b16 %v302
      %v498 = vunpack.c.h.b16 %v302
      %v499 = vunpack.c.l.b16 %v303
      %v500 = vunpack.c.h.b16 %v303
      %v501 = vunpack.c.l.b16 %v304
      %v502 = vunpack.c.h.b16 %v304
      %v503 = vunpack.c.l.b16 %v305
      %v504 = vunpack.c.h.b16 %v305
      %v505 = vunpack.c.l.b16 %v306
      %v506 = vunpack.c.h.b16 %v306
      %v507 = vunpack.c.l.b16 %v307
      %v508 = vunpack.c.h.b16 %v307
      %v509 = vunpack.c.l.b16 %v308
      %v510 = vunpack.c.h.b16 %v308
      %v511 = vunpack.c.l.b16 %v309
      %v512 = vunpack.c.h.b16 %v309
      %v513 = vunpack.c.l.b16 %v310
      %v514 = vunpack.c.h.b16 %v310
      %v515 = vunpack.c.l.b16 %v311
      %v516 = vunpack.c.h.b16 %v311
      %v517 = vunpack.c.l.b16 %v312
      %v518 = vunpack.c.h.b16 %v312
      %v519 = vunpack.c.l.b16 %v313
      %v520 = vunpack.c.h.b16 %v313
      %v521 = vunpack.c.l.b16 %v314
      %v522 = vunpack.c.h.b16 %v314
      %v523 = vunpack.c.l.b16 %v315
      %v524 = vunpack.c.h.b16 %v315
      %v525 = vunpack.c.l.b16 %v316
      %v526 = vunpack.c.h.b16 %v316
      %v527 = vunpack.c.l.b16 %v317
      %v528 = vunpack.c.h.b16 %v317
      %v529 = vunpack.c.l.b16 %v318
      %v530 = vunpack.c.h.b16 %v318
      %v531 = vunpack.c.l.b16 %v319
      %v532 = vunpack.c.h.b16 %v319
      %v533 = vunpack.c.l.b16 %v320
      %v534 = vunpack.c.h.b16 %v320
      %v535 = vunpack.c.l.b16 %v321
      %v536 = vunpack.c.h.b16 %v321
      %v537 = vunpack.c.l.b16 %v322
      %v538 = vunpack.c.h.b16 %v322
      %v539 = vunpack.c.l.b16 %v323
      %v540 = vunpack.c.h.b16 %v323
      %v541 = vunpack.c.l.b16 %v324
      %v542 = vunpack.c.h.b16 %v324
      %v543 = vunpack.c.l.b16 %v325
      %v544 = vunpack.c.h.b16 %v325
      %v545 = vunpack.c.l.b16 %v326
      %v546 = vunpack.c.h.b16 %v326
      %v547 = vunpack.c.l.b16 %v327
      %v548 = vunpack.c.h.b16 %v327
      %v549 = vunpack.c.l.b16 %v328
      %v550 = vunpack.c.h.b16 %v328
      %v551 = vunpack.c.l.b16 %v329
      %v552 = vunpack.c.h.b16 %v329
      %v553 = vunpack.c.l.b16 %v330
      %v554 = vunpack.c.h.b16 %v330
      %v555 = vpack.c.b16 %v429, %v427
      %v556 = vpack.c.b16 %v430, %v428
      %v557 = vpack.c.b16 %v433, %v431
      %v558 = vpack.c.b16 %v434, %v432
      %v559 = vpack.c.b16 %v437, %v435
      %v560 = vpack.c.b16 %v438, %v436
      %v561 = vpack.c.b16 %v441, %v439
      %v562 = vpack.c.b16 %v442, %v440
      %v563 = vpack.c.b16 %v445, %v443
      %v564 = vpack.c.b16 %v446, %v444
      %v565 = vpack.c.b16 %v449, %v447
      %v566 = vpack.c.b16 %v450, %v448
      %v567 = vpack.c.b16 %v453, %v451
      %v568 = vpack.c.b16 %v454, %v452
      %v569 = vpack.c.b16 %v457, %v455
      %v570 = vpack.c.b16 %v458, %v456
      %v571 = vpack.c.b16 %v461, %v459
      %v572 = vpack.c.b16 %v462, %v460
      %v573 = vpack.c.b16 %v465, %v463
      %v574 = vpack.c.b16 %v466, %v464
      %v575 = vpack.c.b16 %v469, %v467
      %v576 = vpack.c.b16 %v470, %v468
      %v577 = vpack.c.b16 %v473, %v471
      %v578 = vpack.c.b16 %v474, %v472
      %v579 = vpack.c.b16 %v477, %v475
      %v580 = vpack.c.b16 %v478, %v476
      %v581 = vpack.c.b16 %v481, %v479
      %v582 = vpack.c.b16 %v482, %v480
      %v583 = vpack.c.b16 %v485, %v483
      %v584 = vpack.c.b16 %v486, %v484
      %v585 = vpack.c.b16 %v489, %v487
      %v586 = vpack.c.b16 %v490, %v488
      %v587 = vpack.c.b16 %v493, %v491
      %v588 = vpack.c.b16 %v494, %v492
      %v589 = vpack.c.b16 %v497, %v495
      %v590 = vpack.c.b16 %v498, %v496
      %v591 = vpack.c.b16 %v501, %v499
      %v592 = vpack.c.b16 %v502, %v500
      %v593 = vpack.c.b16 %v505, %v503
      %v594 = vpack.c.b16 %v506, %v504
      %v595 = vpack.c.b16 %v509, %v507
      %v596 = vpack.c.b16 %v510, %v508
      %v597 = vpack.c.b16 %v513, %v511
      %v598 = vpack.c.b16 %v514, %v512
      %v599 = vpack.c.b16 %v517, %v515
      %v600 = vpack.c.b16 %v518, %v516
      %v601 = vpack.c.b16 %v521, %v519
      %v602 = vpack.c.b16 %v522, %v520
      %v603 = vpack.c.b16 %v525, %v523
      %v604 = vpack.c.b16 %v526, %v524
      %v605 = vpack.c.b16 %v529, %v527
      %v606 = vpack.c.b16 %v530, %v528
      %v607 = vpack.c.b16 %v533, %v531
      %v608 = vpack.c.b16 %v534, %v532
      %v609 = vpack.c.b16 %v537, %v535
      %v610 = vpack.c.b16 %v538, %v536
      %v611 = vpack.c.b16 %v541, %v539
      %v612 = vpack.c.b16 %v542, %v540
      %v613 = vpack.c.b16 %v545, %v543
      %v614 = vpack.c.b16 %v546, %v544
      %v615 = vpack.c.b16 %v549, %v547
      %v616 = vpack.c.b16 %v550, %v548
      %v617 = vpack.c.b16 %v553, %v551
      %v618 = vpack.c.b16 %v554, %v552
      %v715 = vunpack.c.l.b16 %v331
      %v716 = vunpack.c.l.b16 %v332
      %v717 = vunpack.c.l.b16 %v333
      %v718 = vunpack.c.l.b16 %v334
      %v719 = vunpack.c.l.b16 %v335
      %v720 = vunpack.c.l.b16 %v336
      %v721 = vunpack.c.l.b16 %v337
      %v722 = vunpack.c.l.b16 %v338
      %v723 = vunpack.c.l.b16 %v339
      %v724 = vunpack.c.l.b16 %v340
      %v725 = vunpack.c.l.b16 %v341
      %v726 = vunpack.c.l.b16 %v342
      %v727 = vunpack.c.l.b16 %v343
      %v728 = vunpack.c.l.b16 %v344
      %v729 = vunpack.c.l.b16 %v345
      %v730 = vunpack.c.l.b16 %v346
      %v731 = vunpack.c.l.b16 %v347
      %v732 = vunpack.c.l.b16 %v348
      %v733 = vunpack.c.l.b16 %v349
      %v734 = vunpack.c.l.b16 %v350
      %v735 = vunpack.c.l.b16 %v351
      %v736 = vunpack.c.l.b16 %v352
      %v737 = vunpack.c.l.b16 %v353
      %v738 = vunpack.c.l.b16 %v354
      %v739 = vunpack.c.l.b16 %v355
      %v740 = vunpack.c.l.b16 %v356
      %v741 = vunpack.c.l.b16 %v357
      %v742 = vunpack.c.l.b16 %v358
      %v743 = vunpack.c.l.b16 %v359
      %v744 = vunpack.c.l.b16 %v360
      %v745 = vunpack.c.l.b16 %v361
      %v746 = vunpack.c.l.b16 %v362
      %v747 = vpack.c.b16 %v716, %v715
      %v748 = vpack.c.b16 %v718, %v717
      %v749 = vpack.c.b16 %v720, %v719
      %v750 = vpack.c.b16 %v722, %v721
      %v751 = vpack.c.b16 %v724, %v723
      %v752 = vpack.c.b16 %v726, %v725
      %v753 = vpack.c.b16 %v728, %v727
      %v754 = vpack.c.b16 %v730, %v729
      %v755 = vpack.c.b16 %v732, %v731
      %v756 = vpack.c.b16 %v734, %v733
      %v757 = vpack.c.b16 %v736, %v735
      %v758 = vpack.c.b16 %v738, %v737
      %v759 = vpack.c.b16 %v740, %v739
      %v760 = vpack.c.b16 %v742, %v741
      %v761 = vpack.c.b16 %v744, %v743
      %v762 = vpack.c.b16 %v746, %v745
      %779 = vmatpush.bf16.msra.mxu0 %v754
      %780 = vmatpush.bf16.msra.mxu0 %v753
      %781 = vmatpush.bf16.msra.mxu0 %v752
      %782 = vmatpush.bf16.msra.mxu0 %v751
      %783 = vmatpush.bf16.msra.mxu0 %v750
      %784 = vmatpush.bf16.msra.mxu0 %v749
      %785 = vmatpush.bf16.msra.mxu0 %v748
      %786 = vmatpush.bf16.msra.mxu0 %v747
      %787 = vmatmul.bf16.gmra.mxu0 %v555
      %v788 = vpop.f32.mrf.mxu0
      %v789 = vadd.f32 0.0, %v788
      %v790 = vpop.f32.mrf.mxu0
      %v791 = vadd.f32 0.0, %v790
      %792 = vmatmul.bf16.gmra.mxu0 %v557
      %v793 = vpop.f32.mrf.mxu0
      %v794 = vadd.f32 0.0, %v793
      %v795 = vpop.f32.mrf.mxu0
      %v796 = vadd.f32 0.0, %v795
      %797 = vmatmul.bf16.gmra.mxu0 %v559
      %v798 = vpop.f32.mrf.mxu0
      %v799 = vadd.f32 0.0, %v798
      %v800 = vpop.f32.mrf.mxu0
      %v801 = vadd.f32 0.0, %v800
      %802 = vmatmul.bf16.gmra.mxu0 %v561
      %v803 = vpop.f32.mrf.mxu0
      %v804 = vadd.f32 0.0, %v803
      %v805 = vpop.f32.mrf.mxu0
      %v806 = vadd.f32 0.0, %v805
      %807 = vmatmul.bf16.gmra.mxu0 %v563
      %v808 = vpop.f32.mrf.mxu0
      %v809 = vadd.f32 0.0, %v808
      %v810 = vpop.f32.mrf.mxu0
      %v811 = vadd.f32 0.0, %v810
      %812 = vmatmul.bf16.gmra.mxu0 %v565
      %v813 = vpop.f32.mrf.mxu0
      %v814 = vadd.f32 0.0, %v813
      %v815 = vpop.f32.mrf.mxu0
      %v816 = vadd.f32 0.0, %v815
      %817 = vmatmul.bf16.gmra.mxu0 %v567
      %v818 = vpop.f32.mrf.mxu0
      %v819 = vadd.f32 0.0, %v818
      %v820 = vpop.f32.mrf.mxu0
      %v821 = vadd.f32 0.0, %v820
      %822 = vmatmul.bf16.gmra.mxu0 %v569
      %v823 = vpop.f32.mrf.mxu0
      %v824 = vadd.f32 0.0, %v823
      %v825 = vpop.f32.mrf.mxu0
      %v826 = vadd.f32 0.0, %v825
      %827 = vmatmul.bf16.gmra.mxu0 %v571
      %v828 = vpop.f32.mrf.mxu0
      %v829 = vadd.f32 0.0, %v828
      %v830 = vpop.f32.mrf.mxu0
      %v831 = vadd.f32 0.0, %v830
      %832 = vmatmul.bf16.gmra.mxu0 %v573
      %v833 = vpop.f32.mrf.mxu0
      %v834 = vadd.f32 0.0, %v833
      %v835 = vpop.f32.mrf.mxu0
      %v836 = vadd.f32 0.0, %v835
      %837 = vmatmul.bf16.gmra.mxu0 %v575
      %v838 = vpop.f32.mrf.mxu0
      %v839 = vadd.f32 0.0, %v838
      %v840 = vpop.f32.mrf.mxu0
      %v841 = vadd.f32 0.0, %v840
      %842 = vmatmul.bf16.gmra.mxu0 %v577
      %v843 = vpop.f32.mrf.mxu0
      %v844 = vadd.f32 0.0, %v843
      %v845 = vpop.f32.mrf.mxu0
      %v846 = vadd.f32 0.0, %v845
      %847 = vmatmul.bf16.gmra.mxu0 %v579
      %v848 = vpop.f32.mrf.mxu0
      %v849 = vadd.f32 0.0, %v848
      %v850 = vpop.f32.mrf.mxu0
      %v851 = vadd.f32 0.0, %v850
      %852 = vmatmul.bf16.gmra.mxu0 %v581
      %v853 = vpop.f32.mrf.mxu0
      %v854 = vadd.f32 0.0, %v853
      %v855 = vpop.f32.mrf.mxu0
      %v856 = vadd.f32 0.0, %v855
      %857 = vmatmul.bf16.gmra.mxu0 %v583
      %v858 = vpop.f32.mrf.mxu0
      %v859 = vadd.f32 0.0, %v858
      %v860 = vpop.f32.mrf.mxu0
      %v861 = vadd.f32 0.0, %v860
      %862 = vmatmul.bf16.gmra.mxu0 %v585
      %v863 = vpop.f32.mrf.mxu0
      %v864 = vadd.f32 0.0, %v863
      %v865 = vpop.f32.mrf.mxu0
      %v866 = vadd.f32 0.0, %v865
      %867 = vmatmul.bf16.gmra.mxu0 %v587
      %v868 = vpop.f32.mrf.mxu0
      %v869 = vadd.f32 0.0, %v868
      %v870 = vpop.f32.mrf.mxu0
      %v871 = vadd.f32 0.0, %v870
      %872 = vmatmul.bf16.gmra.mxu0 %v589
      %v873 = vpop.f32.mrf.mxu0
      %v874 = vadd.f32 0.0, %v873
      %v875 = vpop.f32.mrf.mxu0
      %v876 = vadd.f32 0.0, %v875
      %877 = vmatmul.bf16.gmra.mxu0 %v591
      %v878 = vpop.f32.mrf.mxu0
      %v879 = vadd.f32 0.0, %v878
      %v880 = vpop.f32.mrf.mxu0
      %v881 = vadd.f32 0.0, %v880
      %882 = vmatmul.bf16.gmra.mxu0 %v593
      %v883 = vpop.f32.mrf.mxu0
      %v884 = vadd.f32 0.0, %v883
      %v885 = vpop.f32.mrf.mxu0
      %v886 = vadd.f32 0.0, %v885
      %887 = vmatmul.bf16.gmra.mxu0 %v595
      %v888 = vpop.f32.mrf.mxu0
      %v889 = vadd.f32 0.0, %v888
      %v890 = vpop.f32.mrf.mxu0
      %v891 = vadd.f32 0.0, %v890
      %892 = vmatmul.bf16.gmra.mxu0 %v597
      %v893 = vpop.f32.mrf.mxu0
      %v894 = vadd.f32 0.0, %v893
      %v895 = vpop.f32.mrf.mxu0
      %v896 = vadd.f32 0.0, %v895
      %897 = vmatmul.bf16.gmra.mxu0 %v599
      %v898 = vpop.f32.mrf.mxu0
      %v899 = vadd.f32 0.0, %v898
      %v900 = vpop.f32.mrf.mxu0
      %v901 = vadd.f32 0.0, %v900
      %902 = vmatmul.bf16.gmra.mxu0 %v601
      %v903 = vpop.f32.mrf.mxu0
      %v904 = vadd.f32 0.0, %v903
      %v905 = vpop.f32.mrf.mxu0
      %v906 = vadd.f32 0.0, %v905
      %907 = vmatmul.bf16.gmra.mxu0 %v603
      %v908 = vpop.f32.mrf.mxu0
      %v909 = vadd.f32 0.0, %v908
      %v910 = vpop.f32.mrf.mxu0
      %v911 = vadd.f32 0.0, %v910
      %912 = vmatmul.bf16.gmra.mxu0 %v605
      %v913 = vpop.f32.mrf.mxu0
      %v914 = vadd.f32 0.0, %v913
      %v915 = vpop.f32.mrf.mxu0
      %v916 = vadd.f32 0.0, %v915
      %917 = vmatmul.bf16.gmra.mxu0 %v607
      %v918 = vpop.f32.mrf.mxu0
      %v919 = vadd.f32 0.0, %v918
      %v920 = vpop.f32.mrf.mxu0
      %v921 = vadd.f32 0.0, %v920
      %922 = vmatmul.bf16.gmra.mxu0 %v609
      %v923 = vpop.f32.mrf.mxu0
      %v924 = vadd.f32 0.0, %v923
      %v925 = vpop.f32.mrf.mxu0
      %v926 = vadd.f32 0.0, %v925
      %927 = vmatmul.bf16.gmra.mxu0 %v611
      %v928 = vpop.f32.mrf.mxu0
      %v929 = vadd.f32 0.0, %v928
      %v930 = vpop.f32.mrf.mxu0
      %v931 = vadd.f32 0.0, %v930
      %932 = vmatmul.bf16.gmra.mxu0 %v613
      %v933 = vpop.f32.mrf.mxu0
      %v934 = vadd.f32 0.0, %v933
      %v935 = vpop.f32.mrf.mxu0
      %v936 = vadd.f32 0.0, %v935
      %937 = vmatmul.bf16.gmra.mxu0 %v615
      %v938 = vpop.f32.mrf.mxu0
      %v939 = vadd.f32 0.0, %v938
      %v940 = vpop.f32.mrf.mxu0
      %v941 = vadd.f32 0.0, %v940
      %942 = vmatmul.bf16.gmra.mxu0 %v617
      %v943 = vpop.f32.mrf.mxu0
      %v944 = vadd.f32 0.0, %v943
      %v945 = vpop.f32.mrf.mxu0
      %v946 = vadd.f32 0.0, %v945
      %947 = vdwg.mxu0
      %948 = vmatpush.bf16.msra.mxu0 %v762
      %949 = vmatpush.bf16.msra.mxu0 %v761
      %950 = vmatpush.bf16.msra.mxu0 %v760
      %951 = vmatpush.bf16.msra.mxu0 %v759
      %952 = vmatpush.bf16.msra.mxu0 %v758
      %953 = vmatpush.bf16.msra.mxu0 %v757
      %954 = vmatpush.bf16.msra.mxu0 %v756
      %955 = vmatpush.bf16.msra.mxu0 %v755
      %956 = vmatmul.bf16.gmra.mxu0 %v556
      %v957 = vpop.f32.mrf.mxu0
      %v958 = vadd.f32 %v789, %v957
      %v959 = vpop.f32.mrf.mxu0
      %v960 = vadd.f32 %v791, %v959
      %961 = vmatmul.bf16.gmra.mxu0 %v558
      %v962 = vpop.f32.mrf.mxu0
      %v963 = vadd.f32 %v794, %v962
      %v964 = vpop.f32.mrf.mxu0
      %v965 = vadd.f32 %v796, %v964
      %966 = vmatmul.bf16.gmra.mxu0 %v560
      %v967 = vpop.f32.mrf.mxu0
      %v968 = vadd.f32 %v799, %v967
      %v969 = vpop.f32.mrf.mxu0
      %v970 = vadd.f32 %v801, %v969
      %971 = vmatmul.bf16.gmra.mxu0 %v562
      %v972 = vpop.f32.mrf.mxu0
      %v973 = vadd.f32 %v804, %v972
      %v974 = vpop.f32.mrf.mxu0
      %v975 = vadd.f32 %v806, %v974
      %976 = vmatmul.bf16.gmra.mxu0 %v564
      %v977 = vpop.f32.mrf.mxu0
      %v978 = vadd.f32 %v809, %v977
      %v979 = vpop.f32.mrf.mxu0
      %v980 = vadd.f32 %v811, %v979
      %981 = vmatmul.bf16.gmra.mxu0 %v566
      %v982 = vpop.f32.mrf.mxu0
      %v983 = vadd.f32 %v814, %v982
      %v984 = vpop.f32.mrf.mxu0
      %v985 = vadd.f32 %v816, %v984
      %986 = vmatmul.bf16.gmra.mxu0 %v568
      %v987 = vpop.f32.mrf.mxu0
      %v988 = vadd.f32 %v819, %v987
      %v989 = vpop.f32.mrf.mxu0
      %v990 = vadd.f32 %v821, %v989
      %991 = vmatmul.bf16.gmra.mxu0 %v570
      %v992 = vpop.f32.mrf.mxu0
      %v993 = vadd.f32 %v824, %v992
      %v994 = vpop.f32.mrf.mxu0
      %v995 = vadd.f32 %v826, %v994
      %996 = vmatmul.bf16.gmra.mxu0 %v572
      %v997 = vpop.f32.mrf.mxu0
      %v998 = vadd.f32 %v829, %v997
      %v999 = vpop.f32.mrf.mxu0
      %v1000 = vadd.f32 %v831, %v999
      %1001 = vmatmul.bf16.gmra.mxu0 %v574
      %v1002 = vpop.f32.mrf.mxu0
      %v1003 = vadd.f32 %v834, %v1002
      %v1004 = vpop.f32.mrf.mxu0
      %v1005 = vadd.f32 %v836, %v1004
      %1006 = vmatmul.bf16.gmra.mxu0 %v576
      %v1007 = vpop.f32.mrf.mxu0
      %v1008 = vadd.f32 %v839, %v1007
      %v1009 = vpop.f32.mrf.mxu0
      %v1010 = vadd.f32 %v841, %v1009
      %1011 = vmatmul.bf16.gmra.mxu0 %v578
      %v1012 = vpop.f32.mrf.mxu0
      %v1013 = vadd.f32 %v844, %v1012
      %v1014 = vpop.f32.mrf.mxu0
      %v1015 = vadd.f32 %v846, %v1014
      %1016 = vmatmul.bf16.gmra.mxu0 %v580
      %v1017 = vpop.f32.mrf.mxu0
      %v1018 = vadd.f32 %v849, %v1017
      %v1019 = vpop.f32.mrf.mxu0
      %v1020 = vadd.f32 %v851, %v1019
      %1021 = vmatmul.bf16.gmra.mxu0 %v582
      %v1022 = vpop.f32.mrf.mxu0
      %v1023 = vadd.f32 %v854, %v1022
      %v1024 = vpop.f32.mrf.mxu0
      %v1025 = vadd.f32 %v856, %v1024
      %1026 = vmatmul.bf16.gmra.mxu0 %v584
      %v1027 = vpop.f32.mrf.mxu0
      %v1028 = vadd.f32 %v859, %v1027
      %v1029 = vpop.f32.mrf.mxu0
      %v1030 = vadd.f32 %v861, %v1029
      %1031 = vmatmul.bf16.gmra.mxu0 %v586
      %v1032 = vpop.f32.mrf.mxu0
      %v1033 = vadd.f32 %v864, %v1032
      %v1034 = vpop.f32.mrf.mxu0
      %v1035 = vadd.f32 %v866, %v1034
      %1036 = vmatmul.bf16.gmra.mxu0 %v588
      %v1037 = vpop.f32.mrf.mxu0
      %v1038 = vadd.f32 %v869, %v1037
      %v1039 = vpop.f32.mrf.mxu0
      %v1040 = vadd.f32 %v871, %v1039
      %1041 = vmatmul.bf16.gmra.mxu0 %v590
      %v1042 = vpop.f32.mrf.mxu0
      %v1043 = vadd.f32 %v874, %v1042
      %v1044 = vpop.f32.mrf.mxu0
      %v1045 = vadd.f32 %v876, %v1044
      %1046 = vmatmul.bf16.gmra.mxu0 %v592
      %v1047 = vpop.f32.mrf.mxu0
      %v1048 = vadd.f32 %v879, %v1047
      %v1049 = vpop.f32.mrf.mxu0
      %v1050 = vadd.f32 %v881, %v1049
      %1051 = vmatmul.bf16.gmra.mxu0 %v594
      %v1052 = vpop.f32.mrf.mxu0
      %v1053 = vadd.f32 %v884, %v1052
      %v1054 = vpop.f32.mrf.mxu0
      %v1055 = vadd.f32 %v886, %v1054
      %1056 = vmatmul.bf16.gmra.mxu0 %v596
      %v1057 = vpop.f32.mrf.mxu0
      %v1058 = vadd.f32 %v889, %v1057
      %v1059 = vpop.f32.mrf.mxu0
      %v1060 = vadd.f32 %v891, %v1059
      %1061 = vmatmul.bf16.gmra.mxu0 %v598
      %v1062 = vpop.f32.mrf.mxu0
      %v1063 = vadd.f32 %v894, %v1062
      %v1064 = vpop.f32.mrf.mxu0
      %v1065 = vadd.f32 %v896, %v1064
      %1066 = vmatmul.bf16.gmra.mxu0 %v600
      %v1067 = vpop.f32.mrf.mxu0
      %v1068 = vadd.f32 %v899, %v1067
      %v1069 = vpop.f32.mrf.mxu0
      %v1070 = vadd.f32 %v901, %v1069
      %1071 = vmatmul.bf16.gmra.mxu0 %v602
      %v1072 = vpop.f32.mrf.mxu0
      %v1073 = vadd.f32 %v904, %v1072
      %v1074 = vpop.f32.mrf.mxu0
      %v1075 = vadd.f32 %v906, %v1074
      %1076 = vmatmul.bf16.gmra.mxu0 %v604
      %v1077 = vpop.f32.mrf.mxu0
      %v1078 = vadd.f32 %v909, %v1077
      %v1079 = vpop.f32.mrf.mxu0
      %v1080 = vadd.f32 %v911, %v1079
      %1081 = vmatmul.bf16.gmra.mxu0 %v606
      %v1082 = vpop.f32.mrf.mxu0
      %v1083 = vadd.f32 %v914, %v1082
      %v1084 = vpop.f32.mrf.mxu0
      %v1085 = vadd.f32 %v916, %v1084
      %1086 = vmatmul.bf16.gmra.mxu0 %v608
      %v1087 = vpop.f32.mrf.mxu0
      %v1088 = vadd.f32 %v919, %v1087
      %v1089 = vpop.f32.mrf.mxu0
      %v1090 = vadd.f32 %v921, %v1089
      %1091 = vmatmul.bf16.gmra.mxu0 %v610
      %v1092 = vpop.f32.mrf.mxu0
      %v1093 = vadd.f32 %v924, %v1092
      %v1094 = vpop.f32.mrf.mxu0
      %v1095 = vadd.f32 %v926, %v1094
      %1096 = vmatmul.bf16.gmra.mxu0 %v612
      %v1097 = vpop.f32.mrf.mxu0
      %v1098 = vadd.f32 %v929, %v1097
      %v1099 = vpop.f32.mrf.mxu0
      %v1100 = vadd.f32 %v931, %v1099
      %1101 = vmatmul.bf16.gmra.mxu0 %v614
      %v1102 = vpop.f32.mrf.mxu0
      %v1103 = vadd.f32 %v934, %v1102
      %v1104 = vpop.f32.mrf.mxu0
      %v1105 = vadd.f32 %v936, %v1104
      %1106 = vmatmul.bf16.gmra.mxu0 %v616
      %v1107 = vpop.f32.mrf.mxu0
      %v1108 = vadd.f32 %v939, %v1107
      %v1109 = vpop.f32.mrf.mxu0
      %v1110 = vadd.f32 %v941, %v1109
      %1111 = vmatmul.bf16.gmra.mxu0 %v618
      %v1112 = vpop.f32.mrf.mxu0
      %v1113 = vadd.f32 %v944, %v1112
      %v1114 = vpop.f32.mrf.mxu0
      %v1115 = vadd.f32 %v946, %v1114
      %1116 = vdwg.mxu0
      %p1117 = scmp.eq.s32.totalorder %s20, 0
      // Predicated region
      $region37: #{frame_generator_forward.8} parent=35 // pred_check
        %p1118 = pneg %p1117
      $region38: #{frame_generator_forward.8} parent=35 // pred_check_branch
        %1120 = sbr.rel (%p1118) target = $region40
      $region39: #{frame_generator_forward.8} parent=35 // pred_region
        %p1121 = scmp.eq.s32.totalorder %s21, 0
        %p1122 = scmp.eq.s32.totalorder %s22, 0
        %p1123 = pnand %p1121, %p1122
        %p1124 = pneg %p1123
        // Predicated region
        $region41: #{frame_generator_forward.8} parent=39 // pred_check
          _
        $region42: #{frame_generator_forward.8} parent=39 // pred_check_branch
          %1126 = sbr.rel (%p1123) target = $region44
        $region43: #{frame_generator_forward.8} parent=39 // pred_region
          %vm1127 = vcmask 253952
          %1128 = vst.msk [vmem:[#allocation2] sm:$0x1] %vm1127, 0.0
          %1129 = vst.msk [vmem:[#allocation3] sm:$0x1] %vm1127, 0.0
        $region44: #{frame_generator_forward.8} parent=39 // pred_fallthru
          _
        %v1130 = vld [vmem:[#allocation2] sm:$0x1]
        %vm1131 = vcmask 261120
        %v1132 = vsel %vm1131, %v958, 0.0
        %v1133 = vsel %vm1131, %v960, 0.0
        %v1134 = vadd.f32 %v1132, %v1133
        %v1135 = vsel %vm1131, %v963, 0.0
        %v1136 = vadd.f32 %v1134, %v1135
        %v1137 = vsel %vm1131, %v965, 0.0
        %v1138 = vadd.f32 %v1136, %v1137
        %v1139 = vsel %vm1131, %v968, 0.0
        %v1140 = vadd.f32 %v1138, %v1139
        %v1141 = vsel %vm1131, %v970, 0.0
        %v1142 = vadd.f32 %v1140, %v1141
        %v1143 = vsel %vm1131, %v973, 0.0
        %v1144 = vadd.f32 %v1142, %v1143
        %v1145 = vsel %vm1131, %v975, 0.0
        %v1146 = vadd.f32 %v1144, %v1145
        %v1147 = vsel %vm1131, %v978, 0.0
        %v1148 = vadd.f32 %v1146, %v1147
        %v1149 = vsel %vm1131, %v980, 0.0
        %v1150 = vadd.f32 %v1148, %v1149
        %v1151 = vsel %vm1131, %v983, 0.0
        %v1152 = vadd.f32 %v1150, %v1151
        %v1153 = vsel %vm1131, %v985, 0.0
        %v1154 = vadd.f32 %v1152, %v1153
        %v1155 = vsel %vm1131, %v988, 0.0
        %v1156 = vadd.f32 %v1154, %v1155
        %v1157 = vsel %vm1131, %v990, 0.0
        %v1158 = vadd.f32 %v1156, %v1157
        %v1159 = vsel %vm1131, %v993, 0.0
        %v1160 = vadd.f32 %v1158, %v1159
        %v1161 = vsel %vm1131, %v995, 0.0
        %v1162 = vadd.f32 %v1160, %v1161
        %v1163 = vsel %vm1131, %v998, 0.0
        %v1164 = vadd.f32 %v1162, %v1163
        %v1165 = vsel %vm1131, %v1000, 0.0
        %v1166 = vadd.f32 %v1164, %v1165
        %v1167 = vsel %vm1131, %v1003, 0.0
        %v1168 = vadd.f32 %v1166, %v1167
        %v1169 = vsel %vm1131, %v1005, 0.0
        %v1170 = vadd.f32 %v1168, %v1169
        %v1171 = vsel %vm1131, %v1008, 0.0
        %v1172 = vadd.f32 %v1170, %v1171
        %v1173 = vsel %vm1131, %v1010, 0.0
        %v1174 = vadd.f32 %v1172, %v1173
        %v1175 = vsel %vm1131, %v1013, 0.0
        %v1176 = vadd.f32 %v1174, %v1175
        %v1177 = vsel %vm1131, %v1015, 0.0
        %v1178 = vadd.f32 %v1176, %v1177
        %v1179 = vsel %vm1131, %v1018, 0.0
        %v1180 = vadd.f32 %v1178, %v1179
        %v1181 = vsel %vm1131, %v1020, 0.0
        %v1182 = vadd.f32 %v1180, %v1181
        %v1183 = vsel %vm1131, %v1023, 0.0
        %v1184 = vadd.f32 %v1182, %v1183
        %v1185 = vsel %vm1131, %v1025, 0.0
        %v1186 = vadd.f32 %v1184, %v1185
        %v1187 = vsel %vm1131, %v1028, 0.0
        %v1188 = vadd.f32 %v1186, %v1187
        %v1189 = vsel %vm1131, %v1030, 0.0
        %v1190 = vadd.f32 %v1188, %v1189
        %v1191 = vsel %vm1131, %v1033, 0.0
        %v1192 = vadd.f32 %v1190, %v1191
        %v1193 = vsel %vm1131, %v1035, 0.0
        %v1194 = vadd.f32 %v1192, %v1193
        %v1195 = vsel %vm1131, %v1038, 0.0
        %v1196 = vadd.f32 %v1194, %v1195
        %v1197 = vsel %vm1131, %v1040, 0.0
        %v1198 = vadd.f32 %v1196, %v1197
        %v1199 = vsel %vm1131, %v1043, 0.0
        %v1200 = vadd.f32 %v1198, %v1199
        %v1201 = vsel %vm1131, %v1045, 0.0
        %v1202 = vadd.f32 %v1200, %v1201
        %v1203 = vsel %vm1131, %v1048, 0.0
        %v1204 = vadd.f32 %v1202, %v1203
        %v1205 = vsel %vm1131, %v1050, 0.0
        %v1206 = vadd.f32 %v1204, %v1205
        %v1207 = vsel %vm1131, %v1053, 0.0
        %v1208 = vadd.f32 %v1206, %v1207
        %v1209 = vsel %vm1131, %v1055, 0.0
        %v1210 = vadd.f32 %v1208, %v1209
        %v1211 = vsel %vm1131, %v1058, 0.0
        %v1212 = vadd.f32 %v1210, %v1211
        %v1213 = vsel %vm1131, %v1060, 0.0
        %v1214 = vadd.f32 %v1212, %v1213
        %v1215 = vsel %vm1131, %v1063, 0.0
        %v1216 = vadd.f32 %v1214, %v1215
        %v1217 = vsel %vm1131, %v1065, 0.0
        %v1218 = vadd.f32 %v1216, %v1217
        %v1219 = vsel %vm1131, %v1068, 0.0
        %v1220 = vadd.f32 %v1218, %v1219
        %v1221 = vsel %vm1131, %v1070, 0.0
        %v1222 = vadd.f32 %v1220, %v1221
        %v1223 = vsel %vm1131, %v1073, 0.0
        %v1224 = vadd.f32 %v1222, %v1223
        %v1225 = vsel %vm1131, %v1075, 0.0
        %v1226 = vadd.f32 %v1224, %v1225
        %v1227 = vsel %vm1131, %v1078, 0.0
        %v1228 = vadd.f32 %v1226, %v1227
        %v1229 = vsel %vm1131, %v1080, 0.0
        %v1230 = vadd.f32 %v1228, %v1229
        %v1231 = vsel %vm1131, %v1083, 0.0
        %v1232 = vadd.f32 %v1230, %v1231
        %v1233 = vsel %vm1131, %v1085, 0.0
        %v1234 = vadd.f32 %v1232, %v1233
        %v1235 = vsel %vm1131, %v1088, 0.0
        %v1236 = vadd.f32 %v1234, %v1235
        %v1237 = vsel %vm1131, %v1090, 0.0
        %v1238 = vadd.f32 %v1236, %v1237
        %v1239 = vsel %vm1131, %v1093, 0.0
        %v1240 = vadd.f32 %v1238, %v1239
        %v1241 = vsel %vm1131, %v1095, 0.0
        %v1242 = vadd.f32 %v1240, %v1241
        %v1243 = vsel %vm1131, %v1098, 0.0
        %v1244 = vadd.f32 %v1242, %v1243
        %v1245 = vsel %vm1131, %v1100, 0.0
        %v1246 = vadd.f32 %v1244, %v1245
        %v1247 = vsel %vm1131, %v1103, 0.0
        %v1248 = vadd.f32 %v1246, %v1247
        %v1249 = vsel %vm1131, %v1105, 0.0
        %v1250 = vadd.f32 %v1248, %v1249
        %v1251 = vsel %vm1131, %v1108, 0.0
        %v1252 = vadd.f32 %v1250, %v1251
        %v1253 = vsel %vm1131, %v1110, 0.0
        %v1254 = vadd.f32 %v1252, %v1253
        %v1255 = vsel %vm1131, %v1113, 0.0
        %v1256 = vadd.f32 %v1254, %v1255
        %v1257 = vsel %vm1131, %v1115, 0.0
        %v1258 = vadd.f32 %v1256, %v1257
        %v1259 = vrot.slane %v1258, 4
        %v1260 = vadd.f32 %v1258, %v1259
        %v1261 = vrot.slane %v1260, 2
        %v1262 = vadd.f32 %v1260, %v1261
        %v1263 = vrot.slane %v1262, 1
        %v1264 = vadd.f32 %v1262, %v1263
        %v1265 = vadd.f32 %v1130, %v1264
        %vm1266 = vcmask 253952
        %1267 = vst.msk [vmem:[#allocation2] sm:$0x1] %vm1266, %v1265
        %v1268 = vld [vmem:[#allocation3] sm:$0x1]
        %v1269 = vmul.f32 %v958, %v958
        %v1270 = vmul.f32 %v960, %v960
        %v1271 = vmul.f32 %v963, %v963
        %v1272 = vmul.f32 %v965, %v965
        %v1273 = vmul.f32 %v968, %v968
        %v1274 = vmul.f32 %v970, %v970
        %v1275 = vmul.f32 %v973, %v973
        %v1276 = vmul.f32 %v975, %v975
        %v1277 = vmul.f32 %v978, %v978
        %v1278 = vmul.f32 %v980, %v980
        %v1279 = vmul.f32 %v983, %v983
        %v1280 = vmul.f32 %v985, %v985
        %v1281 = vmul.f32 %v988, %v988
        %v1282 = vmul.f32 %v990, %v990
        %v1283 = vmul.f32 %v993, %v993
        %v1284 = vmul.f32 %v995, %v995
        %v1285 = vmul.f32 %v998, %v998
        %v1286 = vmul.f32 %v1000, %v1000
        %v1287 = vmul.f32 %v1003, %v1003
        %v1288 = vmul.f32 %v1005, %v1005
        %v1289 = vmul.f32 %v1008, %v1008
        %v1290 = vmul.f32 %v1010, %v1010
        %v1291 = vmul.f32 %v1013, %v1013
        %v1292 = vmul.f32 %v1015, %v1015
        %v1293 = vmul.f32 %v1018, %v1018
        %v1294 = vmul.f32 %v1020, %v1020
        %v1295 = vmul.f32 %v1023, %v1023
        %v1296 = vmul.f32 %v1025, %v1025
        %v1297 = vmul.f32 %v1028, %v1028
        %v1298 = vmul.f32 %v1030, %v1030
        %v1299 = vmul.f32 %v1033, %v1033
        %v1300 = vmul.f32 %v1035, %v1035
        %v1301 = vmul.f32 %v1038, %v1038
        %v1302 = vmul.f32 %v1040, %v1040
        %v1303 = vmul.f32 %v1043, %v1043
        %v1304 = vmul.f32 %v1045, %v1045
        %v1305 = vmul.f32 %v1048, %v1048
        %v1306 = vmul.f32 %v1050, %v1050
        %v1307 = vmul.f32 %v1053, %v1053
        %v1308 = vmul.f32 %v1055, %v1055
        %v1309 = vmul.f32 %v1058, %v1058
        %v1310 = vmul.f32 %v1060, %v1060
        %v1311 = vmul.f32 %v1063, %v1063
        %v1312 = vmul.f32 %v1065, %v1065
        %v1313 = vmul.f32 %v1068, %v1068
        %v1314 = vmul.f32 %v1070, %v1070
        %v1315 = vmul.f32 %v1073, %v1073
        %v1316 = vmul.f32 %v1075, %v1075
        %v1317 = vmul.f32 %v1078, %v1078
        %v1318 = vmul.f32 %v1080, %v1080
        %v1319 = vmul.f32 %v1083, %v1083
        %v1320 = vmul.f32 %v1085, %v1085
        %v1321 = vmul.f32 %v1088, %v1088
        %v1322 = vmul.f32 %v1090, %v1090
        %v1323 = vmul.f32 %v1093, %v1093
        %v1324 = vmul.f32 %v1095, %v1095
        %v1325 = vmul.f32 %v1098, %v1098
        %v1326 = vmul.f32 %v1100, %v1100
        %v1327 = vmul.f32 %v1103, %v1103
        %v1328 = vmul.f32 %v1105, %v1105
        %v1329 = vmul.f32 %v1108, %v1108
        %v1330 = vmul.f32 %v1110, %v1110
        %v1331 = vmul.f32 %v1113, %v1113
        %v1332 = vmul.f32 %v1115, %v1115
        %v1333 = vsel %vm1131, %v1269, 0.0
        %v1334 = vsel %vm1131, %v1270, 0.0
        %v1335 = vadd.f32 %v1333, %v1334
        %v1336 = vsel %vm1131, %v1271, 0.0
        %v1337 = vadd.f32 %v1335, %v1336
        %v1338 = vsel %vm1131, %v1272, 0.0
        %v1339 = vadd.f32 %v1337, %v1338
        %v1340 = vsel %vm1131, %v1273, 0.0
        %v1341 = vadd.f32 %v1339, %v1340
        %v1342 = vsel %vm1131, %v1274, 0.0
        %v1343 = vadd.f32 %v1341, %v1342
        %v1344 = vsel %vm1131, %v1275, 0.0
        %v1345 = vadd.f32 %v1343, %v1344
        %v1346 = vsel %vm1131, %v1276, 0.0
        %v1347 = vadd.f32 %v1345, %v1346
        %v1348 = vsel %vm1131, %v1277, 0.0
        %v1349 = vadd.f32 %v1347, %v1348
        %v1350 = vsel %vm1131, %v1278, 0.0
        %v1351 = vadd.f32 %v1349, %v1350
        %v1352 = vsel %vm1131, %v1279, 0.0
        %v1353 = vadd.f32 %v1351, %v1352
        %v1354 = vsel %vm1131, %v1280, 0.0
        %v1355 = vadd.f32 %v1353, %v1354
        %v1356 = vsel %vm1131, %v1281, 0.0
        %v1357 = vadd.f32 %v1355, %v1356
        %v1358 = vsel %vm1131, %v1282, 0.0
        %v1359 = vadd.f32 %v1357, %v1358
        %v1360 = vsel %vm1131, %v1283, 0.0
        %v1361 = vadd.f32 %v1359, %v1360
        %v1362 = vsel %vm1131, %v1284, 0.0
        %v1363 = vadd.f32 %v1361, %v1362
        %v1364 = vsel %vm1131, %v1285, 0.0
        %v1365 = vadd.f32 %v1363, %v1364
        %v1366 = vsel %vm1131, %v1286, 0.0
        %v1367 = vadd.f32 %v1365, %v1366
        %v1368 = vsel %vm1131, %v1287, 0.0
        %v1369 = vadd.f32 %v1367, %v1368
        %v1370 = vsel %vm1131, %v1288, 0.0
        %v1371 = vadd.f32 %v1369, %v1370
        %v1372 = vsel %vm1131, %v1289, 0.0
        %v1373 = vadd.f32 %v1371, %v1372
        %v1374 = vsel %vm1131, %v1290, 0.0
        %v1375 = vadd.f32 %v1373, %v1374
        %v1376 = vsel %vm1131, %v1291, 0.0
        %v1377 = vadd.f32 %v1375, %v1376
        %v1378 = vsel %vm1131, %v1292, 0.0
        %v1379 = vadd.f32 %v1377, %v1378
        %v1380 = vsel %vm1131, %v1293, 0.0
        %v1381 = vadd.f32 %v1379, %v1380
        %v1382 = vsel %vm1131, %v1294, 0.0
        %v1383 = vadd.f32 %v1381, %v1382
        %v1384 = vsel %vm1131, %v1295, 0.0
        %v1385 = vadd.f32 %v1383, %v1384
        %v1386 = vsel %vm1131, %v1296, 0.0
        %v1387 = vadd.f32 %v1385, %v1386
        %v1388 = vsel %vm1131, %v1297, 0.0
        %v1389 = vadd.f32 %v1387, %v1388
        %v1390 = vsel %vm1131, %v1298, 0.0
        %v1391 = vadd.f32 %v1389, %v1390
        %v1392 = vsel %vm1131, %v1299, 0.0
        %v1393 = vadd.f32 %v1391, %v1392
        %v1394 = vsel %vm1131, %v1300, 0.0
        %v1395 = vadd.f32 %v1393, %v1394
        %v1396 = vsel %vm1131, %v1301, 0.0
        %v1397 = vadd.f32 %v1395, %v1396
        %v1398 = vsel %vm1131, %v1302, 0.0
        %v1399 = vadd.f32 %v1397, %v1398
        %v1400 = vsel %vm1131, %v1303, 0.0
        %v1401 = vadd.f32 %v1399, %v1400
        %v1402 = vsel %vm1131, %v1304, 0.0
        %v1403 = vadd.f32 %v1401, %v1402
        %v1404 = vsel %vm1131, %v1305, 0.0
        %v1405 = vadd.f32 %v1403, %v1404
        %v1406 = vsel %vm1131, %v1306, 0.0
        %v1407 = vadd.f32 %v1405, %v1406
        %v1408 = vsel %vm1131, %v1307, 0.0
        %v1409 = vadd.f32 %v1407, %v1408
        %v1410 = vsel %vm1131, %v1308, 0.0
        %v1411 = vadd.f32 %v1409, %v1410
        %v1412 = vsel %vm1131, %v1309, 0.0
        %v1413 = vadd.f32 %v1411, %v1412
        %v1414 = vsel %vm1131, %v1310, 0.0
        %v1415 = vadd.f32 %v1413, %v1414
        %v1416 = vsel %vm1131, %v1311, 0.0
        %v1417 = vadd.f32 %v1415, %v1416
        %v1418 = vsel %vm1131, %v1312, 0.0
        %v1419 = vadd.f32 %v1417, %v1418
        %v1420 = vsel %vm1131, %v1313, 0.0
        %v1421 = vadd.f32 %v1419, %v1420
        %v1422 = vsel %vm1131, %v1314, 0.0
        %v1423 = vadd.f32 %v1421, %v1422
        %v1424 = vsel %vm1131, %v1315, 0.0
        %v1425 = vadd.f32 %v1423, %v1424
        %v1426 = vsel %vm1131, %v1316, 0.0
        %v1427 = vadd.f32 %v1425, %v1426
        %v1428 = vsel %vm1131, %v1317, 0.0
        %v1429 = vadd.f32 %v1427, %v1428
        %v1430 = vsel %vm1131, %v1318, 0.0
        %v1431 = vadd.f32 %v1429, %v1430
        %v1432 = vsel %vm1131, %v1319, 0.0
        %v1433 = vadd.f32 %v1431, %v1432
        %v1434 = vsel %vm1131, %v1320, 0.0
        %v1435 = vadd.f32 %v1433, %v1434
        %v1436 = vsel %vm1131, %v1321, 0.0
        %v1437 = vadd.f32 %v1435, %v1436
        %v1438 = vsel %vm1131, %v1322, 0.0
        %v1439 = vadd.f32 %v1437, %v1438
        %v1440 = vsel %vm1131, %v1323, 0.0
        %v1441 = vadd.f32 %v1439, %v1440
        %v1442 = vsel %vm1131, %v1324, 0.0
        %v1443 = vadd.f32 %v1441, %v1442
        %v1444 = vsel %vm1131, %v1325, 0.0
        %v1445 = vadd.f32 %v1443, %v1444
        %v1446 = vsel %vm1131, %v1326, 0.0
        %v1447 = vadd.f32 %v1445, %v1446
        %v1448 = vsel %vm1131, %v1327, 0.0
        %v1449 = vadd.f32 %v1447, %v1448
        %v1450 = vsel %vm1131, %v1328, 0.0
        %v1451 = vadd.f32 %v1449, %v1450
        %v1452 = vsel %vm1131, %v1329, 0.0
        %v1453 = vadd.f32 %v1451, %v1452
        %v1454 = vsel %vm1131, %v1330, 0.0
        %v1455 = vadd.f32 %v1453, %v1454
        %v1456 = vsel %vm1131, %v1331, 0.0
        %v1457 = vadd.f32 %v1455, %v1456
        %v1458 = vsel %vm1131, %v1332, 0.0
        %v1459 = vadd.f32 %v1457, %v1458
        %v1460 = vrot.slane %v1459, 4
        %v1461 = vadd.f32 %v1459, %v1460
        %v1462 = vrot.slane %v1461, 2
        %v1463 = vadd.f32 %v1461, %v1462
        %v1464 = vrot.slane %v1463, 1
        %v1465 = vadd.f32 %v1463, %v1464
        %v1466 = vadd.f32 %v1268, %v1465
        %1467 = vst.msk [vmem:[#allocation3] sm:$0x1] %vm1266, %v1466
      $region40: #{frame_generator_forward.8} parent=35 // pred_fallthru
        _
      %p1468 = scmp.eq.s32.totalorder %s20, 1
      // Predicated region
      $region45: #{frame_generator_forward.8} parent=35 // pred_check
        %p1469 = pneg %p1468
      $region46: #{frame_generator_forward.8} parent=35 // pred_check_branch
        %1471 = sbr.rel (%p1469) target = $region48
      $region47: #{frame_generator_forward.8} parent=35 // pred_region
        %v1472 = vld [vmem:[#allocation2] sm:$0x1]
        %v1473 = vmul.f32 %v1472, 0.00048828125
        %v1474 = vld [vmem:[#allocation3] sm:$0x1]
        %v1475 = vmul.f32 %v1474, 0.00048828125
        %v1476 = vmul.f32 %v1473, %v1473
        %v1477 = vsub.f32 %v1475, %v1476
        %v1478 = vadd.f32 %v1477, 1e-05
        %v1479 = vrsqrt.pop %v1478
        %v1480 = vmul.f32 %v1479, %v1478
        %v1481 = vmul.f32 %v1480, %v1479
        %v1482 = vmul.f32 0.5, %v1481
        %v1483 = vsub.f32 1.5, %v1482
        %v1484 = vmul.f32 %v1479, %v1483
        %vm1485 = vweird.f32 %v1478
        %vm1486 = vweird.f32 %v1479
        %vm1487 = vmor %vm1485, %vm1486
        %v1488 = vsel %vm1487, %v1479, %v1484
        %v1490 = vperm.slane %v1473, 0
        %v1492 = vsub.f32 %v958, %v1490
        %v1493 = vsub.f32 %v960, %v1490
        %v1494 = vsub.f32 %v963, %v1490
        %v1495 = vsub.f32 %v965, %v1490
        %v1496 = vsub.f32 %v968, %v1490
        %v1497 = vsub.f32 %v970, %v1490
        %v1498 = vsub.f32 %v973, %v1490
        %v1499 = vsub.f32 %v975, %v1490
        %v1500 = vsub.f32 %v978, %v1490
        %v1501 = vsub.f32 %v980, %v1490
        %v1502 = vsub.f32 %v983, %v1490
        %v1503 = vsub.f32 %v985, %v1490
        %v1504 = vsub.f32 %v988, %v1490
        %v1505 = vsub.f32 %v990, %v1490
        %v1506 = vsub.f32 %v993, %v1490
        %v1507 = vsub.f32 %v995, %v1490
        %v1508 = vsub.f32 %v998, %v1490
        %v1509 = vsub.f32 %v1000, %v1490
        %v1510 = vsub.f32 %v1003, %v1490
        %v1511 = vsub.f32 %v1005, %v1490
        %v1512 = vsub.f32 %v1008, %v1490
        %v1513 = vsub.f32 %v1010, %v1490
        %v1514 = vsub.f32 %v1013, %v1490
        %v1515 = vsub.f32 %v1015, %v1490
        %v1516 = vsub.f32 %v1018, %v1490
        %v1517 = vsub.f32 %v1020, %v1490
        %v1518 = vsub.f32 %v1023, %v1490
        %v1519 = vsub.f32 %v1025, %v1490
        %v1520 = vsub.f32 %v1028, %v1490
        %v1521 = vsub.f32 %v1030, %v1490
        %v1522 = vsub.f32 %v1033, %v1490
        %v1523 = vsub.f32 %v1035, %v1490
        %v1524 = vsub.f32 %v1038, %v1490
        %v1525 = vsub.f32 %v1040, %v1490
        %v1526 = vsub.f32 %v1043, %v1490
        %v1527 = vsub.f32 %v1045, %v1490
        %v1528 = vsub.f32 %v1048, %v1490
        %v1529 = vsub.f32 %v1050, %v1490
        %v1530 = vsub.f32 %v1053, %v1490
        %v1531 = vsub.f32 %v1055, %v1490
        %v1532 = vsub.f32 %v1058, %v1490
        %v1533 = vsub.f32 %v1060, %v1490
        %v1534 = vsub.f32 %v1063, %v1490
        %v1535 = vsub.f32 %v1065, %v1490
        %v1536 = vsub.f32 %v1068, %v1490
        %v1537 = vsub.f32 %v1070, %v1490
        %v1538 = vsub.f32 %v1073, %v1490
        %v1539 = vsub.f32 %v1075, %v1490
        %v1540 = vsub.f32 %v1078, %v1490
        %v1541 = vsub.f32 %v1080, %v1490
        %v1542 = vsub.f32 %v1083, %v1490
        %v1543 = vsub.f32 %v1085, %v1490
        %v1544 = vsub.f32 %v1088, %v1490
        %v1545 = vsub.f32 %v1090, %v1490
        %v1546 = vsub.f32 %v1093, %v1490
        %v1547 = vsub.f32 %v1095, %v1490
        %v1548 = vsub.f32 %v1098, %v1490
        %v1549 = vsub.f32 %v1100, %v1490
        %v1550 = vsub.f32 %v1103, %v1490
        %v1551 = vsub.f32 %v1105, %v1490
        %v1552 = vsub.f32 %v1108, %v1490
        %v1553 = vsub.f32 %v1110, %v1490
        %v1554 = vsub.f32 %v1113, %v1490
        %v1555 = vsub.f32 %v1115, %v1490
        %v1557 = vperm.slane %v1488, 0
        %v1559 = vmul.f32 %v1492, %v1557
        %v1560 = vmul.f32 %v1493, %v1557
        %v1561 = vmul.f32 %v1494, %v1557
        %v1562 = vmul.f32 %v1495, %v1557
        %v1563 = vmul.f32 %v1496, %v1557
        %v1564 = vmul.f32 %v1497, %v1557
        %v1565 = vmul.f32 %v1498, %v1557
        %v1566 = vmul.f32 %v1499, %v1557
        %v1567 = vmul.f32 %v1500, %v1557
        %v1568 = vmul.f32 %v1501, %v1557
        %v1569 = vmul.f32 %v1502, %v1557
        %v1570 = vmul.f32 %v1503, %v1557
        %v1571 = vmul.f32 %v1504, %v1557
        %v1572 = vmul.f32 %v1505, %v1557
        %v1573 = vmul.f32 %v1506, %v1557
        %v1574 = vmul.f32 %v1507, %v1557
        %v1575 = vmul.f32 %v1508, %v1557
        %v1576 = vmul.f32 %v1509, %v1557
        %v1577 = vmul.f32 %v1510, %v1557
        %v1578 = vmul.f32 %v1511, %v1557
        %v1579 = vmul.f32 %v1512, %v1557
        %v1580 = vmul.f32 %v1513, %v1557
        %v1581 = vmul.f32 %v1514, %v1557
        %v1582 = vmul.f32 %v1515, %v1557
        %v1583 = vmul.f32 %v1516, %v1557
        %v1584 = vmul.f32 %v1517, %v1557
        %v1585 = vmul.f32 %v1518, %v1557
        %v1586 = vmul.f32 %v1519, %v1557
        %v1587 = vmul.f32 %v1520, %v1557
        %v1588 = vmul.f32 %v1521, %v1557
        %v1589 = vmul.f32 %v1522, %v1557
        %v1590 = vmul.f32 %v1523, %v1557
        %v1591 = vmul.f32 %v1524, %v1557
        %v1592 = vmul.f32 %v1525, %v1557
        %v1593 = vmul.f32 %v1526, %v1557
        %v1594 = vmul.f32 %v1527, %v1557
        %v1595 = vmul.f32 %v1528, %v1557
        %v1596 = vmul.f32 %v1529, %v1557
        %v1597 = vmul.f32 %v1530, %v1557
        %v1598 = vmul.f32 %v1531, %v1557
        %v1599 = vmul.f32 %v1532, %v1557
        %v1600 = vmul.f32 %v1533, %v1557
        %v1601 = vmul.f32 %v1534, %v1557
        %v1602 = vmul.f32 %v1535, %v1557
        %v1603 = vmul.f32 %v1536, %v1557
        %v1604 = vmul.f32 %v1537, %v1557
        %v1605 = vmul.f32 %v1538, %v1557
        %v1606 = vmul.f32 %v1539, %v1557
        %v1607 = vmul.f32 %v1540, %v1557
        %v1608 = vmul.f32 %v1541, %v1557
        %v1609 = vmul.f32 %v1542, %v1557
        %v1610 = vmul.f32 %v1543, %v1557
        %v1611 = vmul.f32 %v1544, %v1557
        %v1612 = vmul.f32 %v1545, %v1557
        %v1613 = vmul.f32 %v1546, %v1557
        %v1614 = vmul.f32 %v1547, %v1557
        %v1615 = vmul.f32 %v1548, %v1557
        %v1616 = vmul.f32 %v1549, %v1557
        %v1617 = vmul.f32 %v1550, %v1557
        %v1618 = vmul.f32 %v1551, %v1557
        %v1619 = vmul.f32 %v1552, %v1557
        %v1620 = vmul.f32 %v1553, %v1557
        %v1621 = vmul.f32 %v1554, %v1557
        %v1622 = vmul.f32 %v1555, %v1557
        %v1623 = vld [vmem:[%s2] sm:$0x1]
        %v1625 = vperm.slane %v1623, 0
        %v1627 = vmul.f32 %v1559, %v1625
        %v1628 = vmul.f32 %v1560, %v1625
        %v1629 = vmul.f32 %v1561, %v1625
        %v1630 = vmul.f32 %v1562, %v1625
        %v1631 = vmul.f32 %v1563, %v1625
        %v1632 = vmul.f32 %v1564, %v1625
        %v1633 = vmul.f32 %v1565, %v1625
        %v1634 = vmul.f32 %v1566, %v1625
        %v1635 = vmul.f32 %v1567, %v1625
        %v1636 = vmul.f32 %v1568, %v1625
        %v1637 = vmul.f32 %v1569, %v1625
        %v1638 = vmul.f32 %v1570, %v1625
        %v1639 = vmul.f32 %v1571, %v1625
        %v1640 = vmul.f32 %v1572, %v1625
        %v1641 = vmul.f32 %v1573, %v1625
        %v1642 = vmul.f32 %v1574, %v1625
        %v1643 = vmul.f32 %v1575, %v1625
        %v1644 = vmul.f32 %v1576, %v1625
        %v1645 = vmul.f32 %v1577, %v1625
        %v1646 = vmul.f32 %v1578, %v1625
        %v1647 = vmul.f32 %v1579, %v1625
        %v1648 = vmul.f32 %v1580, %v1625
        %v1649 = vmul.f32 %v1581, %v1625
        %v1650 = vmul.f32 %v1582, %v1625
        %v1651 = vmul.f32 %v1583, %v1625
        %v1652 = vmul.f32 %v1584, %v1625
        %v1653 = vmul.f32 %v1585, %v1625
        %v1654 = vmul.f32 %v1586, %v1625
        %v1655 = vmul.f32 %v1587, %v1625
        %v1656 = vmul.f32 %v1588, %v1625
        %v1657 = vmul.f32 %v1589, %v1625
        %v1658 = vmul.f32 %v1590, %v1625
        %v1659 = vmul.f32 %v1591, %v1625
        %v1660 = vmul.f32 %v1592, %v1625
        %v1661 = vmul.f32 %v1593, %v1625
        %v1662 = vmul.f32 %v1594, %v1625
        %v1663 = vmul.f32 %v1595, %v1625
        %v1664 = vmul.f32 %v1596, %v1625
        %v1665 = vmul.f32 %v1597, %v1625
        %v1666 = vmul.f32 %v1598, %v1625
        %v1667 = vmul.f32 %v1599, %v1625
        %v1668 = vmul.f32 %v1600, %v1625
        %v1669 = vmul.f32 %v1601, %v1625
        %v1670 = vmul.f32 %v1602, %v1625
        %v1671 = vmul.f32 %v1603, %v1625
        %v1672 = vmul.f32 %v1604, %v1625
        %v1673 = vmul.f32 %v1605, %v1625
        %v1674 = vmul.f32 %v1606, %v1625
        %v1675 = vmul.f32 %v1607, %v1625
        %v1676 = vmul.f32 %v1608, %v1625
        %v1677 = vmul.f32 %v1609, %v1625
        %v1678 = vmul.f32 %v1610, %v1625
        %v1679 = vmul.f32 %v1611, %v1625
        %v1680 = vmul.f32 %v1612, %v1625
        %v1681 = vmul.f32 %v1613, %v1625
        %v1682 = vmul.f32 %v1614, %v1625
        %v1683 = vmul.f32 %v1615, %v1625
        %v1684 = vmul.f32 %v1616, %v1625
        %v1685 = vmul.f32 %v1617, %v1625
        %v1686 = vmul.f32 %v1618, %v1625
        %v1687 = vmul.f32 %v1619, %v1625
        %v1688 = vmul.f32 %v1620, %v1625
        %v1689 = vmul.f32 %v1621, %v1625
        %v1690 = vmul.f32 %v1622, %v1625
        %v1691 = vld [vmem:[%s3] sm:$0x1]
        %v1693 = vperm.slane %v1691, 0
        %v1695 = vadd.f32 %v1627, %v1693
        %v1696 = vadd.f32 %v1628, %v1693
        %v1697 = vadd.f32 %v1629, %v1693
        %v1698 = vadd.f32 %v1630, %v1693
        %v1699 = vadd.f32 %v1631, %v1693
        %v1700 = vadd.f32 %v1632, %v1693
        %v1701 = vadd.f32 %v1633, %v1693
        %v1702 = vadd.f32 %v1634, %v1693
        %v1703 = vadd.f32 %v1635, %v1693
        %v1704 = vadd.f32 %v1636, %v1693
        %v1705 = vadd.f32 %v1637, %v1693
        %v1706 = vadd.f32 %v1638, %v1693
        %v1707 = vadd.f32 %v1639, %v1693
        %v1708 = vadd.f32 %v1640, %v1693
        %v1709 = vadd.f32 %v1641, %v1693
        %v1710 = vadd.f32 %v1642, %v1693
        %v1711 = vadd.f32 %v1643, %v1693
        %v1712 = vadd.f32 %v1644, %v1693
        %v1713 = vadd.f32 %v1645, %v1693
        %v1714 = vadd.f32 %v1646, %v1693
        %v1715 = vadd.f32 %v1647, %v1693
        %v1716 = vadd.f32 %v1648, %v1693
        %v1717 = vadd.f32 %v1649, %v1693
        %v1718 = vadd.f32 %v1650, %v1693
        %v1719 = vadd.f32 %v1651, %v1693
        %v1720 = vadd.f32 %v1652, %v1693
        %v1721 = vadd.f32 %v1653, %v1693
        %v1722 = vadd.f32 %v1654, %v1693
        %v1723 = vadd.f32 %v1655, %v1693
        %v1724 = vadd.f32 %v1656, %v1693
        %v1725 = vadd.f32 %v1657, %v1693
        %v1726 = vadd.f32 %v1658, %v1693
        %v1727 = vadd.f32 %v1659, %v1693
        %v1728 = vadd.f32 %v1660, %v1693
        %v1729 = vadd.f32 %v1661, %v1693
        %v1730 = vadd.f32 %v1662, %v1693
        %v1731 = vadd.f32 %v1663, %v1693
        %v1732 = vadd.f32 %v1664, %v1693
        %v1733 = vadd.f32 %v1665, %v1693
        %v1734 = vadd.f32 %v1666, %v1693
        %v1735 = vadd.f32 %v1667, %v1693
        %v1736 = vadd.f32 %v1668, %v1693
        %v1737 = vadd.f32 %v1669, %v1693
        %v1738 = vadd.f32 %v1670, %v1693
        %v1739 = vadd.f32 %v1671, %v1693
        %v1740 = vadd.f32 %v1672, %v1693
        %v1741 = vadd.f32 %v1673, %v1693
        %v1742 = vadd.f32 %v1674, %v1693
        %v1743 = vadd.f32 %v1675, %v1693
        %v1744 = vadd.f32 %v1676, %v1693
        %v1745 = vadd.f32 %v1677, %v1693
        %v1746 = vadd.f32 %v1678, %v1693
        %v1747 = vadd.f32 %v1679, %v1693
        %v1748 = vadd.f32 %v1680, %v1693
        %v1749 = vadd.f32 %v1681, %v1693
        %v1750 = vadd.f32 %v1682, %v1693
        %v1751 = vadd.f32 %v1683, %v1693
        %v1752 = vadd.f32 %v1684, %v1693
        %v1753 = vadd.f32 %v1685, %v1693
        %v1754 = vadd.f32 %v1686, %v1693
        %v1755 = vadd.f32 %v1687, %v1693
        %v1756 = vadd.f32 %v1688, %v1693
        %v1757 = vadd.f32 %v1689, %v1693
        %v1758 = vadd.f32 %v1690, %v1693
        %v1759 = vmax.f32 %v1695, 0.0
        %v1760 = vmax.f32 %v1696, 0.0
        %v1761 = vmax.f32 %v1697, 0.0
        %v1762 = vmax.f32 %v1698, 0.0
        %v1763 = vmax.f32 %v1699, 0.0
        %v1764 = vmax.f32 %v1700, 0.0
        %v1765 = vmax.f32 %v1701, 0.0
        %v1766 = vmax.f32 %v1702, 0.0
        %v1767 = vmax.f32 %v1703, 0.0
        %v1768 = vmax.f32 %v1704, 0.0
        %v1769 = vmax.f32 %v1705, 0.0
        %v1770 = vmax.f32 %v1706, 0.0
        %v1771 = vmax.f32 %v1707, 0.0
        %v1772 = vmax.f32 %v1708, 0.0
        %v1773 = vmax.f32 %v1709, 0.0
        %v1774 = vmax.f32 %v1710, 0.0
        %v1775 = vmax.f32 %v1711, 0.0
        %v1776 = vmax.f32 %v1712, 0.0
        %v1777 = vmax.f32 %v1713, 0.0
        %v1778 = vmax.f32 %v1714, 0.0
        %v1779 = vmax.f32 %v1715, 0.0
        %v1780 = vmax.f32 %v1716, 0.0
        %v1781 = vmax.f32 %v1717, 0.0
        %v1782 = vmax.f32 %v1718, 0.0
        %v1783 = vmax.f32 %v1719, 0.0
        %v1784 = vmax.f32 %v1720, 0.0
        %v1785 = vmax.f32 %v1721, 0.0
        %v1786 = vmax.f32 %v1722, 0.0
        %v1787 = vmax.f32 %v1723, 0.0
        %v1788 = vmax.f32 %v1724, 0.0
        %v1789 = vmax.f32 %v1725, 0.0
        %v1790 = vmax.f32 %v1726, 0.0
        %v1791 = vmax.f32 %v1727, 0.0
        %v1792 = vmax.f32 %v1728, 0.0
        %v1793 = vmax.f32 %v1729, 0.0
        %v1794 = vmax.f32 %v1730, 0.0
        %v1795 = vmax.f32 %v1731, 0.0
        %v1796 = vmax.f32 %v1732, 0.0
        %v1797 = vmax.f32 %v1733, 0.0
        %v1798 = vmax.f32 %v1734, 0.0
        %v1799 = vmax.f32 %v1735, 0.0
        %v1800 = vmax.f32 %v1736, 0.0
        %v1801 = vmax.f32 %v1737, 0.0
        %v1802 = vmax.f32 %v1738, 0.0
        %v1803 = vmax.f32 %v1739, 0.0
        %v1804 = vmax.f32 %v1740, 0.0
        %v1805 = vmax.f32 %v1741, 0.0
        %v1806 = vmax.f32 %v1742, 0.0
        %v1807 = vmax.f32 %v1743, 0.0
        %v1808 = vmax.f32 %v1744, 0.0
        %v1809 = vmax.f32 %v1745, 0.0
        %v1810 = vmax.f32 %v1746, 0.0
        %v1811 = vmax.f32 %v1747, 0.0
        %v1812 = vmax.f32 %v1748, 0.0
        %v1813 = vmax.f32 %v1749, 0.0
        %v1814 = vmax.f32 %v1750, 0.0
        %v1815 = vmax.f32 %v1751, 0.0
        %v1816 = vmax.f32 %v1752, 0.0
        %v1817 = vmax.f32 %v1753, 0.0
        %v1818 = vmax.f32 %v1754, 0.0
        %v1819 = vmax.f32 %v1755, 0.0
        %v1820 = vmax.f32 %v1756, 0.0
        %v1821 = vmax.f32 %v1757, 0.0
        %v1822 = vmax.f32 %v1758, 0.0
        %v1823 = vpack.c.bf16 %v1759, %v1759
        %v1824 = vpack.c.bf16 %v1760, %v1760
        %v1825 = vpack.c.bf16 %v1761, %v1761
        %v1826 = vpack.c.bf16 %v1762, %v1762
        %v1827 = vpack.c.bf16 %v1763, %v1763
        %v1828 = vpack.c.bf16 %v1764, %v1764
        %v1829 = vpack.c.bf16 %v1765, %v1765
        %v1830 = vpack.c.bf16 %v1766, %v1766
        %v1831 = vpack.c.bf16 %v1767, %v1767
        %v1832 = vpack.c.bf16 %v1768, %v1768
        %v1833 = vpack.c.bf16 %v1769, %v1769
        %v1834 = vpack.c.bf16 %v1770, %v1770
        %v1835 = vpack.c.bf16 %v1771, %v1771
        %v1836 = vpack.c.bf16 %v1772, %v1772
        %v1837 = vpack.c.bf16 %v1773, %v1773
        %v1838 = vpack.c.bf16 %v1774, %v1774
        %v1839 = vpack.c.bf16 %v1775, %v1775
        %v1840 = vpack.c.bf16 %v1776, %v1776
        %v1841 = vpack.c.bf16 %v1777, %v1777
        %v1842 = vpack.c.bf16 %v1778, %v1778
        %v1843 = vpack.c.bf16 %v1779, %v1779
        %v1844 = vpack.c.bf16 %v1780, %v1780
        %v1845 = vpack.c.bf16 %v1781, %v1781
        %v1846 = vpack.c.bf16 %v1782, %v1782
        %v1847 = vpack.c.bf16 %v1783, %v1783
        %v1848 = vpack.c.bf16 %v1784, %v1784
        %v1849 = vpack.c.bf16 %v1785, %v1785
        %v1850 = vpack.c.bf16 %v1786, %v1786
        %v1851 = vpack.c.bf16 %v1787, %v1787
        %v1852 = vpack.c.bf16 %v1788, %v1788
        %v1853 = vpack.c.bf16 %v1789, %v1789
        %v1854 = vpack.c.bf16 %v1790, %v1790
        %v1855 = vpack.c.bf16 %v1791, %v1791
        %v1856 = vpack.c.bf16 %v1792, %v1792
        %v1857 = vpack.c.bf16 %v1793, %v1793
        %v1858 = vpack.c.bf16 %v1794, %v1794
        %v1859 = vpack.c.bf16 %v1795, %v1795
        %v1860 = vpack.c.bf16 %v1796, %v1796
        %v1861 = vpack.c.bf16 %v1797, %v1797
        %v1862 = vpack.c.bf16 %v1798, %v1798
        %v1863 = vpack.c.bf16 %v1799, %v1799
        %v1864 = vpack.c.bf16 %v1800, %v1800
        %v1865 = vpack.c.bf16 %v1801, %v1801
        %v1866 = vpack.c.bf16 %v1802, %v1802
        %v1867 = vpack.c.bf16 %v1803, %v1803
        %v1868 = vpack.c.bf16 %v1804, %v1804
        %v1869 = vpack.c.bf16 %v1805, %v1805
        %v1870 = vpack.c.bf16 %v1806, %v1806
        %v1871 = vpack.c.bf16 %v1807, %v1807
        %v1872 = vpack.c.bf16 %v1808, %v1808
        %v1873 = vpack.c.bf16 %v1809, %v1809
        %v1874 = vpack.c.bf16 %v1810, %v1810
        %v1875 = vpack.c.bf16 %v1811, %v1811
        %v1876 = vpack.c.bf16 %v1812, %v1812
        %v1877 = vpack.c.bf16 %v1813, %v1813
        %v1878 = vpack.c.bf16 %v1814, %v1814
        %v1879 = vpack.c.bf16 %v1815, %v1815
        %v1880 = vpack.c.bf16 %v1816, %v1816
        %v1881 = vpack.c.bf16 %v1817, %v1817
        %v1882 = vpack.c.bf16 %v1818, %v1818
        %v1883 = vpack.c.bf16 %v1819, %v1819
        %v1884 = vpack.c.bf16 %v1820, %v1820
        %v1885 = vpack.c.bf16 %v1821, %v1821
        %v1886 = vpack.c.bf16 %v1822, %v1822
        %vm1887 = vcmask 257024
        %1888 = vst.msk [vmem:[%s265] sm:$0xf] %vm1887, %v1823
        %1889 = vst.msk [vmem:[%s265 + $0x4] sm:$0xf] %vm1887, %v1824
        %1890 = vst.msk [vmem:[%s265 + $0x8] sm:$0xf] %vm1887, %v1825
        %1891 = vst.msk [vmem:[%s265 + $0xc] sm:$0xf] %vm1887, %v1826
        %1892 = vst.msk [vmem:[%s265 + $0x10] sm:$0xf] %vm1887, %v1827
        %1893 = vst.msk [vmem:[%s265 + $0x14] sm:$0xf] %vm1887, %v1828
        %1894 = vst.msk [vmem:[%s265 + $0x18] sm:$0xf] %vm1887, %v1829
        %1895 = vst.msk [vmem:[%s265 + $0x1c] sm:$0xf] %vm1887, %v1830
        %1896 = vst.msk [vmem:[%s265 + $0x20] sm:$0xf] %vm1887, %v1831
        %1897 = vst.msk [vmem:[%s265 + $0x24] sm:$0xf] %vm1887, %v1832
        %1898 = vst.msk [vmem:[%s265 + $0x28] sm:$0xf] %vm1887, %v1833
        %1899 = vst.msk [vmem:[%s265 + $0x2c] sm:$0xf] %vm1887, %v1834
        %1900 = vst.msk [vmem:[%s265 + $0x30] sm:$0xf] %vm1887, %v1835
        %1901 = vst.msk [vmem:[%s265 + $0x34] sm:$0xf] %vm1887, %v1836
        %1902 = vst.msk [vmem:[%s265 + $0x38] sm:$0xf] %vm1887, %v1837
        %1903 = vst.msk [vmem:[%s265 + $0x3c] sm:$0xf] %vm1887, %v1838
        %1904 = vst.msk [vmem:[%s265 + $0x40] sm:$0xf] %vm1887, %v1839
        %1905 = vst.msk [vmem:[%s265 + $0x44] sm:$0xf] %vm1887, %v1840
        %1906 = vst.msk [vmem:[%s265 + $0x48] sm:$0xf] %vm1887, %v1841
        %1907 = vst.msk [vmem:[%s265 + $0x4c] sm:$0xf] %vm1887, %v1842
        %1908 = vst.msk [vmem:[%s265 + $0x50] sm:$0xf] %vm1887, %v1843
        %1909 = vst.msk [vmem:[%s265 + $0x54] sm:$0xf] %vm1887, %v1844
        %1910 = vst.msk [vmem:[%s265 + $0x58] sm:$0xf] %vm1887, %v1845
        %1911 = vst.msk [vmem:[%s265 + $0x5c] sm:$0xf] %vm1887, %v1846
        %1912 = vst.msk [vmem:[%s265 + $0x60] sm:$0xf] %vm1887, %v1847
        %1913 = vst.msk [vmem:[%s265 + $0x64] sm:$0xf] %vm1887, %v1848
        %1914 = vst.msk [vmem:[%s265 + $0x68] sm:$0xf] %vm1887, %v1849
        %1915 = vst.msk [vmem:[%s265 + $0x6c] sm:$0xf] %vm1887, %v1850
        %1916 = vst.msk [vmem:[%s265 + $0x70] sm:$0xf] %vm1887, %v1851
        %1917 = vst.msk [vmem:[%s265 + $0x74] sm:$0xf] %vm1887, %v1852
        %1918 = vst.msk [vmem:[%s265 + $0x78] sm:$0xf] %vm1887, %v1853
        %1919 = vst.msk [vmem:[%s265 + $0x7c] sm:$0xf] %vm1887, %v1854
        %1920 = vst.msk [vmem:[%s265 + $0x80] sm:$0xf] %vm1887, %v1855
        %1921 = vst.msk [vmem:[%s265 + $0x84] sm:$0xf] %vm1887, %v1856
        %1922 = vst.msk [vmem:[%s265 + $0x88] sm:$0xf] %vm1887, %v1857
        %1923 = vst.msk [vmem:[%s265 + $0x8c] sm:$0xf] %vm1887, %v1858
        %1924 = vst.msk [vmem:[%s265 + $0x90] sm:$0xf] %vm1887, %v1859
        %1925 = vst.msk [vmem:[%s265 + $0x94] sm:$0xf] %vm1887, %v1860
        %1926 = vst.msk [vmem:[%s265 + $0x98] sm:$0xf] %vm1887, %v1861
        %1927 = vst.msk [vmem:[%s265 + $0x9c] sm:$0xf] %vm1887, %v1862
        %1928 = vst.msk [vmem:[%s265 + $0xa0] sm:$0xf] %vm1887, %v1863
        %1929 = vst.msk [vmem:[%s265 + $0xa4] sm:$0xf] %vm1887, %v1864
        %1930 = vst.msk [vmem:[%s265 + $0xa8] sm:$0xf] %vm1887, %v1865
        %1931 = vst.msk [vmem:[%s265 + $0xac] sm:$0xf] %vm1887, %v1866
        %1932 = vst.msk [vmem:[%s265 + $0xb0] sm:$0xf] %vm1887, %v1867
        %1933 = vst.msk [vmem:[%s265 + $0xb4] sm:$0xf] %vm1887, %v1868
        %1934 = vst.msk [vmem:[%s265 + $0xb8] sm:$0xf] %vm1887, %v1869
        %1935 = vst.msk [vmem:[%s265 + $0xbc] sm:$0xf] %vm1887, %v1870
        %1936 = vst.msk [vmem:[%s265 + $0xc0] sm:$0xf] %vm1887, %v1871
        %1937 = vst.msk [vmem:[%s265 + $0xc4] sm:$0xf] %vm1887, %v1872
        %1938 = vst.msk [vmem:[%s265 + $0xc8] sm:$0xf] %vm1887, %v1873
        %1939 = vst.msk [vmem:[%s265 + $0xcc] sm:$0xf] %vm1887, %v1874
        %1940 = vst.msk [vmem:[%s265 + $0xd0] sm:$0xf] %vm1887, %v1875
        %1941 = vst.msk [vmem:[%s265 + $0xd4] sm:$0xf] %vm1887, %v1876
        %1942 = vst.msk [vmem:[%s265 + $0xd8] sm:$0xf] %vm1887, %v1877
        %1943 = vst.msk [vmem:[%s265 + $0xdc] sm:$0xf] %vm1887, %v1878
        %1944 = vst.msk [vmem:[%s265 + $0xe0] sm:$0xf] %vm1887, %v1879
        %1945 = vst.msk [vmem:[%s265 + $0xe4] sm:$0xf] %vm1887, %v1880
        %1946 = vst.msk [vmem:[%s265 + $0xe8] sm:$0xf] %vm1887, %v1881
        %1947 = vst.msk [vmem:[%s265 + $0xec] sm:$0xf] %vm1887, %v1882
        %1948 = vst.msk [vmem:[%s265 + $0xf0] sm:$0xf] %vm1887, %v1883
        %1949 = vst.msk [vmem:[%s265 + $0xf4] sm:$0xf] %vm1887, %v1884
        %1950 = vst.msk [vmem:[%s265 + $0xf8] sm:$0xf] %vm1887, %v1885
        %1951 = vst.msk [vmem:[%s265 + $0xfc] sm:$0xf] %vm1887, %v1886
      $region48: #{frame_generator_forward.8} parent=35 // pred_fallthru
        _
      %s1952 = smul.u32 64, %s22
      %p1953 = scmp.lt.s32.totalorder %s21, 3
      %s1954 = scalar_select %p1953, %s21, 3
      %p1955 = scmp.lt.s32.totalorder %s1952, 63
      %s1956 = scalar_select %p1955, %s1952, 63
      %s1957 = smul.addr %s1954, 64
      %s1958 = sadd.s32 %s1956, %s1957
      %s1959 = smul.addr %s1958, 4
      %s1960 = scalar_lea.vmem %s4, %s1959
      // Predicated region
      $region49: #{frame_generator_forward.8} parent=35 // pred_check
        %p1961 = pneg %p150
      $region50: #{frame_generator_forward.8} parent=35 // pred_check_branch
        %1963 = sbr.rel (%p1961) target = $region52
      $region51: #{frame_generator_forward.8} parent=35 // pred_region
        %s1964 = smul.u32 64, %s22
      $region52: #{frame_generator_forward.8} parent=35 // pred_fallthru
        _
    $region36: #{frame_generator_forward.8} parent=5 // pred_fallthru
      _
    %p1965 = scmp.le.s32.totalorder 2, %s10
    // Predicated region
    $region53: #{frame_generator_forward.8} parent=5 // pred_check
      %p1966 = pneg %p1965
    $region54: #{frame_generator_forward.8} parent=5 // pred_check_branch
      %1968 = sbr.rel (%p1966) target = $region56
    $region55: #{frame_generator_forward.8} parent=5 // pred_region
      %s1969 = ssub.s32 %s10, 2
      // Predicated region
      $region57: #{frame_generator_forward.8} parent=55 // pred_check
        %p1970 = pneg %p156
      $region58: #{frame_generator_forward.8} parent=55 // pred_check_branch
        %1972 = sbr.rel (%p1970) target = $region60
      $region59: #{frame_generator_forward.8} parent=55 // pred_region
        %s1973 = smul.u32 64, %s25
        %p1974 = scmp.lt.s32.totalorder %s24, 3
        %s1975 = scalar_select %p1974, %s24, 3
        %p1976 = scmp.lt.s32.totalorder %s1973, 63
        %s1977 = scalar_select %p1976, %s1973, 63
        %s1978 = smul.addr %s1975, 64
        %s1979 = sadd.s32 %s1977, %s1978
        %s1980 = smul.addr %s1979, 4
        %s1981 = scalar_lea.vmem %s4, %s1980
      $region60: #{frame_generator_forward.8} parent=55 // pred_fallthru
        _
    $region56: #{frame_generator_forward.8} parent=5 // pred_fallthru
      _
  $region6: #{frame_generator_forward.8} parent=0 // loop_footer
    %s14 = sadd.s32 1, %s10
  $region7: #{frame_generator_forward.8} parent=0 // loop_footer_branch
    %9 = sbr.rel target = $region3
  $region8: #{frame_generator_forward.8} parent=0 // loop_exit
    _

// kernel: frame_generator_forward.9
$region0: #{frame_generator_forward.9}
  #allocation0 [shape = 'u32[]', space=smem, size = 0x4, offset = 0x4, fixed_abs, tag = 'smem constant byte address 0x4 - core index']
  #allocation1 [shape = 'u32[72,128]{1,0:T(1,128)}', space=vmem, size = 0x9000, scoped, tag = 'internal scratch']
  %s0 = inlined_call_operand.vmem [shape: bf16[4,2048,128], index: 0, kind: input, shape index: {}]
  %s1 = inlined_call_operand.vmem [shape: bf16[4,128,3], index: 1, kind: input, shape index: {}]
  %s2 = inlined_call_operand.vmem [shape: f32[4,2048,3], index: 2, kind: output, shape index: {}]
  %s3 = sld [smem:[#allocation0]]
  $region41: #{frame_generator_forward.9} parent=0
    _
  %s5 = ssub.s32 1, %s3
  %s6 = scalar_select 0, %s5, %s3
  loop: start=0, step=1, limit=18
  $region2: #{frame_generator_forward.9} parent=0 // loop_pre_header
    _
  $region3: #{frame_generator_forward.9} parent=0 // loop_header
    %s8 = sphi 0, %s12
    %p9 = scmp.ge.s32.totalorder %s8, 18
    %s15 = sphi 0, %s27
    %s16 = sphi 0, %s23
    %s17 = sphi 0, %s15
    %s18 = sphi 0, %s16
    %s19 = sphi 0, %s17
    %s20 = sphi 0, %s18
    %s32 = sphi 0, %s34
    %s35 = sphi 0, %s32
    %s36 = sphi 0, %s35
    %s52 = sphi 0, %s36
    %s58 = sphi 0, %s60
    %s61 = sphi 0, %s58
    %s62 = sphi 0, %s61
    %s78 = sphi 0, %s62
    %s86 = sphi 0, %s88
    %s89 = sphi 0, %s86
    %s90 = sphi 0, %s89
    %s106 = sphi 0, %s90
  $region4: #{frame_generator_forward.9} parent=0 // loop_header_branch
    %11 = sbr.rel (%p9) target = $region8
  $region5: #{frame_generator_forward.9} parent=0 // loop_body
    %s13 = ssub.s32 %s8, 1
    %s14 = ssub.s32 %s8, 2
    %s21 = sadd.s32 1, %s16
    %p22 = scmp.ge.s32.totalorder %s21, 4
    %s23 = scalar_select %p22, 0, %s21
    %s24 = sadd.s32 1, %s15
    %s25 = scalar_select %p22, %s24, %s15
    %p26 = scmp.ge.s32.totalorder %s25, 4
    %s27 = scalar_select %p26, 0, %s25
    %s28 = ssub.s32 %s15, %s27
    %s29 = ssub.s32 %s16, %s23
    %s30 = sor.u32 %s28, %s29
    %p31 = scmp.eq.s32.totalorder %s30, 0
    %s33 = sadd.s32 %s32, 1
    %s34 = scalar_select %p31, %s32, %s33
    %p37 = pneg %p31
    %p38 = scmp.eq.s32.totalorder %s8, 15
    %p39 = por %p37, %p38
    %p40 = scmp.ne.s32.totalorder %s32, %s35
    %p41 = scmp.eq.s32.totalorder %s8, 0
    %p42 = por %p40, %p41
    %p43 = scmp.ne.s32.totalorder %s32, %s35
    %p44 = scmp.eq.s32.totalorder %s13, 15
    %p45 = por %p43, %p44
    %p46 = scmp.ne.s32.totalorder %s35, %s36
    %p47 = scmp.eq.s32.totalorder %s13, 0
    %p48 = por %p46, %p47
    %p49 = scmp.ne.s32.totalorder %s35, %s36
    %p50 = scmp.eq.s32.totalorder %s14, 15
    %p51 = por %p49, %p50
    %p53 = scmp.ne.s32.totalorder %s36, %s52
    %p54 = scmp.eq.s32.totalorder %s14, 0
    %p55 = por %p53, %p54
    %s56 = ssub.s32 %s15, %s27
    %p57 = scmp.eq.s32.totalorder %s56, 0
    %s59 = sadd.s32 %s58, 1
    %s60 = scalar_select %p57, %s58, %s59
    %p63 = pneg %p57
    %p64 = scmp.eq.s32.totalorder %s8, 15
    %p65 = por %p63, %p64
    %p66 = scmp.ne.s32.totalorder %s58, %s61
    %p67 = scmp.eq.s32.totalorder %s8, 0
    %p68 = por %p66, %p67
    %p69 = scmp.ne.s32.totalorder %s58, %s61
    %p70 = scmp.eq.s32.totalorder %s13, 15
    %p71 = por %p69, %p70
    %p72 = scmp.ne.s32.totalorder %s61, %s62
    %p73 = scmp.eq.s32.totalorder %s13, 0
    %p74 = por %p72, %p73
    %p75 = scmp.ne.s32.totalorder %s61, %s62
    %p76 = scmp.eq.s32.totalorder %s14, 15
    %p77 = por %p75, %p76
    %p79 = scmp.ne.s32.totalorder %s62, %s78
    %p80 = scmp.eq.s32.totalorder %s14, 0
    %p81 = por %p79, %p80
    %s82 = ssub.s32 %s15, %s27
    %s83 = ssub.s32 %s16, %s23
    %s84 = sor.u32 %s82, %s83
    %p85 = scmp.eq.s32.totalorder %s84, 0
    %s87 = sadd.s32 %s86, 1
    %s88 = scalar_select %p85, %s86, %s87
    %p91 = pneg %p85
    %p92 = scmp.eq.s32.totalorder %s8, 15
    %p93 = por %p91, %p92
    %p94 = scmp.ne.s32.totalorder %s86, %s89
    %p95 = scmp.eq.s32.totalorder %s8, 0
    %p96 = por %p94, %p95
    %p97 = scmp.ne.s32.totalorder %s86, %s89
    %p98 = scmp.eq.s32.totalorder %s13, 15
    %p99 = por %p97, %p98
    %p100 = scmp.ne.s32.totalorder %s89, %s90
    %p101 = scmp.eq.s32.totalorder %s13, 0
    %p102 = por %p100, %p101
    %p103 = scmp.ne.s32.totalorder %s89, %s90
    %p104 = scmp.eq.s32.totalorder %s14, 15
    %p105 = por %p103, %p104
    %p107 = scmp.ne.s32.totalorder %s90, %s106
    %p108 = scmp.eq.s32.totalorder %s14, 0
    %p109 = por %p107, %p108
    %p110 = scmp.le.s32.totalorder 1, %s8
    %p111 = scmp.lt.s32.totalorder %s8, 17
    %p112 = pnand %p110, %p111
    %p113 = pneg %p112
    // Predicated region
    $region9: #{frame_generator_forward.9} parent=5 // pred_check
      _
    $region10: #{frame_generator_forward.9} parent=5 // pred_check_branch
      %115 = sbr.rel (%p112) target = $region12
    $region11: #{frame_generator_forward.9} parent=5 // pred_region
      %s116 = ssub.s32 %s8, 1
    $region12: #{frame_generator_forward.9} parent=5 // pred_fallthru
      _
    %p117 = scmp.lt.s32.totalorder %s8, 16
    // Predicated region
    $region13: #{frame_generator_forward.9} parent=5 // pred_check
      %p118 = pneg %p117
    $region14: #{frame_generator_forward.9} parent=5 // pred_check_branch
      %120 = sbr.rel (%p118) target = $region16
    $region15: #{frame_generator_forward.9} parent=5 // pred_region
      // Predicated region
      $region17: #{frame_generator_forward.9} parent=15 // pred_check
        %p121 = pneg %p42
      $region18: #{frame_generator_forward.9} parent=15 // pred_check_branch
        %123 = sbr.rel (%p121) target = $region20
      $region19: #{frame_generator_forward.9} parent=15 // pred_region
        %s124 = smul.u32 64, %s16
        %p125 = scmp.lt.s32.totalorder %s15, 3
        %s126 = scalar_select %p125, %s15, 3
        %p127 = scmp.lt.s32.totalorder %s124, 255
        %s128 = scalar_select %p127, %s124, 255
        %s129 = smul.addr %s126, 256
        %s130 = sadd.s32 %s128, %s129
        %s131 = smul.addr %s130, 4
        %s132 = scalar_lea.vmem %s0, %s131
        %s133 = smul.u32 64, %s16
      $region20: #{frame_generator_forward.9} parent=15 // pred_fallthru
        _
      // Predicated region
      $region21: #{frame_generator_forward.9} parent=15 // pred_check
        %p134 = pneg %p68
      $region22: #{frame_generator_forward.9} parent=15 // pred_check_branch
        %136 = sbr.rel (%p134) target = $region24
      $region23: #{frame_generator_forward.9} parent=15 // pred_region
        %p137 = scmp.lt.s32.totalorder %s15, 3
        %s138 = scalar_select %p137, %s15, 3
        %s139 = smul.addr %s138, 16
        %s140 = smul.addr %s139, 4
        %s141 = scalar_lea.vmem %s1, %s140
      $region24: #{frame_generator_forward.9} parent=15 // pred_fallthru
        _
    $region16: #{frame_generator_forward.9} parent=5 // pred_fallthru
      _
    %p142 = scmp.le.s32.totalorder 1, %s8
    %p143 = scmp.lt.s32.totalorder %s8, 17
    %p144 = pnand %p142, %p143
    %p145 = pneg %p144
    // Predicated region
    $region25: #{frame_generator_forward.9} parent=5 // pred_check
      _
    $region26: #{frame_generator_forward.9} parent=5 // pred_check_branch
      %147 = sbr.rel (%p144) target = $region28
    $region27: #{frame_generator_forward.9} parent=5 // pred_region
      %s148 = ssub.s32 %s8, 1
      %s149 = smul.u32 64, %s18
      %p150 = scmp.lt.s32.totalorder %s17, 3
      %s151 = scalar_select %p150, %s17, 3
      %p152 = scmp.lt.s32.totalorder %s149, 255
      %s153 = scalar_select %p152, %s149, 255
      %s154 = smul.addr %s151, 256
      %s155 = sadd.s32 %s153, %s154
      %s156 = smul.addr %s155, 4
      %s157 = scalar_lea.vmem %s0, %s156
      %p158 = pneg %p48
      %p159 = pneg %p45
      %p160 = scmp.lt.s32.totalorder %s17, 3
      %s161 = scalar_select %p160, %s17, 3
      %s162 = smul.addr %s161, 16
      %s163 = smul.addr %s162, 4
      %s164 = scalar_lea.vmem %s1, %s163
      %p165 = pneg %p74
      %p166 = pneg %p71
      %p167 = pneg %p102
      %p168 = pneg %p99
      %s169 = smul.u32 64, %s18
      %p170 = scmp.lt.s32.totalorder %s17, 3
      %s171 = scalar_select %p170, %s17, 3
      %p172 = scmp.lt.s32.totalorder %s169, 255
      %s173 = scalar_select %p172, %s169, 255
      %s174 = smul.addr %s171, 256
      %s175 = sadd.s32 %s173, %s174
      %s176 = smul.addr %s175, 8
      %s177 = scalar_lea.vmem %s2, %s176
      %s178 = smul.u32 64, %s18
      %p179 = scmp.lt.s32.totalorder %s17, 3
      %s180 = scalar_select %p179, %s17, 3
      %p181 = scmp.lt.s32.totalorder %s178, 255
      %s182 = scalar_select %p181, %s178, 255
      %s183 = smul.addr %s180, 256
      %s184 = sadd.s32 %s182, %s183
      %s185 = smul.addr %s184, 4
      %s186 = scalar_lea.vmem %s0, %s185
      %s187 = smul.u32 64, %s18
      %p188 = scmp.lt.s32.totalorder %s17, 3
      %s189 = scalar_select %p188, %s17, 3
      %s190 = smul.addr %s189, 16
      %s191 = smul.addr %s190, 4
      %s192 = scalar_lea.vmem %s1, %s191
      %s193 = smul.u32 64, %s18
      %p194 = scmp.lt.s32.totalorder %s17, 3
      %s195 = scalar_select %p194, %s17, 3
      %p196 = scmp.lt.s32.totalorder %s193, 255
      %s197 = scalar_select %p196, %s193, 255
      %s198 = smul.addr %s195, 256
      %s199 = sadd.s32 %s197, %s198
      %s200 = smul.addr %s199, 8
      %s201 = scalar_lea.vmem %s2, %s200
      %s202 = smul.u32 64, %s18
      %v203 = vld [vmem:[%s186] sm:$0xf]
      %v204 = vld [vmem:[%s186 + $0x4] sm:$0xf]
      %v205 = vld [vmem:[%s186 + $0x8] sm:$0xf]
      %v206 = vld [vmem:[%s186 + $0xc] sm:$0xf]
      %v207 = vld [vmem:[%s186 + $0x10] sm:$0xf]
      %v208 = vld [vmem:[%s186 + $0x14] sm:$0xf]
      %v209 = vld [vmem:[%s186 + $0x18] sm:$0xf]
      %v210 = vld [vmem:[%s186 + $0x1c] sm:$0xf]
      %v211 = vld [vmem:[%s186 + $0x20] sm:$0xf]
      %v212 = vld [vmem:[%s186 + $0x24] sm:$0xf]
      %v213 = vld [vmem:[%s186 + $0x28] sm:$0xf]
      %v214 = vld [vmem:[%s186 + $0x2c] sm:$0xf]
      %v215 = vld [vmem:[%s186 + $0x30] sm:$0xf]
      %v216 = vld [vmem:[%s186 + $0x34] sm:$0xf]
      %v217 = vld [vmem:[%s186 + $0x38] sm:$0xf]
      %v218 = vld [vmem:[%s186 + $0x3c] sm:$0xf]
      %v219 = vld [vmem:[%s186 + $0x40] sm:$0xf]
      %v220 = vld [vmem:[%s186 + $0x44] sm:$0xf]
      %v221 = vld [vmem:[%s186 + $0x48] sm:$0xf]
      %v222 = vld [vmem:[%s186 + $0x4c] sm:$0xf]
      %v223 = vld [vmem:[%s186 + $0x50] sm:$0xf]
      %v224 = vld [vmem:[%s186 + $0x54] sm:$0xf]
      %v225 = vld [vmem:[%s186 + $0x58] sm:$0xf]
      %v226 = vld [vmem:[%s186 + $0x5c] sm:$0xf]
      %v227 = vld [vmem:[%s186 + $0x60] sm:$0xf]
      %v228 = vld [vmem:[%s186 + $0x64] sm:$0xf]
      %v229 = vld [vmem:[%s186 + $0x68] sm:$0xf]
      %v230 = vld [vmem:[%s186 + $0x6c] sm:$0xf]
      %v231 = vld [vmem:[%s186 + $0x70] sm:$0xf]
      %v232 = vld [vmem:[%s186 + $0x74] sm:$0xf]
      %v233 = vld [vmem:[%s186 + $0x78] sm:$0xf]
      %v234 = vld [vmem:[%s186 + $0x7c] sm:$0xf]
      %v235 = vld [vmem:[%s186 + $0x80] sm:$0xf]
      %v236 = vld [vmem:[%s186 + $0x84] sm:$0xf]
      %v237 = vld [vmem:[%s186 + $0x88] sm:$0xf]
      %v238 = vld [vmem:[%s186 + $0x8c] sm:$0xf]
      %v239 = vld [vmem:[%s186 + $0x90] sm:$0xf]
      %v240 = vld [vmem:[%s186 + $0x94] sm:$0xf]
      %v241 = vld [vmem:[%s186 + $0x98] sm:$0xf]
      %v242 = vld [vmem:[%s186 + $0x9c] sm:$0xf]
      %v243 = vld [vmem:[%s186 + $0xa0] sm:$0xf]
      %v244 = vld [vmem:[%s186 + $0xa4] sm:$0xf]
      %v245 = vld [vmem:[%s186 + $0xa8] sm:$0xf]
      %v246 = vld [vmem:[%s186 + $0xac] sm:$0xf]
      %v247 = vld [vmem:[%s186 + $0xb0] sm:$0xf]
      %v248 = vld [vmem:[%s186 + $0xb4] sm:$0xf]
      %v249 = vld [vmem:[%s186 + $0xb8] sm:$0xf]
      %v250 = vld [vmem:[%s186 + $0xbc] sm:$0xf]
      %v251 = vld [vmem:[%s186 + $0xc0] sm:$0xf]
      %v252 = vld [vmem:[%s186 + $0xc4] sm:$0xf]
      %v253 = vld [vmem:[%s186 + $0xc8] sm:$0xf]
      %v254 = vld [vmem:[%s186 + $0xcc] sm:$0xf]
      %v255 = vld [vmem:[%s186 + $0xd0] sm:$0xf]
      %v256 = vld [vmem:[%s186 + $0xd4] sm:$0xf]
      %v257 = vld [vmem:[%s186 + $0xd8] sm:$0xf]
      %v258 = vld [vmem:[%s186 + $0xdc] sm:$0xf]
      %v259 = vld [vmem:[%s186 + $0xe0] sm:$0xf]
      %v260 = vld [vmem:[%s186 + $0xe4] sm:$0xf]
      %v261 = vld [vmem:[%s186 + $0xe8] sm:$0xf]
      %v262 = vld [vmem:[%s186 + $0xec] sm:$0xf]
      %v263 = vld [vmem:[%s186 + $0xf0] sm:$0xf]
      %v264 = vld [vmem:[%s186 + $0xf4] sm:$0xf]
      %v265 = vld [vmem:[%s186 + $0xf8] sm:$0xf]
      %v266 = vld [vmem:[%s186 + $0xfc] sm:$0xf]
      %v267 = vld [vmem:[%s192] sm:$0xf]
      %v268 = vld [vmem:[%s192 + $0x4] sm:$0xf]
      %v269 = vld [vmem:[%s192 + $0x8] sm:$0xf]
      %v270 = vld [vmem:[%s192 + $0xc] sm:$0xf]
      %v271 = vld [vmem:[%s192 + $0x10] sm:$0xf]
      %v272 = vld [vmem:[%s192 + $0x14] sm:$0xf]
      %v273 = vld [vmem:[%s192 + $0x18] sm:$0xf]
      %v274 = vld [vmem:[%s192 + $0x1c] sm:$0xf]
      %v275 = vld [vmem:[%s192 + $0x20] sm:$0xf]
      %v276 = vld [vmem:[%s192 + $0x24] sm:$0xf]
      %v277 = vld [vmem:[%s192 + $0x28] sm:$0xf]
      %v278 = vld [vmem:[%s192 + $0x2c] sm:$0xf]
      %v279 = vld [vmem:[%s192 + $0x30] sm:$0xf]
      %v280 = vld [vmem:[%s192 + $0x34] sm:$0xf]
      %v281 = vld [vmem:[%s192 + $0x38] sm:$0xf]
      %v282 = vld [vmem:[%s192 + $0x3c] sm:$0xf]
      %v347 = vunpack.c.l.b16 %v203
      %v348 = vunpack.c.l.b16 %v204
      %v349 = vunpack.c.l.b16 %v205
      %v350 = vunpack.c.l.b16 %v206
      %v351 = vunpack.c.l.b16 %v207
      %v352 = vunpack.c.l.b16 %v208
      %v353 = vunpack.c.l.b16 %v209
      %v354 = vunpack.c.l.b16 %v210
      %v355 = vunpack.c.l.b16 %v211
      %v356 = vunpack.c.l.b16 %v212
      %v357 = vunpack.c.l.b16 %v213
      %v358 = vunpack.c.l.b16 %v214
      %v359 = vunpack.c.l.b16 %v215
      %v360 = vunpack.c.l.b16 %v216
      %v361 = vunpack.c.l.b16 %v217
      %v362 = vunpack.c.l.b16 %v218
      %v363 = vunpack.c.l.b16 %v219
      %v364 = vunpack.c.l.b16 %v220
      %v365 = vunpack.c.l.b16 %v221
      %v366 = vunpack.c.l.b16 %v222
      %v367 = vunpack.c.l.b16 %v223
      %v368 = vunpack.c.l.b16 %v224
      %v369 = vunpack.c.l.b16 %v225
      %v370 = vunpack.c.l.b16 %v226
      %v371 = vunpack.c.l.b16 %v227
      %v372 = vunpack.c.l.b16 %v228
      %v373 = vunpack.c.l.b16 %v229
      %v374 = vunpack.c.l.b16 %v230
      %v375 = vunpack.c.l.b16 %v231
      %v376 = vunpack.c.l.b16 %v232
      %v377 = vunpack.c.l.b16 %v233
      %v378 = vunpack.c.l.b16 %v234
      %v379 = vunpack.c.l.b16 %v235
      %v380 = vunpack.c.l.b16 %v236
      %v381 = vunpack.c.l.b16 %v237
      %v382 = vunpack.c.l.b16 %v238
      %v383 = vunpack.c.l.b16 %v239
      %v384 = vunpack.c.l.b16 %v240
      %v385 = vunpack.c.l.b16 %v241
      %v386 = vunpack.c.l.b16 %v242
      %v387 = vunpack.c.l.b16 %v243
      %v388 = vunpack.c.l.b16 %v244
      %v389 = vunpack.c.l.b16 %v245
      %v390 = vunpack.c.l.b16 %v246
      %v391 = vunpack.c.l.b16 %v247
      %v392 = vunpack.c.l.b16 %v248
      %v393 = vunpack.c.l.b16 %v249
      %v394 = vunpack.c.l.b16 %v250
      %v395 = vunpack.c.l.b16 %v251
      %v396 = vunpack.c.l.b16 %v252
      %v397 = vunpack.c.l.b16 %v253
      %v398 = vunpack.c.l.b16 %v254
      %v399 = vunpack.c.l.b16 %v255
      %v400 = vunpack.c.l.b16 %v256
      %v401 = vunpack.c.l.b16 %v257
      %v402 = vunpack.c.l.b16 %v258
      %v403 = vunpack.c.l.b16 %v259
      %v404 = vunpack.c.l.b16 %v260
      %v405 = vunpack.c.l.b16 %v261
      %v406 = vunpack.c.l.b16 %v262
      %v407 = vunpack.c.l.b16 %v263
      %v408 = vunpack.c.l.b16 %v264
      %v409 = vunpack.c.l.b16 %v265
      %v410 = vunpack.c.l.b16 %v266
      %v411 = vpack.c.b16 %v348, %v347
      %v412 = vpack.c.b16 %v350, %v349
      %v413 = vpack.c.b16 %v352, %v351
      %v414 = vpack.c.b16 %v354, %v353
      %v415 = vpack.c.b16 %v356, %v355
      %v416 = vpack.c.b16 %v358, %v357
      %v417 = vpack.c.b16 %v360, %v359
      %v418 = vpack.c.b16 %v362, %v361
      %v419 = vpack.c.b16 %v364, %v363
      %v420 = vpack.c.b16 %v366, %v365
      %v421 = vpack.c.b16 %v368, %v367
      %v422 = vpack.c.b16 %v370, %v369
      %v423 = vpack.c.b16 %v372, %v371
      %v424 = vpack.c.b16 %v374, %v373
      %v425 = vpack.c.b16 %v376, %v375
      %v426 = vpack.c.b16 %v378, %v377
      %v427 = vpack.c.b16 %v380, %v379
      %v428 = vpack.c.b16 %v382, %v381
      %v429 = vpack.c.b16 %v384, %v383
      %v430 = vpack.c.b16 %v386, %v385
      %v431 = vpack.c.b16 %v388, %v387
      %v432 = vpack.c.b16 %v390, %v389
      %v433 = vpack.c.b16 %v392, %v391
      %v434 = vpack.c.b16 %v394, %v393
      %v435 = vpack.c.b16 %v396, %v395
      %v436 = vpack.c.b16 %v398, %v397
      %v437 = vpack.c.b16 %v400, %v399
      %v438 = vpack.c.b16 %v402, %v401
      %v439 = vpack.c.b16 %v404, %v403
      %v440 = vpack.c.b16 %v406, %v405
      %v441 = vpack.c.b16 %v408, %v407
      %v442 = vpack.c.b16 %v410, %v409
      %v491 = vunpack.c.l.b16 %v267
      %v492 = vunpack.c.l.b16 %v268
      %v493 = vunpack.c.l.b16 %v269
      %v494 = vunpack.c.l.b16 %v270
      %v495 = vunpack.c.l.b16 %v271
      %v496 = vunpack.c.l.b16 %v272
      %v497 = vunpack.c.l.b16 %v273
      %v498 = vunpack.c.l.b16 %v274
      %v499 = vunpack.c.l.b16 %v275
      %v500 = vunpack.c.l.b16 %v276
      %v501 = vunpack.c.l.b16 %v277
      %v502 = vunpack.c.l.b16 %v278
      %v503 = vunpack.c.l.b16 %v279
      %v504 = vunpack.c.l.b16 %v280
      %v505 = vunpack.c.l.b16 %v281
      %v506 = vunpack.c.l.b16 %v282
      %v507 = vpack.c.b16 %v492, %v491
      %v508 = vpack.c.b16 %v494, %v493
      %v509 = vpack.c.b16 %v496, %v495
      %v510 = vpack.c.b16 %v498, %v497
      %v511 = vpack.c.b16 %v500, %v499
      %v512 = vpack.c.b16 %v502, %v501
      %v513 = vpack.c.b16 %v504, %v503
      %v514 = vpack.c.b16 %v506, %v505
      %523 = vmatpush.bf16.msra.mxu0 %v514
      %524 = vmatpush.bf16.msra.mxu0 %v513
      %525 = vmatpush.bf16.msra.mxu0 %v512
      %526 = vmatpush.bf16.msra.mxu0 %v511
      %527 = vmatpush.bf16.msra.mxu0 %v510
      %528 = vmatpush.bf16.msra.mxu0 %v509
      %529 = vmatpush.bf16.msra.mxu0 %v508
      %530 = vmatpush.bf16.msra.mxu0 %v507
      %531 = vmatmul.bf16.gmra.mxu0 %v411
      %v532 = vpop.f32.mrf.mxu0
      %v533 = vadd.f32 0.0, %v532
      %v534 = vpop.f32.mrf.mxu0
      %v535 = vadd.f32 0.0, %v534
      %536 = vmatmul.bf16.gmra.mxu0 %v412
      %v537 = vpop.f32.mrf.mxu0
      %v538 = vadd.f32 0.0, %v537
      %v539 = vpop.f32.mrf.mxu0
      %v540 = vadd.f32 0.0, %v539
      %541 = vmatmul.bf16.gmra.mxu0 %v413
      %v542 = vpop.f32.mrf.mxu0
      %v543 = vadd.f32 0.0, %v542
      %v544 = vpop.f32.mrf.mxu0
      %v545 = vadd.f32 0.0, %v544
      %546 = vmatmul.bf16.gmra.mxu0 %v414
      %v547 = vpop.f32.mrf.mxu0
      %v548 = vadd.f32 0.0, %v547
      %v549 = vpop.f32.mrf.mxu0
      %v550 = vadd.f32 0.0, %v549
      %551 = vmatmul.bf16.gmra.mxu0 %v415
      %v552 = vpop.f32.mrf.mxu0
      %v553 = vadd.f32 0.0, %v552
      %v554 = vpop.f32.mrf.mxu0
      %v555 = vadd.f32 0.0, %v554
      %556 = vmatmul.bf16.gmra.mxu0 %v416
      %v557 = vpop.f32.mrf.mxu0
      %v558 = vadd.f32 0.0, %v557
      %v559 = vpop.f32.mrf.mxu0
      %v560 = vadd.f32 0.0, %v559
      %561 = vmatmul.bf16.gmra.mxu0 %v417
      %v562 = vpop.f32.mrf.mxu0
      %v563 = vadd.f32 0.0, %v562
      %v564 = vpop.f32.mrf.mxu0
      %v565 = vadd.f32 0.0, %v564
      %566 = vmatmul.bf16.gmra.mxu0 %v418
      %v567 = vpop.f32.mrf.mxu0
      %v568 = vadd.f32 0.0, %v567
      %v569 = vpop.f32.mrf.mxu0
      %v570 = vadd.f32 0.0, %v569
      %571 = vmatmul.bf16.gmra.mxu0 %v419
      %v572 = vpop.f32.mrf.mxu0
      %v573 = vadd.f32 0.0, %v572
      %v574 = vpop.f32.mrf.mxu0
      %v575 = vadd.f32 0.0, %v574
      %576 = vmatmul.bf16.gmra.mxu0 %v420
      %v577 = vpop.f32.mrf.mxu0
      %v578 = vadd.f32 0.0, %v577
      %v579 = vpop.f32.mrf.mxu0
      %v580 = vadd.f32 0.0, %v579
      %581 = vmatmul.bf16.gmra.mxu0 %v421
      %v582 = vpop.f32.mrf.mxu0
      %v583 = vadd.f32 0.0, %v582
      %v584 = vpop.f32.mrf.mxu0
      %v585 = vadd.f32 0.0, %v584
      %586 = vmatmul.bf16.gmra.mxu0 %v422
      %v587 = vpop.f32.mrf.mxu0
      %v588 = vadd.f32 0.0, %v587
      %v589 = vpop.f32.mrf.mxu0
      %v590 = vadd.f32 0.0, %v589
      %591 = vmatmul.bf16.gmra.mxu0 %v423
      %v592 = vpop.f32.mrf.mxu0
      %v593 = vadd.f32 0.0, %v592
      %v594 = vpop.f32.mrf.mxu0
      %v595 = vadd.f32 0.0, %v594
      %596 = vmatmul.bf16.gmra.mxu0 %v424
      %v597 = vpop.f32.mrf.mxu0
      %v598 = vadd.f32 0.0, %v597
      %v599 = vpop.f32.mrf.mxu0
      %v600 = vadd.f32 0.0, %v599
      %601 = vmatmul.bf16.gmra.mxu0 %v425
      %v602 = vpop.f32.mrf.mxu0
      %v603 = vadd.f32 0.0, %v602
      %v604 = vpop.f32.mrf.mxu0
      %v605 = vadd.f32 0.0, %v604
      %606 = vmatmul.bf16.gmra.mxu0 %v426
      %v607 = vpop.f32.mrf.mxu0
      %v608 = vadd.f32 0.0, %v607
      %v609 = vpop.f32.mrf.mxu0
      %v610 = vadd.f32 0.0, %v609
      %611 = vmatmul.bf16.gmra.mxu0 %v427
      %v612 = vpop.f32.mrf.mxu0
      %v613 = vadd.f32 0.0, %v612
      %v614 = vpop.f32.mrf.mxu0
      %v615 = vadd.f32 0.0, %v614
      %616 = vmatmul.bf16.gmra.mxu0 %v428
      %v617 = vpop.f32.mrf.mxu0
      %v618 = vadd.f32 0.0, %v617
      %v619 = vpop.f32.mrf.mxu0
      %v620 = vadd.f32 0.0, %v619
      %621 = vmatmul.bf16.gmra.mxu0 %v429
      %v622 = vpop.f32.mrf.mxu0
      %v623 = vadd.f32 0.0, %v622
      %v624 = vpop.f32.mrf.mxu0
      %v625 = vadd.f32 0.0, %v624
      %626 = vmatmul.bf16.gmra.mxu0 %v430
      %v627 = vpop.f32.mrf.mxu0
      %v628 = vadd.f32 0.0, %v627
      %v629 = vpop.f32.mrf.mxu0
      %v630 = vadd.f32 0.0, %v629
      %631 = vmatmul.bf16.gmra.mxu0 %v431
      %v632 = vpop.f32.mrf.mxu0
      %v633 = vadd.f32 0.0, %v632
      %v634 = vpop.f32.mrf.mxu0
      %v635 = vadd.f32 0.0, %v634
      %636 = vmatmul.bf16.gmra.mxu0 %v432
      %v637 = vpop.f32.mrf.mxu0
      %v638 = vadd.f32 0.0, %v637
      %v639 = vpop.f32.mrf.mxu0
      %v640 = vadd.f32 0.0, %v639
      %641 = vmatmul.bf16.gmra.mxu0 %v433
      %v642 = vpop.f32.mrf.mxu0
      %v643 = vadd.f32 0.0, %v642
      %v644 = vpop.f32.mrf.mxu0
      %v645 = vadd.f32 0.0, %v644
      %646 = vmatmul.bf16.gmra.mxu0 %v434
      %v647 = vpop.f32.mrf.mxu0
      %v648 = vadd.f32 0.0, %v647
      %v649 = vpop.f32.mrf.mxu0
      %v650 = vadd.f32 0.0, %v649
      %651 = vmatmul.bf16.gmra.mxu0 %v435
      %v652 = vpop.f32.mrf.mxu0
      %v653 = vadd.f32 0.0, %v652
      %v654 = vpop.f32.mrf.mxu0
      %v655 = vadd.f32 0.0, %v654
      %656 = vmatmul.bf16.gmra.mxu0 %v436
      %v657 = vpop.f32.mrf.mxu0
      %v658 = vadd.f32 0.0, %v657
      %v659 = vpop.f32.mrf.mxu0
      %v660 = vadd.f32 0.0, %v659
      %661 = vmatmul.bf16.gmra.mxu0 %v437
      %v662 = vpop.f32.mrf.mxu0
      %v663 = vadd.f32 0.0, %v662
      %v664 = vpop.f32.mrf.mxu0
      %v665 = vadd.f32 0.0, %v664
      %666 = vmatmul.bf16.gmra.mxu0 %v438
      %v667 = vpop.f32.mrf.mxu0
      %v668 = vadd.f32 0.0, %v667
      %v669 = vpop.f32.mrf.mxu0
      %v670 = vadd.f32 0.0, %v669
      %671 = vmatmul.bf16.gmra.mxu0 %v439
      %v672 = vpop.f32.mrf.mxu0
      %v673 = vadd.f32 0.0, %v672
      %v674 = vpop.f32.mrf.mxu0
      %v675 = vadd.f32 0.0, %v674
      %676 = vmatmul.bf16.gmra.mxu0 %v440
      %v677 = vpop.f32.mrf.mxu0
      %v678 = vadd.f32 0.0, %v677
      %v679 = vpop.f32.mrf.mxu0
      %v680 = vadd.f32 0.0, %v679
      %681 = vmatmul.bf16.gmra.mxu0 %v441
      %v682 = vpop.f32.mrf.mxu0
      %v683 = vadd.f32 0.0, %v682
      %v684 = vpop.f32.mrf.mxu0
      %v685 = vadd.f32 0.0, %v684
      %686 = vmatmul.bf16.gmra.mxu0 %v442
      %v687 = vpop.f32.mrf.mxu0
      %v688 = vadd.f32 0.0, %v687
      %v689 = vpop.f32.mrf.mxu0
      %v690 = vadd.f32 0.0, %v689
      %691 = vdwg.mxu0
      %v692 = vtanh.pop %v533
      %v693 = vtanh.pop %v535
      %v694 = vtanh.pop %v538
      %v695 = vtanh.pop %v540
      %v696 = vtanh.pop %v543
      %v697 = vtanh.pop %v545
      %v698 = vtanh.pop %v548
      %v699 = vtanh.pop %v550
      %v700 = vtanh.pop %v553
      %v701 = vtanh.pop %v555
      %v702 = vtanh.pop %v558
      %v703 = vtanh.pop %v560
      %v704 = vtanh.pop %v563
      %v705 = vtanh.pop %v565
      %v706 = vtanh.pop %v568
      %v707 = vtanh.pop %v570
      %v708 = vtanh.pop %v573
      %v709 = vtanh.pop %v575
      %v710 = vtanh.pop %v578
      %v711 = vtanh.pop %v580
      %v712 = vtanh.pop %v583
      %v713 = vtanh.pop %v585
      %v714 = vtanh.pop %v588
      %v715 = vtanh.pop %v590
      %v716 = vtanh.pop %v593
      %v717 = vtanh.pop %v595
      %v718 = vtanh.pop %v598
      %v719 = vtanh.pop %v600
      %v720 = vtanh.pop %v603
      %v721 = vtanh.pop %v605
      %v722 = vtanh.pop %v608
      %v723 = vtanh.pop %v610
      %v724 = vtanh.pop %v613
      %v725 = vtanh.pop %v615
      %v726 = vtanh.pop %v618
      %v727 = vtanh.pop %v620
      %v728 = vtanh.pop %v623
      %v729 = vtanh.pop %v625
      %v730 = vtanh.pop %v628
      %v731 = vtanh.pop %v630
      %v732 = vtanh.pop %v633
      %v733 = vtanh.pop %v635
      %v734 = vtanh.pop %v638
      %v735 = vtanh.pop %v640
      %v736 = vtanh.pop %v643
      %v737 = vtanh.pop %v645
      %v738 = vtanh.pop %v648
      %v739 = vtanh.pop %v650
      %v740 = vtanh.pop %v653
      %v741 = vtanh.pop %v655
      %v742 = vtanh.pop %v658
      %v743 = vtanh.pop %v660
      %v744 = vtanh.pop %v663
      %v745 = vtanh.pop %v665
      %v746 = vtanh.pop %v668
      %v747 = vtanh.pop %v670
      %v748 = vtanh.pop %v673
      %v749 = vtanh.pop %v675
      %v750 = vtanh.pop %v678
      %v751 = vtanh.pop %v680
      %v752 = vtanh.pop %v683
      %v753 = vtanh.pop %v685
      %v754 = vtanh.pop %v688
      %v755 = vtanh.pop %v690
      %vm756 = vcmask 23552
      %757 = vst.msk [vmem:[%s201] sm:$0xff] %vm756, %v692
      %758 = vst.msk [vmem:[%s201 + $0x8] sm:$0xff] %vm756, %v693
      %759 = vst.msk [vmem:[%s201 + $0x10] sm:$0xff] %vm756, %v694
      %760 = vst.msk [vmem:[%s201 + $0x18] sm:$0xff] %vm756, %v695
      %761 = vst.msk [vmem:[%s201 + $0x20] sm:$0xff] %vm756, %v696
      %762 = vst.msk [vmem:[%s201 + $0x28] sm:$0xff] %vm756, %v697
      %763 = vst.msk [vmem:[%s201 + $0x30] sm:$0xff] %vm756, %v698
      %764 = vst.msk [vmem:[%s201 + $0x38] sm:$0xff] %vm756, %v699
      %765 = vst.msk [vmem:[%s201 + $0x40] sm:$0xff] %vm756, %v700
      %766 = vst.msk [vmem:[%s201 + $0x48] sm:$0xff] %vm756, %v701
      %767 = vst.msk [vmem:[%s201 + $0x50] sm:$0xff] %vm756, %v702
      %768 = vst.msk [vmem:[%s201 + $0x58] sm:$0xff] %vm756, %v703
      %769 = vst.msk [vmem:[%s201 + $0x60] sm:$0xff] %vm756, %v704
      %770 = vst.msk [vmem:[%s201 + $0x68] sm:$0xff] %vm756, %v705
      %771 = vst.msk [vmem:[%s201 + $0x70] sm:$0xff] %vm756, %v706
      %772 = vst.msk [vmem:[%s201 + $0x78] sm:$0xff] %vm756, %v707
      %773 = vst.msk [vmem:[%s201 + $0x80] sm:$0xff] %vm756, %v708
      %774 = vst.msk [vmem:[%s201 + $0x88] sm:$0xff] %vm756, %v709
      %775 = vst.msk [vmem:[%s201 + $0x90] sm:$0xff] %vm756, %v710
      %776 = vst.msk [vmem:[%s201 + $0x98] sm:$0xff] %vm756, %v711
      %777 = vst.msk [vmem:[%s201 + $0xa0] sm:$0xff] %vm756, %v712
      %778 = vst.msk [vmem:[%s201 + $0xa8] sm:$0xff] %vm756, %v713
      %779 = vst.msk [vmem:[%s201 + $0xb0] sm:$0xff] %vm756, %v714
      %780 = vst.msk [vmem:[%s201 + $0xb8] sm:$0xff] %vm756, %v715
      %781 = vst.msk [vmem:[%s201 + $0xc0] sm:$0xff] %vm756, %v716
      %782 = vst.msk [vmem:[%s201 + $0xc8] sm:$0xff] %vm756, %v717
      %783 = vst.msk [vmem:[%s201 + $0xd0] sm:$0xff] %vm756, %v718
      %784 = vst.msk [vmem:[%s201 + $0xd8] sm:$0xff] %vm756, %v719
      %785 = vst.msk [vmem:[%s201 + $0xe0] sm:$0xff] %vm756, %v720
      %786 = vst.msk [vmem:[%s201 + $0xe8] sm:$0xff] %vm756, %v721
      %787 = vst.msk [vmem:[%s201 + $0xf0] sm:$0xff] %vm756, %v722
      %788 = vst.msk [vmem:[%s201 + $0xf8] sm:$0xff] %vm756, %v723
      %789 = vst.msk [vmem:[%s201 + $0x100] sm:$0xff] %vm756, %v724
      %790 = vst.msk [vmem:[%s201 + $0x108] sm:$0xff] %vm756, %v725
      %791 = vst.msk [vmem:[%s201 + $0x110] sm:$0xff] %vm756, %v726
      %792 = vst.msk [vmem:[%s201 + $0x118] sm:$0xff] %vm756, %v727
      %793 = vst.msk [vmem:[%s201 + $0x120] sm:$0xff] %vm756, %v728
      %794 = vst.msk [vmem:[%s201 + $0x128] sm:$0xff] %vm756, %v729
      %795 = vst.msk [vmem:[%s201 + $0x130] sm:$0xff] %vm756, %v730
      %796 = vst.msk [vmem:[%s201 + $0x138] sm:$0xff] %vm756, %v731
      %797 = vst.msk [vmem:[%s201 + $0x140] sm:$0xff] %vm756, %v732
      %798 = vst.msk [vmem:[%s201 + $0x148] sm:$0xff] %vm756, %v733
      %799 = vst.msk [vmem:[%s201 + $0x150] sm:$0xff] %vm756, %v734
      %800 = vst.msk [vmem:[%s201 + $0x158] sm:$0xff] %vm756, %v735
      %801 = vst.msk [vmem:[%s201 + $0x160] sm:$0xff] %vm756, %v736
      %802 = vst.msk [vmem:[%s201 + $0x168] sm:$0xff] %vm756, %v737
      %803 = vst.msk [vmem:[%s201 + $0x170] sm:$0xff] %vm756, %v738
      %804 = vst.msk [vmem:[%s201 + $0x178] sm:$0xff] %vm756, %v739
      %805 = vst.msk [vmem:[%s201 + $0x180] sm:$0xff] %vm756, %v740
      %806 = vst.msk [vmem:[%s201 + $0x188] sm:$0xff] %vm756, %v741
      %807 = vst.msk [vmem:[%s201 + $0x190] sm:$0xff] %vm756, %v742
      %808 = vst.msk [vmem:[%s201 + $0x198] sm:$0xff] %vm756, %v743
      %809 = vst.msk [vmem:[%s201 + $0x1a0] sm:$0xff] %vm756, %v744
      %810 = vst.msk [vmem:[%s201 + $0x1a8] sm:$0xff] %vm756, %v745
      %811 = vst.msk [vmem:[%s201 + $0x1b0] sm:$0xff] %vm756, %v746
      %812 = vst.msk [vmem:[%s201 + $0x1b8] sm:$0xff] %vm756, %v747
      %813 = vst.msk [vmem:[%s201 + $0x1c0] sm:$0xff] %vm756, %v748
      %814 = vst.msk [vmem:[%s201 + $0x1c8] sm:$0xff] %vm756, %v749
      %815 = vst.msk [vmem:[%s201 + $0x1d0] sm:$0xff] %vm756, %v750
      %816 = vst.msk [vmem:[%s201 + $0x1d8] sm:$0xff] %vm756, %v751
      %817 = vst.msk [vmem:[%s201 + $0x1e0] sm:$0xff] %vm756, %v752
      %818 = vst.msk [vmem:[%s201 + $0x1e8] sm:$0xff] %vm756, %v753
      %819 = vst.msk [vmem:[%s201 + $0x1f0] sm:$0xff] %vm756, %v754
      %820 = vst.msk [vmem:[%s201 + $0x1f8] sm:$0xff] %vm756, %v755
      %s821 = smul.u32 64, %s18
      %p822 = scmp.lt.s32.totalorder %s17, 3
      %s823 = scalar_select %p822, %s17, 3
      %p824 = scmp.lt.s32.totalorder %s821, 255
      %s825 = scalar_select %p824, %s821, 255
      %s826 = smul.addr %s823, 256
      %s827 = sadd.s32 %s825, %s826
      %s828 = smul.addr %s827, 8
      %s829 = scalar_lea.vmem %s2, %s828
      // Predicated region
      $region29: #{frame_generator_forward.9} parent=27 // pred_check
        %p830 = pneg %p99
      $region30: #{frame_generator_forward.9} parent=27 // pred_check_branch
        %832 = sbr.rel (%p830) target = $region32
      $region31: #{frame_generator_forward.9} parent=27 // pred_region
        %s833 = smul.u32 64, %s18
      $region32: #{frame_generator_forward.9} parent=27 // pred_fallthru
        _
    $region28: #{frame_generator_forward.9} parent=5 // pred_fallthru
      _
    %p834 = scmp.le.s32.totalorder 2, %s8
    // Predicated region
    $region33: #{frame_generator_forward.9} parent=5 // pred_check
      %p835 = pneg %p834
    $region34: #{frame_generator_forward.9} parent=5 // pred_check_branch
      %837 = sbr.rel (%p835) target = $region36
    $region35: #{frame_generator_forward.9} parent=5 // pred_region
      %s838 = ssub.s32 %s8, 2
      // Predicated region
      $region37: #{frame_generator_forward.9} parent=35 // pred_check
        %p839 = pneg %p105
      $region38: #{frame_generator_forward.9} parent=35 // pred_check_branch
        %841 = sbr.rel (%p839) target = $region40
      $region39: #{frame_generator_forward.9} parent=35 // pred_region
        %s842 = smul.u32 64, %s20
        %p843 = scmp.lt.s32.totalorder %s19, 3
        %s844 = scalar_select %p843, %s19, 3
        %p845 = scmp.lt.s32.totalorder %s842, 255
        %s846 = scalar_select %p845, %s842, 255
        %s847 = smul.addr %s844, 256
        %s848 = sadd.s32 %s846, %s847
        %s849 = smul.addr %s848, 8
        %s850 = scalar_lea.vmem %s2, %s849
      $region40: #{frame_generator_forward.9} parent=35 // pred_fallthru
        _
    $region36: #{frame_generator_forward.9} parent=5 // pred_fallthru
      _
  $region6: #{frame_generator_forward.9} parent=0 // loop_footer
    %s12 = sadd.s32 1, %s8
  $region7: #{frame_generator_forward.9} parent=0 // loop_footer_branch
    %7 = sbr.rel target = $region3
  $region8: #{frame_generator_forward.9} parent=0 // loop_exit
    _

</llo_original>
